<compile_context>
chip_gen: v7x
topology: tpu7x:2x2x1
jax: 0.10.0
libtpu: 0.0.40
codegen_flags: <defaults>
</compile_context>

<pallas_src>
import jax
import jax.numpy as jnp
from jax import lax
from jax.experimental import pallas as pl
from jax.experimental.pallas import tpu as pltpu


def _logsigmoid(x):
    # Numerically stable log(sigmoid(x)) = min(x, 0) - log1p(exp(-|x|))
    return jnp.minimum(x, 0.0) - jnp.log1p(jnp.exp(-jnp.abs(x)))


def _sgns_kernel(ids_ref, table_ref, out_ref):
    """One grid step = block_b examples, fully vectorized (no per-row loops).

    ids_ref   : VMEM (R, 4) int32, R = block_b * K (K = n_near + n_neg context rows / example)
                lanes: [ctx_word_id, center_word_id, sign(+1/-1), local_example_idx]
    table_ref : VMEM (V_pad, D_pad) f32 -- full (padded) embedding table, constant block.
    out_ref   : VMEM (1, 1, block_b) f32 -- per-example loss, lane-major.
    """
    r = ids_ref.shape[0]
    v_pad = table_ref.shape[0]
    block_b = out_ref.shape[-1]

    ids = ids_ref[...]                                   # (R, 4) int32
    ctx_id = ids[:, 0:1]                                 # (R, 1)
    cent_id = ids[:, 1:2]                                # (R, 1)
    sgn = ids[:, 2:3].astype(jnp.float32)                # (R, 1)  +1 near / -1 neg
    loc = ids[:, 3:4]                                    # (R, 1)  example index within block

    # ---- one-hot gather on the MXU (replaces the serialized scalar row gather) ----
    lane_v = lax.broadcasted_iota(jnp.int32, (r, v_pad), 1)
    oh_ctx = (ctx_id == lane_v).astype(jnp.float32)      # (R, V_pad)
    oh_cent = jnp.where(cent_id == lane_v, sgn, 0.0)     # (R, V_pad), sign folded in

    table = table_ref[...]                               # (V_pad, D_pad) f32
    g_ctx = jnp.dot(oh_ctx, table, preferred_element_type=jnp.float32)    # (R, D_pad)
    g_cent = jnp.dot(oh_cent, table, preferred_element_type=jnp.float32)  # (R, D_pad)  +/- center

    # ---- scores (VPU multiply + lane reduce), logsigmoid on just R elements ----
    s = jnp.sum(g_ctx * g_cent, axis=1, keepdims=True)   # (R, 1) signed scores
    ls = _logsigmoid(s)                                  # (R, 1)

    # ---- segment-sum over each example's K rows -> lane-major (1, block_b) loss ----
    lane_b = lax.broadcasted_iota(jnp.int32, (r, block_b), 1)
    seg = (loc == lane_b).astype(jnp.float32)            # (R, block_b) membership mask
    loss_row = -jnp.sum(ls * seg, axis=0, keepdims=True)  # (1, block_b)

    out_ref[0, :, :] = loss_row


def sgns_loss(input_weight, input_wordids, near_wordids, neg_wordids, *, block_b=64):
    """Forward pass of EmbeddingModel: per-example SGNS loss, shape (B,)."""
    assert block_b % 8 == 0
    V, D = input_weight.shape
    B = input_wordids.shape[0]
    k_near = near_wordids.shape[1]
    k_neg = neg_wordids.shape[1]
    K = k_near + k_neg

    # Lane-aligned padding of the table (zeros -> dot products unchanged).
    v_pad = ((V + 127) // 128) * 128
    d_pad = ((D + 127) // 128) * 128
    table = input_weight.astype(jnp.float32)
    table = jnp.pad(table, ((0, v_pad - V), (0, d_pad - D)))

    # Per-row id/metadata stream: one row per (example, context-or-neg word).
    ctx = jnp.concatenate([near_wordids, neg_wordids], axis=1).astype(jnp.int32)   # (B, K)
    cent = jnp.broadcast_to(input_wordids.astype(jnp.int32)[:, None], (B, K))      # (B, K)
    sgn = jnp.concatenate([jnp.ones((B, k_near), jnp.int32),
                           jnp.full((B, k_neg), -1, jnp.int32)], axis=1)           # (B, K)

    b_pad = ((B + block_b - 1) // block_b) * block_b
    pad = b_pad - B
    if pad:
        ctx = jnp.pad(ctx, ((0, pad), (0, 0)))       # padded rows use id 0; sliced off below
        cent = jnp.pad(cent, ((0, pad), (0, 0)))
        sgn = jnp.pad(sgn, ((0, pad), (0, 0)), constant_values=1)
    loc = jnp.broadcast_to(
        (jnp.arange(b_pad, dtype=jnp.int32) % block_b)[:, None], (b_pad, K))

    ids = jnp.stack([ctx, cent, sgn, loc], axis=-1).reshape(b_pad * K, 4)           # (b_pad*K, 4)

    nblk = b_pad // block_b
    out = pl.pallas_call(
        _sgns_kernel,
        out_shape=jax.ShapeDtypeStruct((nblk, 1, block_b), jnp.float32),
        grid=(nblk,),
        in_specs=[
            pl.BlockSpec((block_b * K, 4), lambda i: (i, 0)),
            # Whole table as one VMEM block; constant block index -> DMA'd once, never re-fetched.
            pl.BlockSpec((v_pad, d_pad), lambda i: (0, 0)),
        ],
        out_specs=pl.BlockSpec((1, 1, block_b), lambda i: (i, 0, 0)),
        compiler_params=pltpu.CompilerParams(
            dimension_semantics=("parallel",),
            vmem_limit_bytes=32 * 1024 * 1024),
    )(ids, table)

    return out.reshape(b_pad)[:B]


if __name__ == "__main__":
    # Small, deterministic setup consistent with the module's __init__ (embedding_dim=100).
    common_vocab_size = 64
    embedding_dim = 100
    B = 200        # batch of center words (not a multiple of 64 -> exercises padding)
    K_near = 8     # positive context words per example
    K_neg = 16     # negative samples per example

    key = jax.random.PRNGKey(0)
    k_in, k_out, k_c, k_n, k_g = jax.random.split(key, 5)

    init_range = 6.0 / embedding_dim
    # torch.nn.Embedding weights, uniform in [-init_range, init_range]
    input_weight = jax.random.uniform(
        k_in, (common_vocab_size, embedding_dim), dtype=jnp.float32,
        minval=-init_range, maxval=init_range)
    # output_layer exists in the module but is unused in forward(); kept only for parity.
    output_weight = jax.random.uniform(
        k_out, (common_vocab_size, embedding_dim), dtype=jnp.float32,
        minval=-init_range, maxval=init_range)

    input_wordids = jax.random.randint(k_c, (B,), 0, common_vocab_size, dtype=jnp.int32)
    near_wordids = jax.random.randint(k_n, (B, K_near), 0, common_vocab_size, dtype=jnp.int32)
    neg_wordids = jax.random.randint(k_g, (B, K_neg), 0, common_vocab_size, dtype=jnp.int32)

    loss = sgns_loss(input_weight, input_wordids, near_wordids, neg_wordids)
    loss = jax.block_until_ready(loss)

    # Pure-JAX reference (same math as the PyTorch module, no Pallas).
    inp_e = input_weight[input_wordids]
    near_e = input_weight[near_wordids]
    neg_e = input_weight[neg_wordids]
    ls = lambda x: jnp.minimum(x, 0.0) - jnp.log1p(jnp.exp(-jnp.abs(x)))
    ref = -(jnp.sum(ls(jnp.einsum('bkd,bd->bk', near_e, inp_e)), axis=1)
            + jnp.sum(ls(jnp.einsum('bkd,bd->bk', neg_e, -inp_e)), axis=1))

    assert loss.shape == (B,)
    assert jnp.allclose(loss, ref, atol=1e-4, rtol=1e-4), (
        float(jnp.max(jnp.abs(loss - ref))))

    print("KERNEL_OK")
</pallas_src>

<mosaic_0001>
module attributes {stable_mosaic.version = 11 : i64} {
  func.func @_sgns_kernel(%arg0: i32, %arg1: memref<1536x4xi32, #tpu.memory_space<vmem>>, %arg2: memref<128x128xf32, #tpu.memory_space<vmem>>, %arg3: memref<1x1x64xf32, #tpu.memory_space<vmem>>) attributes {dimension_semantics = [#tpu.dimension_semantics<parallel>], iteration_bounds = array<i64: 4>, scalar_prefetch = 0 : i64, scratch_operands = 0 : i64, tpu.core_type = #tpu.core_type<tc>, window_params = [{transform_indices = @transform_0, window_bounds = array<i64: 1536, 4>}, {pipeline_mode = #tpu.pipeline_mode<synchronous>, transform_indices = @transform_1, window_bounds = array<i64: 128, 128>}, {transform_indices = @transform_2, window_bounds = array<i64: 1, 1, 64>}]} {
    %c0 = arith.constant 0 : index
    %c0_0 = arith.constant 0 : index
    %0 = vector.load %arg1[%c0, %c0_0] : memref<1536x4xi32, #tpu.memory_space<vmem>>, vector<1536x4xi32>
    %1 = vector.extract_strided_slice %0 {offsets = [0, 0], sizes = [1536, 1], strides = [1, 1]} : vector<1536x4xi32> to vector<1536x1xi32>
    %2 = vector.extract_strided_slice %0 {offsets = [0, 1], sizes = [1536, 1], strides = [1, 1]} : vector<1536x4xi32> to vector<1536x1xi32>
    %3 = vector.extract_strided_slice %0 {offsets = [0, 2], sizes = [1536, 1], strides = [1, 1]} : vector<1536x4xi32> to vector<1536x1xi32>
    %4 = arith.sitofp %3 : vector<1536x1xi32> to vector<1536x1xf32>
    %5 = vector.extract_strided_slice %0 {offsets = [0, 3], sizes = [1536, 1], strides = [1, 1]} : vector<1536x4xi32> to vector<1536x1xi32>
    %6 = tpu.iota {dimensions = array<i32: 1>} : vector<1536x128xi32>
    %7 = vector.broadcast %1 : vector<1536x1xi32> to vector<1536x128xi32>
    %8 = arith.cmpi eq, %7, %6 : vector<1536x128xi32>
    %9 = arith.extui %8 : vector<1536x128xi1> to vector<1536x128xi32>
    %10 = arith.sitofp %9 : vector<1536x128xi32> to vector<1536x128xf32>
    %11 = vector.broadcast %2 : vector<1536x1xi32> to vector<1536x128xi32>
    %12 = arith.cmpi eq, %11, %6 : vector<1536x128xi32>
    %cst = arith.constant 0.000000e+00 : f32
    %13 = vector.shape_cast %4 : vector<1536x1xf32> to vector<1536x1xf32>
    %14 = vector.broadcast %13 : vector<1536x1xf32> to vector<1536x128xf32>
    %15 = vector.broadcast %cst : f32 to vector<1536x128xf32>
    %16 = arith.select %12, %14, %15 : vector<1536x128xi1>, vector<1536x128xf32>
    %c0_1 = arith.constant 0 : index
    %c0_2 = arith.constant 0 : index
    %17 = vector.load %arg2[%c0_1, %c0_2] : memref<128x128xf32, #tpu.memory_space<vmem>>, vector<128x128xf32>
    %cst_3 = arith.constant dense<0.000000e+00> : vector<1536x128xf32>
    %18 = tpu.matmul %10, %17, %cst_3 {dimension_numbers = #tpu.dot_dimension_numbers<[1], [0], [0], [1], [0, 0, 1, 1], [], []>} : vector<1536x128xf32>, vector<128x128xf32>, vector<1536x128xf32> -> vector<1536x128xf32>
    %cst_4 = arith.constant dense<0.000000e+00> : vector<1536x128xf32>
    %19 = tpu.matmul %16, %17, %cst_4 {dimension_numbers = #tpu.dot_dimension_numbers<[1], [0], [0], [1], [0, 0, 1, 1], [], []>} : vector<1536x128xf32>, vector<128x128xf32>, vector<1536x128xf32> -> vector<1536x128xf32>
    %20 = arith.mulf %18, %19 : vector<1536x128xf32>
    %cst_5 = arith.constant dense<0.000000e+00> : vector<1536xf32>
    %21 = vector.multi_reduction <add>, %20, %cst_5 [1] : vector<1536x128xf32> to vector<1536xf32>
    %22 = vector.shape_cast %21 : vector<1536xf32> to vector<1536x1xf32>
    %cst_6 = arith.constant 0.000000e+00 : f32
    %23 = vector.broadcast %cst_6 : f32 to vector<1536x1xf32>
    %24 = arith.minimumf %22, %23 : vector<1536x1xf32>
    %25 = math.absf %22 : vector<1536x1xf32>
    %cst_7 = arith.constant 0.000000e+00 : f32
    %26 = vector.broadcast %cst_7 : f32 to vector<1536x1xf32>
    %27 = arith.subf %26, %25 : vector<1536x1xf32>
    %28 = math.exp %27 : vector<1536x1xf32>
    %29 = math.log1p %28 : vector<1536x1xf32>
    %30 = arith.subf %24, %29 : vector<1536x1xf32>
    %31 = tpu.iota {dimensions = array<i32: 1>} : vector<1536x64xi32>
    %32 = vector.broadcast %5 : vector<1536x1xi32> to vector<1536x64xi32>
    %33 = arith.cmpi eq, %32, %31 : vector<1536x64xi32>
    %34 = arith.extui %33 : vector<1536x64xi1> to vector<1536x64xi32>
    %35 = arith.sitofp %34 : vector<1536x64xi32> to vector<1536x64xf32>
    %36 = vector.broadcast %30 : vector<1536x1xf32> to vector<1536x64xf32>
    %37 = arith.mulf %36, %35 : vector<1536x64xf32>
    %cst_8 = arith.constant dense<0.000000e+00> : vector<64xf32>
    %38 = vector.multi_reduction <add>, %37, %cst_8 [0] : vector<1536x64xf32> to vector<64xf32>
    %39 = vector.shape_cast %38 : vector<64xf32> to vector<1x64xf32>
    %cst_9 = arith.constant 0.000000e+00 : f32
    %40 = vector.broadcast %cst_9 : f32 to vector<1x64xf32>
    %41 = arith.subf %40, %39 : vector<1x64xf32>
    %c0_10 = arith.constant 0 : index
    %c0_11 = arith.constant 0 : index
    %c0_12 = arith.constant 0 : index
    %42 = vector.load %arg3[%c0_10, %c0_11, %c0_12] : memref<1x1x64xf32, #tpu.memory_space<vmem>>, vector<1x1x64xf32>
    %43 = vector.shape_cast %42 : vector<1x1x64xf32> to vector<1x64xf32>
    %44 = vector.shape_cast %41 : vector<1x64xf32> to vector<1x1x64xf32>
    tpu.vector_store %arg3[%c0_10, %c0_11, %c0_12], %44 {strides = array<i32>} : memref<1x1x64xf32, #tpu.memory_space<vmem>>, vector<1x1x64xf32>,
    return
  }
  func.func @transform_0(%arg0: i32) -> (i32, i32) {
    %c0_i32 = arith.constant 0 : i32
    %c0_i32_0 = arith.constant 0 : i32
    return %arg0, %c0_i32 : i32, i32
  }
  func.func @transform_1(%arg0: i32) -> (i32, i32) {
    %c0_i32 = arith.constant 0 : i32
    %c0_i32_0 = arith.constant 0 : i32
    %c0_i32_1 = arith.constant 0 : i32
    return %c0_i32, %c0_i32_0 : i32, i32
  }
  func.func @transform_2(%arg0: i32) -> (i32, i32, i32) {
    %c0_i32 = arith.constant 0 : i32
    %c0_i32_0 = arith.constant 0 : i32
    %c0_i32_1 = arith.constant 0 : i32
    return %arg0, %c0_i32, %c0_i32_0 : i32, i32, i32
  }
}

</mosaic_0001>

<llo_original>
// kernel: tpu_custom_call.1
$region0: #{tpu_custom_call.1}
  #allocation0 [shape = 'u32[]', space=smem, size = 0x4, offset = 0x4, fixed_abs, tag = 'smem constant byte address 0x4 - core index']
  #allocation1 [shape = 'u32[144,128]{1,0:T(1,128)}', space=vmem, size = 0x12000, scoped, tag = 'internal scratch']
  %s0 = inlined_call_operand.vmem [shape: s32[6144,4], index: 0, kind: input, shape index: {}]
  %s1 = inlined_call_operand.vmem [shape: f32[128,128], index: 1, kind: input, shape index: {}]
  %s2 = inlined_call_operand.hbm [shape: f32[4,1,64], index: 2, kind: output, shape index: {}]
  %s3 = sld [smem:[#allocation0]]
  $region41: #{tpu_custom_call.1} parent=0
    _
  %s5 = ssub.s32 1, %s3
  %s6 = scalar_select 0, %s5, %s3
  $region1: #{tpu_custom_call.1} parent=0
    #allocation2 [shape = 'u8[1024]{0}', space=vmem, size = 0x400, scoped, tag = 'output window, operand 0']
    #allocation3 [shape = 's32[2]{0}', space=sflag, size = 0x8, scoped, tag = 'scoped memory for tpu_custom_call.1']
    %7 = vsyncpa [#allocation3], 0
    %s8 = scalar_lea.sflag [#allocation3], 1
    %9 = vsyncpa %s8, 0
    loop: start=0, step=1, limit=6
    $region2: #{tpu_custom_call.1} parent=1 // loop_pre_header
      _
    $region3: #{tpu_custom_call.1} parent=1 // loop_header
      %s11 = sphi 0, %s15
      %p12 = scmp.ge.s32.totalorder %s11, 6
      %s21 = sphi 0, %s23
      %s24 = sphi 0, %s21
      %s25 = sphi 0, %s24
      %s41 = sphi 0, %s25
      %s45 = sphi 0, %s45
      %s47 = sphi 0, %s45
      %s48 = sphi 0, %s47
      %s62 = sphi 0, %s48
      %s68 = sphi 0, %s70
      %s71 = sphi 0, %s68
      %s72 = sphi 0, %s71
      %s88 = sphi 0, %s72
    $region4: #{tpu_custom_call.1} parent=1 // loop_header_branch
      %14 = sbr.rel (%p12) target = $region8
    $region5: #{tpu_custom_call.1} parent=1 // loop_body
      %s16 = ssub.s32 %s11, 1
      %s17 = ssub.s32 %s11, 2
      %s18 = sadd.s32 %s11, 1
      %s19 = ssub.s32 %s11, %s18
      %p20 = scmp.eq.s32.totalorder %s19, 0
      %s22 = sadd.s32 %s21, 1
      %s23 = scalar_select %p20, %s21, %s22
      %p26 = pneg %p20
      %p27 = scmp.eq.s32.totalorder %s11, 3
      %p28 = por %p26, %p27
      %p29 = scmp.ne.s32.totalorder %s21, %s24
      %p30 = scmp.eq.s32.totalorder %s11, 0
      %p31 = por %p29, %p30
      %p32 = scmp.ne.s32.totalorder %s21, %s24
      %p33 = scmp.eq.s32.totalorder %s16, 3
      %p34 = por %p32, %p33
      %p35 = scmp.ne.s32.totalorder %s24, %s25
      %p36 = scmp.eq.s32.totalorder %s16, 0
      %p37 = por %p35, %p36
      %p38 = scmp.ne.s32.totalorder %s24, %s25
      %p39 = scmp.eq.s32.totalorder %s17, 3
      %p40 = por %p38, %p39
      %p42 = scmp.ne.s32.totalorder %s25, %s41
      %p43 = scmp.eq.s32.totalorder %s17, 0
      %p44 = por %p42, %p43
      %s46 = sadd.s32 %s45, 1
      %p49 = scmp.eq.s32.totalorder %s11, 3
      %p50 = scmp.ne.s32.totalorder %s45, %s47
      %p51 = scmp.eq.s32.totalorder %s11, 0
      %p52 = por %p50, %p51
      %p53 = scmp.ne.s32.totalorder %s45, %s47
      %p54 = scmp.eq.s32.totalorder %s16, 3
      %p55 = por %p53, %p54
      %p56 = scmp.ne.s32.totalorder %s47, %s48
      %p57 = scmp.eq.s32.totalorder %s16, 0
      %p58 = por %p56, %p57
      %p59 = scmp.ne.s32.totalorder %s47, %s48
      %p60 = scmp.eq.s32.totalorder %s17, 3
      %p61 = por %p59, %p60
      %p63 = scmp.ne.s32.totalorder %s48, %s62
      %p64 = scmp.eq.s32.totalorder %s17, 0
      %p65 = por %p63, %p64
      %s66 = ssub.s32 %s11, %s18
      %p67 = scmp.eq.s32.totalorder %s66, 0
      %s69 = sadd.s32 %s68, 1
      %s70 = scalar_select %p67, %s68, %s69
      %p73 = pneg %p67
      %p74 = scmp.eq.s32.totalorder %s11, 3
      %p75 = por %p73, %p74
      %p76 = scmp.ne.s32.totalorder %s68, %s71
      %p77 = scmp.eq.s32.totalorder %s11, 0
      %p78 = por %p76, %p77
      %p79 = scmp.ne.s32.totalorder %s68, %s71
      %p80 = scmp.eq.s32.totalorder %s16, 3
      %p81 = por %p79, %p80
      %p82 = scmp.ne.s32.totalorder %s71, %s72
      %p83 = scmp.eq.s32.totalorder %s16, 0
      %p84 = por %p82, %p83
      %p85 = scmp.ne.s32.totalorder %s71, %s72
      %p86 = scmp.eq.s32.totalorder %s17, 3
      %p87 = por %p85, %p86
      %p89 = scmp.ne.s32.totalorder %s72, %s88
      %p90 = scmp.eq.s32.totalorder %s17, 0
      %p91 = por %p89, %p90
      %p92 = scmp.le.s32.totalorder 1, %s11
      %p93 = scmp.lt.s32.totalorder %s11, 5
      %p94 = pnand %p92, %p93
      %p95 = pneg %p94
      // Predicated region
      $region9: #{tpu_custom_call.1} parent=5 // pred_check
        _
      $region10: #{tpu_custom_call.1} parent=5 // pred_check_branch
        %97 = sbr.rel (%p94) target = $region12
      $region11: #{tpu_custom_call.1} parent=5 // pred_region
        %s98 = ssub.s32 %s11, 1
        // Predicated region
        $region13: #{tpu_custom_call.1} parent=11 // pred_check
          %p99 = pneg %p58
        $region14: #{tpu_custom_call.1} parent=11 // pred_check_branch
          %101 = sbr.rel (%p99) target = $region16
        $region15: #{tpu_custom_call.1} parent=11 // pred_region
          _
        $region16: #{tpu_custom_call.1} parent=11 // pred_fallthru
          _
      $region12: #{tpu_custom_call.1} parent=5 // pred_fallthru
        _
      %p102 = scmp.lt.s32.totalorder %s11, 4
      // Predicated region
      $region17: #{tpu_custom_call.1} parent=5 // pred_check
        %p103 = pneg %p102
      $region18: #{tpu_custom_call.1} parent=5 // pred_check_branch
        %105 = sbr.rel (%p103) target = $region20
      $region19: #{tpu_custom_call.1} parent=5 // pred_region
        // Predicated region
        $region21: #{tpu_custom_call.1} parent=19 // pred_check
          %p106 = pneg %p31
        $region22: #{tpu_custom_call.1} parent=19 // pred_check_branch
          %108 = sbr.rel (%p106) target = $region24
        $region23: #{tpu_custom_call.1} parent=19 // pred_region
          %s109 = smul.u32 192, %s11
          %p110 = scmp.lt.s32.totalorder %s109, 767
          %s111 = scalar_select %p110, %s109, 767
          %s112 = smul.addr %s111, 8
          %s113 = scalar_lea.vmem %s0, %s112
          %s114 = smul.u32 192, %s11
        $region24: #{tpu_custom_call.1} parent=19 // pred_fallthru
          _
      $region20: #{tpu_custom_call.1} parent=5 // pred_fallthru
        _
      %p115 = scmp.le.s32.totalorder 1, %s11
      %p116 = scmp.lt.s32.totalorder %s11, 5
      %p117 = pnand %p115, %p116
      %p118 = pneg %p117
      // Predicated region
      $region25: #{tpu_custom_call.1} parent=5 // pred_check
        _
      $region26: #{tpu_custom_call.1} parent=5 // pred_check_branch
        %120 = sbr.rel (%p117) target = $region28
      $region27: #{tpu_custom_call.1} parent=5 // pred_region
        %s121 = ssub.s32 %s11, 1
        %s122 = smul.u32 192, %s16
        %p123 = scmp.lt.s32.totalorder %s122, 767
        %s124 = scalar_select %p123, %s122, 767
        %s125 = smul.addr %s124, 8
        %s126 = scalar_lea.vmem %s0, %s125
        %p127 = pneg %p37
        %p128 = pneg %p34
        %p129 = pneg %p58
        %p130 = pneg %p55
        %p131 = pneg %p84
        %p132 = pneg %p81
        %s133 = sand.u32 %s71, 1
        %s134 = scalar_lea.sflag [#allocation3], %s133
        %s135 = sand.u32 %s71, 1
        %s136 = scalar_lea.vmem [#allocation2], %s135
        %s137 = smul.u32 192, %s16
        %p138 = scmp.lt.s32.totalorder %s137, 767
        %s139 = scalar_select %p138, %s137, 767
        %s140 = smul.addr %s139, 8
        %s141 = scalar_lea.vmem %s0, %s140
        %s142 = smul.u32 192, %s16
        %v143 = vld [vmem:[%s141] sm:$0xff]
        %v144 = vld [vmem:[%s141 + $0x8] sm:$0xff]
        %v145 = vld [vmem:[%s141 + $0x10] sm:$0xff]
        %v146 = vld [vmem:[%s141 + $0x18] sm:$0xff]
        %v147 = vld [vmem:[%s141 + $0x20] sm:$0xff]
        %v148 = vld [vmem:[%s141 + $0x28] sm:$0xff]
        %v149 = vld [vmem:[%s141 + $0x30] sm:$0xff]
        %v150 = vld [vmem:[%s141 + $0x38] sm:$0xff]
        %v151 = vld [vmem:[%s141 + $0x40] sm:$0xff]
        %v152 = vld [vmem:[%s141 + $0x48] sm:$0xff]
        %v153 = vld [vmem:[%s141 + $0x50] sm:$0xff]
        %v154 = vld [vmem:[%s141 + $0x58] sm:$0xff]
        %v155 = vld [vmem:[%s141 + $0x60] sm:$0xff]
        %v156 = vld [vmem:[%s141 + $0x68] sm:$0xff]
        %v157 = vld [vmem:[%s141 + $0x70] sm:$0xff]
        %v158 = vld [vmem:[%s141 + $0x78] sm:$0xff]
        %v159 = vld [vmem:[%s141 + $0x80] sm:$0xff]
        %v160 = vld [vmem:[%s141 + $0x88] sm:$0xff]
        %v161 = vld [vmem:[%s141 + $0x90] sm:$0xff]
        %v162 = vld [vmem:[%s141 + $0x98] sm:$0xff]
        %v163 = vld [vmem:[%s141 + $0xa0] sm:$0xff]
        %v164 = vld [vmem:[%s141 + $0xa8] sm:$0xff]
        %v165 = vld [vmem:[%s141 + $0xb0] sm:$0xff]
        %v166 = vld [vmem:[%s141 + $0xb8] sm:$0xff]
        %v167 = vld [vmem:[%s141 + $0xc0] sm:$0xff]
        %v168 = vld [vmem:[%s141 + $0xc8] sm:$0xff]
        %v169 = vld [vmem:[%s141 + $0xd0] sm:$0xff]
        %v170 = vld [vmem:[%s141 + $0xd8] sm:$0xff]
        %v171 = vld [vmem:[%s141 + $0xe0] sm:$0xff]
        %v172 = vld [vmem:[%s141 + $0xe8] sm:$0xff]
        %v173 = vld [vmem:[%s141 + $0xf0] sm:$0xff]
        %v174 = vld [vmem:[%s141 + $0xf8] sm:$0xff]
        %v175 = vld [vmem:[%s141 + $0x100] sm:$0xff]
        %v176 = vld [vmem:[%s141 + $0x108] sm:$0xff]
        %v177 = vld [vmem:[%s141 + $0x110] sm:$0xff]
        %v178 = vld [vmem:[%s141 + $0x118] sm:$0xff]
        %v179 = vld [vmem:[%s141 + $0x120] sm:$0xff]
        %v180 = vld [vmem:[%s141 + $0x128] sm:$0xff]
        %v181 = vld [vmem:[%s141 + $0x130] sm:$0xff]
        %v182 = vld [vmem:[%s141 + $0x138] sm:$0xff]
        %v183 = vld [vmem:[%s141 + $0x140] sm:$0xff]
        %v184 = vld [vmem:[%s141 + $0x148] sm:$0xff]
        %v185 = vld [vmem:[%s141 + $0x150] sm:$0xff]
        %v186 = vld [vmem:[%s141 + $0x158] sm:$0xff]
        %v187 = vld [vmem:[%s141 + $0x160] sm:$0xff]
        %v188 = vld [vmem:[%s141 + $0x168] sm:$0xff]
        %v189 = vld [vmem:[%s141 + $0x170] sm:$0xff]
        %v190 = vld [vmem:[%s141 + $0x178] sm:$0xff]
        %v191 = vld [vmem:[%s141 + $0x180] sm:$0xff]
        %v192 = vld [vmem:[%s141 + $0x188] sm:$0xff]
        %v193 = vld [vmem:[%s141 + $0x190] sm:$0xff]
        %v194 = vld [vmem:[%s141 + $0x198] sm:$0xff]
        %v195 = vld [vmem:[%s141 + $0x1a0] sm:$0xff]
        %v196 = vld [vmem:[%s141 + $0x1a8] sm:$0xff]
        %v197 = vld [vmem:[%s141 + $0x1b0] sm:$0xff]
        %v198 = vld [vmem:[%s141 + $0x1b8] sm:$0xff]
        %v199 = vld [vmem:[%s141 + $0x1c0] sm:$0xff]
        %v200 = vld [vmem:[%s141 + $0x1c8] sm:$0xff]
        %v201 = vld [vmem:[%s141 + $0x1d0] sm:$0xff]
        %v202 = vld [vmem:[%s141 + $0x1d8] sm:$0xff]
        %v203 = vld [vmem:[%s141 + $0x1e0] sm:$0xff]
        %v204 = vld [vmem:[%s141 + $0x1e8] sm:$0xff]
        %v205 = vld [vmem:[%s141 + $0x1f0] sm:$0xff]
        %v206 = vld [vmem:[%s141 + $0x1f8] sm:$0xff]
        %v207 = vld [vmem:[%s141 + $0x200] sm:$0xff]
        %v208 = vld [vmem:[%s141 + $0x208] sm:$0xff]
        %v209 = vld [vmem:[%s141 + $0x210] sm:$0xff]
        %v210 = vld [vmem:[%s141 + $0x218] sm:$0xff]
        %v211 = vld [vmem:[%s141 + $0x220] sm:$0xff]
        %v212 = vld [vmem:[%s141 + $0x228] sm:$0xff]
        %v213 = vld [vmem:[%s141 + $0x230] sm:$0xff]
        %v214 = vld [vmem:[%s141 + $0x238] sm:$0xff]
        %v215 = vld [vmem:[%s141 + $0x240] sm:$0xff]
        %v216 = vld [vmem:[%s141 + $0x248] sm:$0xff]
        %v217 = vld [vmem:[%s141 + $0x250] sm:$0xff]
        %v218 = vld [vmem:[%s141 + $0x258] sm:$0xff]
        %v219 = vld [vmem:[%s141 + $0x260] sm:$0xff]
        %v220 = vld [vmem:[%s141 + $0x268] sm:$0xff]
        %v221 = vld [vmem:[%s141 + $0x270] sm:$0xff]
        %v222 = vld [vmem:[%s141 + $0x278] sm:$0xff]
        %v223 = vld [vmem:[%s141 + $0x280] sm:$0xff]
        %v224 = vld [vmem:[%s141 + $0x288] sm:$0xff]
        %v225 = vld [vmem:[%s141 + $0x290] sm:$0xff]
        %v226 = vld [vmem:[%s141 + $0x298] sm:$0xff]
        %v227 = vld [vmem:[%s141 + $0x2a0] sm:$0xff]
        %v228 = vld [vmem:[%s141 + $0x2a8] sm:$0xff]
        %v229 = vld [vmem:[%s141 + $0x2b0] sm:$0xff]
        %v230 = vld [vmem:[%s141 + $0x2b8] sm:$0xff]
        %v231 = vld [vmem:[%s141 + $0x2c0] sm:$0xff]
        %v232 = vld [vmem:[%s141 + $0x2c8] sm:$0xff]
        %v233 = vld [vmem:[%s141 + $0x2d0] sm:$0xff]
        %v234 = vld [vmem:[%s141 + $0x2d8] sm:$0xff]
        %v235 = vld [vmem:[%s141 + $0x2e0] sm:$0xff]
        %v236 = vld [vmem:[%s141 + $0x2e8] sm:$0xff]
        %v237 = vld [vmem:[%s141 + $0x2f0] sm:$0xff]
        %v238 = vld [vmem:[%s141 + $0x2f8] sm:$0xff]
        %v239 = vld [vmem:[%s141 + $0x300] sm:$0xff]
        %v240 = vld [vmem:[%s141 + $0x308] sm:$0xff]
        %v241 = vld [vmem:[%s141 + $0x310] sm:$0xff]
        %v242 = vld [vmem:[%s141 + $0x318] sm:$0xff]
        %v243 = vld [vmem:[%s141 + $0x320] sm:$0xff]
        %v244 = vld [vmem:[%s141 + $0x328] sm:$0xff]
        %v245 = vld [vmem:[%s141 + $0x330] sm:$0xff]
        %v246 = vld [vmem:[%s141 + $0x338] sm:$0xff]
        %v247 = vld [vmem:[%s141 + $0x340] sm:$0xff]
        %v248 = vld [vmem:[%s141 + $0x348] sm:$0xff]
        %v249 = vld [vmem:[%s141 + $0x350] sm:$0xff]
        %v250 = vld [vmem:[%s141 + $0x358] sm:$0xff]
        %v251 = vld [vmem:[%s141 + $0x360] sm:$0xff]
        %v252 = vld [vmem:[%s141 + $0x368] sm:$0xff]
        %v253 = vld [vmem:[%s141 + $0x370] sm:$0xff]
        %v254 = vld [vmem:[%s141 + $0x378] sm:$0xff]
        %v255 = vld [vmem:[%s141 + $0x380] sm:$0xff]
        %v256 = vld [vmem:[%s141 + $0x388] sm:$0xff]
        %v257 = vld [vmem:[%s141 + $0x390] sm:$0xff]
        %v258 = vld [vmem:[%s141 + $0x398] sm:$0xff]
        %v259 = vld [vmem:[%s141 + $0x3a0] sm:$0xff]
        %v260 = vld [vmem:[%s141 + $0x3a8] sm:$0xff]
        %v261 = vld [vmem:[%s141 + $0x3b0] sm:$0xff]
        %v262 = vld [vmem:[%s141 + $0x3b8] sm:$0xff]
        %v263 = vld [vmem:[%s141 + $0x3c0] sm:$0xff]
        %v264 = vld [vmem:[%s141 + $0x3c8] sm:$0xff]
        %v265 = vld [vmem:[%s141 + $0x3d0] sm:$0xff]
        %v266 = vld [vmem:[%s141 + $0x3d8] sm:$0xff]
        %v267 = vld [vmem:[%s141 + $0x3e0] sm:$0xff]
        %v268 = vld [vmem:[%s141 + $0x3e8] sm:$0xff]
        %v269 = vld [vmem:[%s141 + $0x3f0] sm:$0xff]
        %v270 = vld [vmem:[%s141 + $0x3f8] sm:$0xff]
        %v271 = vld [vmem:[%s141 + $0x400] sm:$0xff]
        %v272 = vld [vmem:[%s141 + $0x408] sm:$0xff]
        %v273 = vld [vmem:[%s141 + $0x410] sm:$0xff]
        %v274 = vld [vmem:[%s141 + $0x418] sm:$0xff]
        %v275 = vld [vmem:[%s141 + $0x420] sm:$0xff]
        %v276 = vld [vmem:[%s141 + $0x428] sm:$0xff]
        %v277 = vld [vmem:[%s141 + $0x430] sm:$0xff]
        %v278 = vld [vmem:[%s141 + $0x438] sm:$0xff]
        %v279 = vld [vmem:[%s141 + $0x440] sm:$0xff]
        %v280 = vld [vmem:[%s141 + $0x448] sm:$0xff]
        %v281 = vld [vmem:[%s141 + $0x450] sm:$0xff]
        %v282 = vld [vmem:[%s141 + $0x458] sm:$0xff]
        %v283 = vld [vmem:[%s141 + $0x460] sm:$0xff]
        %v284 = vld [vmem:[%s141 + $0x468] sm:$0xff]
        %v285 = vld [vmem:[%s141 + $0x470] sm:$0xff]
        %v286 = vld [vmem:[%s141 + $0x478] sm:$0xff]
        %v287 = vld [vmem:[%s141 + $0x480] sm:$0xff]
        %v288 = vld [vmem:[%s141 + $0x488] sm:$0xff]
        %v289 = vld [vmem:[%s141 + $0x490] sm:$0xff]
        %v290 = vld [vmem:[%s141 + $0x498] sm:$0xff]
        %v291 = vld [vmem:[%s141 + $0x4a0] sm:$0xff]
        %v292 = vld [vmem:[%s141 + $0x4a8] sm:$0xff]
        %v293 = vld [vmem:[%s141 + $0x4b0] sm:$0xff]
        %v294 = vld [vmem:[%s141 + $0x4b8] sm:$0xff]
        %v295 = vld [vmem:[%s141 + $0x4c0] sm:$0xff]
        %v296 = vld [vmem:[%s141 + $0x4c8] sm:$0xff]
        %v297 = vld [vmem:[%s141 + $0x4d0] sm:$0xff]
        %v298 = vld [vmem:[%s141 + $0x4d8] sm:$0xff]
        %v299 = vld [vmem:[%s141 + $0x4e0] sm:$0xff]
        %v300 = vld [vmem:[%s141 + $0x4e8] sm:$0xff]
        %v301 = vld [vmem:[%s141 + $0x4f0] sm:$0xff]
        %v302 = vld [vmem:[%s141 + $0x4f8] sm:$0xff]
        %v303 = vld [vmem:[%s141 + $0x500] sm:$0xff]
        %v304 = vld [vmem:[%s141 + $0x508] sm:$0xff]
        %v305 = vld [vmem:[%s141 + $0x510] sm:$0xff]
        %v306 = vld [vmem:[%s141 + $0x518] sm:$0xff]
        %v307 = vld [vmem:[%s141 + $0x520] sm:$0xff]
        %v308 = vld [vmem:[%s141 + $0x528] sm:$0xff]
        %v309 = vld [vmem:[%s141 + $0x530] sm:$0xff]
        %v310 = vld [vmem:[%s141 + $0x538] sm:$0xff]
        %v311 = vld [vmem:[%s141 + $0x540] sm:$0xff]
        %v312 = vld [vmem:[%s141 + $0x548] sm:$0xff]
        %v313 = vld [vmem:[%s141 + $0x550] sm:$0xff]
        %v314 = vld [vmem:[%s141 + $0x558] sm:$0xff]
        %v315 = vld [vmem:[%s141 + $0x560] sm:$0xff]
        %v316 = vld [vmem:[%s141 + $0x568] sm:$0xff]
        %v317 = vld [vmem:[%s141 + $0x570] sm:$0xff]
        %v318 = vld [vmem:[%s141 + $0x578] sm:$0xff]
        %v319 = vld [vmem:[%s141 + $0x580] sm:$0xff]
        %v320 = vld [vmem:[%s141 + $0x588] sm:$0xff]
        %v321 = vld [vmem:[%s141 + $0x590] sm:$0xff]
        %v322 = vld [vmem:[%s141 + $0x598] sm:$0xff]
        %v323 = vld [vmem:[%s141 + $0x5a0] sm:$0xff]
        %v324 = vld [vmem:[%s141 + $0x5a8] sm:$0xff]
        %v325 = vld [vmem:[%s141 + $0x5b0] sm:$0xff]
        %v326 = vld [vmem:[%s141 + $0x5b8] sm:$0xff]
        %v327 = vld [vmem:[%s141 + $0x5c0] sm:$0xff]
        %v328 = vld [vmem:[%s141 + $0x5c8] sm:$0xff]
        %v329 = vld [vmem:[%s141 + $0x5d0] sm:$0xff]
        %v330 = vld [vmem:[%s141 + $0x5d8] sm:$0xff]
        %v331 = vld [vmem:[%s141 + $0x5e0] sm:$0xff]
        %v332 = vld [vmem:[%s141 + $0x5e8] sm:$0xff]
        %v333 = vld [vmem:[%s141 + $0x5f0] sm:$0xff]
        %v334 = vld [vmem:[%s141 + $0x5f8] sm:$0xff]
        %v335 = vcvt.s32.f32 %v143
        %v336 = vcvt.s32.f32 %v144
        %v337 = vcvt.s32.f32 %v145
        %v338 = vcvt.s32.f32 %v146
        %v339 = vcvt.s32.f32 %v147
        %v340 = vcvt.s32.f32 %v148
        %v341 = vcvt.s32.f32 %v149
        %v342 = vcvt.s32.f32 %v150
        %v343 = vcvt.s32.f32 %v151
        %v344 = vcvt.s32.f32 %v152
        %v345 = vcvt.s32.f32 %v153
        %v346 = vcvt.s32.f32 %v154
        %v347 = vcvt.s32.f32 %v155
        %v348 = vcvt.s32.f32 %v156
        %v349 = vcvt.s32.f32 %v157
        %v350 = vcvt.s32.f32 %v158
        %v351 = vcvt.s32.f32 %v159
        %v352 = vcvt.s32.f32 %v160
        %v353 = vcvt.s32.f32 %v161
        %v354 = vcvt.s32.f32 %v162
        %v355 = vcvt.s32.f32 %v163
        %v356 = vcvt.s32.f32 %v164
        %v357 = vcvt.s32.f32 %v165
        %v358 = vcvt.s32.f32 %v166
        %v359 = vcvt.s32.f32 %v167
        %v360 = vcvt.s32.f32 %v168
        %v361 = vcvt.s32.f32 %v169
        %v362 = vcvt.s32.f32 %v170
        %v363 = vcvt.s32.f32 %v171
        %v364 = vcvt.s32.f32 %v172
        %v365 = vcvt.s32.f32 %v173
        %v366 = vcvt.s32.f32 %v174
        %v367 = vcvt.s32.f32 %v175
        %v368 = vcvt.s32.f32 %v176
        %v369 = vcvt.s32.f32 %v177
        %v370 = vcvt.s32.f32 %v178
        %v371 = vcvt.s32.f32 %v179
        %v372 = vcvt.s32.f32 %v180
        %v373 = vcvt.s32.f32 %v181
        %v374 = vcvt.s32.f32 %v182
        %v375 = vcvt.s32.f32 %v183
        %v376 = vcvt.s32.f32 %v184
        %v377 = vcvt.s32.f32 %v185
        %v378 = vcvt.s32.f32 %v186
        %v379 = vcvt.s32.f32 %v187
        %v380 = vcvt.s32.f32 %v188
        %v381 = vcvt.s32.f32 %v189
        %v382 = vcvt.s32.f32 %v190
        %v383 = vcvt.s32.f32 %v191
        %v384 = vcvt.s32.f32 %v192
        %v385 = vcvt.s32.f32 %v193
        %v386 = vcvt.s32.f32 %v194
        %v387 = vcvt.s32.f32 %v195
        %v388 = vcvt.s32.f32 %v196
        %v389 = vcvt.s32.f32 %v197
        %v390 = vcvt.s32.f32 %v198
        %v391 = vcvt.s32.f32 %v199
        %v392 = vcvt.s32.f32 %v200
        %v393 = vcvt.s32.f32 %v201
        %v394 = vcvt.s32.f32 %v202
        %v395 = vcvt.s32.f32 %v203
        %v396 = vcvt.s32.f32 %v204
        %v397 = vcvt.s32.f32 %v205
        %v398 = vcvt.s32.f32 %v206
        %v399 = vcvt.s32.f32 %v207
        %v400 = vcvt.s32.f32 %v208
        %v401 = vcvt.s32.f32 %v209
        %v402 = vcvt.s32.f32 %v210
        %v403 = vcvt.s32.f32 %v211
        %v404 = vcvt.s32.f32 %v212
        %v405 = vcvt.s32.f32 %v213
        %v406 = vcvt.s32.f32 %v214
        %v407 = vcvt.s32.f32 %v215
        %v408 = vcvt.s32.f32 %v216
        %v409 = vcvt.s32.f32 %v217
        %v410 = vcvt.s32.f32 %v218
        %v411 = vcvt.s32.f32 %v219
        %v412 = vcvt.s32.f32 %v220
        %v413 = vcvt.s32.f32 %v221
        %v414 = vcvt.s32.f32 %v222
        %v415 = vcvt.s32.f32 %v223
        %v416 = vcvt.s32.f32 %v224
        %v417 = vcvt.s32.f32 %v225
        %v418 = vcvt.s32.f32 %v226
        %v419 = vcvt.s32.f32 %v227
        %v420 = vcvt.s32.f32 %v228
        %v421 = vcvt.s32.f32 %v229
        %v422 = vcvt.s32.f32 %v230
        %v423 = vcvt.s32.f32 %v231
        %v424 = vcvt.s32.f32 %v232
        %v425 = vcvt.s32.f32 %v233
        %v426 = vcvt.s32.f32 %v234
        %v427 = vcvt.s32.f32 %v235
        %v428 = vcvt.s32.f32 %v236
        %v429 = vcvt.s32.f32 %v237
        %v430 = vcvt.s32.f32 %v238
        %v431 = vcvt.s32.f32 %v239
        %v432 = vcvt.s32.f32 %v240
        %v433 = vcvt.s32.f32 %v241
        %v434 = vcvt.s32.f32 %v242
        %v435 = vcvt.s32.f32 %v243
        %v436 = vcvt.s32.f32 %v244
        %v437 = vcvt.s32.f32 %v245
        %v438 = vcvt.s32.f32 %v246
        %v439 = vcvt.s32.f32 %v247
        %v440 = vcvt.s32.f32 %v248
        %v441 = vcvt.s32.f32 %v249
        %v442 = vcvt.s32.f32 %v250
        %v443 = vcvt.s32.f32 %v251
        %v444 = vcvt.s32.f32 %v252
        %v445 = vcvt.s32.f32 %v253
        %v446 = vcvt.s32.f32 %v254
        %v447 = vcvt.s32.f32 %v255
        %v448 = vcvt.s32.f32 %v256
        %v449 = vcvt.s32.f32 %v257
        %v450 = vcvt.s32.f32 %v258
        %v451 = vcvt.s32.f32 %v259
        %v452 = vcvt.s32.f32 %v260
        %v453 = vcvt.s32.f32 %v261
        %v454 = vcvt.s32.f32 %v262
        %v455 = vcvt.s32.f32 %v263
        %v456 = vcvt.s32.f32 %v264
        %v457 = vcvt.s32.f32 %v265
        %v458 = vcvt.s32.f32 %v266
        %v459 = vcvt.s32.f32 %v267
        %v460 = vcvt.s32.f32 %v268
        %v461 = vcvt.s32.f32 %v269
        %v462 = vcvt.s32.f32 %v270
        %v463 = vcvt.s32.f32 %v271
        %v464 = vcvt.s32.f32 %v272
        %v465 = vcvt.s32.f32 %v273
        %v466 = vcvt.s32.f32 %v274
        %v467 = vcvt.s32.f32 %v275
        %v468 = vcvt.s32.f32 %v276
        %v469 = vcvt.s32.f32 %v277
        %v470 = vcvt.s32.f32 %v278
        %v471 = vcvt.s32.f32 %v279
        %v472 = vcvt.s32.f32 %v280
        %v473 = vcvt.s32.f32 %v281
        %v474 = vcvt.s32.f32 %v282
        %v475 = vcvt.s32.f32 %v283
        %v476 = vcvt.s32.f32 %v284
        %v477 = vcvt.s32.f32 %v285
        %v478 = vcvt.s32.f32 %v286
        %v479 = vcvt.s32.f32 %v287
        %v480 = vcvt.s32.f32 %v288
        %v481 = vcvt.s32.f32 %v289
        %v482 = vcvt.s32.f32 %v290
        %v483 = vcvt.s32.f32 %v291
        %v484 = vcvt.s32.f32 %v292
        %v485 = vcvt.s32.f32 %v293
        %v486 = vcvt.s32.f32 %v294
        %v487 = vcvt.s32.f32 %v295
        %v488 = vcvt.s32.f32 %v296
        %v489 = vcvt.s32.f32 %v297
        %v490 = vcvt.s32.f32 %v298
        %v491 = vcvt.s32.f32 %v299
        %v492 = vcvt.s32.f32 %v300
        %v493 = vcvt.s32.f32 %v301
        %v494 = vcvt.s32.f32 %v302
        %v495 = vcvt.s32.f32 %v303
        %v496 = vcvt.s32.f32 %v304
        %v497 = vcvt.s32.f32 %v305
        %v498 = vcvt.s32.f32 %v306
        %v499 = vcvt.s32.f32 %v307
        %v500 = vcvt.s32.f32 %v308
        %v501 = vcvt.s32.f32 %v309
        %v502 = vcvt.s32.f32 %v310
        %v503 = vcvt.s32.f32 %v311
        %v504 = vcvt.s32.f32 %v312
        %v505 = vcvt.s32.f32 %v313
        %v506 = vcvt.s32.f32 %v314
        %v507 = vcvt.s32.f32 %v315
        %v508 = vcvt.s32.f32 %v316
        %v509 = vcvt.s32.f32 %v317
        %v510 = vcvt.s32.f32 %v318
        %v511 = vcvt.s32.f32 %v319
        %v512 = vcvt.s32.f32 %v320
        %v513 = vcvt.s32.f32 %v321
        %v514 = vcvt.s32.f32 %v322
        %v515 = vcvt.s32.f32 %v323
        %v516 = vcvt.s32.f32 %v324
        %v517 = vcvt.s32.f32 %v325
        %v518 = vcvt.s32.f32 %v326
        %v519 = vcvt.s32.f32 %v327
        %v520 = vcvt.s32.f32 %v328
        %v521 = vcvt.s32.f32 %v329
        %v522 = vcvt.s32.f32 %v330
        %v523 = vcvt.s32.f32 %v331
        %v524 = vcvt.s32.f32 %v332
        %v525 = vcvt.s32.f32 %v333
        %v526 = vcvt.s32.f32 %v334
        %v527 = vlaneseq
        %v528 = vand.u32 %v527, 127
        %529 = vset.pattern.permute.xlu0 0
        %530 = vperm.xlu0 %529, %v143
        %v531 = vpop.permute.xlu0 %530
        %532 = vset.pattern.permute.xlu0 0
        %533 = vperm.xlu0 %532, %v144
        %v534 = vpop.permute.xlu0 %533
        %535 = vset.pattern.permute.xlu0 0
        %536 = vperm.xlu0 %535, %v145
        %v537 = vpop.permute.xlu0 %536
        %538 = vset.pattern.permute.xlu0 0
        %539 = vperm.xlu0 %538, %v146
        %v540 = vpop.permute.xlu0 %539
        %541 = vset.pattern.permute.xlu0 0
        %542 = vperm.xlu0 %541, %v147
        %v543 = vpop.permute.xlu0 %542
        %544 = vset.pattern.permute.xlu0 0
        %545 = vperm.xlu0 %544, %v148
        %v546 = vpop.permute.xlu0 %545
        %547 = vset.pattern.permute.xlu0 0
        %548 = vperm.xlu0 %547, %v149
        %v549 = vpop.permute.xlu0 %548
        %550 = vset.pattern.permute.xlu0 0
        %551 = vperm.xlu0 %550, %v150
        %v552 = vpop.permute.xlu0 %551
        %553 = vset.pattern.permute.xlu0 0
        %554 = vperm.xlu0 %553, %v151
        %v555 = vpop.permute.xlu0 %554
        %556 = vset.pattern.permute.xlu0 0
        %557 = vperm.xlu0 %556, %v152
        %v558 = vpop.permute.xlu0 %557
        %559 = vset.pattern.permute.xlu0 0
        %560 = vperm.xlu0 %559, %v153
        %v561 = vpop.permute.xlu0 %560
        %562 = vset.pattern.permute.xlu0 0
        %563 = vperm.xlu0 %562, %v154
        %v564 = vpop.permute.xlu0 %563
        %565 = vset.pattern.permute.xlu0 0
        %566 = vperm.xlu0 %565, %v155
        %v567 = vpop.permute.xlu0 %566
        %568 = vset.pattern.permute.xlu0 0
        %569 = vperm.xlu0 %568, %v156
        %v570 = vpop.permute.xlu0 %569
        %571 = vset.pattern.permute.xlu0 0
        %572 = vperm.xlu0 %571, %v157
        %v573 = vpop.permute.xlu0 %572
        %574 = vset.pattern.permute.xlu0 0
        %575 = vperm.xlu0 %574, %v158
        %v576 = vpop.permute.xlu0 %575
        %577 = vset.pattern.permute.xlu0 0
        %578 = vperm.xlu0 %577, %v159
        %v579 = vpop.permute.xlu0 %578
        %580 = vset.pattern.permute.xlu0 0
        %581 = vperm.xlu0 %580, %v160
        %v582 = vpop.permute.xlu0 %581
        %583 = vset.pattern.permute.xlu0 0
        %584 = vperm.xlu0 %583, %v161
        %v585 = vpop.permute.xlu0 %584
        %586 = vset.pattern.permute.xlu0 0
        %587 = vperm.xlu0 %586, %v162
        %v588 = vpop.permute.xlu0 %587
        %589 = vset.pattern.permute.xlu0 0
        %590 = vperm.xlu0 %589, %v163
        %v591 = vpop.permute.xlu0 %590
        %592 = vset.pattern.permute.xlu0 0
        %593 = vperm.xlu0 %592, %v164
        %v594 = vpop.permute.xlu0 %593
        %595 = vset.pattern.permute.xlu0 0
        %596 = vperm.xlu0 %595, %v165
        %v597 = vpop.permute.xlu0 %596
        %598 = vset.pattern.permute.xlu0 0
        %599 = vperm.xlu0 %598, %v166
        %v600 = vpop.permute.xlu0 %599
        %601 = vset.pattern.permute.xlu0 0
        %602 = vperm.xlu0 %601, %v167
        %v603 = vpop.permute.xlu0 %602
        %604 = vset.pattern.permute.xlu0 0
        %605 = vperm.xlu0 %604, %v168
        %v606 = vpop.permute.xlu0 %605
        %607 = vset.pattern.permute.xlu0 0
        %608 = vperm.xlu0 %607, %v169
        %v609 = vpop.permute.xlu0 %608
        %610 = vset.pattern.permute.xlu0 0
        %611 = vperm.xlu0 %610, %v170
        %v612 = vpop.permute.xlu0 %611
        %613 = vset.pattern.permute.xlu0 0
        %614 = vperm.xlu0 %613, %v171
        %v615 = vpop.permute.xlu0 %614
        %616 = vset.pattern.permute.xlu0 0
        %617 = vperm.xlu0 %616, %v172
        %v618 = vpop.permute.xlu0 %617
        %619 = vset.pattern.permute.xlu0 0
        %620 = vperm.xlu0 %619, %v173
        %v621 = vpop.permute.xlu0 %620
        %622 = vset.pattern.permute.xlu0 0
        %623 = vperm.xlu0 %622, %v174
        %v624 = vpop.permute.xlu0 %623
        %625 = vset.pattern.permute.xlu0 0
        %626 = vperm.xlu0 %625, %v175
        %v627 = vpop.permute.xlu0 %626
        %628 = vset.pattern.permute.xlu0 0
        %629 = vperm.xlu0 %628, %v176
        %v630 = vpop.permute.xlu0 %629
        %631 = vset.pattern.permute.xlu0 0
        %632 = vperm.xlu0 %631, %v177
        %v633 = vpop.permute.xlu0 %632
        %634 = vset.pattern.permute.xlu0 0
        %635 = vperm.xlu0 %634, %v178
        %v636 = vpop.permute.xlu0 %635
        %637 = vset.pattern.permute.xlu0 0
        %638 = vperm.xlu0 %637, %v179
        %v639 = vpop.permute.xlu0 %638
        %640 = vset.pattern.permute.xlu0 0
        %641 = vperm.xlu0 %640, %v180
        %v642 = vpop.permute.xlu0 %641
        %643 = vset.pattern.permute.xlu0 0
        %644 = vperm.xlu0 %643, %v181
        %v645 = vpop.permute.xlu0 %644
        %646 = vset.pattern.permute.xlu0 0
        %647 = vperm.xlu0 %646, %v182
        %v648 = vpop.permute.xlu0 %647
        %649 = vset.pattern.permute.xlu0 0
        %650 = vperm.xlu0 %649, %v183
        %v651 = vpop.permute.xlu0 %650
        %652 = vset.pattern.permute.xlu0 0
        %653 = vperm.xlu0 %652, %v184
        %v654 = vpop.permute.xlu0 %653
        %655 = vset.pattern.permute.xlu0 0
        %656 = vperm.xlu0 %655, %v185
        %v657 = vpop.permute.xlu0 %656
        %658 = vset.pattern.permute.xlu0 0
        %659 = vperm.xlu0 %658, %v186
        %v660 = vpop.permute.xlu0 %659
        %661 = vset.pattern.permute.xlu0 0
        %662 = vperm.xlu0 %661, %v187
        %v663 = vpop.permute.xlu0 %662
        %664 = vset.pattern.permute.xlu0 0
        %665 = vperm.xlu0 %664, %v188
        %v666 = vpop.permute.xlu0 %665
        %667 = vset.pattern.permute.xlu0 0
        %668 = vperm.xlu0 %667, %v189
        %v669 = vpop.permute.xlu0 %668
        %670 = vset.pattern.permute.xlu0 0
        %671 = vperm.xlu0 %670, %v190
        %v672 = vpop.permute.xlu0 %671
        %673 = vset.pattern.permute.xlu0 0
        %674 = vperm.xlu0 %673, %v191
        %v675 = vpop.permute.xlu0 %674
        %676 = vset.pattern.permute.xlu0 0
        %677 = vperm.xlu0 %676, %v192
        %v678 = vpop.permute.xlu0 %677
        %679 = vset.pattern.permute.xlu0 0
        %680 = vperm.xlu0 %679, %v193
        %v681 = vpop.permute.xlu0 %680
        %682 = vset.pattern.permute.xlu0 0
        %683 = vperm.xlu0 %682, %v194
        %v684 = vpop.permute.xlu0 %683
        %685 = vset.pattern.permute.xlu0 0
        %686 = vperm.xlu0 %685, %v195
        %v687 = vpop.permute.xlu0 %686
        %688 = vset.pattern.permute.xlu0 0
        %689 = vperm.xlu0 %688, %v196
        %v690 = vpop.permute.xlu0 %689
        %691 = vset.pattern.permute.xlu0 0
        %692 = vperm.xlu0 %691, %v197
        %v693 = vpop.permute.xlu0 %692
        %694 = vset.pattern.permute.xlu0 0
        %695 = vperm.xlu0 %694, %v198
        %v696 = vpop.permute.xlu0 %695
        %697 = vset.pattern.permute.xlu0 0
        %698 = vperm.xlu0 %697, %v199
        %v699 = vpop.permute.xlu0 %698
        %700 = vset.pattern.permute.xlu0 0
        %701 = vperm.xlu0 %700, %v200
        %v702 = vpop.permute.xlu0 %701
        %703 = vset.pattern.permute.xlu0 0
        %704 = vperm.xlu0 %703, %v201
        %v705 = vpop.permute.xlu0 %704
        %706 = vset.pattern.permute.xlu0 0
        %707 = vperm.xlu0 %706, %v202
        %v708 = vpop.permute.xlu0 %707
        %709 = vset.pattern.permute.xlu0 0
        %710 = vperm.xlu0 %709, %v203
        %v711 = vpop.permute.xlu0 %710
        %712 = vset.pattern.permute.xlu0 0
        %713 = vperm.xlu0 %712, %v204
        %v714 = vpop.permute.xlu0 %713
        %715 = vset.pattern.permute.xlu0 0
        %716 = vperm.xlu0 %715, %v205
        %v717 = vpop.permute.xlu0 %716
        %718 = vset.pattern.permute.xlu0 0
        %719 = vperm.xlu0 %718, %v206
        %v720 = vpop.permute.xlu0 %719
        %721 = vset.pattern.permute.xlu0 0
        %722 = vperm.xlu0 %721, %v207
        %v723 = vpop.permute.xlu0 %722
        %724 = vset.pattern.permute.xlu0 0
        %725 = vperm.xlu0 %724, %v208
        %v726 = vpop.permute.xlu0 %725
        %727 = vset.pattern.permute.xlu0 0
        %728 = vperm.xlu0 %727, %v209
        %v729 = vpop.permute.xlu0 %728
        %730 = vset.pattern.permute.xlu0 0
        %731 = vperm.xlu0 %730, %v210
        %v732 = vpop.permute.xlu0 %731
        %733 = vset.pattern.permute.xlu0 0
        %734 = vperm.xlu0 %733, %v211
        %v735 = vpop.permute.xlu0 %734
        %736 = vset.pattern.permute.xlu0 0
        %737 = vperm.xlu0 %736, %v212
        %v738 = vpop.permute.xlu0 %737
        %739 = vset.pattern.permute.xlu0 0
        %740 = vperm.xlu0 %739, %v213
        %v741 = vpop.permute.xlu0 %740
        %742 = vset.pattern.permute.xlu0 0
        %743 = vperm.xlu0 %742, %v214
        %v744 = vpop.permute.xlu0 %743
        %745 = vset.pattern.permute.xlu0 0
        %746 = vperm.xlu0 %745, %v215
        %v747 = vpop.permute.xlu0 %746
        %748 = vset.pattern.permute.xlu0 0
        %749 = vperm.xlu0 %748, %v216
        %v750 = vpop.permute.xlu0 %749
        %751 = vset.pattern.permute.xlu0 0
        %752 = vperm.xlu0 %751, %v217
        %v753 = vpop.permute.xlu0 %752
        %754 = vset.pattern.permute.xlu0 0
        %755 = vperm.xlu0 %754, %v218
        %v756 = vpop.permute.xlu0 %755
        %757 = vset.pattern.permute.xlu0 0
        %758 = vperm.xlu0 %757, %v219
        %v759 = vpop.permute.xlu0 %758
        %760 = vset.pattern.permute.xlu0 0
        %761 = vperm.xlu0 %760, %v220
        %v762 = vpop.permute.xlu0 %761
        %763 = vset.pattern.permute.xlu0 0
        %764 = vperm.xlu0 %763, %v221
        %v765 = vpop.permute.xlu0 %764
        %766 = vset.pattern.permute.xlu0 0
        %767 = vperm.xlu0 %766, %v222
        %v768 = vpop.permute.xlu0 %767
        %769 = vset.pattern.permute.xlu0 0
        %770 = vperm.xlu0 %769, %v223
        %v771 = vpop.permute.xlu0 %770
        %772 = vset.pattern.permute.xlu0 0
        %773 = vperm.xlu0 %772, %v224
        %v774 = vpop.permute.xlu0 %773
        %775 = vset.pattern.permute.xlu0 0
        %776 = vperm.xlu0 %775, %v225
        %v777 = vpop.permute.xlu0 %776
        %778 = vset.pattern.permute.xlu0 0
        %779 = vperm.xlu0 %778, %v226
        %v780 = vpop.permute.xlu0 %779
        %781 = vset.pattern.permute.xlu0 0
        %782 = vperm.xlu0 %781, %v227
        %v783 = vpop.permute.xlu0 %782
        %784 = vset.pattern.permute.xlu0 0
        %785 = vperm.xlu0 %784, %v228
        %v786 = vpop.permute.xlu0 %785
        %787 = vset.pattern.permute.xlu0 0
        %788 = vperm.xlu0 %787, %v229
        %v789 = vpop.permute.xlu0 %788
        %790 = vset.pattern.permute.xlu0 0
        %791 = vperm.xlu0 %790, %v230
        %v792 = vpop.permute.xlu0 %791
        %793 = vset.pattern.permute.xlu0 0
        %794 = vperm.xlu0 %793, %v231
        %v795 = vpop.permute.xlu0 %794
        %796 = vset.pattern.permute.xlu0 0
        %797 = vperm.xlu0 %796, %v232
        %v798 = vpop.permute.xlu0 %797
        %799 = vset.pattern.permute.xlu0 0
        %800 = vperm.xlu0 %799, %v233
        %v801 = vpop.permute.xlu0 %800
        %802 = vset.pattern.permute.xlu0 0
        %803 = vperm.xlu0 %802, %v234
        %v804 = vpop.permute.xlu0 %803
        %805 = vset.pattern.permute.xlu0 0
        %806 = vperm.xlu0 %805, %v235
        %v807 = vpop.permute.xlu0 %806
        %808 = vset.pattern.permute.xlu0 0
        %809 = vperm.xlu0 %808, %v236
        %v810 = vpop.permute.xlu0 %809
        %811 = vset.pattern.permute.xlu0 0
        %812 = vperm.xlu0 %811, %v237
        %v813 = vpop.permute.xlu0 %812
        %814 = vset.pattern.permute.xlu0 0
        %815 = vperm.xlu0 %814, %v238
        %v816 = vpop.permute.xlu0 %815
        %817 = vset.pattern.permute.xlu0 0
        %818 = vperm.xlu0 %817, %v239
        %v819 = vpop.permute.xlu0 %818
        %820 = vset.pattern.permute.xlu0 0
        %821 = vperm.xlu0 %820, %v240
        %v822 = vpop.permute.xlu0 %821
        %823 = vset.pattern.permute.xlu0 0
        %824 = vperm.xlu0 %823, %v241
        %v825 = vpop.permute.xlu0 %824
        %826 = vset.pattern.permute.xlu0 0
        %827 = vperm.xlu0 %826, %v242
        %v828 = vpop.permute.xlu0 %827
        %829 = vset.pattern.permute.xlu0 0
        %830 = vperm.xlu0 %829, %v243
        %v831 = vpop.permute.xlu0 %830
        %832 = vset.pattern.permute.xlu0 0
        %833 = vperm.xlu0 %832, %v244
        %v834 = vpop.permute.xlu0 %833
        %835 = vset.pattern.permute.xlu0 0
        %836 = vperm.xlu0 %835, %v245
        %v837 = vpop.permute.xlu0 %836
        %838 = vset.pattern.permute.xlu0 0
        %839 = vperm.xlu0 %838, %v246
        %v840 = vpop.permute.xlu0 %839
        %841 = vset.pattern.permute.xlu0 0
        %842 = vperm.xlu0 %841, %v247
        %v843 = vpop.permute.xlu0 %842
        %844 = vset.pattern.permute.xlu0 0
        %845 = vperm.xlu0 %844, %v248
        %v846 = vpop.permute.xlu0 %845
        %847 = vset.pattern.permute.xlu0 0
        %848 = vperm.xlu0 %847, %v249
        %v849 = vpop.permute.xlu0 %848
        %850 = vset.pattern.permute.xlu0 0
        %851 = vperm.xlu0 %850, %v250
        %v852 = vpop.permute.xlu0 %851
        %853 = vset.pattern.permute.xlu0 0
        %854 = vperm.xlu0 %853, %v251
        %v855 = vpop.permute.xlu0 %854
        %856 = vset.pattern.permute.xlu0 0
        %857 = vperm.xlu0 %856, %v252
        %v858 = vpop.permute.xlu0 %857
        %859 = vset.pattern.permute.xlu0 0
        %860 = vperm.xlu0 %859, %v253
        %v861 = vpop.permute.xlu0 %860
        %862 = vset.pattern.permute.xlu0 0
        %863 = vperm.xlu0 %862, %v254
        %v864 = vpop.permute.xlu0 %863
        %865 = vset.pattern.permute.xlu0 0
        %866 = vperm.xlu0 %865, %v255
        %v867 = vpop.permute.xlu0 %866
        %868 = vset.pattern.permute.xlu0 0
        %869 = vperm.xlu0 %868, %v256
        %v870 = vpop.permute.xlu0 %869
        %871 = vset.pattern.permute.xlu0 0
        %872 = vperm.xlu0 %871, %v257
        %v873 = vpop.permute.xlu0 %872
        %874 = vset.pattern.permute.xlu0 0
        %875 = vperm.xlu0 %874, %v258
        %v876 = vpop.permute.xlu0 %875
        %877 = vset.pattern.permute.xlu0 0
        %878 = vperm.xlu0 %877, %v259
        %v879 = vpop.permute.xlu0 %878
        %880 = vset.pattern.permute.xlu0 0
        %881 = vperm.xlu0 %880, %v260
        %v882 = vpop.permute.xlu0 %881
        %883 = vset.pattern.permute.xlu0 0
        %884 = vperm.xlu0 %883, %v261
        %v885 = vpop.permute.xlu0 %884
        %886 = vset.pattern.permute.xlu0 0
        %887 = vperm.xlu0 %886, %v262
        %v888 = vpop.permute.xlu0 %887
        %889 = vset.pattern.permute.xlu0 0
        %890 = vperm.xlu0 %889, %v263
        %v891 = vpop.permute.xlu0 %890
        %892 = vset.pattern.permute.xlu0 0
        %893 = vperm.xlu0 %892, %v264
        %v894 = vpop.permute.xlu0 %893
        %895 = vset.pattern.permute.xlu0 0
        %896 = vperm.xlu0 %895, %v265
        %v897 = vpop.permute.xlu0 %896
        %898 = vset.pattern.permute.xlu0 0
        %899 = vperm.xlu0 %898, %v266
        %v900 = vpop.permute.xlu0 %899
        %901 = vset.pattern.permute.xlu0 0
        %902 = vperm.xlu0 %901, %v267
        %v903 = vpop.permute.xlu0 %902
        %904 = vset.pattern.permute.xlu0 0
        %905 = vperm.xlu0 %904, %v268
        %v906 = vpop.permute.xlu0 %905
        %907 = vset.pattern.permute.xlu0 0
        %908 = vperm.xlu0 %907, %v269
        %v909 = vpop.permute.xlu0 %908
        %910 = vset.pattern.permute.xlu0 0
        %911 = vperm.xlu0 %910, %v270
        %v912 = vpop.permute.xlu0 %911
        %913 = vset.pattern.permute.xlu0 0
        %914 = vperm.xlu0 %913, %v271
        %v915 = vpop.permute.xlu0 %914
        %916 = vset.pattern.permute.xlu0 0
        %917 = vperm.xlu0 %916, %v272
        %v918 = vpop.permute.xlu0 %917
        %919 = vset.pattern.permute.xlu0 0
        %920 = vperm.xlu0 %919, %v273
        %v921 = vpop.permute.xlu0 %920
        %922 = vset.pattern.permute.xlu0 0
        %923 = vperm.xlu0 %922, %v274
        %v924 = vpop.permute.xlu0 %923
        %925 = vset.pattern.permute.xlu0 0
        %926 = vperm.xlu0 %925, %v275
        %v927 = vpop.permute.xlu0 %926
        %928 = vset.pattern.permute.xlu0 0
        %929 = vperm.xlu0 %928, %v276
        %v930 = vpop.permute.xlu0 %929
        %931 = vset.pattern.permute.xlu0 0
        %932 = vperm.xlu0 %931, %v277
        %v933 = vpop.permute.xlu0 %932
        %934 = vset.pattern.permute.xlu0 0
        %935 = vperm.xlu0 %934, %v278
        %v936 = vpop.permute.xlu0 %935
        %937 = vset.pattern.permute.xlu0 0
        %938 = vperm.xlu0 %937, %v279
        %v939 = vpop.permute.xlu0 %938
        %940 = vset.pattern.permute.xlu0 0
        %941 = vperm.xlu0 %940, %v280
        %v942 = vpop.permute.xlu0 %941
        %943 = vset.pattern.permute.xlu0 0
        %944 = vperm.xlu0 %943, %v281
        %v945 = vpop.permute.xlu0 %944
        %946 = vset.pattern.permute.xlu0 0
        %947 = vperm.xlu0 %946, %v282
        %v948 = vpop.permute.xlu0 %947
        %949 = vset.pattern.permute.xlu0 0
        %950 = vperm.xlu0 %949, %v283
        %v951 = vpop.permute.xlu0 %950
        %952 = vset.pattern.permute.xlu0 0
        %953 = vperm.xlu0 %952, %v284
        %v954 = vpop.permute.xlu0 %953
        %955 = vset.pattern.permute.xlu0 0
        %956 = vperm.xlu0 %955, %v285
        %v957 = vpop.permute.xlu0 %956
        %958 = vset.pattern.permute.xlu0 0
        %959 = vperm.xlu0 %958, %v286
        %v960 = vpop.permute.xlu0 %959
        %961 = vset.pattern.permute.xlu0 0
        %962 = vperm.xlu0 %961, %v287
        %v963 = vpop.permute.xlu0 %962
        %964 = vset.pattern.permute.xlu0 0
        %965 = vperm.xlu0 %964, %v288
        %v966 = vpop.permute.xlu0 %965
        %967 = vset.pattern.permute.xlu0 0
        %968 = vperm.xlu0 %967, %v289
        %v969 = vpop.permute.xlu0 %968
        %970 = vset.pattern.permute.xlu0 0
        %971 = vperm.xlu0 %970, %v290
        %v972 = vpop.permute.xlu0 %971
        %973 = vset.pattern.permute.xlu0 0
        %974 = vperm.xlu0 %973, %v291
        %v975 = vpop.permute.xlu0 %974
        %976 = vset.pattern.permute.xlu0 0
        %977 = vperm.xlu0 %976, %v292
        %v978 = vpop.permute.xlu0 %977
        %979 = vset.pattern.permute.xlu0 0
        %980 = vperm.xlu0 %979, %v293
        %v981 = vpop.permute.xlu0 %980
        %982 = vset.pattern.permute.xlu0 0
        %983 = vperm.xlu0 %982, %v294
        %v984 = vpop.permute.xlu0 %983
        %985 = vset.pattern.permute.xlu0 0
        %986 = vperm.xlu0 %985, %v295
        %v987 = vpop.permute.xlu0 %986
        %988 = vset.pattern.permute.xlu0 0
        %989 = vperm.xlu0 %988, %v296
        %v990 = vpop.permute.xlu0 %989
        %991 = vset.pattern.permute.xlu0 0
        %992 = vperm.xlu0 %991, %v297
        %v993 = vpop.permute.xlu0 %992
        %994 = vset.pattern.permute.xlu0 0
        %995 = vperm.xlu0 %994, %v298
        %v996 = vpop.permute.xlu0 %995
        %997 = vset.pattern.permute.xlu0 0
        %998 = vperm.xlu0 %997, %v299
        %v999 = vpop.permute.xlu0 %998
        %1000 = vset.pattern.permute.xlu0 0
        %1001 = vperm.xlu0 %1000, %v300
        %v1002 = vpop.permute.xlu0 %1001
        %1003 = vset.pattern.permute.xlu0 0
        %1004 = vperm.xlu0 %1003, %v301
        %v1005 = vpop.permute.xlu0 %1004
        %1006 = vset.pattern.permute.xlu0 0
        %1007 = vperm.xlu0 %1006, %v302
        %v1008 = vpop.permute.xlu0 %1007
        %1009 = vset.pattern.permute.xlu0 0
        %1010 = vperm.xlu0 %1009, %v303
        %v1011 = vpop.permute.xlu0 %1010
        %1012 = vset.pattern.permute.xlu0 0
        %1013 = vperm.xlu0 %1012, %v304
        %v1014 = vpop.permute.xlu0 %1013
        %1015 = vset.pattern.permute.xlu0 0
        %1016 = vperm.xlu0 %1015, %v305
        %v1017 = vpop.permute.xlu0 %1016
        %1018 = vset.pattern.permute.xlu0 0
        %1019 = vperm.xlu0 %1018, %v306
        %v1020 = vpop.permute.xlu0 %1019
        %1021 = vset.pattern.permute.xlu0 0
        %1022 = vperm.xlu0 %1021, %v307
        %v1023 = vpop.permute.xlu0 %1022
        %1024 = vset.pattern.permute.xlu0 0
        %1025 = vperm.xlu0 %1024, %v308
        %v1026 = vpop.permute.xlu0 %1025
        %1027 = vset.pattern.permute.xlu0 0
        %1028 = vperm.xlu0 %1027, %v309
        %v1029 = vpop.permute.xlu0 %1028
        %1030 = vset.pattern.permute.xlu0 0
        %1031 = vperm.xlu0 %1030, %v310
        %v1032 = vpop.permute.xlu0 %1031
        %1033 = vset.pattern.permute.xlu0 0
        %1034 = vperm.xlu0 %1033, %v311
        %v1035 = vpop.permute.xlu0 %1034
        %1036 = vset.pattern.permute.xlu0 0
        %1037 = vperm.xlu0 %1036, %v312
        %v1038 = vpop.permute.xlu0 %1037
        %1039 = vset.pattern.permute.xlu0 0
        %1040 = vperm.xlu0 %1039, %v313
        %v1041 = vpop.permute.xlu0 %1040
        %1042 = vset.pattern.permute.xlu0 0
        %1043 = vperm.xlu0 %1042, %v314
        %v1044 = vpop.permute.xlu0 %1043
        %1045 = vset.pattern.permute.xlu0 0
        %1046 = vperm.xlu0 %1045, %v315
        %v1047 = vpop.permute.xlu0 %1046
        %1048 = vset.pattern.permute.xlu0 0
        %1049 = vperm.xlu0 %1048, %v316
        %v1050 = vpop.permute.xlu0 %1049
        %1051 = vset.pattern.permute.xlu0 0
        %1052 = vperm.xlu0 %1051, %v317
        %v1053 = vpop.permute.xlu0 %1052
        %1054 = vset.pattern.permute.xlu0 0
        %1055 = vperm.xlu0 %1054, %v318
        %v1056 = vpop.permute.xlu0 %1055
        %1057 = vset.pattern.permute.xlu0 0
        %1058 = vperm.xlu0 %1057, %v319
        %v1059 = vpop.permute.xlu0 %1058
        %1060 = vset.pattern.permute.xlu0 0
        %1061 = vperm.xlu0 %1060, %v320
        %v1062 = vpop.permute.xlu0 %1061
        %1063 = vset.pattern.permute.xlu0 0
        %1064 = vperm.xlu0 %1063, %v321
        %v1065 = vpop.permute.xlu0 %1064
        %1066 = vset.pattern.permute.xlu0 0
        %1067 = vperm.xlu0 %1066, %v322
        %v1068 = vpop.permute.xlu0 %1067
        %1069 = vset.pattern.permute.xlu0 0
        %1070 = vperm.xlu0 %1069, %v323
        %v1071 = vpop.permute.xlu0 %1070
        %1072 = vset.pattern.permute.xlu0 0
        %1073 = vperm.xlu0 %1072, %v324
        %v1074 = vpop.permute.xlu0 %1073
        %1075 = vset.pattern.permute.xlu0 0
        %1076 = vperm.xlu0 %1075, %v325
        %v1077 = vpop.permute.xlu0 %1076
        %1078 = vset.pattern.permute.xlu0 0
        %1079 = vperm.xlu0 %1078, %v326
        %v1080 = vpop.permute.xlu0 %1079
        %1081 = vset.pattern.permute.xlu0 0
        %1082 = vperm.xlu0 %1081, %v327
        %v1083 = vpop.permute.xlu0 %1082
        %1084 = vset.pattern.permute.xlu0 0
        %1085 = vperm.xlu0 %1084, %v328
        %v1086 = vpop.permute.xlu0 %1085
        %1087 = vset.pattern.permute.xlu0 0
        %1088 = vperm.xlu0 %1087, %v329
        %v1089 = vpop.permute.xlu0 %1088
        %1090 = vset.pattern.permute.xlu0 0
        %1091 = vperm.xlu0 %1090, %v330
        %v1092 = vpop.permute.xlu0 %1091
        %1093 = vset.pattern.permute.xlu0 0
        %1094 = vperm.xlu0 %1093, %v331
        %v1095 = vpop.permute.xlu0 %1094
        %1096 = vset.pattern.permute.xlu0 0
        %1097 = vperm.xlu0 %1096, %v332
        %v1098 = vpop.permute.xlu0 %1097
        %1099 = vset.pattern.permute.xlu0 0
        %1100 = vperm.xlu0 %1099, %v333
        %v1101 = vpop.permute.xlu0 %1100
        %1102 = vset.pattern.permute.xlu0 0
        %1103 = vperm.xlu0 %1102, %v334
        %v1104 = vpop.permute.xlu0 %1103
        %vm1105 = vcmp.eq.s32.totalorder %v531, %v528
        %vm1106 = vcmp.eq.s32.totalorder %v534, %v528
        %vm1107 = vcmp.eq.s32.totalorder %v537, %v528
        %vm1108 = vcmp.eq.s32.totalorder %v540, %v528
        %vm1109 = vcmp.eq.s32.totalorder %v543, %v528
        %vm1110 = vcmp.eq.s32.totalorder %v546, %v528
        %vm1111 = vcmp.eq.s32.totalorder %v549, %v528
        %vm1112 = vcmp.eq.s32.totalorder %v552, %v528
        %vm1113 = vcmp.eq.s32.totalorder %v555, %v528
        %vm1114 = vcmp.eq.s32.totalorder %v558, %v528
        %vm1115 = vcmp.eq.s32.totalorder %v561, %v528
        %vm1116 = vcmp.eq.s32.totalorder %v564, %v528
        %vm1117 = vcmp.eq.s32.totalorder %v567, %v528
        %vm1118 = vcmp.eq.s32.totalorder %v570, %v528
        %vm1119 = vcmp.eq.s32.totalorder %v573, %v528
        %vm1120 = vcmp.eq.s32.totalorder %v576, %v528
        %vm1121 = vcmp.eq.s32.totalorder %v579, %v528
        %vm1122 = vcmp.eq.s32.totalorder %v582, %v528
        %vm1123 = vcmp.eq.s32.totalorder %v585, %v528
        %vm1124 = vcmp.eq.s32.totalorder %v588, %v528
        %vm1125 = vcmp.eq.s32.totalorder %v591, %v528
        %vm1126 = vcmp.eq.s32.totalorder %v594, %v528
        %vm1127 = vcmp.eq.s32.totalorder %v597, %v528
        %vm1128 = vcmp.eq.s32.totalorder %v600, %v528
        %vm1129 = vcmp.eq.s32.totalorder %v603, %v528
        %vm1130 = vcmp.eq.s32.totalorder %v606, %v528
        %vm1131 = vcmp.eq.s32.totalorder %v609, %v528
        %vm1132 = vcmp.eq.s32.totalorder %v612, %v528
        %vm1133 = vcmp.eq.s32.totalorder %v615, %v528
        %vm1134 = vcmp.eq.s32.totalorder %v618, %v528
        %vm1135 = vcmp.eq.s32.totalorder %v621, %v528
        %vm1136 = vcmp.eq.s32.totalorder %v624, %v528
        %vm1137 = vcmp.eq.s32.totalorder %v627, %v528
        %vm1138 = vcmp.eq.s32.totalorder %v630, %v528
        %vm1139 = vcmp.eq.s32.totalorder %v633, %v528
        %vm1140 = vcmp.eq.s32.totalorder %v636, %v528
        %vm1141 = vcmp.eq.s32.totalorder %v639, %v528
        %vm1142 = vcmp.eq.s32.totalorder %v642, %v528
        %vm1143 = vcmp.eq.s32.totalorder %v645, %v528
        %vm1144 = vcmp.eq.s32.totalorder %v648, %v528
        %vm1145 = vcmp.eq.s32.totalorder %v651, %v528
        %vm1146 = vcmp.eq.s32.totalorder %v654, %v528
        %vm1147 = vcmp.eq.s32.totalorder %v657, %v528
        %vm1148 = vcmp.eq.s32.totalorder %v660, %v528
        %vm1149 = vcmp.eq.s32.totalorder %v663, %v528
        %vm1150 = vcmp.eq.s32.totalorder %v666, %v528
        %vm1151 = vcmp.eq.s32.totalorder %v669, %v528
        %vm1152 = vcmp.eq.s32.totalorder %v672, %v528
        %vm1153 = vcmp.eq.s32.totalorder %v675, %v528
        %vm1154 = vcmp.eq.s32.totalorder %v678, %v528
        %vm1155 = vcmp.eq.s32.totalorder %v681, %v528
        %vm1156 = vcmp.eq.s32.totalorder %v684, %v528
        %vm1157 = vcmp.eq.s32.totalorder %v687, %v528
        %vm1158 = vcmp.eq.s32.totalorder %v690, %v528
        %vm1159 = vcmp.eq.s32.totalorder %v693, %v528
        %vm1160 = vcmp.eq.s32.totalorder %v696, %v528
        %vm1161 = vcmp.eq.s32.totalorder %v699, %v528
        %vm1162 = vcmp.eq.s32.totalorder %v702, %v528
        %vm1163 = vcmp.eq.s32.totalorder %v705, %v528
        %vm1164 = vcmp.eq.s32.totalorder %v708, %v528
        %vm1165 = vcmp.eq.s32.totalorder %v711, %v528
        %vm1166 = vcmp.eq.s32.totalorder %v714, %v528
        %vm1167 = vcmp.eq.s32.totalorder %v717, %v528
        %vm1168 = vcmp.eq.s32.totalorder %v720, %v528
        %vm1169 = vcmp.eq.s32.totalorder %v723, %v528
        %vm1170 = vcmp.eq.s32.totalorder %v726, %v528
        %vm1171 = vcmp.eq.s32.totalorder %v729, %v528
        %vm1172 = vcmp.eq.s32.totalorder %v732, %v528
        %vm1173 = vcmp.eq.s32.totalorder %v735, %v528
        %vm1174 = vcmp.eq.s32.totalorder %v738, %v528
        %vm1175 = vcmp.eq.s32.totalorder %v741, %v528
        %vm1176 = vcmp.eq.s32.totalorder %v744, %v528
        %vm1177 = vcmp.eq.s32.totalorder %v747, %v528
        %vm1178 = vcmp.eq.s32.totalorder %v750, %v528
        %vm1179 = vcmp.eq.s32.totalorder %v753, %v528
        %vm1180 = vcmp.eq.s32.totalorder %v756, %v528
        %vm1181 = vcmp.eq.s32.totalorder %v759, %v528
        %vm1182 = vcmp.eq.s32.totalorder %v762, %v528
        %vm1183 = vcmp.eq.s32.totalorder %v765, %v528
        %vm1184 = vcmp.eq.s32.totalorder %v768, %v528
        %vm1185 = vcmp.eq.s32.totalorder %v771, %v528
        %vm1186 = vcmp.eq.s32.totalorder %v774, %v528
        %vm1187 = vcmp.eq.s32.totalorder %v777, %v528
        %vm1188 = vcmp.eq.s32.totalorder %v780, %v528
        %vm1189 = vcmp.eq.s32.totalorder %v783, %v528
        %vm1190 = vcmp.eq.s32.totalorder %v786, %v528
        %vm1191 = vcmp.eq.s32.totalorder %v789, %v528
        %vm1192 = vcmp.eq.s32.totalorder %v792, %v528
        %vm1193 = vcmp.eq.s32.totalorder %v795, %v528
        %vm1194 = vcmp.eq.s32.totalorder %v798, %v528
        %vm1195 = vcmp.eq.s32.totalorder %v801, %v528
        %vm1196 = vcmp.eq.s32.totalorder %v804, %v528
        %vm1197 = vcmp.eq.s32.totalorder %v807, %v528
        %vm1198 = vcmp.eq.s32.totalorder %v810, %v528
        %vm1199 = vcmp.eq.s32.totalorder %v813, %v528
        %vm1200 = vcmp.eq.s32.totalorder %v816, %v528
        %vm1201 = vcmp.eq.s32.totalorder %v819, %v528
        %vm1202 = vcmp.eq.s32.totalorder %v822, %v528
        %vm1203 = vcmp.eq.s32.totalorder %v825, %v528
        %vm1204 = vcmp.eq.s32.totalorder %v828, %v528
        %vm1205 = vcmp.eq.s32.totalorder %v831, %v528
        %vm1206 = vcmp.eq.s32.totalorder %v834, %v528
        %vm1207 = vcmp.eq.s32.totalorder %v837, %v528
        %vm1208 = vcmp.eq.s32.totalorder %v840, %v528
        %vm1209 = vcmp.eq.s32.totalorder %v843, %v528
        %vm1210 = vcmp.eq.s32.totalorder %v846, %v528
        %vm1211 = vcmp.eq.s32.totalorder %v849, %v528
        %vm1212 = vcmp.eq.s32.totalorder %v852, %v528
        %vm1213 = vcmp.eq.s32.totalorder %v855, %v528
        %vm1214 = vcmp.eq.s32.totalorder %v858, %v528
        %vm1215 = vcmp.eq.s32.totalorder %v861, %v528
        %vm1216 = vcmp.eq.s32.totalorder %v864, %v528
        %vm1217 = vcmp.eq.s32.totalorder %v867, %v528
        %vm1218 = vcmp.eq.s32.totalorder %v870, %v528
        %vm1219 = vcmp.eq.s32.totalorder %v873, %v528
        %vm1220 = vcmp.eq.s32.totalorder %v876, %v528
        %vm1221 = vcmp.eq.s32.totalorder %v879, %v528
        %vm1222 = vcmp.eq.s32.totalorder %v882, %v528
        %vm1223 = vcmp.eq.s32.totalorder %v885, %v528
        %vm1224 = vcmp.eq.s32.totalorder %v888, %v528
        %vm1225 = vcmp.eq.s32.totalorder %v891, %v528
        %vm1226 = vcmp.eq.s32.totalorder %v894, %v528
        %vm1227 = vcmp.eq.s32.totalorder %v897, %v528
        %vm1228 = vcmp.eq.s32.totalorder %v900, %v528
        %vm1229 = vcmp.eq.s32.totalorder %v903, %v528
        %vm1230 = vcmp.eq.s32.totalorder %v906, %v528
        %vm1231 = vcmp.eq.s32.totalorder %v909, %v528
        %vm1232 = vcmp.eq.s32.totalorder %v912, %v528
        %vm1233 = vcmp.eq.s32.totalorder %v915, %v528
        %vm1234 = vcmp.eq.s32.totalorder %v918, %v528
        %vm1235 = vcmp.eq.s32.totalorder %v921, %v528
        %vm1236 = vcmp.eq.s32.totalorder %v924, %v528
        %vm1237 = vcmp.eq.s32.totalorder %v927, %v528
        %vm1238 = vcmp.eq.s32.totalorder %v930, %v528
        %vm1239 = vcmp.eq.s32.totalorder %v933, %v528
        %vm1240 = vcmp.eq.s32.totalorder %v936, %v528
        %vm1241 = vcmp.eq.s32.totalorder %v939, %v528
        %vm1242 = vcmp.eq.s32.totalorder %v942, %v528
        %vm1243 = vcmp.eq.s32.totalorder %v945, %v528
        %vm1244 = vcmp.eq.s32.totalorder %v948, %v528
        %vm1245 = vcmp.eq.s32.totalorder %v951, %v528
        %vm1246 = vcmp.eq.s32.totalorder %v954, %v528
        %vm1247 = vcmp.eq.s32.totalorder %v957, %v528
        %vm1248 = vcmp.eq.s32.totalorder %v960, %v528
        %vm1249 = vcmp.eq.s32.totalorder %v963, %v528
        %vm1250 = vcmp.eq.s32.totalorder %v966, %v528
        %vm1251 = vcmp.eq.s32.totalorder %v969, %v528
        %vm1252 = vcmp.eq.s32.totalorder %v972, %v528
        %vm1253 = vcmp.eq.s32.totalorder %v975, %v528
        %vm1254 = vcmp.eq.s32.totalorder %v978, %v528
        %vm1255 = vcmp.eq.s32.totalorder %v981, %v528
        %vm1256 = vcmp.eq.s32.totalorder %v984, %v528
        %vm1257 = vcmp.eq.s32.totalorder %v987, %v528
        %vm1258 = vcmp.eq.s32.totalorder %v990, %v528
        %vm1259 = vcmp.eq.s32.totalorder %v993, %v528
        %vm1260 = vcmp.eq.s32.totalorder %v996, %v528
        %vm1261 = vcmp.eq.s32.totalorder %v999, %v528
        %vm1262 = vcmp.eq.s32.totalorder %v1002, %v528
        %vm1263 = vcmp.eq.s32.totalorder %v1005, %v528
        %vm1264 = vcmp.eq.s32.totalorder %v1008, %v528
        %vm1265 = vcmp.eq.s32.totalorder %v1011, %v528
        %vm1266 = vcmp.eq.s32.totalorder %v1014, %v528
        %vm1267 = vcmp.eq.s32.totalorder %v1017, %v528
        %vm1268 = vcmp.eq.s32.totalorder %v1020, %v528
        %vm1269 = vcmp.eq.s32.totalorder %v1023, %v528
        %vm1270 = vcmp.eq.s32.totalorder %v1026, %v528
        %vm1271 = vcmp.eq.s32.totalorder %v1029, %v528
        %vm1272 = vcmp.eq.s32.totalorder %v1032, %v528
        %vm1273 = vcmp.eq.s32.totalorder %v1035, %v528
        %vm1274 = vcmp.eq.s32.totalorder %v1038, %v528
        %vm1275 = vcmp.eq.s32.totalorder %v1041, %v528
        %vm1276 = vcmp.eq.s32.totalorder %v1044, %v528
        %vm1277 = vcmp.eq.s32.totalorder %v1047, %v528
        %vm1278 = vcmp.eq.s32.totalorder %v1050, %v528
        %vm1279 = vcmp.eq.s32.totalorder %v1053, %v528
        %vm1280 = vcmp.eq.s32.totalorder %v1056, %v528
        %vm1281 = vcmp.eq.s32.totalorder %v1059, %v528
        %vm1282 = vcmp.eq.s32.totalorder %v1062, %v528
        %vm1283 = vcmp.eq.s32.totalorder %v1065, %v528
        %vm1284 = vcmp.eq.s32.totalorder %v1068, %v528
        %vm1285 = vcmp.eq.s32.totalorder %v1071, %v528
        %vm1286 = vcmp.eq.s32.totalorder %v1074, %v528
        %vm1287 = vcmp.eq.s32.totalorder %v1077, %v528
        %vm1288 = vcmp.eq.s32.totalorder %v1080, %v528
        %vm1289 = vcmp.eq.s32.totalorder %v1083, %v528
        %vm1290 = vcmp.eq.s32.totalorder %v1086, %v528
        %vm1291 = vcmp.eq.s32.totalorder %v1089, %v528
        %vm1292 = vcmp.eq.s32.totalorder %v1092, %v528
        %vm1293 = vcmp.eq.s32.totalorder %v1095, %v528
        %vm1294 = vcmp.eq.s32.totalorder %v1098, %v528
        %vm1295 = vcmp.eq.s32.totalorder %v1101, %v528
        %vm1296 = vcmp.eq.s32.totalorder %v1104, %v528
        %v1297 = vsel %vm1105, 1, 0
        %v1298 = vsel %vm1106, 1, 0
        %v1299 = vsel %vm1107, 1, 0
        %v1300 = vsel %vm1108, 1, 0
        %v1301 = vsel %vm1109, 1, 0
        %v1302 = vsel %vm1110, 1, 0
        %v1303 = vsel %vm1111, 1, 0
        %v1304 = vsel %vm1112, 1, 0
        %v1305 = vsel %vm1113, 1, 0
        %v1306 = vsel %vm1114, 1, 0
        %v1307 = vsel %vm1115, 1, 0
        %v1308 = vsel %vm1116, 1, 0
        %v1309 = vsel %vm1117, 1, 0
        %v1310 = vsel %vm1118, 1, 0
        %v1311 = vsel %vm1119, 1, 0
        %v1312 = vsel %vm1120, 1, 0
        %v1313 = vsel %vm1121, 1, 0
        %v1314 = vsel %vm1122, 1, 0
        %v1315 = vsel %vm1123, 1, 0
        %v1316 = vsel %vm1124, 1, 0
        %v1317 = vsel %vm1125, 1, 0
        %v1318 = vsel %vm1126, 1, 0
        %v1319 = vsel %vm1127, 1, 0
        %v1320 = vsel %vm1128, 1, 0
        %v1321 = vsel %vm1129, 1, 0
        %v1322 = vsel %vm1130, 1, 0
        %v1323 = vsel %vm1131, 1, 0
        %v1324 = vsel %vm1132, 1, 0
        %v1325 = vsel %vm1133, 1, 0
        %v1326 = vsel %vm1134, 1, 0
        %v1327 = vsel %vm1135, 1, 0
        %v1328 = vsel %vm1136, 1, 0
        %v1329 = vsel %vm1137, 1, 0
        %v1330 = vsel %vm1138, 1, 0
        %v1331 = vsel %vm1139, 1, 0
        %v1332 = vsel %vm1140, 1, 0
        %v1333 = vsel %vm1141, 1, 0
        %v1334 = vsel %vm1142, 1, 0
        %v1335 = vsel %vm1143, 1, 0
        %v1336 = vsel %vm1144, 1, 0
        %v1337 = vsel %vm1145, 1, 0
        %v1338 = vsel %vm1146, 1, 0
        %v1339 = vsel %vm1147, 1, 0
        %v1340 = vsel %vm1148, 1, 0
        %v1341 = vsel %vm1149, 1, 0
        %v1342 = vsel %vm1150, 1, 0
        %v1343 = vsel %vm1151, 1, 0
        %v1344 = vsel %vm1152, 1, 0
        %v1345 = vsel %vm1153, 1, 0
        %v1346 = vsel %vm1154, 1, 0
        %v1347 = vsel %vm1155, 1, 0
        %v1348 = vsel %vm1156, 1, 0
        %v1349 = vsel %vm1157, 1, 0
        %v1350 = vsel %vm1158, 1, 0
        %v1351 = vsel %vm1159, 1, 0
        %v1352 = vsel %vm1160, 1, 0
        %v1353 = vsel %vm1161, 1, 0
        %v1354 = vsel %vm1162, 1, 0
        %v1355 = vsel %vm1163, 1, 0
        %v1356 = vsel %vm1164, 1, 0
        %v1357 = vsel %vm1165, 1, 0
        %v1358 = vsel %vm1166, 1, 0
        %v1359 = vsel %vm1167, 1, 0
        %v1360 = vsel %vm1168, 1, 0
        %v1361 = vsel %vm1169, 1, 0
        %v1362 = vsel %vm1170, 1, 0
        %v1363 = vsel %vm1171, 1, 0
        %v1364 = vsel %vm1172, 1, 0
        %v1365 = vsel %vm1173, 1, 0
        %v1366 = vsel %vm1174, 1, 0
        %v1367 = vsel %vm1175, 1, 0
        %v1368 = vsel %vm1176, 1, 0
        %v1369 = vsel %vm1177, 1, 0
        %v1370 = vsel %vm1178, 1, 0
        %v1371 = vsel %vm1179, 1, 0
        %v1372 = vsel %vm1180, 1, 0
        %v1373 = vsel %vm1181, 1, 0
        %v1374 = vsel %vm1182, 1, 0
        %v1375 = vsel %vm1183, 1, 0
        %v1376 = vsel %vm1184, 1, 0
        %v1377 = vsel %vm1185, 1, 0
        %v1378 = vsel %vm1186, 1, 0
        %v1379 = vsel %vm1187, 1, 0
        %v1380 = vsel %vm1188, 1, 0
        %v1381 = vsel %vm1189, 1, 0
        %v1382 = vsel %vm1190, 1, 0
        %v1383 = vsel %vm1191, 1, 0
        %v1384 = vsel %vm1192, 1, 0
        %v1385 = vsel %vm1193, 1, 0
        %v1386 = vsel %vm1194, 1, 0
        %v1387 = vsel %vm1195, 1, 0
        %v1388 = vsel %vm1196, 1, 0
        %v1389 = vsel %vm1197, 1, 0
        %v1390 = vsel %vm1198, 1, 0
        %v1391 = vsel %vm1199, 1, 0
        %v1392 = vsel %vm1200, 1, 0
        %v1393 = vsel %vm1201, 1, 0
        %v1394 = vsel %vm1202, 1, 0
        %v1395 = vsel %vm1203, 1, 0
        %v1396 = vsel %vm1204, 1, 0
        %v1397 = vsel %vm1205, 1, 0
        %v1398 = vsel %vm1206, 1, 0
        %v1399 = vsel %vm1207, 1, 0
        %v1400 = vsel %vm1208, 1, 0
        %v1401 = vsel %vm1209, 1, 0
        %v1402 = vsel %vm1210, 1, 0
        %v1403 = vsel %vm1211, 1, 0
        %v1404 = vsel %vm1212, 1, 0
        %v1405 = vsel %vm1213, 1, 0
        %v1406 = vsel %vm1214, 1, 0
        %v1407 = vsel %vm1215, 1, 0
        %v1408 = vsel %vm1216, 1, 0
        %v1409 = vsel %vm1217, 1, 0
        %v1410 = vsel %vm1218, 1, 0
        %v1411 = vsel %vm1219, 1, 0
        %v1412 = vsel %vm1220, 1, 0
        %v1413 = vsel %vm1221, 1, 0
        %v1414 = vsel %vm1222, 1, 0
        %v1415 = vsel %vm1223, 1, 0
        %v1416 = vsel %vm1224, 1, 0
        %v1417 = vsel %vm1225, 1, 0
        %v1418 = vsel %vm1226, 1, 0
        %v1419 = vsel %vm1227, 1, 0
        %v1420 = vsel %vm1228, 1, 0
        %v1421 = vsel %vm1229, 1, 0
        %v1422 = vsel %vm1230, 1, 0
        %v1423 = vsel %vm1231, 1, 0
        %v1424 = vsel %vm1232, 1, 0
        %v1425 = vsel %vm1233, 1, 0
        %v1426 = vsel %vm1234, 1, 0
        %v1427 = vsel %vm1235, 1, 0
        %v1428 = vsel %vm1236, 1, 0
        %v1429 = vsel %vm1237, 1, 0
        %v1430 = vsel %vm1238, 1, 0
        %v1431 = vsel %vm1239, 1, 0
        %v1432 = vsel %vm1240, 1, 0
        %v1433 = vsel %vm1241, 1, 0
        %v1434 = vsel %vm1242, 1, 0
        %v1435 = vsel %vm1243, 1, 0
        %v1436 = vsel %vm1244, 1, 0
        %v1437 = vsel %vm1245, 1, 0
        %v1438 = vsel %vm1246, 1, 0
        %v1439 = vsel %vm1247, 1, 0
        %v1440 = vsel %vm1248, 1, 0
        %v1441 = vsel %vm1249, 1, 0
        %v1442 = vsel %vm1250, 1, 0
        %v1443 = vsel %vm1251, 1, 0
        %v1444 = vsel %vm1252, 1, 0
        %v1445 = vsel %vm1253, 1, 0
        %v1446 = vsel %vm1254, 1, 0
        %v1447 = vsel %vm1255, 1, 0
        %v1448 = vsel %vm1256, 1, 0
        %v1449 = vsel %vm1257, 1, 0
        %v1450 = vsel %vm1258, 1, 0
        %v1451 = vsel %vm1259, 1, 0
        %v1452 = vsel %vm1260, 1, 0
        %v1453 = vsel %vm1261, 1, 0
        %v1454 = vsel %vm1262, 1, 0
        %v1455 = vsel %vm1263, 1, 0
        %v1456 = vsel %vm1264, 1, 0
        %v1457 = vsel %vm1265, 1, 0
        %v1458 = vsel %vm1266, 1, 0
        %v1459 = vsel %vm1267, 1, 0
        %v1460 = vsel %vm1268, 1, 0
        %v1461 = vsel %vm1269, 1, 0
        %v1462 = vsel %vm1270, 1, 0
        %v1463 = vsel %vm1271, 1, 0
        %v1464 = vsel %vm1272, 1, 0
        %v1465 = vsel %vm1273, 1, 0
        %v1466 = vsel %vm1274, 1, 0
        %v1467 = vsel %vm1275, 1, 0
        %v1468 = vsel %vm1276, 1, 0
        %v1469 = vsel %vm1277, 1, 0
        %v1470 = vsel %vm1278, 1, 0
        %v1471 = vsel %vm1279, 1, 0
        %v1472 = vsel %vm1280, 1, 0
        %v1473 = vsel %vm1281, 1, 0
        %v1474 = vsel %vm1282, 1, 0
        %v1475 = vsel %vm1283, 1, 0
        %v1476 = vsel %vm1284, 1, 0
        %v1477 = vsel %vm1285, 1, 0
        %v1478 = vsel %vm1286, 1, 0
        %v1479 = vsel %vm1287, 1, 0
        %v1480 = vsel %vm1288, 1, 0
        %v1481 = vsel %vm1289, 1, 0
        %v1482 = vsel %vm1290, 1, 0
        %v1483 = vsel %vm1291, 1, 0
        %v1484 = vsel %vm1292, 1, 0
        %v1485 = vsel %vm1293, 1, 0
        %v1486 = vsel %vm1294, 1, 0
        %v1487 = vsel %vm1295, 1, 0
        %v1488 = vsel %vm1296, 1, 0
        %v1489 = vcvt.s32.f32 %v1297
        %v1490 = vcvt.s32.f32 %v1298
        %v1491 = vcvt.s32.f32 %v1299
        %v1492 = vcvt.s32.f32 %v1300
        %v1493 = vcvt.s32.f32 %v1301
        %v1494 = vcvt.s32.f32 %v1302
        %v1495 = vcvt.s32.f32 %v1303
        %v1496 = vcvt.s32.f32 %v1304
        %v1497 = vcvt.s32.f32 %v1305
        %v1498 = vcvt.s32.f32 %v1306
        %v1499 = vcvt.s32.f32 %v1307
        %v1500 = vcvt.s32.f32 %v1308
        %v1501 = vcvt.s32.f32 %v1309
        %v1502 = vcvt.s32.f32 %v1310
        %v1503 = vcvt.s32.f32 %v1311
        %v1504 = vcvt.s32.f32 %v1312
        %v1505 = vcvt.s32.f32 %v1313
        %v1506 = vcvt.s32.f32 %v1314
        %v1507 = vcvt.s32.f32 %v1315
        %v1508 = vcvt.s32.f32 %v1316
        %v1509 = vcvt.s32.f32 %v1317
        %v1510 = vcvt.s32.f32 %v1318
        %v1511 = vcvt.s32.f32 %v1319
        %v1512 = vcvt.s32.f32 %v1320
        %v1513 = vcvt.s32.f32 %v1321
        %v1514 = vcvt.s32.f32 %v1322
        %v1515 = vcvt.s32.f32 %v1323
        %v1516 = vcvt.s32.f32 %v1324
        %v1517 = vcvt.s32.f32 %v1325
        %v1518 = vcvt.s32.f32 %v1326
        %v1519 = vcvt.s32.f32 %v1327
        %v1520 = vcvt.s32.f32 %v1328
        %v1521 = vcvt.s32.f32 %v1329
        %v1522 = vcvt.s32.f32 %v1330
        %v1523 = vcvt.s32.f32 %v1331
        %v1524 = vcvt.s32.f32 %v1332
        %v1525 = vcvt.s32.f32 %v1333
        %v1526 = vcvt.s32.f32 %v1334
        %v1527 = vcvt.s32.f32 %v1335
        %v1528 = vcvt.s32.f32 %v1336
        %v1529 = vcvt.s32.f32 %v1337
        %v1530 = vcvt.s32.f32 %v1338
        %v1531 = vcvt.s32.f32 %v1339
        %v1532 = vcvt.s32.f32 %v1340
        %v1533 = vcvt.s32.f32 %v1341
        %v1534 = vcvt.s32.f32 %v1342
        %v1535 = vcvt.s32.f32 %v1343
        %v1536 = vcvt.s32.f32 %v1344
        %v1537 = vcvt.s32.f32 %v1345
        %v1538 = vcvt.s32.f32 %v1346
        %v1539 = vcvt.s32.f32 %v1347
        %v1540 = vcvt.s32.f32 %v1348
        %v1541 = vcvt.s32.f32 %v1349
        %v1542 = vcvt.s32.f32 %v1350
        %v1543 = vcvt.s32.f32 %v1351
        %v1544 = vcvt.s32.f32 %v1352
        %v1545 = vcvt.s32.f32 %v1353
        %v1546 = vcvt.s32.f32 %v1354
        %v1547 = vcvt.s32.f32 %v1355
        %v1548 = vcvt.s32.f32 %v1356
        %v1549 = vcvt.s32.f32 %v1357
        %v1550 = vcvt.s32.f32 %v1358
        %v1551 = vcvt.s32.f32 %v1359
        %v1552 = vcvt.s32.f32 %v1360
        %v1553 = vcvt.s32.f32 %v1361
        %v1554 = vcvt.s32.f32 %v1362
        %v1555 = vcvt.s32.f32 %v1363
        %v1556 = vcvt.s32.f32 %v1364
        %v1557 = vcvt.s32.f32 %v1365
        %v1558 = vcvt.s32.f32 %v1366
        %v1559 = vcvt.s32.f32 %v1367
        %v1560 = vcvt.s32.f32 %v1368
        %v1561 = vcvt.s32.f32 %v1369
        %v1562 = vcvt.s32.f32 %v1370
        %v1563 = vcvt.s32.f32 %v1371
        %v1564 = vcvt.s32.f32 %v1372
        %v1565 = vcvt.s32.f32 %v1373
        %v1566 = vcvt.s32.f32 %v1374
        %v1567 = vcvt.s32.f32 %v1375
        %v1568 = vcvt.s32.f32 %v1376
        %v1569 = vcvt.s32.f32 %v1377
        %v1570 = vcvt.s32.f32 %v1378
        %v1571 = vcvt.s32.f32 %v1379
        %v1572 = vcvt.s32.f32 %v1380
        %v1573 = vcvt.s32.f32 %v1381
        %v1574 = vcvt.s32.f32 %v1382
        %v1575 = vcvt.s32.f32 %v1383
        %v1576 = vcvt.s32.f32 %v1384
        %v1577 = vcvt.s32.f32 %v1385
        %v1578 = vcvt.s32.f32 %v1386
        %v1579 = vcvt.s32.f32 %v1387
        %v1580 = vcvt.s32.f32 %v1388
        %v1581 = vcvt.s32.f32 %v1389
        %v1582 = vcvt.s32.f32 %v1390
        %v1583 = vcvt.s32.f32 %v1391
        %v1584 = vcvt.s32.f32 %v1392
        %v1585 = vcvt.s32.f32 %v1393
        %v1586 = vcvt.s32.f32 %v1394
        %v1587 = vcvt.s32.f32 %v1395
        %v1588 = vcvt.s32.f32 %v1396
        %v1589 = vcvt.s32.f32 %v1397
        %v1590 = vcvt.s32.f32 %v1398
        %v1591 = vcvt.s32.f32 %v1399
        %v1592 = vcvt.s32.f32 %v1400
        %v1593 = vcvt.s32.f32 %v1401
        %v1594 = vcvt.s32.f32 %v1402
        %v1595 = vcvt.s32.f32 %v1403
        %v1596 = vcvt.s32.f32 %v1404
        %v1597 = vcvt.s32.f32 %v1405
        %v1598 = vcvt.s32.f32 %v1406
        %v1599 = vcvt.s32.f32 %v1407
        %v1600 = vcvt.s32.f32 %v1408
        %v1601 = vcvt.s32.f32 %v1409
        %v1602 = vcvt.s32.f32 %v1410
        %v1603 = vcvt.s32.f32 %v1411
        %v1604 = vcvt.s32.f32 %v1412
        %v1605 = vcvt.s32.f32 %v1413
        %v1606 = vcvt.s32.f32 %v1414
        %v1607 = vcvt.s32.f32 %v1415
        %v1608 = vcvt.s32.f32 %v1416
        %v1609 = vcvt.s32.f32 %v1417
        %v1610 = vcvt.s32.f32 %v1418
        %v1611 = vcvt.s32.f32 %v1419
        %v1612 = vcvt.s32.f32 %v1420
        %v1613 = vcvt.s32.f32 %v1421
        %v1614 = vcvt.s32.f32 %v1422
        %v1615 = vcvt.s32.f32 %v1423
        %v1616 = vcvt.s32.f32 %v1424
        %v1617 = vcvt.s32.f32 %v1425
        %v1618 = vcvt.s32.f32 %v1426
        %v1619 = vcvt.s32.f32 %v1427
        %v1620 = vcvt.s32.f32 %v1428
        %v1621 = vcvt.s32.f32 %v1429
        %v1622 = vcvt.s32.f32 %v1430
        %v1623 = vcvt.s32.f32 %v1431
        %v1624 = vcvt.s32.f32 %v1432
        %v1625 = vcvt.s32.f32 %v1433
        %v1626 = vcvt.s32.f32 %v1434
        %v1627 = vcvt.s32.f32 %v1435
        %v1628 = vcvt.s32.f32 %v1436
        %v1629 = vcvt.s32.f32 %v1437
        %v1630 = vcvt.s32.f32 %v1438
        %v1631 = vcvt.s32.f32 %v1439
        %v1632 = vcvt.s32.f32 %v1440
        %v1633 = vcvt.s32.f32 %v1441
        %v1634 = vcvt.s32.f32 %v1442
        %v1635 = vcvt.s32.f32 %v1443
        %v1636 = vcvt.s32.f32 %v1444
        %v1637 = vcvt.s32.f32 %v1445
        %v1638 = vcvt.s32.f32 %v1446
        %v1639 = vcvt.s32.f32 %v1447
        %v1640 = vcvt.s32.f32 %v1448
        %v1641 = vcvt.s32.f32 %v1449
        %v1642 = vcvt.s32.f32 %v1450
        %v1643 = vcvt.s32.f32 %v1451
        %v1644 = vcvt.s32.f32 %v1452
        %v1645 = vcvt.s32.f32 %v1453
        %v1646 = vcvt.s32.f32 %v1454
        %v1647 = vcvt.s32.f32 %v1455
        %v1648 = vcvt.s32.f32 %v1456
        %v1649 = vcvt.s32.f32 %v1457
        %v1650 = vcvt.s32.f32 %v1458
        %v1651 = vcvt.s32.f32 %v1459
        %v1652 = vcvt.s32.f32 %v1460
        %v1653 = vcvt.s32.f32 %v1461
        %v1654 = vcvt.s32.f32 %v1462
        %v1655 = vcvt.s32.f32 %v1463
        %v1656 = vcvt.s32.f32 %v1464
        %v1657 = vcvt.s32.f32 %v1465
        %v1658 = vcvt.s32.f32 %v1466
        %v1659 = vcvt.s32.f32 %v1467
        %v1660 = vcvt.s32.f32 %v1468
        %v1661 = vcvt.s32.f32 %v1469
        %v1662 = vcvt.s32.f32 %v1470
        %v1663 = vcvt.s32.f32 %v1471
        %v1664 = vcvt.s32.f32 %v1472
        %v1665 = vcvt.s32.f32 %v1473
        %v1666 = vcvt.s32.f32 %v1474
        %v1667 = vcvt.s32.f32 %v1475
        %v1668 = vcvt.s32.f32 %v1476
        %v1669 = vcvt.s32.f32 %v1477
        %v1670 = vcvt.s32.f32 %v1478
        %v1671 = vcvt.s32.f32 %v1479
        %v1672 = vcvt.s32.f32 %v1480
        %v1673 = vcvt.s32.f32 %v1481
        %v1674 = vcvt.s32.f32 %v1482
        %v1675 = vcvt.s32.f32 %v1483
        %v1676 = vcvt.s32.f32 %v1484
        %v1677 = vcvt.s32.f32 %v1485
        %v1678 = vcvt.s32.f32 %v1486
        %v1679 = vcvt.s32.f32 %v1487
        %v1680 = vcvt.s32.f32 %v1488
        %1681 = vset.pattern.permute.xlu0 1
        %1682 = vperm.xlu0 %1681, %v143
        %v1683 = vpop.permute.xlu0 %1682
        %1684 = vset.pattern.permute.xlu0 1
        %1685 = vperm.xlu0 %1684, %v144
        %v1686 = vpop.permute.xlu0 %1685
        %1687 = vset.pattern.permute.xlu0 1
        %1688 = vperm.xlu0 %1687, %v145
        %v1689 = vpop.permute.xlu0 %1688
        %1690 = vset.pattern.permute.xlu0 1
        %1691 = vperm.xlu0 %1690, %v146
        %v1692 = vpop.permute.xlu0 %1691
        %1693 = vset.pattern.permute.xlu0 1
        %1694 = vperm.xlu0 %1693, %v147
        %v1695 = vpop.permute.xlu0 %1694
        %1696 = vset.pattern.permute.xlu0 1
        %1697 = vperm.xlu0 %1696, %v148
        %v1698 = vpop.permute.xlu0 %1697
        %1699 = vset.pattern.permute.xlu0 1
        %1700 = vperm.xlu0 %1699, %v149
        %v1701 = vpop.permute.xlu0 %1700
        %1702 = vset.pattern.permute.xlu0 1
        %1703 = vperm.xlu0 %1702, %v150
        %v1704 = vpop.permute.xlu0 %1703
        %1705 = vset.pattern.permute.xlu0 1
        %1706 = vperm.xlu0 %1705, %v151
        %v1707 = vpop.permute.xlu0 %1706
        %1708 = vset.pattern.permute.xlu0 1
        %1709 = vperm.xlu0 %1708, %v152
        %v1710 = vpop.permute.xlu0 %1709
        %1711 = vset.pattern.permute.xlu0 1
        %1712 = vperm.xlu0 %1711, %v153
        %v1713 = vpop.permute.xlu0 %1712
        %1714 = vset.pattern.permute.xlu0 1
        %1715 = vperm.xlu0 %1714, %v154
        %v1716 = vpop.permute.xlu0 %1715
        %1717 = vset.pattern.permute.xlu0 1
        %1718 = vperm.xlu0 %1717, %v155
        %v1719 = vpop.permute.xlu0 %1718
        %1720 = vset.pattern.permute.xlu0 1
        %1721 = vperm.xlu0 %1720, %v156
        %v1722 = vpop.permute.xlu0 %1721
        %1723 = vset.pattern.permute.xlu0 1
        %1724 = vperm.xlu0 %1723, %v157
        %v1725 = vpop.permute.xlu0 %1724
        %1726 = vset.pattern.permute.xlu0 1
        %1727 = vperm.xlu0 %1726, %v158
        %v1728 = vpop.permute.xlu0 %1727
        %1729 = vset.pattern.permute.xlu0 1
        %1730 = vperm.xlu0 %1729, %v159
        %v1731 = vpop.permute.xlu0 %1730
        %1732 = vset.pattern.permute.xlu0 1
        %1733 = vperm.xlu0 %1732, %v160
        %v1734 = vpop.permute.xlu0 %1733
        %1735 = vset.pattern.permute.xlu0 1
        %1736 = vperm.xlu0 %1735, %v161
        %v1737 = vpop.permute.xlu0 %1736
        %1738 = vset.pattern.permute.xlu0 1
        %1739 = vperm.xlu0 %1738, %v162
        %v1740 = vpop.permute.xlu0 %1739
        %1741 = vset.pattern.permute.xlu0 1
        %1742 = vperm.xlu0 %1741, %v163
        %v1743 = vpop.permute.xlu0 %1742
        %1744 = vset.pattern.permute.xlu0 1
        %1745 = vperm.xlu0 %1744, %v164
        %v1746 = vpop.permute.xlu0 %1745
        %1747 = vset.pattern.permute.xlu0 1
        %1748 = vperm.xlu0 %1747, %v165
        %v1749 = vpop.permute.xlu0 %1748
        %1750 = vset.pattern.permute.xlu0 1
        %1751 = vperm.xlu0 %1750, %v166
        %v1752 = vpop.permute.xlu0 %1751
        %1753 = vset.pattern.permute.xlu0 1
        %1754 = vperm.xlu0 %1753, %v167
        %v1755 = vpop.permute.xlu0 %1754
        %1756 = vset.pattern.permute.xlu0 1
        %1757 = vperm.xlu0 %1756, %v168
        %v1758 = vpop.permute.xlu0 %1757
        %1759 = vset.pattern.permute.xlu0 1
        %1760 = vperm.xlu0 %1759, %v169
        %v1761 = vpop.permute.xlu0 %1760
        %1762 = vset.pattern.permute.xlu0 1
        %1763 = vperm.xlu0 %1762, %v170
        %v1764 = vpop.permute.xlu0 %1763
        %1765 = vset.pattern.permute.xlu0 1
        %1766 = vperm.xlu0 %1765, %v171
        %v1767 = vpop.permute.xlu0 %1766
        %1768 = vset.pattern.permute.xlu0 1
        %1769 = vperm.xlu0 %1768, %v172
        %v1770 = vpop.permute.xlu0 %1769
        %1771 = vset.pattern.permute.xlu0 1
        %1772 = vperm.xlu0 %1771, %v173
        %v1773 = vpop.permute.xlu0 %1772
        %1774 = vset.pattern.permute.xlu0 1
        %1775 = vperm.xlu0 %1774, %v174
        %v1776 = vpop.permute.xlu0 %1775
        %1777 = vset.pattern.permute.xlu0 1
        %1778 = vperm.xlu0 %1777, %v175
        %v1779 = vpop.permute.xlu0 %1778
        %1780 = vset.pattern.permute.xlu0 1
        %1781 = vperm.xlu0 %1780, %v176
        %v1782 = vpop.permute.xlu0 %1781
        %1783 = vset.pattern.permute.xlu0 1
        %1784 = vperm.xlu0 %1783, %v177
        %v1785 = vpop.permute.xlu0 %1784
        %1786 = vset.pattern.permute.xlu0 1
        %1787 = vperm.xlu0 %1786, %v178
        %v1788 = vpop.permute.xlu0 %1787
        %1789 = vset.pattern.permute.xlu0 1
        %1790 = vperm.xlu0 %1789, %v179
        %v1791 = vpop.permute.xlu0 %1790
        %1792 = vset.pattern.permute.xlu0 1
        %1793 = vperm.xlu0 %1792, %v180
        %v1794 = vpop.permute.xlu0 %1793
        %1795 = vset.pattern.permute.xlu0 1
        %1796 = vperm.xlu0 %1795, %v181
        %v1797 = vpop.permute.xlu0 %1796
        %1798 = vset.pattern.permute.xlu0 1
        %1799 = vperm.xlu0 %1798, %v182
        %v1800 = vpop.permute.xlu0 %1799
        %1801 = vset.pattern.permute.xlu0 1
        %1802 = vperm.xlu0 %1801, %v183
        %v1803 = vpop.permute.xlu0 %1802
        %1804 = vset.pattern.permute.xlu0 1
        %1805 = vperm.xlu0 %1804, %v184
        %v1806 = vpop.permute.xlu0 %1805
        %1807 = vset.pattern.permute.xlu0 1
        %1808 = vperm.xlu0 %1807, %v185
        %v1809 = vpop.permute.xlu0 %1808
        %1810 = vset.pattern.permute.xlu0 1
        %1811 = vperm.xlu0 %1810, %v186
        %v1812 = vpop.permute.xlu0 %1811
        %1813 = vset.pattern.permute.xlu0 1
        %1814 = vperm.xlu0 %1813, %v187
        %v1815 = vpop.permute.xlu0 %1814
        %1816 = vset.pattern.permute.xlu0 1
        %1817 = vperm.xlu0 %1816, %v188
        %v1818 = vpop.permute.xlu0 %1817
        %1819 = vset.pattern.permute.xlu0 1
        %1820 = vperm.xlu0 %1819, %v189
        %v1821 = vpop.permute.xlu0 %1820
        %1822 = vset.pattern.permute.xlu0 1
        %1823 = vperm.xlu0 %1822, %v190
        %v1824 = vpop.permute.xlu0 %1823
        %1825 = vset.pattern.permute.xlu0 1
        %1826 = vperm.xlu0 %1825, %v191
        %v1827 = vpop.permute.xlu0 %1826
        %1828 = vset.pattern.permute.xlu0 1
        %1829 = vperm.xlu0 %1828, %v192
        %v1830 = vpop.permute.xlu0 %1829
        %1831 = vset.pattern.permute.xlu0 1
        %1832 = vperm.xlu0 %1831, %v193
        %v1833 = vpop.permute.xlu0 %1832
        %1834 = vset.pattern.permute.xlu0 1
        %1835 = vperm.xlu0 %1834, %v194
        %v1836 = vpop.permute.xlu0 %1835
        %1837 = vset.pattern.permute.xlu0 1
        %1838 = vperm.xlu0 %1837, %v195
        %v1839 = vpop.permute.xlu0 %1838
        %1840 = vset.pattern.permute.xlu0 1
        %1841 = vperm.xlu0 %1840, %v196
        %v1842 = vpop.permute.xlu0 %1841
        %1843 = vset.pattern.permute.xlu0 1
        %1844 = vperm.xlu0 %1843, %v197
        %v1845 = vpop.permute.xlu0 %1844
        %1846 = vset.pattern.permute.xlu0 1
        %1847 = vperm.xlu0 %1846, %v198
        %v1848 = vpop.permute.xlu0 %1847
        %1849 = vset.pattern.permute.xlu0 1
        %1850 = vperm.xlu0 %1849, %v199
        %v1851 = vpop.permute.xlu0 %1850
        %1852 = vset.pattern.permute.xlu0 1
        %1853 = vperm.xlu0 %1852, %v200
        %v1854 = vpop.permute.xlu0 %1853
        %1855 = vset.pattern.permute.xlu0 1
        %1856 = vperm.xlu0 %1855, %v201
        %v1857 = vpop.permute.xlu0 %1856
        %1858 = vset.pattern.permute.xlu0 1
        %1859 = vperm.xlu0 %1858, %v202
        %v1860 = vpop.permute.xlu0 %1859
        %1861 = vset.pattern.permute.xlu0 1
        %1862 = vperm.xlu0 %1861, %v203
        %v1863 = vpop.permute.xlu0 %1862
        %1864 = vset.pattern.permute.xlu0 1
        %1865 = vperm.xlu0 %1864, %v204
        %v1866 = vpop.permute.xlu0 %1865
        %1867 = vset.pattern.permute.xlu0 1
        %1868 = vperm.xlu0 %1867, %v205
        %v1869 = vpop.permute.xlu0 %1868
        %1870 = vset.pattern.permute.xlu0 1
        %1871 = vperm.xlu0 %1870, %v206
        %v1872 = vpop.permute.xlu0 %1871
        %1873 = vset.pattern.permute.xlu0 1
        %1874 = vperm.xlu0 %1873, %v207
        %v1875 = vpop.permute.xlu0 %1874
        %1876 = vset.pattern.permute.xlu0 1
        %1877 = vperm.xlu0 %1876, %v208
        %v1878 = vpop.permute.xlu0 %1877
        %1879 = vset.pattern.permute.xlu0 1
        %1880 = vperm.xlu0 %1879, %v209
        %v1881 = vpop.permute.xlu0 %1880
        %1882 = vset.pattern.permute.xlu0 1
        %1883 = vperm.xlu0 %1882, %v210
        %v1884 = vpop.permute.xlu0 %1883
        %1885 = vset.pattern.permute.xlu0 1
        %1886 = vperm.xlu0 %1885, %v211
        %v1887 = vpop.permute.xlu0 %1886
        %1888 = vset.pattern.permute.xlu0 1
        %1889 = vperm.xlu0 %1888, %v212
        %v1890 = vpop.permute.xlu0 %1889
        %1891 = vset.pattern.permute.xlu0 1
        %1892 = vperm.xlu0 %1891, %v213
        %v1893 = vpop.permute.xlu0 %1892
        %1894 = vset.pattern.permute.xlu0 1
        %1895 = vperm.xlu0 %1894, %v214
        %v1896 = vpop.permute.xlu0 %1895
        %1897 = vset.pattern.permute.xlu0 1
        %1898 = vperm.xlu0 %1897, %v215
        %v1899 = vpop.permute.xlu0 %1898
        %1900 = vset.pattern.permute.xlu0 1
        %1901 = vperm.xlu0 %1900, %v216
        %v1902 = vpop.permute.xlu0 %1901
        %1903 = vset.pattern.permute.xlu0 1
        %1904 = vperm.xlu0 %1903, %v217
        %v1905 = vpop.permute.xlu0 %1904
        %1906 = vset.pattern.permute.xlu0 1
        %1907 = vperm.xlu0 %1906, %v218
        %v1908 = vpop.permute.xlu0 %1907
        %1909 = vset.pattern.permute.xlu0 1
        %1910 = vperm.xlu0 %1909, %v219
        %v1911 = vpop.permute.xlu0 %1910
        %1912 = vset.pattern.permute.xlu0 1
        %1913 = vperm.xlu0 %1912, %v220
        %v1914 = vpop.permute.xlu0 %1913
        %1915 = vset.pattern.permute.xlu0 1
        %1916 = vperm.xlu0 %1915, %v221
        %v1917 = vpop.permute.xlu0 %1916
        %1918 = vset.pattern.permute.xlu0 1
        %1919 = vperm.xlu0 %1918, %v222
        %v1920 = vpop.permute.xlu0 %1919
        %1921 = vset.pattern.permute.xlu0 1
        %1922 = vperm.xlu0 %1921, %v223
        %v1923 = vpop.permute.xlu0 %1922
        %1924 = vset.pattern.permute.xlu0 1
        %1925 = vperm.xlu0 %1924, %v224
        %v1926 = vpop.permute.xlu0 %1925
        %1927 = vset.pattern.permute.xlu0 1
        %1928 = vperm.xlu0 %1927, %v225
        %v1929 = vpop.permute.xlu0 %1928
        %1930 = vset.pattern.permute.xlu0 1
        %1931 = vperm.xlu0 %1930, %v226
        %v1932 = vpop.permute.xlu0 %1931
        %1933 = vset.pattern.permute.xlu0 1
        %1934 = vperm.xlu0 %1933, %v227
        %v1935 = vpop.permute.xlu0 %1934
        %1936 = vset.pattern.permute.xlu0 1
        %1937 = vperm.xlu0 %1936, %v228
        %v1938 = vpop.permute.xlu0 %1937
        %1939 = vset.pattern.permute.xlu0 1
        %1940 = vperm.xlu0 %1939, %v229
        %v1941 = vpop.permute.xlu0 %1940
        %1942 = vset.pattern.permute.xlu0 1
        %1943 = vperm.xlu0 %1942, %v230
        %v1944 = vpop.permute.xlu0 %1943
        %1945 = vset.pattern.permute.xlu0 1
        %1946 = vperm.xlu0 %1945, %v231
        %v1947 = vpop.permute.xlu0 %1946
        %1948 = vset.pattern.permute.xlu0 1
        %1949 = vperm.xlu0 %1948, %v232
        %v1950 = vpop.permute.xlu0 %1949
        %1951 = vset.pattern.permute.xlu0 1
        %1952 = vperm.xlu0 %1951, %v233
        %v1953 = vpop.permute.xlu0 %1952
        %1954 = vset.pattern.permute.xlu0 1
        %1955 = vperm.xlu0 %1954, %v234
        %v1956 = vpop.permute.xlu0 %1955
        %1957 = vset.pattern.permute.xlu0 1
        %1958 = vperm.xlu0 %1957, %v235
        %v1959 = vpop.permute.xlu0 %1958
        %1960 = vset.pattern.permute.xlu0 1
        %1961 = vperm.xlu0 %1960, %v236
        %v1962 = vpop.permute.xlu0 %1961
        %1963 = vset.pattern.permute.xlu0 1
        %1964 = vperm.xlu0 %1963, %v237
        %v1965 = vpop.permute.xlu0 %1964
        %1966 = vset.pattern.permute.xlu0 1
        %1967 = vperm.xlu0 %1966, %v238
        %v1968 = vpop.permute.xlu0 %1967
        %1969 = vset.pattern.permute.xlu0 1
        %1970 = vperm.xlu0 %1969, %v239
        %v1971 = vpop.permute.xlu0 %1970
        %1972 = vset.pattern.permute.xlu0 1
        %1973 = vperm.xlu0 %1972, %v240
        %v1974 = vpop.permute.xlu0 %1973
        %1975 = vset.pattern.permute.xlu0 1
        %1976 = vperm.xlu0 %1975, %v241
        %v1977 = vpop.permute.xlu0 %1976
        %1978 = vset.pattern.permute.xlu0 1
        %1979 = vperm.xlu0 %1978, %v242
        %v1980 = vpop.permute.xlu0 %1979
        %1981 = vset.pattern.permute.xlu0 1
        %1982 = vperm.xlu0 %1981, %v243
        %v1983 = vpop.permute.xlu0 %1982
        %1984 = vset.pattern.permute.xlu0 1
        %1985 = vperm.xlu0 %1984, %v244
        %v1986 = vpop.permute.xlu0 %1985
        %1987 = vset.pattern.permute.xlu0 1
        %1988 = vperm.xlu0 %1987, %v245
        %v1989 = vpop.permute.xlu0 %1988
        %1990 = vset.pattern.permute.xlu0 1
        %1991 = vperm.xlu0 %1990, %v246
        %v1992 = vpop.permute.xlu0 %1991
        %1993 = vset.pattern.permute.xlu0 1
        %1994 = vperm.xlu0 %1993, %v247
        %v1995 = vpop.permute.xlu0 %1994
        %1996 = vset.pattern.permute.xlu0 1
        %1997 = vperm.xlu0 %1996, %v248
        %v1998 = vpop.permute.xlu0 %1997
        %1999 = vset.pattern.permute.xlu0 1
        %2000 = vperm.xlu0 %1999, %v249
        %v2001 = vpop.permute.xlu0 %2000
        %2002 = vset.pattern.permute.xlu0 1
        %2003 = vperm.xlu0 %2002, %v250
        %v2004 = vpop.permute.xlu0 %2003
        %2005 = vset.pattern.permute.xlu0 1
        %2006 = vperm.xlu0 %2005, %v251
        %v2007 = vpop.permute.xlu0 %2006
        %2008 = vset.pattern.permute.xlu0 1
        %2009 = vperm.xlu0 %2008, %v252
        %v2010 = vpop.permute.xlu0 %2009
        %2011 = vset.pattern.permute.xlu0 1
        %2012 = vperm.xlu0 %2011, %v253
        %v2013 = vpop.permute.xlu0 %2012
        %2014 = vset.pattern.permute.xlu0 1
        %2015 = vperm.xlu0 %2014, %v254
        %v2016 = vpop.permute.xlu0 %2015
        %2017 = vset.pattern.permute.xlu0 1
        %2018 = vperm.xlu0 %2017, %v255
        %v2019 = vpop.permute.xlu0 %2018
        %2020 = vset.pattern.permute.xlu0 1
        %2021 = vperm.xlu0 %2020, %v256
        %v2022 = vpop.permute.xlu0 %2021
        %2023 = vset.pattern.permute.xlu0 1
        %2024 = vperm.xlu0 %2023, %v257
        %v2025 = vpop.permute.xlu0 %2024
        %2026 = vset.pattern.permute.xlu0 1
        %2027 = vperm.xlu0 %2026, %v258
        %v2028 = vpop.permute.xlu0 %2027
        %2029 = vset.pattern.permute.xlu0 1
        %2030 = vperm.xlu0 %2029, %v259
        %v2031 = vpop.permute.xlu0 %2030
        %2032 = vset.pattern.permute.xlu0 1
        %2033 = vperm.xlu0 %2032, %v260
        %v2034 = vpop.permute.xlu0 %2033
        %2035 = vset.pattern.permute.xlu0 1
        %2036 = vperm.xlu0 %2035, %v261
        %v2037 = vpop.permute.xlu0 %2036
        %2038 = vset.pattern.permute.xlu0 1
        %2039 = vperm.xlu0 %2038, %v262
        %v2040 = vpop.permute.xlu0 %2039
        %2041 = vset.pattern.permute.xlu0 1
        %2042 = vperm.xlu0 %2041, %v263
        %v2043 = vpop.permute.xlu0 %2042
        %2044 = vset.pattern.permute.xlu0 1
        %2045 = vperm.xlu0 %2044, %v264
        %v2046 = vpop.permute.xlu0 %2045
        %2047 = vset.pattern.permute.xlu0 1
        %2048 = vperm.xlu0 %2047, %v265
        %v2049 = vpop.permute.xlu0 %2048
        %2050 = vset.pattern.permute.xlu0 1
        %2051 = vperm.xlu0 %2050, %v266
        %v2052 = vpop.permute.xlu0 %2051
        %2053 = vset.pattern.permute.xlu0 1
        %2054 = vperm.xlu0 %2053, %v267
        %v2055 = vpop.permute.xlu0 %2054
        %2056 = vset.pattern.permute.xlu0 1
        %2057 = vperm.xlu0 %2056, %v268
        %v2058 = vpop.permute.xlu0 %2057
        %2059 = vset.pattern.permute.xlu0 1
        %2060 = vperm.xlu0 %2059, %v269
        %v2061 = vpop.permute.xlu0 %2060
        %2062 = vset.pattern.permute.xlu0 1
        %2063 = vperm.xlu0 %2062, %v270
        %v2064 = vpop.permute.xlu0 %2063
        %2065 = vset.pattern.permute.xlu0 1
        %2066 = vperm.xlu0 %2065, %v271
        %v2067 = vpop.permute.xlu0 %2066
        %2068 = vset.pattern.permute.xlu0 1
        %2069 = vperm.xlu0 %2068, %v272
        %v2070 = vpop.permute.xlu0 %2069
        %2071 = vset.pattern.permute.xlu0 1
        %2072 = vperm.xlu0 %2071, %v273
        %v2073 = vpop.permute.xlu0 %2072
        %2074 = vset.pattern.permute.xlu0 1
        %2075 = vperm.xlu0 %2074, %v274
        %v2076 = vpop.permute.xlu0 %2075
        %2077 = vset.pattern.permute.xlu0 1
        %2078 = vperm.xlu0 %2077, %v275
        %v2079 = vpop.permute.xlu0 %2078
        %2080 = vset.pattern.permute.xlu0 1
        %2081 = vperm.xlu0 %2080, %v276
        %v2082 = vpop.permute.xlu0 %2081
        %2083 = vset.pattern.permute.xlu0 1
        %2084 = vperm.xlu0 %2083, %v277
        %v2085 = vpop.permute.xlu0 %2084
        %2086 = vset.pattern.permute.xlu0 1
        %2087 = vperm.xlu0 %2086, %v278
        %v2088 = vpop.permute.xlu0 %2087
        %2089 = vset.pattern.permute.xlu0 1
        %2090 = vperm.xlu0 %2089, %v279
        %v2091 = vpop.permute.xlu0 %2090
        %2092 = vset.pattern.permute.xlu0 1
        %2093 = vperm.xlu0 %2092, %v280
        %v2094 = vpop.permute.xlu0 %2093
        %2095 = vset.pattern.permute.xlu0 1
        %2096 = vperm.xlu0 %2095, %v281
        %v2097 = vpop.permute.xlu0 %2096
        %2098 = vset.pattern.permute.xlu0 1
        %2099 = vperm.xlu0 %2098, %v282
        %v2100 = vpop.permute.xlu0 %2099
        %2101 = vset.pattern.permute.xlu0 1
        %2102 = vperm.xlu0 %2101, %v283
        %v2103 = vpop.permute.xlu0 %2102
        %2104 = vset.pattern.permute.xlu0 1
        %2105 = vperm.xlu0 %2104, %v284
        %v2106 = vpop.permute.xlu0 %2105
        %2107 = vset.pattern.permute.xlu0 1
        %2108 = vperm.xlu0 %2107, %v285
        %v2109 = vpop.permute.xlu0 %2108
        %2110 = vset.pattern.permute.xlu0 1
        %2111 = vperm.xlu0 %2110, %v286
        %v2112 = vpop.permute.xlu0 %2111
        %2113 = vset.pattern.permute.xlu0 1
        %2114 = vperm.xlu0 %2113, %v287
        %v2115 = vpop.permute.xlu0 %2114
        %2116 = vset.pattern.permute.xlu0 1
        %2117 = vperm.xlu0 %2116, %v288
        %v2118 = vpop.permute.xlu0 %2117
        %2119 = vset.pattern.permute.xlu0 1
        %2120 = vperm.xlu0 %2119, %v289
        %v2121 = vpop.permute.xlu0 %2120
        %2122 = vset.pattern.permute.xlu0 1
        %2123 = vperm.xlu0 %2122, %v290
        %v2124 = vpop.permute.xlu0 %2123
        %2125 = vset.pattern.permute.xlu0 1
        %2126 = vperm.xlu0 %2125, %v291
        %v2127 = vpop.permute.xlu0 %2126
        %2128 = vset.pattern.permute.xlu0 1
        %2129 = vperm.xlu0 %2128, %v292
        %v2130 = vpop.permute.xlu0 %2129
        %2131 = vset.pattern.permute.xlu0 1
        %2132 = vperm.xlu0 %2131, %v293
        %v2133 = vpop.permute.xlu0 %2132
        %2134 = vset.pattern.permute.xlu0 1
        %2135 = vperm.xlu0 %2134, %v294
        %v2136 = vpop.permute.xlu0 %2135
        %2137 = vset.pattern.permute.xlu0 1
        %2138 = vperm.xlu0 %2137, %v295
        %v2139 = vpop.permute.xlu0 %2138
        %2140 = vset.pattern.permute.xlu0 1
        %2141 = vperm.xlu0 %2140, %v296
        %v2142 = vpop.permute.xlu0 %2141
        %2143 = vset.pattern.permute.xlu0 1
        %2144 = vperm.xlu0 %2143, %v297
        %v2145 = vpop.permute.xlu0 %2144
        %2146 = vset.pattern.permute.xlu0 1
        %2147 = vperm.xlu0 %2146, %v298
        %v2148 = vpop.permute.xlu0 %2147
        %2149 = vset.pattern.permute.xlu0 1
        %2150 = vperm.xlu0 %2149, %v299
        %v2151 = vpop.permute.xlu0 %2150
        %2152 = vset.pattern.permute.xlu0 1
        %2153 = vperm.xlu0 %2152, %v300
        %v2154 = vpop.permute.xlu0 %2153
        %2155 = vset.pattern.permute.xlu0 1
        %2156 = vperm.xlu0 %2155, %v301
        %v2157 = vpop.permute.xlu0 %2156
        %2158 = vset.pattern.permute.xlu0 1
        %2159 = vperm.xlu0 %2158, %v302
        %v2160 = vpop.permute.xlu0 %2159
        %2161 = vset.pattern.permute.xlu0 1
        %2162 = vperm.xlu0 %2161, %v303
        %v2163 = vpop.permute.xlu0 %2162
        %2164 = vset.pattern.permute.xlu0 1
        %2165 = vperm.xlu0 %2164, %v304
        %v2166 = vpop.permute.xlu0 %2165
        %2167 = vset.pattern.permute.xlu0 1
        %2168 = vperm.xlu0 %2167, %v305
        %v2169 = vpop.permute.xlu0 %2168
        %2170 = vset.pattern.permute.xlu0 1
        %2171 = vperm.xlu0 %2170, %v306
        %v2172 = vpop.permute.xlu0 %2171
        %2173 = vset.pattern.permute.xlu0 1
        %2174 = vperm.xlu0 %2173, %v307
        %v2175 = vpop.permute.xlu0 %2174
        %2176 = vset.pattern.permute.xlu0 1
        %2177 = vperm.xlu0 %2176, %v308
        %v2178 = vpop.permute.xlu0 %2177
        %2179 = vset.pattern.permute.xlu0 1
        %2180 = vperm.xlu0 %2179, %v309
        %v2181 = vpop.permute.xlu0 %2180
        %2182 = vset.pattern.permute.xlu0 1
        %2183 = vperm.xlu0 %2182, %v310
        %v2184 = vpop.permute.xlu0 %2183
        %2185 = vset.pattern.permute.xlu0 1
        %2186 = vperm.xlu0 %2185, %v311
        %v2187 = vpop.permute.xlu0 %2186
        %2188 = vset.pattern.permute.xlu0 1
        %2189 = vperm.xlu0 %2188, %v312
        %v2190 = vpop.permute.xlu0 %2189
        %2191 = vset.pattern.permute.xlu0 1
        %2192 = vperm.xlu0 %2191, %v313
        %v2193 = vpop.permute.xlu0 %2192
        %2194 = vset.pattern.permute.xlu0 1
        %2195 = vperm.xlu0 %2194, %v314
        %v2196 = vpop.permute.xlu0 %2195
        %2197 = vset.pattern.permute.xlu0 1
        %2198 = vperm.xlu0 %2197, %v315
        %v2199 = vpop.permute.xlu0 %2198
        %2200 = vset.pattern.permute.xlu0 1
        %2201 = vperm.xlu0 %2200, %v316
        %v2202 = vpop.permute.xlu0 %2201
        %2203 = vset.pattern.permute.xlu0 1
        %2204 = vperm.xlu0 %2203, %v317
        %v2205 = vpop.permute.xlu0 %2204
        %2206 = vset.pattern.permute.xlu0 1
        %2207 = vperm.xlu0 %2206, %v318
        %v2208 = vpop.permute.xlu0 %2207
        %2209 = vset.pattern.permute.xlu0 1
        %2210 = vperm.xlu0 %2209, %v319
        %v2211 = vpop.permute.xlu0 %2210
        %2212 = vset.pattern.permute.xlu0 1
        %2213 = vperm.xlu0 %2212, %v320
        %v2214 = vpop.permute.xlu0 %2213
        %2215 = vset.pattern.permute.xlu0 1
        %2216 = vperm.xlu0 %2215, %v321
        %v2217 = vpop.permute.xlu0 %2216
        %2218 = vset.pattern.permute.xlu0 1
        %2219 = vperm.xlu0 %2218, %v322
        %v2220 = vpop.permute.xlu0 %2219
        %2221 = vset.pattern.permute.xlu0 1
        %2222 = vperm.xlu0 %2221, %v323
        %v2223 = vpop.permute.xlu0 %2222
        %2224 = vset.pattern.permute.xlu0 1
        %2225 = vperm.xlu0 %2224, %v324
        %v2226 = vpop.permute.xlu0 %2225
        %2227 = vset.pattern.permute.xlu0 1
        %2228 = vperm.xlu0 %2227, %v325
        %v2229 = vpop.permute.xlu0 %2228
        %2230 = vset.pattern.permute.xlu0 1
        %2231 = vperm.xlu0 %2230, %v326
        %v2232 = vpop.permute.xlu0 %2231
        %2233 = vset.pattern.permute.xlu0 1
        %2234 = vperm.xlu0 %2233, %v327
        %v2235 = vpop.permute.xlu0 %2234
        %2236 = vset.pattern.permute.xlu0 1
        %2237 = vperm.xlu0 %2236, %v328
        %v2238 = vpop.permute.xlu0 %2237
        %2239 = vset.pattern.permute.xlu0 1
        %2240 = vperm.xlu0 %2239, %v329
        %v2241 = vpop.permute.xlu0 %2240
        %2242 = vset.pattern.permute.xlu0 1
        %2243 = vperm.xlu0 %2242, %v330
        %v2244 = vpop.permute.xlu0 %2243
        %2245 = vset.pattern.permute.xlu0 1
        %2246 = vperm.xlu0 %2245, %v331
        %v2247 = vpop.permute.xlu0 %2246
        %2248 = vset.pattern.permute.xlu0 1
        %2249 = vperm.xlu0 %2248, %v332
        %v2250 = vpop.permute.xlu0 %2249
        %2251 = vset.pattern.permute.xlu0 1
        %2252 = vperm.xlu0 %2251, %v333
        %v2253 = vpop.permute.xlu0 %2252
        %2254 = vset.pattern.permute.xlu0 1
        %2255 = vperm.xlu0 %2254, %v334
        %v2256 = vpop.permute.xlu0 %2255
        %vm2257 = vcmp.eq.s32.totalorder %v1683, %v528
        %vm2258 = vcmp.eq.s32.totalorder %v1686, %v528
        %vm2259 = vcmp.eq.s32.totalorder %v1689, %v528
        %vm2260 = vcmp.eq.s32.totalorder %v1692, %v528
        %vm2261 = vcmp.eq.s32.totalorder %v1695, %v528
        %vm2262 = vcmp.eq.s32.totalorder %v1698, %v528
        %vm2263 = vcmp.eq.s32.totalorder %v1701, %v528
        %vm2264 = vcmp.eq.s32.totalorder %v1704, %v528
        %vm2265 = vcmp.eq.s32.totalorder %v1707, %v528
        %vm2266 = vcmp.eq.s32.totalorder %v1710, %v528
        %vm2267 = vcmp.eq.s32.totalorder %v1713, %v528
        %vm2268 = vcmp.eq.s32.totalorder %v1716, %v528
        %vm2269 = vcmp.eq.s32.totalorder %v1719, %v528
        %vm2270 = vcmp.eq.s32.totalorder %v1722, %v528
        %vm2271 = vcmp.eq.s32.totalorder %v1725, %v528
        %vm2272 = vcmp.eq.s32.totalorder %v1728, %v528
        %vm2273 = vcmp.eq.s32.totalorder %v1731, %v528
        %vm2274 = vcmp.eq.s32.totalorder %v1734, %v528
        %vm2275 = vcmp.eq.s32.totalorder %v1737, %v528
        %vm2276 = vcmp.eq.s32.totalorder %v1740, %v528
        %vm2277 = vcmp.eq.s32.totalorder %v1743, %v528
        %vm2278 = vcmp.eq.s32.totalorder %v1746, %v528
        %vm2279 = vcmp.eq.s32.totalorder %v1749, %v528
        %vm2280 = vcmp.eq.s32.totalorder %v1752, %v528
        %vm2281 = vcmp.eq.s32.totalorder %v1755, %v528
        %vm2282 = vcmp.eq.s32.totalorder %v1758, %v528
        %vm2283 = vcmp.eq.s32.totalorder %v1761, %v528
        %vm2284 = vcmp.eq.s32.totalorder %v1764, %v528
        %vm2285 = vcmp.eq.s32.totalorder %v1767, %v528
        %vm2286 = vcmp.eq.s32.totalorder %v1770, %v528
        %vm2287 = vcmp.eq.s32.totalorder %v1773, %v528
        %vm2288 = vcmp.eq.s32.totalorder %v1776, %v528
        %vm2289 = vcmp.eq.s32.totalorder %v1779, %v528
        %vm2290 = vcmp.eq.s32.totalorder %v1782, %v528
        %vm2291 = vcmp.eq.s32.totalorder %v1785, %v528
        %vm2292 = vcmp.eq.s32.totalorder %v1788, %v528
        %vm2293 = vcmp.eq.s32.totalorder %v1791, %v528
        %vm2294 = vcmp.eq.s32.totalorder %v1794, %v528
        %vm2295 = vcmp.eq.s32.totalorder %v1797, %v528
        %vm2296 = vcmp.eq.s32.totalorder %v1800, %v528
        %vm2297 = vcmp.eq.s32.totalorder %v1803, %v528
        %vm2298 = vcmp.eq.s32.totalorder %v1806, %v528
        %vm2299 = vcmp.eq.s32.totalorder %v1809, %v528
        %vm2300 = vcmp.eq.s32.totalorder %v1812, %v528
        %vm2301 = vcmp.eq.s32.totalorder %v1815, %v528
        %vm2302 = vcmp.eq.s32.totalorder %v1818, %v528
        %vm2303 = vcmp.eq.s32.totalorder %v1821, %v528
        %vm2304 = vcmp.eq.s32.totalorder %v1824, %v528
        %vm2305 = vcmp.eq.s32.totalorder %v1827, %v528
        %vm2306 = vcmp.eq.s32.totalorder %v1830, %v528
        %vm2307 = vcmp.eq.s32.totalorder %v1833, %v528
        %vm2308 = vcmp.eq.s32.totalorder %v1836, %v528
        %vm2309 = vcmp.eq.s32.totalorder %v1839, %v528
        %vm2310 = vcmp.eq.s32.totalorder %v1842, %v528
        %vm2311 = vcmp.eq.s32.totalorder %v1845, %v528
        %vm2312 = vcmp.eq.s32.totalorder %v1848, %v528
        %vm2313 = vcmp.eq.s32.totalorder %v1851, %v528
        %vm2314 = vcmp.eq.s32.totalorder %v1854, %v528
        %vm2315 = vcmp.eq.s32.totalorder %v1857, %v528
        %vm2316 = vcmp.eq.s32.totalorder %v1860, %v528
        %vm2317 = vcmp.eq.s32.totalorder %v1863, %v528
        %vm2318 = vcmp.eq.s32.totalorder %v1866, %v528
        %vm2319 = vcmp.eq.s32.totalorder %v1869, %v528
        %vm2320 = vcmp.eq.s32.totalorder %v1872, %v528
        %vm2321 = vcmp.eq.s32.totalorder %v1875, %v528
        %vm2322 = vcmp.eq.s32.totalorder %v1878, %v528
        %vm2323 = vcmp.eq.s32.totalorder %v1881, %v528
        %vm2324 = vcmp.eq.s32.totalorder %v1884, %v528
        %vm2325 = vcmp.eq.s32.totalorder %v1887, %v528
        %vm2326 = vcmp.eq.s32.totalorder %v1890, %v528
        %vm2327 = vcmp.eq.s32.totalorder %v1893, %v528
        %vm2328 = vcmp.eq.s32.totalorder %v1896, %v528
        %vm2329 = vcmp.eq.s32.totalorder %v1899, %v528
        %vm2330 = vcmp.eq.s32.totalorder %v1902, %v528
        %vm2331 = vcmp.eq.s32.totalorder %v1905, %v528
        %vm2332 = vcmp.eq.s32.totalorder %v1908, %v528
        %vm2333 = vcmp.eq.s32.totalorder %v1911, %v528
        %vm2334 = vcmp.eq.s32.totalorder %v1914, %v528
        %vm2335 = vcmp.eq.s32.totalorder %v1917, %v528
        %vm2336 = vcmp.eq.s32.totalorder %v1920, %v528
        %vm2337 = vcmp.eq.s32.totalorder %v1923, %v528
        %vm2338 = vcmp.eq.s32.totalorder %v1926, %v528
        %vm2339 = vcmp.eq.s32.totalorder %v1929, %v528
        %vm2340 = vcmp.eq.s32.totalorder %v1932, %v528
        %vm2341 = vcmp.eq.s32.totalorder %v1935, %v528
        %vm2342 = vcmp.eq.s32.totalorder %v1938, %v528
        %vm2343 = vcmp.eq.s32.totalorder %v1941, %v528
        %vm2344 = vcmp.eq.s32.totalorder %v1944, %v528
        %vm2345 = vcmp.eq.s32.totalorder %v1947, %v528
        %vm2346 = vcmp.eq.s32.totalorder %v1950, %v528
        %vm2347 = vcmp.eq.s32.totalorder %v1953, %v528
        %vm2348 = vcmp.eq.s32.totalorder %v1956, %v528
        %vm2349 = vcmp.eq.s32.totalorder %v1959, %v528
        %vm2350 = vcmp.eq.s32.totalorder %v1962, %v528
        %vm2351 = vcmp.eq.s32.totalorder %v1965, %v528
        %vm2352 = vcmp.eq.s32.totalorder %v1968, %v528
        %vm2353 = vcmp.eq.s32.totalorder %v1971, %v528
        %vm2354 = vcmp.eq.s32.totalorder %v1974, %v528
        %vm2355 = vcmp.eq.s32.totalorder %v1977, %v528
        %vm2356 = vcmp.eq.s32.totalorder %v1980, %v528
        %vm2357 = vcmp.eq.s32.totalorder %v1983, %v528
        %vm2358 = vcmp.eq.s32.totalorder %v1986, %v528
        %vm2359 = vcmp.eq.s32.totalorder %v1989, %v528
        %vm2360 = vcmp.eq.s32.totalorder %v1992, %v528
        %vm2361 = vcmp.eq.s32.totalorder %v1995, %v528
        %vm2362 = vcmp.eq.s32.totalorder %v1998, %v528
        %vm2363 = vcmp.eq.s32.totalorder %v2001, %v528
        %vm2364 = vcmp.eq.s32.totalorder %v2004, %v528
        %vm2365 = vcmp.eq.s32.totalorder %v2007, %v528
        %vm2366 = vcmp.eq.s32.totalorder %v2010, %v528
        %vm2367 = vcmp.eq.s32.totalorder %v2013, %v528
        %vm2368 = vcmp.eq.s32.totalorder %v2016, %v528
        %vm2369 = vcmp.eq.s32.totalorder %v2019, %v528
        %vm2370 = vcmp.eq.s32.totalorder %v2022, %v528
        %vm2371 = vcmp.eq.s32.totalorder %v2025, %v528
        %vm2372 = vcmp.eq.s32.totalorder %v2028, %v528
        %vm2373 = vcmp.eq.s32.totalorder %v2031, %v528
        %vm2374 = vcmp.eq.s32.totalorder %v2034, %v528
        %vm2375 = vcmp.eq.s32.totalorder %v2037, %v528
        %vm2376 = vcmp.eq.s32.totalorder %v2040, %v528
        %vm2377 = vcmp.eq.s32.totalorder %v2043, %v528
        %vm2378 = vcmp.eq.s32.totalorder %v2046, %v528
        %vm2379 = vcmp.eq.s32.totalorder %v2049, %v528
        %vm2380 = vcmp.eq.s32.totalorder %v2052, %v528
        %vm2381 = vcmp.eq.s32.totalorder %v2055, %v528
        %vm2382 = vcmp.eq.s32.totalorder %v2058, %v528
        %vm2383 = vcmp.eq.s32.totalorder %v2061, %v528
        %vm2384 = vcmp.eq.s32.totalorder %v2064, %v528
        %vm2385 = vcmp.eq.s32.totalorder %v2067, %v528
        %vm2386 = vcmp.eq.s32.totalorder %v2070, %v528
        %vm2387 = vcmp.eq.s32.totalorder %v2073, %v528
        %vm2388 = vcmp.eq.s32.totalorder %v2076, %v528
        %vm2389 = vcmp.eq.s32.totalorder %v2079, %v528
        %vm2390 = vcmp.eq.s32.totalorder %v2082, %v528
        %vm2391 = vcmp.eq.s32.totalorder %v2085, %v528
        %vm2392 = vcmp.eq.s32.totalorder %v2088, %v528
        %vm2393 = vcmp.eq.s32.totalorder %v2091, %v528
        %vm2394 = vcmp.eq.s32.totalorder %v2094, %v528
        %vm2395 = vcmp.eq.s32.totalorder %v2097, %v528
        %vm2396 = vcmp.eq.s32.totalorder %v2100, %v528
        %vm2397 = vcmp.eq.s32.totalorder %v2103, %v528
        %vm2398 = vcmp.eq.s32.totalorder %v2106, %v528
        %vm2399 = vcmp.eq.s32.totalorder %v2109, %v528
        %vm2400 = vcmp.eq.s32.totalorder %v2112, %v528
        %vm2401 = vcmp.eq.s32.totalorder %v2115, %v528
        %vm2402 = vcmp.eq.s32.totalorder %v2118, %v528
        %vm2403 = vcmp.eq.s32.totalorder %v2121, %v528
        %vm2404 = vcmp.eq.s32.totalorder %v2124, %v528
        %vm2405 = vcmp.eq.s32.totalorder %v2127, %v528
        %vm2406 = vcmp.eq.s32.totalorder %v2130, %v528
        %vm2407 = vcmp.eq.s32.totalorder %v2133, %v528
        %vm2408 = vcmp.eq.s32.totalorder %v2136, %v528
        %vm2409 = vcmp.eq.s32.totalorder %v2139, %v528
        %vm2410 = vcmp.eq.s32.totalorder %v2142, %v528
        %vm2411 = vcmp.eq.s32.totalorder %v2145, %v528
        %vm2412 = vcmp.eq.s32.totalorder %v2148, %v528
        %vm2413 = vcmp.eq.s32.totalorder %v2151, %v528
        %vm2414 = vcmp.eq.s32.totalorder %v2154, %v528
        %vm2415 = vcmp.eq.s32.totalorder %v2157, %v528
        %vm2416 = vcmp.eq.s32.totalorder %v2160, %v528
        %vm2417 = vcmp.eq.s32.totalorder %v2163, %v528
        %vm2418 = vcmp.eq.s32.totalorder %v2166, %v528
        %vm2419 = vcmp.eq.s32.totalorder %v2169, %v528
        %vm2420 = vcmp.eq.s32.totalorder %v2172, %v528
        %vm2421 = vcmp.eq.s32.totalorder %v2175, %v528
        %vm2422 = vcmp.eq.s32.totalorder %v2178, %v528
        %vm2423 = vcmp.eq.s32.totalorder %v2181, %v528
        %vm2424 = vcmp.eq.s32.totalorder %v2184, %v528
        %vm2425 = vcmp.eq.s32.totalorder %v2187, %v528
        %vm2426 = vcmp.eq.s32.totalorder %v2190, %v528
        %vm2427 = vcmp.eq.s32.totalorder %v2193, %v528
        %vm2428 = vcmp.eq.s32.totalorder %v2196, %v528
        %vm2429 = vcmp.eq.s32.totalorder %v2199, %v528
        %vm2430 = vcmp.eq.s32.totalorder %v2202, %v528
        %vm2431 = vcmp.eq.s32.totalorder %v2205, %v528
        %vm2432 = vcmp.eq.s32.totalorder %v2208, %v528
        %vm2433 = vcmp.eq.s32.totalorder %v2211, %v528
        %vm2434 = vcmp.eq.s32.totalorder %v2214, %v528
        %vm2435 = vcmp.eq.s32.totalorder %v2217, %v528
        %vm2436 = vcmp.eq.s32.totalorder %v2220, %v528
        %vm2437 = vcmp.eq.s32.totalorder %v2223, %v528
        %vm2438 = vcmp.eq.s32.totalorder %v2226, %v528
        %vm2439 = vcmp.eq.s32.totalorder %v2229, %v528
        %vm2440 = vcmp.eq.s32.totalorder %v2232, %v528
        %vm2441 = vcmp.eq.s32.totalorder %v2235, %v528
        %vm2442 = vcmp.eq.s32.totalorder %v2238, %v528
        %vm2443 = vcmp.eq.s32.totalorder %v2241, %v528
        %vm2444 = vcmp.eq.s32.totalorder %v2244, %v528
        %vm2445 = vcmp.eq.s32.totalorder %v2247, %v528
        %vm2446 = vcmp.eq.s32.totalorder %v2250, %v528
        %vm2447 = vcmp.eq.s32.totalorder %v2253, %v528
        %vm2448 = vcmp.eq.s32.totalorder %v2256, %v528
        %2450 = vset.pattern.permute.xlu0 2
        %2451 = vperm.xlu0 %2450, %v335
        %v2452 = vpop.permute.xlu0 %2451
        %2455 = vset.pattern.permute.xlu0 2
        %2456 = vperm.xlu0 %2455, %v336
        %v2457 = vpop.permute.xlu0 %2456
        %2460 = vset.pattern.permute.xlu0 2
        %2461 = vperm.xlu0 %2460, %v337
        %v2462 = vpop.permute.xlu0 %2461
        %2465 = vset.pattern.permute.xlu0 2
        %2466 = vperm.xlu0 %2465, %v338
        %v2467 = vpop.permute.xlu0 %2466
        %2470 = vset.pattern.permute.xlu0 2
        %2471 = vperm.xlu0 %2470, %v339
        %v2472 = vpop.permute.xlu0 %2471
        %2475 = vset.pattern.permute.xlu0 2
        %2476 = vperm.xlu0 %2475, %v340
        %v2477 = vpop.permute.xlu0 %2476
        %2480 = vset.pattern.permute.xlu0 2
        %2481 = vperm.xlu0 %2480, %v341
        %v2482 = vpop.permute.xlu0 %2481
        %2485 = vset.pattern.permute.xlu0 2
        %2486 = vperm.xlu0 %2485, %v342
        %v2487 = vpop.permute.xlu0 %2486
        %2490 = vset.pattern.permute.xlu0 2
        %2491 = vperm.xlu0 %2490, %v343
        %v2492 = vpop.permute.xlu0 %2491
        %2495 = vset.pattern.permute.xlu0 2
        %2496 = vperm.xlu0 %2495, %v344
        %v2497 = vpop.permute.xlu0 %2496
        %2500 = vset.pattern.permute.xlu0 2
        %2501 = vperm.xlu0 %2500, %v345
        %v2502 = vpop.permute.xlu0 %2501
        %2505 = vset.pattern.permute.xlu0 2
        %2506 = vperm.xlu0 %2505, %v346
        %v2507 = vpop.permute.xlu0 %2506
        %2510 = vset.pattern.permute.xlu0 2
        %2511 = vperm.xlu0 %2510, %v347
        %v2512 = vpop.permute.xlu0 %2511
        %2515 = vset.pattern.permute.xlu0 2
        %2516 = vperm.xlu0 %2515, %v348
        %v2517 = vpop.permute.xlu0 %2516
        %2520 = vset.pattern.permute.xlu0 2
        %2521 = vperm.xlu0 %2520, %v349
        %v2522 = vpop.permute.xlu0 %2521
        %2525 = vset.pattern.permute.xlu0 2
        %2526 = vperm.xlu0 %2525, %v350
        %v2527 = vpop.permute.xlu0 %2526
        %2530 = vset.pattern.permute.xlu0 2
        %2531 = vperm.xlu0 %2530, %v351
        %v2532 = vpop.permute.xlu0 %2531
        %2535 = vset.pattern.permute.xlu0 2
        %2536 = vperm.xlu0 %2535, %v352
        %v2537 = vpop.permute.xlu0 %2536
        %2540 = vset.pattern.permute.xlu0 2
        %2541 = vperm.xlu0 %2540, %v353
        %v2542 = vpop.permute.xlu0 %2541
        %2545 = vset.pattern.permute.xlu0 2
        %2546 = vperm.xlu0 %2545, %v354
        %v2547 = vpop.permute.xlu0 %2546
        %2550 = vset.pattern.permute.xlu0 2
        %2551 = vperm.xlu0 %2550, %v355
        %v2552 = vpop.permute.xlu0 %2551
        %2555 = vset.pattern.permute.xlu0 2
        %2556 = vperm.xlu0 %2555, %v356
        %v2557 = vpop.permute.xlu0 %2556
        %2560 = vset.pattern.permute.xlu0 2
        %2561 = vperm.xlu0 %2560, %v357
        %v2562 = vpop.permute.xlu0 %2561
        %2565 = vset.pattern.permute.xlu0 2
        %2566 = vperm.xlu0 %2565, %v358
        %v2567 = vpop.permute.xlu0 %2566
        %2570 = vset.pattern.permute.xlu0 2
        %2571 = vperm.xlu0 %2570, %v359
        %v2572 = vpop.permute.xlu0 %2571
        %2575 = vset.pattern.permute.xlu0 2
        %2576 = vperm.xlu0 %2575, %v360
        %v2577 = vpop.permute.xlu0 %2576
        %2580 = vset.pattern.permute.xlu0 2
        %2581 = vperm.xlu0 %2580, %v361
        %v2582 = vpop.permute.xlu0 %2581
        %2585 = vset.pattern.permute.xlu0 2
        %2586 = vperm.xlu0 %2585, %v362
        %v2587 = vpop.permute.xlu0 %2586
        %2590 = vset.pattern.permute.xlu0 2
        %2591 = vperm.xlu0 %2590, %v363
        %v2592 = vpop.permute.xlu0 %2591
        %2595 = vset.pattern.permute.xlu0 2
        %2596 = vperm.xlu0 %2595, %v364
        %v2597 = vpop.permute.xlu0 %2596
        %2600 = vset.pattern.permute.xlu0 2
        %2601 = vperm.xlu0 %2600, %v365
        %v2602 = vpop.permute.xlu0 %2601
        %2605 = vset.pattern.permute.xlu0 2
        %2606 = vperm.xlu0 %2605, %v366
        %v2607 = vpop.permute.xlu0 %2606
        %2610 = vset.pattern.permute.xlu0 2
        %2611 = vperm.xlu0 %2610, %v367
        %v2612 = vpop.permute.xlu0 %2611
        %2615 = vset.pattern.permute.xlu0 2
        %2616 = vperm.xlu0 %2615, %v368
        %v2617 = vpop.permute.xlu0 %2616
        %2620 = vset.pattern.permute.xlu0 2
        %2621 = vperm.xlu0 %2620, %v369
        %v2622 = vpop.permute.xlu0 %2621
        %2625 = vset.pattern.permute.xlu0 2
        %2626 = vperm.xlu0 %2625, %v370
        %v2627 = vpop.permute.xlu0 %2626
        %2630 = vset.pattern.permute.xlu0 2
        %2631 = vperm.xlu0 %2630, %v371
        %v2632 = vpop.permute.xlu0 %2631
        %2635 = vset.pattern.permute.xlu0 2
        %2636 = vperm.xlu0 %2635, %v372
        %v2637 = vpop.permute.xlu0 %2636
        %2640 = vset.pattern.permute.xlu0 2
        %2641 = vperm.xlu0 %2640, %v373
        %v2642 = vpop.permute.xlu0 %2641
        %2645 = vset.pattern.permute.xlu0 2
        %2646 = vperm.xlu0 %2645, %v374
        %v2647 = vpop.permute.xlu0 %2646
        %2650 = vset.pattern.permute.xlu0 2
        %2651 = vperm.xlu0 %2650, %v375
        %v2652 = vpop.permute.xlu0 %2651
        %2655 = vset.pattern.permute.xlu0 2
        %2656 = vperm.xlu0 %2655, %v376
        %v2657 = vpop.permute.xlu0 %2656
        %2660 = vset.pattern.permute.xlu0 2
        %2661 = vperm.xlu0 %2660, %v377
        %v2662 = vpop.permute.xlu0 %2661
        %2665 = vset.pattern.permute.xlu0 2
        %2666 = vperm.xlu0 %2665, %v378
        %v2667 = vpop.permute.xlu0 %2666
        %2670 = vset.pattern.permute.xlu0 2
        %2671 = vperm.xlu0 %2670, %v379
        %v2672 = vpop.permute.xlu0 %2671
        %2675 = vset.pattern.permute.xlu0 2
        %2676 = vperm.xlu0 %2675, %v380
        %v2677 = vpop.permute.xlu0 %2676
        %2680 = vset.pattern.permute.xlu0 2
        %2681 = vperm.xlu0 %2680, %v381
        %v2682 = vpop.permute.xlu0 %2681
        %2685 = vset.pattern.permute.xlu0 2
        %2686 = vperm.xlu0 %2685, %v382
        %v2687 = vpop.permute.xlu0 %2686
        %2690 = vset.pattern.permute.xlu0 2
        %2691 = vperm.xlu0 %2690, %v383
        %v2692 = vpop.permute.xlu0 %2691
        %2695 = vset.pattern.permute.xlu0 2
        %2696 = vperm.xlu0 %2695, %v384
        %v2697 = vpop.permute.xlu0 %2696
        %2700 = vset.pattern.permute.xlu0 2
        %2701 = vperm.xlu0 %2700, %v385
        %v2702 = vpop.permute.xlu0 %2701
        %2705 = vset.pattern.permute.xlu0 2
        %2706 = vperm.xlu0 %2705, %v386
        %v2707 = vpop.permute.xlu0 %2706
        %2710 = vset.pattern.permute.xlu0 2
        %2711 = vperm.xlu0 %2710, %v387
        %v2712 = vpop.permute.xlu0 %2711
        %2715 = vset.pattern.permute.xlu0 2
        %2716 = vperm.xlu0 %2715, %v388
        %v2717 = vpop.permute.xlu0 %2716
        %2720 = vset.pattern.permute.xlu0 2
        %2721 = vperm.xlu0 %2720, %v389
        %v2722 = vpop.permute.xlu0 %2721
        %2725 = vset.pattern.permute.xlu0 2
        %2726 = vperm.xlu0 %2725, %v390
        %v2727 = vpop.permute.xlu0 %2726
        %2730 = vset.pattern.permute.xlu0 2
        %2731 = vperm.xlu0 %2730, %v391
        %v2732 = vpop.permute.xlu0 %2731
        %2735 = vset.pattern.permute.xlu0 2
        %2736 = vperm.xlu0 %2735, %v392
        %v2737 = vpop.permute.xlu0 %2736
        %2740 = vset.pattern.permute.xlu0 2
        %2741 = vperm.xlu0 %2740, %v393
        %v2742 = vpop.permute.xlu0 %2741
        %2745 = vset.pattern.permute.xlu0 2
        %2746 = vperm.xlu0 %2745, %v394
        %v2747 = vpop.permute.xlu0 %2746
        %2750 = vset.pattern.permute.xlu0 2
        %2751 = vperm.xlu0 %2750, %v395
        %v2752 = vpop.permute.xlu0 %2751
        %2755 = vset.pattern.permute.xlu0 2
        %2756 = vperm.xlu0 %2755, %v396
        %v2757 = vpop.permute.xlu0 %2756
        %2760 = vset.pattern.permute.xlu0 2
        %2761 = vperm.xlu0 %2760, %v397
        %v2762 = vpop.permute.xlu0 %2761
        %2765 = vset.pattern.permute.xlu0 2
        %2766 = vperm.xlu0 %2765, %v398
        %v2767 = vpop.permute.xlu0 %2766
        %2770 = vset.pattern.permute.xlu0 2
        %2771 = vperm.xlu0 %2770, %v399
        %v2772 = vpop.permute.xlu0 %2771
        %2775 = vset.pattern.permute.xlu0 2
        %2776 = vperm.xlu0 %2775, %v400
        %v2777 = vpop.permute.xlu0 %2776
        %2780 = vset.pattern.permute.xlu0 2
        %2781 = vperm.xlu0 %2780, %v401
        %v2782 = vpop.permute.xlu0 %2781
        %2785 = vset.pattern.permute.xlu0 2
        %2786 = vperm.xlu0 %2785, %v402
        %v2787 = vpop.permute.xlu0 %2786
        %2790 = vset.pattern.permute.xlu0 2
        %2791 = vperm.xlu0 %2790, %v403
        %v2792 = vpop.permute.xlu0 %2791
        %2795 = vset.pattern.permute.xlu0 2
        %2796 = vperm.xlu0 %2795, %v404
        %v2797 = vpop.permute.xlu0 %2796
        %2800 = vset.pattern.permute.xlu0 2
        %2801 = vperm.xlu0 %2800, %v405
        %v2802 = vpop.permute.xlu0 %2801
        %2805 = vset.pattern.permute.xlu0 2
        %2806 = vperm.xlu0 %2805, %v406
        %v2807 = vpop.permute.xlu0 %2806
        %2810 = vset.pattern.permute.xlu0 2
        %2811 = vperm.xlu0 %2810, %v407
        %v2812 = vpop.permute.xlu0 %2811
        %2815 = vset.pattern.permute.xlu0 2
        %2816 = vperm.xlu0 %2815, %v408
        %v2817 = vpop.permute.xlu0 %2816
        %2820 = vset.pattern.permute.xlu0 2
        %2821 = vperm.xlu0 %2820, %v409
        %v2822 = vpop.permute.xlu0 %2821
        %2825 = vset.pattern.permute.xlu0 2
        %2826 = vperm.xlu0 %2825, %v410
        %v2827 = vpop.permute.xlu0 %2826
        %2830 = vset.pattern.permute.xlu0 2
        %2831 = vperm.xlu0 %2830, %v411
        %v2832 = vpop.permute.xlu0 %2831
        %2835 = vset.pattern.permute.xlu0 2
        %2836 = vperm.xlu0 %2835, %v412
        %v2837 = vpop.permute.xlu0 %2836
        %2840 = vset.pattern.permute.xlu0 2
        %2841 = vperm.xlu0 %2840, %v413
        %v2842 = vpop.permute.xlu0 %2841
        %2845 = vset.pattern.permute.xlu0 2
        %2846 = vperm.xlu0 %2845, %v414
        %v2847 = vpop.permute.xlu0 %2846
        %2850 = vset.pattern.permute.xlu0 2
        %2851 = vperm.xlu0 %2850, %v415
        %v2852 = vpop.permute.xlu0 %2851
        %2855 = vset.pattern.permute.xlu0 2
        %2856 = vperm.xlu0 %2855, %v416
        %v2857 = vpop.permute.xlu0 %2856
        %2860 = vset.pattern.permute.xlu0 2
        %2861 = vperm.xlu0 %2860, %v417
        %v2862 = vpop.permute.xlu0 %2861
        %2865 = vset.pattern.permute.xlu0 2
        %2866 = vperm.xlu0 %2865, %v418
        %v2867 = vpop.permute.xlu0 %2866
        %2870 = vset.pattern.permute.xlu0 2
        %2871 = vperm.xlu0 %2870, %v419
        %v2872 = vpop.permute.xlu0 %2871
        %2875 = vset.pattern.permute.xlu0 2
        %2876 = vperm.xlu0 %2875, %v420
        %v2877 = vpop.permute.xlu0 %2876
        %2880 = vset.pattern.permute.xlu0 2
        %2881 = vperm.xlu0 %2880, %v421
        %v2882 = vpop.permute.xlu0 %2881
        %2885 = vset.pattern.permute.xlu0 2
        %2886 = vperm.xlu0 %2885, %v422
        %v2887 = vpop.permute.xlu0 %2886
        %2890 = vset.pattern.permute.xlu0 2
        %2891 = vperm.xlu0 %2890, %v423
        %v2892 = vpop.permute.xlu0 %2891
        %2895 = vset.pattern.permute.xlu0 2
        %2896 = vperm.xlu0 %2895, %v424
        %v2897 = vpop.permute.xlu0 %2896
        %2900 = vset.pattern.permute.xlu0 2
        %2901 = vperm.xlu0 %2900, %v425
        %v2902 = vpop.permute.xlu0 %2901
        %2905 = vset.pattern.permute.xlu0 2
        %2906 = vperm.xlu0 %2905, %v426
        %v2907 = vpop.permute.xlu0 %2906
        %2910 = vset.pattern.permute.xlu0 2
        %2911 = vperm.xlu0 %2910, %v427
        %v2912 = vpop.permute.xlu0 %2911
        %2915 = vset.pattern.permute.xlu0 2
        %2916 = vperm.xlu0 %2915, %v428
        %v2917 = vpop.permute.xlu0 %2916
        %2920 = vset.pattern.permute.xlu0 2
        %2921 = vperm.xlu0 %2920, %v429
        %v2922 = vpop.permute.xlu0 %2921
        %2925 = vset.pattern.permute.xlu0 2
        %2926 = vperm.xlu0 %2925, %v430
        %v2927 = vpop.permute.xlu0 %2926
        %2930 = vset.pattern.permute.xlu0 2
        %2931 = vperm.xlu0 %2930, %v431
        %v2932 = vpop.permute.xlu0 %2931
        %2935 = vset.pattern.permute.xlu0 2
        %2936 = vperm.xlu0 %2935, %v432
        %v2937 = vpop.permute.xlu0 %2936
        %2940 = vset.pattern.permute.xlu0 2
        %2941 = vperm.xlu0 %2940, %v433
        %v2942 = vpop.permute.xlu0 %2941
        %2945 = vset.pattern.permute.xlu0 2
        %2946 = vperm.xlu0 %2945, %v434
        %v2947 = vpop.permute.xlu0 %2946
        %2950 = vset.pattern.permute.xlu0 2
        %2951 = vperm.xlu0 %2950, %v435
        %v2952 = vpop.permute.xlu0 %2951
        %2955 = vset.pattern.permute.xlu0 2
        %2956 = vperm.xlu0 %2955, %v436
        %v2957 = vpop.permute.xlu0 %2956
        %2960 = vset.pattern.permute.xlu0 2
        %2961 = vperm.xlu0 %2960, %v437
        %v2962 = vpop.permute.xlu0 %2961
        %2965 = vset.pattern.permute.xlu0 2
        %2966 = vperm.xlu0 %2965, %v438
        %v2967 = vpop.permute.xlu0 %2966
        %2970 = vset.pattern.permute.xlu0 2
        %2971 = vperm.xlu0 %2970, %v439
        %v2972 = vpop.permute.xlu0 %2971
        %2975 = vset.pattern.permute.xlu0 2
        %2976 = vperm.xlu0 %2975, %v440
        %v2977 = vpop.permute.xlu0 %2976
        %2980 = vset.pattern.permute.xlu0 2
        %2981 = vperm.xlu0 %2980, %v441
        %v2982 = vpop.permute.xlu0 %2981
        %2985 = vset.pattern.permute.xlu0 2
        %2986 = vperm.xlu0 %2985, %v442
        %v2987 = vpop.permute.xlu0 %2986
        %2990 = vset.pattern.permute.xlu0 2
        %2991 = vperm.xlu0 %2990, %v443
        %v2992 = vpop.permute.xlu0 %2991
        %2995 = vset.pattern.permute.xlu0 2
        %2996 = vperm.xlu0 %2995, %v444
        %v2997 = vpop.permute.xlu0 %2996
        %3000 = vset.pattern.permute.xlu0 2
        %3001 = vperm.xlu0 %3000, %v445
        %v3002 = vpop.permute.xlu0 %3001
        %3005 = vset.pattern.permute.xlu0 2
        %3006 = vperm.xlu0 %3005, %v446
        %v3007 = vpop.permute.xlu0 %3006
        %3010 = vset.pattern.permute.xlu0 2
        %3011 = vperm.xlu0 %3010, %v447
        %v3012 = vpop.permute.xlu0 %3011
        %3015 = vset.pattern.permute.xlu0 2
        %3016 = vperm.xlu0 %3015, %v448
        %v3017 = vpop.permute.xlu0 %3016
        %3020 = vset.pattern.permute.xlu0 2
        %3021 = vperm.xlu0 %3020, %v449
        %v3022 = vpop.permute.xlu0 %3021
        %3025 = vset.pattern.permute.xlu0 2
        %3026 = vperm.xlu0 %3025, %v450
        %v3027 = vpop.permute.xlu0 %3026
        %3030 = vset.pattern.permute.xlu0 2
        %3031 = vperm.xlu0 %3030, %v451
        %v3032 = vpop.permute.xlu0 %3031
        %3035 = vset.pattern.permute.xlu0 2
        %3036 = vperm.xlu0 %3035, %v452
        %v3037 = vpop.permute.xlu0 %3036
        %3040 = vset.pattern.permute.xlu0 2
        %3041 = vperm.xlu0 %3040, %v453
        %v3042 = vpop.permute.xlu0 %3041
        %3045 = vset.pattern.permute.xlu0 2
        %3046 = vperm.xlu0 %3045, %v454
        %v3047 = vpop.permute.xlu0 %3046
        %3050 = vset.pattern.permute.xlu0 2
        %3051 = vperm.xlu0 %3050, %v455
        %v3052 = vpop.permute.xlu0 %3051
        %3055 = vset.pattern.permute.xlu0 2
        %3056 = vperm.xlu0 %3055, %v456
        %v3057 = vpop.permute.xlu0 %3056
        %3060 = vset.pattern.permute.xlu0 2
        %3061 = vperm.xlu0 %3060, %v457
        %v3062 = vpop.permute.xlu0 %3061
        %3065 = vset.pattern.permute.xlu0 2
        %3066 = vperm.xlu0 %3065, %v458
        %v3067 = vpop.permute.xlu0 %3066
        %3070 = vset.pattern.permute.xlu0 2
        %3071 = vperm.xlu0 %3070, %v459
        %v3072 = vpop.permute.xlu0 %3071
        %3075 = vset.pattern.permute.xlu0 2
        %3076 = vperm.xlu0 %3075, %v460
        %v3077 = vpop.permute.xlu0 %3076
        %3080 = vset.pattern.permute.xlu0 2
        %3081 = vperm.xlu0 %3080, %v461
        %v3082 = vpop.permute.xlu0 %3081
        %3085 = vset.pattern.permute.xlu0 2
        %3086 = vperm.xlu0 %3085, %v462
        %v3087 = vpop.permute.xlu0 %3086
        %3090 = vset.pattern.permute.xlu0 2
        %3091 = vperm.xlu0 %3090, %v463
        %v3092 = vpop.permute.xlu0 %3091
        %3095 = vset.pattern.permute.xlu0 2
        %3096 = vperm.xlu0 %3095, %v464
        %v3097 = vpop.permute.xlu0 %3096
        %3100 = vset.pattern.permute.xlu0 2
        %3101 = vperm.xlu0 %3100, %v465
        %v3102 = vpop.permute.xlu0 %3101
        %3105 = vset.pattern.permute.xlu0 2
        %3106 = vperm.xlu0 %3105, %v466
        %v3107 = vpop.permute.xlu0 %3106
        %3110 = vset.pattern.permute.xlu0 2
        %3111 = vperm.xlu0 %3110, %v467
        %v3112 = vpop.permute.xlu0 %3111
        %3115 = vset.pattern.permute.xlu0 2
        %3116 = vperm.xlu0 %3115, %v468
        %v3117 = vpop.permute.xlu0 %3116
        %3120 = vset.pattern.permute.xlu0 2
        %3121 = vperm.xlu0 %3120, %v469
        %v3122 = vpop.permute.xlu0 %3121
        %3125 = vset.pattern.permute.xlu0 2
        %3126 = vperm.xlu0 %3125, %v470
        %v3127 = vpop.permute.xlu0 %3126
        %3130 = vset.pattern.permute.xlu0 2
        %3131 = vperm.xlu0 %3130, %v471
        %v3132 = vpop.permute.xlu0 %3131
        %3135 = vset.pattern.permute.xlu0 2
        %3136 = vperm.xlu0 %3135, %v472
        %v3137 = vpop.permute.xlu0 %3136
        %3140 = vset.pattern.permute.xlu0 2
        %3141 = vperm.xlu0 %3140, %v473
        %v3142 = vpop.permute.xlu0 %3141
        %3145 = vset.pattern.permute.xlu0 2
        %3146 = vperm.xlu0 %3145, %v474
        %v3147 = vpop.permute.xlu0 %3146
        %3150 = vset.pattern.permute.xlu0 2
        %3151 = vperm.xlu0 %3150, %v475
        %v3152 = vpop.permute.xlu0 %3151
        %3155 = vset.pattern.permute.xlu0 2
        %3156 = vperm.xlu0 %3155, %v476
        %v3157 = vpop.permute.xlu0 %3156
        %3160 = vset.pattern.permute.xlu0 2
        %3161 = vperm.xlu0 %3160, %v477
        %v3162 = vpop.permute.xlu0 %3161
        %3165 = vset.pattern.permute.xlu0 2
        %3166 = vperm.xlu0 %3165, %v478
        %v3167 = vpop.permute.xlu0 %3166
        %3170 = vset.pattern.permute.xlu0 2
        %3171 = vperm.xlu0 %3170, %v479
        %v3172 = vpop.permute.xlu0 %3171
        %3175 = vset.pattern.permute.xlu0 2
        %3176 = vperm.xlu0 %3175, %v480
        %v3177 = vpop.permute.xlu0 %3176
        %3180 = vset.pattern.permute.xlu0 2
        %3181 = vperm.xlu0 %3180, %v481
        %v3182 = vpop.permute.xlu0 %3181
        %3185 = vset.pattern.permute.xlu0 2
        %3186 = vperm.xlu0 %3185, %v482
        %v3187 = vpop.permute.xlu0 %3186
        %3190 = vset.pattern.permute.xlu0 2
        %3191 = vperm.xlu0 %3190, %v483
        %v3192 = vpop.permute.xlu0 %3191
        %3195 = vset.pattern.permute.xlu0 2
        %3196 = vperm.xlu0 %3195, %v484
        %v3197 = vpop.permute.xlu0 %3196
        %3200 = vset.pattern.permute.xlu0 2
        %3201 = vperm.xlu0 %3200, %v485
        %v3202 = vpop.permute.xlu0 %3201
        %3205 = vset.pattern.permute.xlu0 2
        %3206 = vperm.xlu0 %3205, %v486
        %v3207 = vpop.permute.xlu0 %3206
        %3210 = vset.pattern.permute.xlu0 2
        %3211 = vperm.xlu0 %3210, %v487
        %v3212 = vpop.permute.xlu0 %3211
        %3215 = vset.pattern.permute.xlu0 2
        %3216 = vperm.xlu0 %3215, %v488
        %v3217 = vpop.permute.xlu0 %3216
        %3220 = vset.pattern.permute.xlu0 2
        %3221 = vperm.xlu0 %3220, %v489
        %v3222 = vpop.permute.xlu0 %3221
        %3225 = vset.pattern.permute.xlu0 2
        %3226 = vperm.xlu0 %3225, %v490
        %v3227 = vpop.permute.xlu0 %3226
        %3230 = vset.pattern.permute.xlu0 2
        %3231 = vperm.xlu0 %3230, %v491
        %v3232 = vpop.permute.xlu0 %3231
        %3235 = vset.pattern.permute.xlu0 2
        %3236 = vperm.xlu0 %3235, %v492
        %v3237 = vpop.permute.xlu0 %3236
        %3240 = vset.pattern.permute.xlu0 2
        %3241 = vperm.xlu0 %3240, %v493
        %v3242 = vpop.permute.xlu0 %3241
        %3245 = vset.pattern.permute.xlu0 2
        %3246 = vperm.xlu0 %3245, %v494
        %v3247 = vpop.permute.xlu0 %3246
        %3250 = vset.pattern.permute.xlu0 2
        %3251 = vperm.xlu0 %3250, %v495
        %v3252 = vpop.permute.xlu0 %3251
        %3255 = vset.pattern.permute.xlu0 2
        %3256 = vperm.xlu0 %3255, %v496
        %v3257 = vpop.permute.xlu0 %3256
        %3260 = vset.pattern.permute.xlu0 2
        %3261 = vperm.xlu0 %3260, %v497
        %v3262 = vpop.permute.xlu0 %3261
        %3265 = vset.pattern.permute.xlu0 2
        %3266 = vperm.xlu0 %3265, %v498
        %v3267 = vpop.permute.xlu0 %3266
        %3270 = vset.pattern.permute.xlu0 2
        %3271 = vperm.xlu0 %3270, %v499
        %v3272 = vpop.permute.xlu0 %3271
        %3275 = vset.pattern.permute.xlu0 2
        %3276 = vperm.xlu0 %3275, %v500
        %v3277 = vpop.permute.xlu0 %3276
        %3280 = vset.pattern.permute.xlu0 2
        %3281 = vperm.xlu0 %3280, %v501
        %v3282 = vpop.permute.xlu0 %3281
        %3285 = vset.pattern.permute.xlu0 2
        %3286 = vperm.xlu0 %3285, %v502
        %v3287 = vpop.permute.xlu0 %3286
        %3290 = vset.pattern.permute.xlu0 2
        %3291 = vperm.xlu0 %3290, %v503
        %v3292 = vpop.permute.xlu0 %3291
        %3295 = vset.pattern.permute.xlu0 2
        %3296 = vperm.xlu0 %3295, %v504
        %v3297 = vpop.permute.xlu0 %3296
        %3300 = vset.pattern.permute.xlu0 2
        %3301 = vperm.xlu0 %3300, %v505
        %v3302 = vpop.permute.xlu0 %3301
        %3305 = vset.pattern.permute.xlu0 2
        %3306 = vperm.xlu0 %3305, %v506
        %v3307 = vpop.permute.xlu0 %3306
        %3310 = vset.pattern.permute.xlu0 2
        %3311 = vperm.xlu0 %3310, %v507
        %v3312 = vpop.permute.xlu0 %3311
        %3315 = vset.pattern.permute.xlu0 2
        %3316 = vperm.xlu0 %3315, %v508
        %v3317 = vpop.permute.xlu0 %3316
        %3320 = vset.pattern.permute.xlu0 2
        %3321 = vperm.xlu0 %3320, %v509
        %v3322 = vpop.permute.xlu0 %3321
        %3325 = vset.pattern.permute.xlu0 2
        %3326 = vperm.xlu0 %3325, %v510
        %v3327 = vpop.permute.xlu0 %3326
        %3330 = vset.pattern.permute.xlu0 2
        %3331 = vperm.xlu0 %3330, %v511
        %v3332 = vpop.permute.xlu0 %3331
        %3335 = vset.pattern.permute.xlu0 2
        %3336 = vperm.xlu0 %3335, %v512
        %v3337 = vpop.permute.xlu0 %3336
        %3340 = vset.pattern.permute.xlu0 2
        %3341 = vperm.xlu0 %3340, %v513
        %v3342 = vpop.permute.xlu0 %3341
        %3345 = vset.pattern.permute.xlu0 2
        %3346 = vperm.xlu0 %3345, %v514
        %v3347 = vpop.permute.xlu0 %3346
        %3350 = vset.pattern.permute.xlu0 2
        %3351 = vperm.xlu0 %3350, %v515
        %v3352 = vpop.permute.xlu0 %3351
        %3355 = vset.pattern.permute.xlu0 2
        %3356 = vperm.xlu0 %3355, %v516
        %v3357 = vpop.permute.xlu0 %3356
        %3360 = vset.pattern.permute.xlu0 2
        %3361 = vperm.xlu0 %3360, %v517
        %v3362 = vpop.permute.xlu0 %3361
        %3365 = vset.pattern.permute.xlu0 2
        %3366 = vperm.xlu0 %3365, %v518
        %v3367 = vpop.permute.xlu0 %3366
        %3370 = vset.pattern.permute.xlu0 2
        %3371 = vperm.xlu0 %3370, %v519
        %v3372 = vpop.permute.xlu0 %3371
        %3375 = vset.pattern.permute.xlu0 2
        %3376 = vperm.xlu0 %3375, %v520
        %v3377 = vpop.permute.xlu0 %3376
        %3380 = vset.pattern.permute.xlu0 2
        %3381 = vperm.xlu0 %3380, %v521
        %v3382 = vpop.permute.xlu0 %3381
        %3385 = vset.pattern.permute.xlu0 2
        %3386 = vperm.xlu0 %3385, %v522
        %v3387 = vpop.permute.xlu0 %3386
        %3390 = vset.pattern.permute.xlu0 2
        %3391 = vperm.xlu0 %3390, %v523
        %v3392 = vpop.permute.xlu0 %3391
        %3395 = vset.pattern.permute.xlu0 2
        %3396 = vperm.xlu0 %3395, %v524
        %v3397 = vpop.permute.xlu0 %3396
        %3400 = vset.pattern.permute.xlu0 2
        %3401 = vperm.xlu0 %3400, %v525
        %v3402 = vpop.permute.xlu0 %3401
        %3405 = vset.pattern.permute.xlu0 2
        %3406 = vperm.xlu0 %3405, %v526
        %v3407 = vpop.permute.xlu0 %3406
        %v3409 = vsel %vm2257, %v2452, 0.0
        %v3410 = vsel %vm2258, %v2457, 0.0
        %v3411 = vsel %vm2259, %v2462, 0.0
        %v3412 = vsel %vm2260, %v2467, 0.0
        %v3413 = vsel %vm2261, %v2472, 0.0
        %v3414 = vsel %vm2262, %v2477, 0.0
        %v3415 = vsel %vm2263, %v2482, 0.0
        %v3416 = vsel %vm2264, %v2487, 0.0
        %v3417 = vsel %vm2265, %v2492, 0.0
        %v3418 = vsel %vm2266, %v2497, 0.0
        %v3419 = vsel %vm2267, %v2502, 0.0
        %v3420 = vsel %vm2268, %v2507, 0.0
        %v3421 = vsel %vm2269, %v2512, 0.0
        %v3422 = vsel %vm2270, %v2517, 0.0
        %v3423 = vsel %vm2271, %v2522, 0.0
        %v3424 = vsel %vm2272, %v2527, 0.0
        %v3425 = vsel %vm2273, %v2532, 0.0
        %v3426 = vsel %vm2274, %v2537, 0.0
        %v3427 = vsel %vm2275, %v2542, 0.0
        %v3428 = vsel %vm2276, %v2547, 0.0
        %v3429 = vsel %vm2277, %v2552, 0.0
        %v3430 = vsel %vm2278, %v2557, 0.0
        %v3431 = vsel %vm2279, %v2562, 0.0
        %v3432 = vsel %vm2280, %v2567, 0.0
        %v3433 = vsel %vm2281, %v2572, 0.0
        %v3434 = vsel %vm2282, %v2577, 0.0
        %v3435 = vsel %vm2283, %v2582, 0.0
        %v3436 = vsel %vm2284, %v2587, 0.0
        %v3437 = vsel %vm2285, %v2592, 0.0
        %v3438 = vsel %vm2286, %v2597, 0.0
        %v3439 = vsel %vm2287, %v2602, 0.0
        %v3440 = vsel %vm2288, %v2607, 0.0
        %v3441 = vsel %vm2289, %v2612, 0.0
        %v3442 = vsel %vm2290, %v2617, 0.0
        %v3443 = vsel %vm2291, %v2622, 0.0
        %v3444 = vsel %vm2292, %v2627, 0.0
        %v3445 = vsel %vm2293, %v2632, 0.0
        %v3446 = vsel %vm2294, %v2637, 0.0
        %v3447 = vsel %vm2295, %v2642, 0.0
        %v3448 = vsel %vm2296, %v2647, 0.0
        %v3449 = vsel %vm2297, %v2652, 0.0
        %v3450 = vsel %vm2298, %v2657, 0.0
        %v3451 = vsel %vm2299, %v2662, 0.0
        %v3452 = vsel %vm2300, %v2667, 0.0
        %v3453 = vsel %vm2301, %v2672, 0.0
        %v3454 = vsel %vm2302, %v2677, 0.0
        %v3455 = vsel %vm2303, %v2682, 0.0
        %v3456 = vsel %vm2304, %v2687, 0.0
        %v3457 = vsel %vm2305, %v2692, 0.0
        %v3458 = vsel %vm2306, %v2697, 0.0
        %v3459 = vsel %vm2307, %v2702, 0.0
        %v3460 = vsel %vm2308, %v2707, 0.0
        %v3461 = vsel %vm2309, %v2712, 0.0
        %v3462 = vsel %vm2310, %v2717, 0.0
        %v3463 = vsel %vm2311, %v2722, 0.0
        %v3464 = vsel %vm2312, %v2727, 0.0
        %v3465 = vsel %vm2313, %v2732, 0.0
        %v3466 = vsel %vm2314, %v2737, 0.0
        %v3467 = vsel %vm2315, %v2742, 0.0
        %v3468 = vsel %vm2316, %v2747, 0.0
        %v3469 = vsel %vm2317, %v2752, 0.0
        %v3470 = vsel %vm2318, %v2757, 0.0
        %v3471 = vsel %vm2319, %v2762, 0.0
        %v3472 = vsel %vm2320, %v2767, 0.0
        %v3473 = vsel %vm2321, %v2772, 0.0
        %v3474 = vsel %vm2322, %v2777, 0.0
        %v3475 = vsel %vm2323, %v2782, 0.0
        %v3476 = vsel %vm2324, %v2787, 0.0
        %v3477 = vsel %vm2325, %v2792, 0.0
        %v3478 = vsel %vm2326, %v2797, 0.0
        %v3479 = vsel %vm2327, %v2802, 0.0
        %v3480 = vsel %vm2328, %v2807, 0.0
        %v3481 = vsel %vm2329, %v2812, 0.0
        %v3482 = vsel %vm2330, %v2817, 0.0
        %v3483 = vsel %vm2331, %v2822, 0.0
        %v3484 = vsel %vm2332, %v2827, 0.0
        %v3485 = vsel %vm2333, %v2832, 0.0
        %v3486 = vsel %vm2334, %v2837, 0.0
        %v3487 = vsel %vm2335, %v2842, 0.0
        %v3488 = vsel %vm2336, %v2847, 0.0
        %v3489 = vsel %vm2337, %v2852, 0.0
        %v3490 = vsel %vm2338, %v2857, 0.0
        %v3491 = vsel %vm2339, %v2862, 0.0
        %v3492 = vsel %vm2340, %v2867, 0.0
        %v3493 = vsel %vm2341, %v2872, 0.0
        %v3494 = vsel %vm2342, %v2877, 0.0
        %v3495 = vsel %vm2343, %v2882, 0.0
        %v3496 = vsel %vm2344, %v2887, 0.0
        %v3497 = vsel %vm2345, %v2892, 0.0
        %v3498 = vsel %vm2346, %v2897, 0.0
        %v3499 = vsel %vm2347, %v2902, 0.0
        %v3500 = vsel %vm2348, %v2907, 0.0
        %v3501 = vsel %vm2349, %v2912, 0.0
        %v3502 = vsel %vm2350, %v2917, 0.0
        %v3503 = vsel %vm2351, %v2922, 0.0
        %v3504 = vsel %vm2352, %v2927, 0.0
        %v3505 = vsel %vm2353, %v2932, 0.0
        %v3506 = vsel %vm2354, %v2937, 0.0
        %v3507 = vsel %vm2355, %v2942, 0.0
        %v3508 = vsel %vm2356, %v2947, 0.0
        %v3509 = vsel %vm2357, %v2952, 0.0
        %v3510 = vsel %vm2358, %v2957, 0.0
        %v3511 = vsel %vm2359, %v2962, 0.0
        %v3512 = vsel %vm2360, %v2967, 0.0
        %v3513 = vsel %vm2361, %v2972, 0.0
        %v3514 = vsel %vm2362, %v2977, 0.0
        %v3515 = vsel %vm2363, %v2982, 0.0
        %v3516 = vsel %vm2364, %v2987, 0.0
        %v3517 = vsel %vm2365, %v2992, 0.0
        %v3518 = vsel %vm2366, %v2997, 0.0
        %v3519 = vsel %vm2367, %v3002, 0.0
        %v3520 = vsel %vm2368, %v3007, 0.0
        %v3521 = vsel %vm2369, %v3012, 0.0
        %v3522 = vsel %vm2370, %v3017, 0.0
        %v3523 = vsel %vm2371, %v3022, 0.0
        %v3524 = vsel %vm2372, %v3027, 0.0
        %v3525 = vsel %vm2373, %v3032, 0.0
        %v3526 = vsel %vm2374, %v3037, 0.0
        %v3527 = vsel %vm2375, %v3042, 0.0
        %v3528 = vsel %vm2376, %v3047, 0.0
        %v3529 = vsel %vm2377, %v3052, 0.0
        %v3530 = vsel %vm2378, %v3057, 0.0
        %v3531 = vsel %vm2379, %v3062, 0.0
        %v3532 = vsel %vm2380, %v3067, 0.0
        %v3533 = vsel %vm2381, %v3072, 0.0
        %v3534 = vsel %vm2382, %v3077, 0.0
        %v3535 = vsel %vm2383, %v3082, 0.0
        %v3536 = vsel %vm2384, %v3087, 0.0
        %v3537 = vsel %vm2385, %v3092, 0.0
        %v3538 = vsel %vm2386, %v3097, 0.0
        %v3539 = vsel %vm2387, %v3102, 0.0
        %v3540 = vsel %vm2388, %v3107, 0.0
        %v3541 = vsel %vm2389, %v3112, 0.0
        %v3542 = vsel %vm2390, %v3117, 0.0
        %v3543 = vsel %vm2391, %v3122, 0.0
        %v3544 = vsel %vm2392, %v3127, 0.0
        %v3545 = vsel %vm2393, %v3132, 0.0
        %v3546 = vsel %vm2394, %v3137, 0.0
        %v3547 = vsel %vm2395, %v3142, 0.0
        %v3548 = vsel %vm2396, %v3147, 0.0
        %v3549 = vsel %vm2397, %v3152, 0.0
        %v3550 = vsel %vm2398, %v3157, 0.0
        %v3551 = vsel %vm2399, %v3162, 0.0
        %v3552 = vsel %vm2400, %v3167, 0.0
        %v3553 = vsel %vm2401, %v3172, 0.0
        %v3554 = vsel %vm2402, %v3177, 0.0
        %v3555 = vsel %vm2403, %v3182, 0.0
        %v3556 = vsel %vm2404, %v3187, 0.0
        %v3557 = vsel %vm2405, %v3192, 0.0
        %v3558 = vsel %vm2406, %v3197, 0.0
        %v3559 = vsel %vm2407, %v3202, 0.0
        %v3560 = vsel %vm2408, %v3207, 0.0
        %v3561 = vsel %vm2409, %v3212, 0.0
        %v3562 = vsel %vm2410, %v3217, 0.0
        %v3563 = vsel %vm2411, %v3222, 0.0
        %v3564 = vsel %vm2412, %v3227, 0.0
        %v3565 = vsel %vm2413, %v3232, 0.0
        %v3566 = vsel %vm2414, %v3237, 0.0
        %v3567 = vsel %vm2415, %v3242, 0.0
        %v3568 = vsel %vm2416, %v3247, 0.0
        %v3569 = vsel %vm2417, %v3252, 0.0
        %v3570 = vsel %vm2418, %v3257, 0.0
        %v3571 = vsel %vm2419, %v3262, 0.0
        %v3572 = vsel %vm2420, %v3267, 0.0
        %v3573 = vsel %vm2421, %v3272, 0.0
        %v3574 = vsel %vm2422, %v3277, 0.0
        %v3575 = vsel %vm2423, %v3282, 0.0
        %v3576 = vsel %vm2424, %v3287, 0.0
        %v3577 = vsel %vm2425, %v3292, 0.0
        %v3578 = vsel %vm2426, %v3297, 0.0
        %v3579 = vsel %vm2427, %v3302, 0.0
        %v3580 = vsel %vm2428, %v3307, 0.0
        %v3581 = vsel %vm2429, %v3312, 0.0
        %v3582 = vsel %vm2430, %v3317, 0.0
        %v3583 = vsel %vm2431, %v3322, 0.0
        %v3584 = vsel %vm2432, %v3327, 0.0
        %v3585 = vsel %vm2433, %v3332, 0.0
        %v3586 = vsel %vm2434, %v3337, 0.0
        %v3587 = vsel %vm2435, %v3342, 0.0
        %v3588 = vsel %vm2436, %v3347, 0.0
        %v3589 = vsel %vm2437, %v3352, 0.0
        %v3590 = vsel %vm2438, %v3357, 0.0
        %v3591 = vsel %vm2439, %v3362, 0.0
        %v3592 = vsel %vm2440, %v3367, 0.0
        %v3593 = vsel %vm2441, %v3372, 0.0
        %v3594 = vsel %vm2442, %v3377, 0.0
        %v3595 = vsel %vm2443, %v3382, 0.0
        %v3596 = vsel %vm2444, %v3387, 0.0
        %v3597 = vsel %vm2445, %v3392, 0.0
        %v3598 = vsel %vm2446, %v3397, 0.0
        %v3599 = vsel %vm2447, %v3402, 0.0
        %v3600 = vsel %vm2448, %v3407, 0.0
        %v3601 = vld [vmem:[%s1] sm:$0xff]
        %v3602 = vld [vmem:[%s1 + $0x8] sm:$0xff]
        %v3603 = vld [vmem:[%s1 + $0x10] sm:$0xff]
        %v3604 = vld [vmem:[%s1 + $0x18] sm:$0xff]
        %v3605 = vld [vmem:[%s1 + $0x20] sm:$0xff]
        %v3606 = vld [vmem:[%s1 + $0x28] sm:$0xff]
        %v3607 = vld [vmem:[%s1 + $0x30] sm:$0xff]
        %v3608 = vld [vmem:[%s1 + $0x38] sm:$0xff]
        %v3609 = vld [vmem:[%s1 + $0x40] sm:$0xff]
        %v3610 = vld [vmem:[%s1 + $0x48] sm:$0xff]
        %v3611 = vld [vmem:[%s1 + $0x50] sm:$0xff]
        %v3612 = vld [vmem:[%s1 + $0x58] sm:$0xff]
        %v3613 = vld [vmem:[%s1 + $0x60] sm:$0xff]
        %v3614 = vld [vmem:[%s1 + $0x68] sm:$0xff]
        %v3615 = vld [vmem:[%s1 + $0x70] sm:$0xff]
        %v3616 = vld [vmem:[%s1 + $0x78] sm:$0xff]
        %3617 = vmatprep.subr.mxu0 0.0
        %3618 = vmatpush1.msra.mxu0 %v3601
        %3619 = vmatprep.subr.mxu0 0.0
        %3620 = vmatpush1.msra.mxu0 %v3602
        %3621 = vmatprep.subr.mxu0 0.0
        %3622 = vmatpush1.msra.mxu0 %v3603
        %3623 = vmatprep.subr.mxu0 0.0
        %3624 = vmatpush1.msra.mxu0 %v3604
        %3625 = vmatprep.subr.mxu0 0.0
        %3626 = vmatpush1.msra.mxu0 %v3605
        %3627 = vmatprep.subr.mxu0 0.0
        %3628 = vmatpush1.msra.mxu0 %v3606
        %3629 = vmatprep.subr.mxu0 0.0
        %3630 = vmatpush1.msra.mxu0 %v3607
        %3631 = vmatprep.subr.mxu0 0.0
        %3632 = vmatpush1.msra.mxu0 %v3608
        %3633 = vmatprep.subr.mxu0 0.0
        %3634 = vmatpush1.msra.mxu0 %v3609
        %3635 = vmatprep.subr.mxu0 0.0
        %3636 = vmatpush1.msra.mxu0 %v3610
        %3637 = vmatprep.subr.mxu0 0.0
        %3638 = vmatpush1.msra.mxu0 %v3611
        %3639 = vmatprep.subr.mxu0 0.0
        %3640 = vmatpush1.msra.mxu0 %v3612
        %3641 = vmatprep.subr.mxu0 0.0
        %3642 = vmatpush1.msra.mxu0 %v3613
        %3643 = vmatprep.subr.mxu0 0.0
        %3644 = vmatpush1.msra.mxu0 %v3614
        %3645 = vmatprep.subr.mxu0 0.0
        %3646 = vmatpush1.msra.mxu0 %v3615
        %3647 = vmatprep.subr.mxu0 0.0
        %3648 = vmatpush1.msra.mxu0 %v3616
        %3649 = vmatprep.subr.mxu0 0.0
        %3650 = vmatpush1.msra.mxu0 0.0
        %3651 = vmatprep.subr.mxu0 0.0
        %3652 = vmatpush1.msra.mxu0 0.0
        %3653 = vmatprep.subr.mxu0 0.0
        %3654 = vmatpush1.msra.mxu0 0.0
        %3655 = vmatprep.subr.mxu0 0.0
        %3656 = vmatpush1.msra.mxu0 0.0
        %3657 = vmatprep.subr.mxu0 0.0
        %3658 = vmatpush1.msra.mxu0 0.0
        %3659 = vmatprep.subr.mxu0 0.0
        %3660 = vmatpush1.msra.mxu0 0.0
        %3661 = vmatprep.subr.mxu0 0.0
        %3662 = vmatpush1.msra.mxu0 0.0
        %3663 = vmatprep.subr.mxu0 0.0
        %3664 = vmatpush1.msra.mxu0 0.0
        %3665 = vmatprep.subr.mxu0 0.0
        %3666 = vmatpush1.msra.mxu0 0.0
        %3667 = vmatprep.subr.mxu0 0.0
        %3668 = vmatpush1.msra.mxu0 0.0
        %3669 = vmatprep.subr.mxu0 0.0
        %3670 = vmatpush1.msra.mxu0 0.0
        %3671 = vmatprep.subr.mxu0 0.0
        %3672 = vmatpush1.msra.mxu0 0.0
        %3673 = vmatprep.subr.mxu0 0.0
        %3674 = vmatpush1.msra.mxu0 0.0
        %3675 = vmatprep.subr.mxu0 0.0
        %3676 = vmatpush1.msra.mxu0 0.0
        %3677 = vmatprep.subr.mxu0 0.0
        %3678 = vmatpush1.msra.mxu0 0.0
        %3679 = vmatprep.subr.mxu0 0.0
        %3680 = vmatpush1.msra.mxu0 0.0
        %3681 = vmatprep.mubr.f32.mxu0 0.0
        %3682 = vmatmul.mubr.f32.gmra.mrb[0].mxu0 %v1489
        %v3683 = vpop.f32.mrb[0].mxu0
        %v3684 = vadd.f32 0.0, %v3683
        %v3685 = vpop.f32.mrb[0].mxu0
        %3686 = vmatprep.mubr.f32.mxu0 0.0
        %3687 = vmatmul.mubr.f32.gmra.mrb[0].mxu0 %v1490
        %v3688 = vpop.f32.mrb[0].mxu0
        %v3689 = vadd.f32 0.0, %v3688
        %v3690 = vpop.f32.mrb[0].mxu0
        %3691 = vmatprep.mubr.f32.mxu0 0.0
        %3692 = vmatmul.mubr.f32.gmra.mrb[0].mxu0 %v1491
        %v3693 = vpop.f32.mrb[0].mxu0
        %v3694 = vadd.f32 0.0, %v3693
        %v3695 = vpop.f32.mrb[0].mxu0
        %3696 = vmatprep.mubr.f32.mxu0 0.0
        %3697 = vmatmul.mubr.f32.gmra.mrb[0].mxu0 %v1492
        %v3698 = vpop.f32.mrb[0].mxu0
        %v3699 = vadd.f32 0.0, %v3698
        %v3700 = vpop.f32.mrb[0].mxu0
        %3701 = vmatprep.mubr.f32.mxu0 0.0
        %3702 = vmatmul.mubr.f32.gmra.mrb[0].mxu0 %v1493
        %v3703 = vpop.f32.mrb[0].mxu0
        %v3704 = vadd.f32 0.0, %v3703
        %v3705 = vpop.f32.mrb[0].mxu0
        %3706 = vmatprep.mubr.f32.mxu0 0.0
        %3707 = vmatmul.mubr.f32.gmra.mrb[0].mxu0 %v1494
        %v3708 = vpop.f32.mrb[0].mxu0
        %v3709 = vadd.f32 0.0, %v3708
        %v3710 = vpop.f32.mrb[0].mxu0
        %3711 = vmatprep.mubr.f32.mxu0 0.0
        %3712 = vmatmul.mubr.f32.gmra.mrb[0].mxu0 %v1495
        %v3713 = vpop.f32.mrb[0].mxu0
        %v3714 = vadd.f32 0.0, %v3713
        %v3715 = vpop.f32.mrb[0].mxu0
        %3716 = vmatprep.mubr.f32.mxu0 0.0
        %3717 = vmatmul.mubr.f32.gmra.mrb[0].mxu0 %v1496
        %v3718 = vpop.f32.mrb[0].mxu0
        %v3719 = vadd.f32 0.0, %v3718
        %v3720 = vpop.f32.mrb[0].mxu0
        %3721 = vmatprep.mubr.f32.mxu0 0.0
        %3722 = vmatmul.mubr.f32.gmra.mrb[0].mxu0 %v1497
        %v3723 = vpop.f32.mrb[0].mxu0
        %v3724 = vadd.f32 0.0, %v3723
        %v3725 = vpop.f32.mrb[0].mxu0
        %3726 = vmatprep.mubr.f32.mxu0 0.0
        %3727 = vmatmul.mubr.f32.gmra.mrb[0].mxu0 %v1498
        %v3728 = vpop.f32.mrb[0].mxu0
        %v3729 = vadd.f32 0.0, %v3728
        %v3730 = vpop.f32.mrb[0].mxu0
        %3731 = vmatprep.mubr.f32.mxu0 0.0
        %3732 = vmatmul.mubr.f32.gmra.mrb[0].mxu0 %v1499
        %v3733 = vpop.f32.mrb[0].mxu0
        %v3734 = vadd.f32 0.0, %v3733
        %v3735 = vpop.f32.mrb[0].mxu0
        %3736 = vmatprep.mubr.f32.mxu0 0.0
        %3737 = vmatmul.mubr.f32.gmra.mrb[0].mxu0 %v1500
        %v3738 = vpop.f32.mrb[0].mxu0
        %v3739 = vadd.f32 0.0, %v3738
        %v3740 = vpop.f32.mrb[0].mxu0
        %3741 = vmatprep.mubr.f32.mxu0 0.0
        %3742 = vmatmul.mubr.f32.gmra.mrb[0].mxu0 %v1501
        %v3743 = vpop.f32.mrb[0].mxu0
        %v3744 = vadd.f32 0.0, %v3743
        %v3745 = vpop.f32.mrb[0].mxu0
        %3746 = vmatprep.mubr.f32.mxu0 0.0
        %3747 = vmatmul.mubr.f32.gmra.mrb[0].mxu0 %v1502
        %v3748 = vpop.f32.mrb[0].mxu0
        %v3749 = vadd.f32 0.0, %v3748
        %v3750 = vpop.f32.mrb[0].mxu0
        %3751 = vmatprep.mubr.f32.mxu0 0.0
        %3752 = vmatmul.mubr.f32.gmra.mrb[0].mxu0 %v1503
        %v3753 = vpop.f32.mrb[0].mxu0
        %v3754 = vadd.f32 0.0, %v3753
        %v3755 = vpop.f32.mrb[0].mxu0
        %3756 = vmatprep.mubr.f32.mxu0 0.0
        %3757 = vmatmul.mubr.f32.gmra.mrb[0].mxu0 %v1504
        %v3758 = vpop.f32.mrb[0].mxu0
        %v3759 = vadd.f32 0.0, %v3758
        %v3760 = vpop.f32.mrb[0].mxu0
        %3761 = vmatprep.mubr.f32.mxu0 0.0
        %3762 = vmatmul.mubr.f32.gmra.mrb[0].mxu0 %v1505
        %v3763 = vpop.f32.mrb[0].mxu0
        %v3764 = vadd.f32 0.0, %v3763
        %v3765 = vpop.f32.mrb[0].mxu0
        %3766 = vmatprep.mubr.f32.mxu0 0.0
        %3767 = vmatmul.mubr.f32.gmra.mrb[0].mxu0 %v1506
        %v3768 = vpop.f32.mrb[0].mxu0
        %v3769 = vadd.f32 0.0, %v3768
        %v3770 = vpop.f32.mrb[0].mxu0
        %3771 = vmatprep.mubr.f32.mxu0 0.0
        %3772 = vmatmul.mubr.f32.gmra.mrb[0].mxu0 %v1507
        %v3773 = vpop.f32.mrb[0].mxu0
        %v3774 = vadd.f32 0.0, %v3773
        %v3775 = vpop.f32.mrb[0].mxu0
        %3776 = vmatprep.mubr.f32.mxu0 0.0
        %3777 = vmatmul.mubr.f32.gmra.mrb[0].mxu0 %v1508
        %v3778 = vpop.f32.mrb[0].mxu0
        %v3779 = vadd.f32 0.0, %v3778
        %v3780 = vpop.f32.mrb[0].mxu0
        %3781 = vmatprep.mubr.f32.mxu0 0.0
        %3782 = vmatmul.mubr.f32.gmra.mrb[0].mxu0 %v1509
        %v3783 = vpop.f32.mrb[0].mxu0
        %v3784 = vadd.f32 0.0, %v3783
        %v3785 = vpop.f32.mrb[0].mxu0
        %3786 = vmatprep.mubr.f32.mxu0 0.0
        %3787 = vmatmul.mubr.f32.gmra.mrb[0].mxu0 %v1510
        %v3788 = vpop.f32.mrb[0].mxu0
        %v3789 = vadd.f32 0.0, %v3788
        %v3790 = vpop.f32.mrb[0].mxu0
        %3791 = vmatprep.mubr.f32.mxu0 0.0
        %3792 = vmatmul.mubr.f32.gmra.mrb[0].mxu0 %v1511
        %v3793 = vpop.f32.mrb[0].mxu0
        %v3794 = vadd.f32 0.0, %v3793
        %v3795 = vpop.f32.mrb[0].mxu0
        %3796 = vmatprep.mubr.f32.mxu0 0.0
        %3797 = vmatmul.mubr.f32.gmra.mrb[0].mxu0 %v1512
        %v3798 = vpop.f32.mrb[0].mxu0
        %v3799 = vadd.f32 0.0, %v3798
        %v3800 = vpop.f32.mrb[0].mxu0
        %3801 = vmatprep.mubr.f32.mxu0 0.0
        %3802 = vmatmul.mubr.f32.gmra.mrb[0].mxu0 %v1513
        %v3803 = vpop.f32.mrb[0].mxu0
        %v3804 = vadd.f32 0.0, %v3803
        %v3805 = vpop.f32.mrb[0].mxu0
        %3806 = vmatprep.mubr.f32.mxu0 0.0
        %3807 = vmatmul.mubr.f32.gmra.mrb[0].mxu0 %v1514
        %v3808 = vpop.f32.mrb[0].mxu0
        %v3809 = vadd.f32 0.0, %v3808
        %v3810 = vpop.f32.mrb[0].mxu0
        %3811 = vmatprep.mubr.f32.mxu0 0.0
        %3812 = vmatmul.mubr.f32.gmra.mrb[0].mxu0 %v1515
        %v3813 = vpop.f32.mrb[0].mxu0
        %v3814 = vadd.f32 0.0, %v3813
        %v3815 = vpop.f32.mrb[0].mxu0
        %3816 = vmatprep.mubr.f32.mxu0 0.0
        %3817 = vmatmul.mubr.f32.gmra.mrb[0].mxu0 %v1516
        %v3818 = vpop.f32.mrb[0].mxu0
        %v3819 = vadd.f32 0.0, %v3818
        %v3820 = vpop.f32.mrb[0].mxu0
        %3821 = vmatprep.mubr.f32.mxu0 0.0
        %3822 = vmatmul.mubr.f32.gmra.mrb[0].mxu0 %v1517
        %v3823 = vpop.f32.mrb[0].mxu0
        %v3824 = vadd.f32 0.0, %v3823
        %v3825 = vpop.f32.mrb[0].mxu0
        %3826 = vmatprep.mubr.f32.mxu0 0.0
        %3827 = vmatmul.mubr.f32.gmra.mrb[0].mxu0 %v1518
        %v3828 = vpop.f32.mrb[0].mxu0
        %v3829 = vadd.f32 0.0, %v3828
        %v3830 = vpop.f32.mrb[0].mxu0
        %3831 = vmatprep.mubr.f32.mxu0 0.0
        %3832 = vmatmul.mubr.f32.gmra.mrb[0].mxu0 %v1519
        %v3833 = vpop.f32.mrb[0].mxu0
        %v3834 = vadd.f32 0.0, %v3833
        %v3835 = vpop.f32.mrb[0].mxu0
        %3836 = vmatprep.mubr.f32.mxu0 0.0
        %3837 = vmatmul.mubr.f32.gmra.mrb[0].mxu0 %v1520
        %v3838 = vpop.f32.mrb[0].mxu0
        %v3839 = vadd.f32 0.0, %v3838
        %v3840 = vpop.f32.mrb[0].mxu0
        %3841 = vmatprep.mubr.f32.mxu0 0.0
        %3842 = vmatmul.mubr.f32.gmra.mrb[0].mxu0 %v1521
        %v3843 = vpop.f32.mrb[0].mxu0
        %v3844 = vadd.f32 0.0, %v3843
        %v3845 = vpop.f32.mrb[0].mxu0
        %3846 = vmatprep.mubr.f32.mxu0 0.0
        %3847 = vmatmul.mubr.f32.gmra.mrb[0].mxu0 %v1522
        %v3848 = vpop.f32.mrb[0].mxu0
        %v3849 = vadd.f32 0.0, %v3848
        %v3850 = vpop.f32.mrb[0].mxu0
        %3851 = vmatprep.mubr.f32.mxu0 0.0
        %3852 = vmatmul.mubr.f32.gmra.mrb[0].mxu0 %v1523
        %v3853 = vpop.f32.mrb[0].mxu0
        %v3854 = vadd.f32 0.0, %v3853
        %v3855 = vpop.f32.mrb[0].mxu0
        %3856 = vmatprep.mubr.f32.mxu0 0.0
        %3857 = vmatmul.mubr.f32.gmra.mrb[0].mxu0 %v1524
        %v3858 = vpop.f32.mrb[0].mxu0
        %v3859 = vadd.f32 0.0, %v3858
        %v3860 = vpop.f32.mrb[0].mxu0
        %3861 = vmatprep.mubr.f32.mxu0 0.0
        %3862 = vmatmul.mubr.f32.gmra.mrb[0].mxu0 %v1525
        %v3863 = vpop.f32.mrb[0].mxu0
        %v3864 = vadd.f32 0.0, %v3863
        %v3865 = vpop.f32.mrb[0].mxu0
        %3866 = vmatprep.mubr.f32.mxu0 0.0
        %3867 = vmatmul.mubr.f32.gmra.mrb[0].mxu0 %v1526
        %v3868 = vpop.f32.mrb[0].mxu0
        %v3869 = vadd.f32 0.0, %v3868
        %v3870 = vpop.f32.mrb[0].mxu0
        %3871 = vmatprep.mubr.f32.mxu0 0.0
        %3872 = vmatmul.mubr.f32.gmra.mrb[0].mxu0 %v1527
        %v3873 = vpop.f32.mrb[0].mxu0
        %v3874 = vadd.f32 0.0, %v3873
        %v3875 = vpop.f32.mrb[0].mxu0
        %3876 = vmatprep.mubr.f32.mxu0 0.0
        %3877 = vmatmul.mubr.f32.gmra.mrb[0].mxu0 %v1528
        %v3878 = vpop.f32.mrb[0].mxu0
        %v3879 = vadd.f32 0.0, %v3878
        %v3880 = vpop.f32.mrb[0].mxu0
        %3881 = vmatprep.mubr.f32.mxu0 0.0
        %3882 = vmatmul.mubr.f32.gmra.mrb[0].mxu0 %v1529
        %v3883 = vpop.f32.mrb[0].mxu0
        %v3884 = vadd.f32 0.0, %v3883
        %v3885 = vpop.f32.mrb[0].mxu0
        %3886 = vmatprep.mubr.f32.mxu0 0.0
        %3887 = vmatmul.mubr.f32.gmra.mrb[0].mxu0 %v1530
        %v3888 = vpop.f32.mrb[0].mxu0
        %v3889 = vadd.f32 0.0, %v3888
        %v3890 = vpop.f32.mrb[0].mxu0
        %3891 = vmatprep.mubr.f32.mxu0 0.0
        %3892 = vmatmul.mubr.f32.gmra.mrb[0].mxu0 %v1531
        %v3893 = vpop.f32.mrb[0].mxu0
        %v3894 = vadd.f32 0.0, %v3893
        %v3895 = vpop.f32.mrb[0].mxu0
        %3896 = vmatprep.mubr.f32.mxu0 0.0
        %3897 = vmatmul.mubr.f32.gmra.mrb[0].mxu0 %v1532
        %v3898 = vpop.f32.mrb[0].mxu0
        %v3899 = vadd.f32 0.0, %v3898
        %v3900 = vpop.f32.mrb[0].mxu0
        %3901 = vmatprep.mubr.f32.mxu0 0.0
        %3902 = vmatmul.mubr.f32.gmra.mrb[0].mxu0 %v1533
        %v3903 = vpop.f32.mrb[0].mxu0
        %v3904 = vadd.f32 0.0, %v3903
        %v3905 = vpop.f32.mrb[0].mxu0
        %3906 = vmatprep.mubr.f32.mxu0 0.0
        %3907 = vmatmul.mubr.f32.gmra.mrb[0].mxu0 %v1534
        %v3908 = vpop.f32.mrb[0].mxu0
        %v3909 = vadd.f32 0.0, %v3908
        %v3910 = vpop.f32.mrb[0].mxu0
        %3911 = vmatprep.mubr.f32.mxu0 0.0
        %3912 = vmatmul.mubr.f32.gmra.mrb[0].mxu0 %v1535
        %v3913 = vpop.f32.mrb[0].mxu0
        %v3914 = vadd.f32 0.0, %v3913
        %v3915 = vpop.f32.mrb[0].mxu0
        %3916 = vmatprep.mubr.f32.mxu0 0.0
        %3917 = vmatmul.mubr.f32.gmra.mrb[0].mxu0 %v1536
        %v3918 = vpop.f32.mrb[0].mxu0
        %v3919 = vadd.f32 0.0, %v3918
        %v3920 = vpop.f32.mrb[0].mxu0
        %3921 = vmatprep.mubr.f32.mxu0 0.0
        %3922 = vmatmul.mubr.f32.gmra.mrb[0].mxu0 %v1537
        %v3923 = vpop.f32.mrb[0].mxu0
        %v3924 = vadd.f32 0.0, %v3923
        %v3925 = vpop.f32.mrb[0].mxu0
        %3926 = vmatprep.mubr.f32.mxu0 0.0
        %3927 = vmatmul.mubr.f32.gmra.mrb[0].mxu0 %v1538
        %v3928 = vpop.f32.mrb[0].mxu0
        %v3929 = vadd.f32 0.0, %v3928
        %v3930 = vpop.f32.mrb[0].mxu0
        %3931 = vmatprep.mubr.f32.mxu0 0.0
        %3932 = vmatmul.mubr.f32.gmra.mrb[0].mxu0 %v1539
        %v3933 = vpop.f32.mrb[0].mxu0
        %v3934 = vadd.f32 0.0, %v3933
        %v3935 = vpop.f32.mrb[0].mxu0
        %3936 = vmatprep.mubr.f32.mxu0 0.0
        %3937 = vmatmul.mubr.f32.gmra.mrb[0].mxu0 %v1540
        %v3938 = vpop.f32.mrb[0].mxu0
        %v3939 = vadd.f32 0.0, %v3938
        %v3940 = vpop.f32.mrb[0].mxu0
        %3941 = vmatprep.mubr.f32.mxu0 0.0
        %3942 = vmatmul.mubr.f32.gmra.mrb[0].mxu0 %v1541
        %v3943 = vpop.f32.mrb[0].mxu0
        %v3944 = vadd.f32 0.0, %v3943
        %v3945 = vpop.f32.mrb[0].mxu0
        %3946 = vmatprep.mubr.f32.mxu0 0.0
        %3947 = vmatmul.mubr.f32.gmra.mrb[0].mxu0 %v1542
        %v3948 = vpop.f32.mrb[0].mxu0
        %v3949 = vadd.f32 0.0, %v3948
        %v3950 = vpop.f32.mrb[0].mxu0
        %3951 = vmatprep.mubr.f32.mxu0 0.0
        %3952 = vmatmul.mubr.f32.gmra.mrb[0].mxu0 %v1543
        %v3953 = vpop.f32.mrb[0].mxu0
        %v3954 = vadd.f32 0.0, %v3953
        %v3955 = vpop.f32.mrb[0].mxu0
        %3956 = vmatprep.mubr.f32.mxu0 0.0
        %3957 = vmatmul.mubr.f32.gmra.mrb[0].mxu0 %v1544
        %v3958 = vpop.f32.mrb[0].mxu0
        %v3959 = vadd.f32 0.0, %v3958
        %v3960 = vpop.f32.mrb[0].mxu0
        %3961 = vmatprep.mubr.f32.mxu0 0.0
        %3962 = vmatmul.mubr.f32.gmra.mrb[0].mxu0 %v1545
        %v3963 = vpop.f32.mrb[0].mxu0
        %v3964 = vadd.f32 0.0, %v3963
        %v3965 = vpop.f32.mrb[0].mxu0
        %3966 = vmatprep.mubr.f32.mxu0 0.0
        %3967 = vmatmul.mubr.f32.gmra.mrb[0].mxu0 %v1546
        %v3968 = vpop.f32.mrb[0].mxu0
        %v3969 = vadd.f32 0.0, %v3968
        %v3970 = vpop.f32.mrb[0].mxu0
        %3971 = vmatprep.mubr.f32.mxu0 0.0
        %3972 = vmatmul.mubr.f32.gmra.mrb[0].mxu0 %v1547
        %v3973 = vpop.f32.mrb[0].mxu0
        %v3974 = vadd.f32 0.0, %v3973
        %v3975 = vpop.f32.mrb[0].mxu0
        %3976 = vmatprep.mubr.f32.mxu0 0.0
        %3977 = vmatmul.mubr.f32.gmra.mrb[0].mxu0 %v1548
        %v3978 = vpop.f32.mrb[0].mxu0
        %v3979 = vadd.f32 0.0, %v3978
        %v3980 = vpop.f32.mrb[0].mxu0
        %3981 = vmatprep.mubr.f32.mxu0 0.0
        %3982 = vmatmul.mubr.f32.gmra.mrb[0].mxu0 %v1549
        %v3983 = vpop.f32.mrb[0].mxu0
        %v3984 = vadd.f32 0.0, %v3983
        %v3985 = vpop.f32.mrb[0].mxu0
        %3986 = vmatprep.mubr.f32.mxu0 0.0
        %3987 = vmatmul.mubr.f32.gmra.mrb[0].mxu0 %v1550
        %v3988 = vpop.f32.mrb[0].mxu0
        %v3989 = vadd.f32 0.0, %v3988
        %v3990 = vpop.f32.mrb[0].mxu0
        %3991 = vmatprep.mubr.f32.mxu0 0.0
        %3992 = vmatmul.mubr.f32.gmra.mrb[0].mxu0 %v1551
        %v3993 = vpop.f32.mrb[0].mxu0
        %v3994 = vadd.f32 0.0, %v3993
        %v3995 = vpop.f32.mrb[0].mxu0
        %3996 = vmatprep.mubr.f32.mxu0 0.0
        %3997 = vmatmul.mubr.f32.gmra.mrb[0].mxu0 %v1552
        %v3998 = vpop.f32.mrb[0].mxu0
        %v3999 = vadd.f32 0.0, %v3998
        %v4000 = vpop.f32.mrb[0].mxu0
        %4001 = vmatprep.mubr.f32.mxu0 0.0
        %4002 = vmatmul.mubr.f32.gmra.mrb[0].mxu0 %v1553
        %v4003 = vpop.f32.mrb[0].mxu0
        %v4004 = vadd.f32 0.0, %v4003
        %v4005 = vpop.f32.mrb[0].mxu0
        %4006 = vmatprep.mubr.f32.mxu0 0.0
        %4007 = vmatmul.mubr.f32.gmra.mrb[0].mxu0 %v1554
        %v4008 = vpop.f32.mrb[0].mxu0
        %v4009 = vadd.f32 0.0, %v4008
        %v4010 = vpop.f32.mrb[0].mxu0
        %4011 = vmatprep.mubr.f32.mxu0 0.0
        %4012 = vmatmul.mubr.f32.gmra.mrb[0].mxu0 %v1555
        %v4013 = vpop.f32.mrb[0].mxu0
        %v4014 = vadd.f32 0.0, %v4013
        %v4015 = vpop.f32.mrb[0].mxu0
        %4016 = vmatprep.mubr.f32.mxu0 0.0
        %4017 = vmatmul.mubr.f32.gmra.mrb[0].mxu0 %v1556
        %v4018 = vpop.f32.mrb[0].mxu0
        %v4019 = vadd.f32 0.0, %v4018
        %v4020 = vpop.f32.mrb[0].mxu0
        %4021 = vmatprep.mubr.f32.mxu0 0.0
        %4022 = vmatmul.mubr.f32.gmra.mrb[0].mxu0 %v1557
        %v4023 = vpop.f32.mrb[0].mxu0
        %v4024 = vadd.f32 0.0, %v4023
        %v4025 = vpop.f32.mrb[0].mxu0
        %4026 = vmatprep.mubr.f32.mxu0 0.0
        %4027 = vmatmul.mubr.f32.gmra.mrb[0].mxu0 %v1558
        %v4028 = vpop.f32.mrb[0].mxu0
        %v4029 = vadd.f32 0.0, %v4028
        %v4030 = vpop.f32.mrb[0].mxu0
        %4031 = vmatprep.mubr.f32.mxu0 0.0
        %4032 = vmatmul.mubr.f32.gmra.mrb[0].mxu0 %v1559
        %v4033 = vpop.f32.mrb[0].mxu0
        %v4034 = vadd.f32 0.0, %v4033
        %v4035 = vpop.f32.mrb[0].mxu0
        %4036 = vmatprep.mubr.f32.mxu0 0.0
        %4037 = vmatmul.mubr.f32.gmra.mrb[0].mxu0 %v1560
        %v4038 = vpop.f32.mrb[0].mxu0
        %v4039 = vadd.f32 0.0, %v4038
        %v4040 = vpop.f32.mrb[0].mxu0
        %4041 = vmatprep.mubr.f32.mxu0 0.0
        %4042 = vmatmul.mubr.f32.gmra.mrb[0].mxu0 %v1561
        %v4043 = vpop.f32.mrb[0].mxu0
        %v4044 = vadd.f32 0.0, %v4043
        %v4045 = vpop.f32.mrb[0].mxu0
        %4046 = vmatprep.mubr.f32.mxu0 0.0
        %4047 = vmatmul.mubr.f32.gmra.mrb[0].mxu0 %v1562
        %v4048 = vpop.f32.mrb[0].mxu0
        %v4049 = vadd.f32 0.0, %v4048
        %v4050 = vpop.f32.mrb[0].mxu0
        %4051 = vmatprep.mubr.f32.mxu0 0.0
        %4052 = vmatmul.mubr.f32.gmra.mrb[0].mxu0 %v1563
        %v4053 = vpop.f32.mrb[0].mxu0
        %v4054 = vadd.f32 0.0, %v4053
        %v4055 = vpop.f32.mrb[0].mxu0
        %4056 = vmatprep.mubr.f32.mxu0 0.0
        %4057 = vmatmul.mubr.f32.gmra.mrb[0].mxu0 %v1564
        %v4058 = vpop.f32.mrb[0].mxu0
        %v4059 = vadd.f32 0.0, %v4058
        %v4060 = vpop.f32.mrb[0].mxu0
        %4061 = vmatprep.mubr.f32.mxu0 0.0
        %4062 = vmatmul.mubr.f32.gmra.mrb[0].mxu0 %v1565
        %v4063 = vpop.f32.mrb[0].mxu0
        %v4064 = vadd.f32 0.0, %v4063
        %v4065 = vpop.f32.mrb[0].mxu0
        %4066 = vmatprep.mubr.f32.mxu0 0.0
        %4067 = vmatmul.mubr.f32.gmra.mrb[0].mxu0 %v1566
        %v4068 = vpop.f32.mrb[0].mxu0
        %v4069 = vadd.f32 0.0, %v4068
        %v4070 = vpop.f32.mrb[0].mxu0
        %4071 = vmatprep.mubr.f32.mxu0 0.0
        %4072 = vmatmul.mubr.f32.gmra.mrb[0].mxu0 %v1567
        %v4073 = vpop.f32.mrb[0].mxu0
        %v4074 = vadd.f32 0.0, %v4073
        %v4075 = vpop.f32.mrb[0].mxu0
        %4076 = vmatprep.mubr.f32.mxu0 0.0
        %4077 = vmatmul.mubr.f32.gmra.mrb[0].mxu0 %v1568
        %v4078 = vpop.f32.mrb[0].mxu0
        %v4079 = vadd.f32 0.0, %v4078
        %v4080 = vpop.f32.mrb[0].mxu0
        %4081 = vmatprep.mubr.f32.mxu0 0.0
        %4082 = vmatmul.mubr.f32.gmra.mrb[0].mxu0 %v1569
        %v4083 = vpop.f32.mrb[0].mxu0
        %v4084 = vadd.f32 0.0, %v4083
        %v4085 = vpop.f32.mrb[0].mxu0
        %4086 = vmatprep.mubr.f32.mxu0 0.0
        %4087 = vmatmul.mubr.f32.gmra.mrb[0].mxu0 %v1570
        %v4088 = vpop.f32.mrb[0].mxu0
        %v4089 = vadd.f32 0.0, %v4088
        %v4090 = vpop.f32.mrb[0].mxu0
        %4091 = vmatprep.mubr.f32.mxu0 0.0
        %4092 = vmatmul.mubr.f32.gmra.mrb[0].mxu0 %v1571
        %v4093 = vpop.f32.mrb[0].mxu0
        %v4094 = vadd.f32 0.0, %v4093
        %v4095 = vpop.f32.mrb[0].mxu0
        %4096 = vmatprep.mubr.f32.mxu0 0.0
        %4097 = vmatmul.mubr.f32.gmra.mrb[0].mxu0 %v1572
        %v4098 = vpop.f32.mrb[0].mxu0
        %v4099 = vadd.f32 0.0, %v4098
        %v4100 = vpop.f32.mrb[0].mxu0
        %4101 = vmatprep.mubr.f32.mxu0 0.0
        %4102 = vmatmul.mubr.f32.gmra.mrb[0].mxu0 %v1573
        %v4103 = vpop.f32.mrb[0].mxu0
        %v4104 = vadd.f32 0.0, %v4103
        %v4105 = vpop.f32.mrb[0].mxu0
        %4106 = vmatprep.mubr.f32.mxu0 0.0
        %4107 = vmatmul.mubr.f32.gmra.mrb[0].mxu0 %v1574
        %v4108 = vpop.f32.mrb[0].mxu0
        %v4109 = vadd.f32 0.0, %v4108
        %v4110 = vpop.f32.mrb[0].mxu0
        %4111 = vmatprep.mubr.f32.mxu0 0.0
        %4112 = vmatmul.mubr.f32.gmra.mrb[0].mxu0 %v1575
        %v4113 = vpop.f32.mrb[0].mxu0
        %v4114 = vadd.f32 0.0, %v4113
        %v4115 = vpop.f32.mrb[0].mxu0
        %4116 = vmatprep.mubr.f32.mxu0 0.0
        %4117 = vmatmul.mubr.f32.gmra.mrb[0].mxu0 %v1576
        %v4118 = vpop.f32.mrb[0].mxu0
        %v4119 = vadd.f32 0.0, %v4118
        %v4120 = vpop.f32.mrb[0].mxu0
        %4121 = vmatprep.mubr.f32.mxu0 0.0
        %4122 = vmatmul.mubr.f32.gmra.mrb[0].mxu0 %v1577
        %v4123 = vpop.f32.mrb[0].mxu0
        %v4124 = vadd.f32 0.0, %v4123
        %v4125 = vpop.f32.mrb[0].mxu0
        %4126 = vmatprep.mubr.f32.mxu0 0.0
        %4127 = vmatmul.mubr.f32.gmra.mrb[0].mxu0 %v1578
        %v4128 = vpop.f32.mrb[0].mxu0
        %v4129 = vadd.f32 0.0, %v4128
        %v4130 = vpop.f32.mrb[0].mxu0
        %4131 = vmatprep.mubr.f32.mxu0 0.0
        %4132 = vmatmul.mubr.f32.gmra.mrb[0].mxu0 %v1579
        %v4133 = vpop.f32.mrb[0].mxu0
        %v4134 = vadd.f32 0.0, %v4133
        %v4135 = vpop.f32.mrb[0].mxu0
        %4136 = vmatprep.mubr.f32.mxu0 0.0
        %4137 = vmatmul.mubr.f32.gmra.mrb[0].mxu0 %v1580
        %v4138 = vpop.f32.mrb[0].mxu0
        %v4139 = vadd.f32 0.0, %v4138
        %v4140 = vpop.f32.mrb[0].mxu0
        %4141 = vmatprep.mubr.f32.mxu0 0.0
        %4142 = vmatmul.mubr.f32.gmra.mrb[0].mxu0 %v1581
        %v4143 = vpop.f32.mrb[0].mxu0
        %v4144 = vadd.f32 0.0, %v4143
        %v4145 = vpop.f32.mrb[0].mxu0
        %4146 = vmatprep.mubr.f32.mxu0 0.0
        %4147 = vmatmul.mubr.f32.gmra.mrb[0].mxu0 %v1582
        %v4148 = vpop.f32.mrb[0].mxu0
        %v4149 = vadd.f32 0.0, %v4148
        %v4150 = vpop.f32.mrb[0].mxu0
        %4151 = vmatprep.mubr.f32.mxu0 0.0
        %4152 = vmatmul.mubr.f32.gmra.mrb[0].mxu0 %v1583
        %v4153 = vpop.f32.mrb[0].mxu0
        %v4154 = vadd.f32 0.0, %v4153
        %v4155 = vpop.f32.mrb[0].mxu0
        %4156 = vmatprep.mubr.f32.mxu0 0.0
        %4157 = vmatmul.mubr.f32.gmra.mrb[0].mxu0 %v1584
        %v4158 = vpop.f32.mrb[0].mxu0
        %v4159 = vadd.f32 0.0, %v4158
        %v4160 = vpop.f32.mrb[0].mxu0
        %4161 = vmatprep.mubr.f32.mxu0 0.0
        %4162 = vmatmul.mubr.f32.gmra.mrb[0].mxu0 %v1585
        %v4163 = vpop.f32.mrb[0].mxu0
        %v4164 = vadd.f32 0.0, %v4163
        %v4165 = vpop.f32.mrb[0].mxu0
        %4166 = vmatprep.mubr.f32.mxu0 0.0
        %4167 = vmatmul.mubr.f32.gmra.mrb[0].mxu0 %v1586
        %v4168 = vpop.f32.mrb[0].mxu0
        %v4169 = vadd.f32 0.0, %v4168
        %v4170 = vpop.f32.mrb[0].mxu0
        %4171 = vmatprep.mubr.f32.mxu0 0.0
        %4172 = vmatmul.mubr.f32.gmra.mrb[0].mxu0 %v1587
        %v4173 = vpop.f32.mrb[0].mxu0
        %v4174 = vadd.f32 0.0, %v4173
        %v4175 = vpop.f32.mrb[0].mxu0
        %4176 = vmatprep.mubr.f32.mxu0 0.0
        %4177 = vmatmul.mubr.f32.gmra.mrb[0].mxu0 %v1588
        %v4178 = vpop.f32.mrb[0].mxu0
        %v4179 = vadd.f32 0.0, %v4178
        %v4180 = vpop.f32.mrb[0].mxu0
        %4181 = vmatprep.mubr.f32.mxu0 0.0
        %4182 = vmatmul.mubr.f32.gmra.mrb[0].mxu0 %v1589
        %v4183 = vpop.f32.mrb[0].mxu0
        %v4184 = vadd.f32 0.0, %v4183
        %v4185 = vpop.f32.mrb[0].mxu0
        %4186 = vmatprep.mubr.f32.mxu0 0.0
        %4187 = vmatmul.mubr.f32.gmra.mrb[0].mxu0 %v1590
        %v4188 = vpop.f32.mrb[0].mxu0
        %v4189 = vadd.f32 0.0, %v4188
        %v4190 = vpop.f32.mrb[0].mxu0
        %4191 = vmatprep.mubr.f32.mxu0 0.0
        %4192 = vmatmul.mubr.f32.gmra.mrb[0].mxu0 %v1591
        %v4193 = vpop.f32.mrb[0].mxu0
        %v4194 = vadd.f32 0.0, %v4193
        %v4195 = vpop.f32.mrb[0].mxu0
        %4196 = vmatprep.mubr.f32.mxu0 0.0
        %4197 = vmatmul.mubr.f32.gmra.mrb[0].mxu0 %v1592
        %v4198 = vpop.f32.mrb[0].mxu0
        %v4199 = vadd.f32 0.0, %v4198
        %v4200 = vpop.f32.mrb[0].mxu0
        %4201 = vmatprep.mubr.f32.mxu0 0.0
        %4202 = vmatmul.mubr.f32.gmra.mrb[0].mxu0 %v1593
        %v4203 = vpop.f32.mrb[0].mxu0
        %v4204 = vadd.f32 0.0, %v4203
        %v4205 = vpop.f32.mrb[0].mxu0
        %4206 = vmatprep.mubr.f32.mxu0 0.0
        %4207 = vmatmul.mubr.f32.gmra.mrb[0].mxu0 %v1594
        %v4208 = vpop.f32.mrb[0].mxu0
        %v4209 = vadd.f32 0.0, %v4208
        %v4210 = vpop.f32.mrb[0].mxu0
        %4211 = vmatprep.mubr.f32.mxu0 0.0
        %4212 = vmatmul.mubr.f32.gmra.mrb[0].mxu0 %v1595
        %v4213 = vpop.f32.mrb[0].mxu0
        %v4214 = vadd.f32 0.0, %v4213
        %v4215 = vpop.f32.mrb[0].mxu0
        %4216 = vmatprep.mubr.f32.mxu0 0.0
        %4217 = vmatmul.mubr.f32.gmra.mrb[0].mxu0 %v1596
        %v4218 = vpop.f32.mrb[0].mxu0
        %v4219 = vadd.f32 0.0, %v4218
        %v4220 = vpop.f32.mrb[0].mxu0
        %4221 = vmatprep.mubr.f32.mxu0 0.0
        %4222 = vmatmul.mubr.f32.gmra.mrb[0].mxu0 %v1597
        %v4223 = vpop.f32.mrb[0].mxu0
        %v4224 = vadd.f32 0.0, %v4223
        %v4225 = vpop.f32.mrb[0].mxu0
        %4226 = vmatprep.mubr.f32.mxu0 0.0
        %4227 = vmatmul.mubr.f32.gmra.mrb[0].mxu0 %v1598
        %v4228 = vpop.f32.mrb[0].mxu0
        %v4229 = vadd.f32 0.0, %v4228
        %v4230 = vpop.f32.mrb[0].mxu0
        %4231 = vmatprep.mubr.f32.mxu0 0.0
        %4232 = vmatmul.mubr.f32.gmra.mrb[0].mxu0 %v1599
        %v4233 = vpop.f32.mrb[0].mxu0
        %v4234 = vadd.f32 0.0, %v4233
        %v4235 = vpop.f32.mrb[0].mxu0
        %4236 = vmatprep.mubr.f32.mxu0 0.0
        %4237 = vmatmul.mubr.f32.gmra.mrb[0].mxu0 %v1600
        %v4238 = vpop.f32.mrb[0].mxu0
        %v4239 = vadd.f32 0.0, %v4238
        %v4240 = vpop.f32.mrb[0].mxu0
        %4241 = vmatprep.mubr.f32.mxu0 0.0
        %4242 = vmatmul.mubr.f32.gmra.mrb[0].mxu0 %v1601
        %v4243 = vpop.f32.mrb[0].mxu0
        %v4244 = vadd.f32 0.0, %v4243
        %v4245 = vpop.f32.mrb[0].mxu0
        %4246 = vmatprep.mubr.f32.mxu0 0.0
        %4247 = vmatmul.mubr.f32.gmra.mrb[0].mxu0 %v1602
        %v4248 = vpop.f32.mrb[0].mxu0
        %v4249 = vadd.f32 0.0, %v4248
        %v4250 = vpop.f32.mrb[0].mxu0
        %4251 = vmatprep.mubr.f32.mxu0 0.0
        %4252 = vmatmul.mubr.f32.gmra.mrb[0].mxu0 %v1603
        %v4253 = vpop.f32.mrb[0].mxu0
        %v4254 = vadd.f32 0.0, %v4253
        %v4255 = vpop.f32.mrb[0].mxu0
        %4256 = vmatprep.mubr.f32.mxu0 0.0
        %4257 = vmatmul.mubr.f32.gmra.mrb[0].mxu0 %v1604
        %v4258 = vpop.f32.mrb[0].mxu0
        %v4259 = vadd.f32 0.0, %v4258
        %v4260 = vpop.f32.mrb[0].mxu0
        %4261 = vmatprep.mubr.f32.mxu0 0.0
        %4262 = vmatmul.mubr.f32.gmra.mrb[0].mxu0 %v1605
        %v4263 = vpop.f32.mrb[0].mxu0
        %v4264 = vadd.f32 0.0, %v4263
        %v4265 = vpop.f32.mrb[0].mxu0
        %4266 = vmatprep.mubr.f32.mxu0 0.0
        %4267 = vmatmul.mubr.f32.gmra.mrb[0].mxu0 %v1606
        %v4268 = vpop.f32.mrb[0].mxu0
        %v4269 = vadd.f32 0.0, %v4268
        %v4270 = vpop.f32.mrb[0].mxu0
        %4271 = vmatprep.mubr.f32.mxu0 0.0
        %4272 = vmatmul.mubr.f32.gmra.mrb[0].mxu0 %v1607
        %v4273 = vpop.f32.mrb[0].mxu0
        %v4274 = vadd.f32 0.0, %v4273
        %v4275 = vpop.f32.mrb[0].mxu0
        %4276 = vmatprep.mubr.f32.mxu0 0.0
        %4277 = vmatmul.mubr.f32.gmra.mrb[0].mxu0 %v1608
        %v4278 = vpop.f32.mrb[0].mxu0
        %v4279 = vadd.f32 0.0, %v4278
        %v4280 = vpop.f32.mrb[0].mxu0
        %4281 = vmatprep.mubr.f32.mxu0 0.0
        %4282 = vmatmul.mubr.f32.gmra.mrb[0].mxu0 %v1609
        %v4283 = vpop.f32.mrb[0].mxu0
        %v4284 = vadd.f32 0.0, %v4283
        %v4285 = vpop.f32.mrb[0].mxu0
        %4286 = vmatprep.mubr.f32.mxu0 0.0
        %4287 = vmatmul.mubr.f32.gmra.mrb[0].mxu0 %v1610
        %v4288 = vpop.f32.mrb[0].mxu0
        %v4289 = vadd.f32 0.0, %v4288
        %v4290 = vpop.f32.mrb[0].mxu0
        %4291 = vmatprep.mubr.f32.mxu0 0.0
        %4292 = vmatmul.mubr.f32.gmra.mrb[0].mxu0 %v1611
        %v4293 = vpop.f32.mrb[0].mxu0
        %v4294 = vadd.f32 0.0, %v4293
        %v4295 = vpop.f32.mrb[0].mxu0
        %4296 = vmatprep.mubr.f32.mxu0 0.0
        %4297 = vmatmul.mubr.f32.gmra.mrb[0].mxu0 %v1612
        %v4298 = vpop.f32.mrb[0].mxu0
        %v4299 = vadd.f32 0.0, %v4298
        %v4300 = vpop.f32.mrb[0].mxu0
        %4301 = vmatprep.mubr.f32.mxu0 0.0
        %4302 = vmatmul.mubr.f32.gmra.mrb[0].mxu0 %v1613
        %v4303 = vpop.f32.mrb[0].mxu0
        %v4304 = vadd.f32 0.0, %v4303
        %v4305 = vpop.f32.mrb[0].mxu0
        %4306 = vmatprep.mubr.f32.mxu0 0.0
        %4307 = vmatmul.mubr.f32.gmra.mrb[0].mxu0 %v1614
        %v4308 = vpop.f32.mrb[0].mxu0
        %v4309 = vadd.f32 0.0, %v4308
        %v4310 = vpop.f32.mrb[0].mxu0
        %4311 = vmatprep.mubr.f32.mxu0 0.0
        %4312 = vmatmul.mubr.f32.gmra.mrb[0].mxu0 %v1615
        %v4313 = vpop.f32.mrb[0].mxu0
        %v4314 = vadd.f32 0.0, %v4313
        %v4315 = vpop.f32.mrb[0].mxu0
        %4316 = vmatprep.mubr.f32.mxu0 0.0
        %4317 = vmatmul.mubr.f32.gmra.mrb[0].mxu0 %v1616
        %v4318 = vpop.f32.mrb[0].mxu0
        %v4319 = vadd.f32 0.0, %v4318
        %v4320 = vpop.f32.mrb[0].mxu0
        %4321 = vmatprep.mubr.f32.mxu0 0.0
        %4322 = vmatmul.mubr.f32.gmra.mrb[0].mxu0 %v1617
        %v4323 = vpop.f32.mrb[0].mxu0
        %v4324 = vadd.f32 0.0, %v4323
        %v4325 = vpop.f32.mrb[0].mxu0
        %4326 = vmatprep.mubr.f32.mxu0 0.0
        %4327 = vmatmul.mubr.f32.gmra.mrb[0].mxu0 %v1618
        %v4328 = vpop.f32.mrb[0].mxu0
        %v4329 = vadd.f32 0.0, %v4328
        %v4330 = vpop.f32.mrb[0].mxu0
        %4331 = vmatprep.mubr.f32.mxu0 0.0
        %4332 = vmatmul.mubr.f32.gmra.mrb[0].mxu0 %v1619
        %v4333 = vpop.f32.mrb[0].mxu0
        %v4334 = vadd.f32 0.0, %v4333
        %v4335 = vpop.f32.mrb[0].mxu0
        %4336 = vmatprep.mubr.f32.mxu0 0.0
        %4337 = vmatmul.mubr.f32.gmra.mrb[0].mxu0 %v1620
        %v4338 = vpop.f32.mrb[0].mxu0
        %v4339 = vadd.f32 0.0, %v4338
        %v4340 = vpop.f32.mrb[0].mxu0
        %4341 = vmatprep.mubr.f32.mxu0 0.0
        %4342 = vmatmul.mubr.f32.gmra.mrb[0].mxu0 %v1621
        %v4343 = vpop.f32.mrb[0].mxu0
        %v4344 = vadd.f32 0.0, %v4343
        %v4345 = vpop.f32.mrb[0].mxu0
        %4346 = vmatprep.mubr.f32.mxu0 0.0
        %4347 = vmatmul.mubr.f32.gmra.mrb[0].mxu0 %v1622
        %v4348 = vpop.f32.mrb[0].mxu0
        %v4349 = vadd.f32 0.0, %v4348
        %v4350 = vpop.f32.mrb[0].mxu0
        %4351 = vmatprep.mubr.f32.mxu0 0.0
        %4352 = vmatmul.mubr.f32.gmra.mrb[0].mxu0 %v1623
        %v4353 = vpop.f32.mrb[0].mxu0
        %v4354 = vadd.f32 0.0, %v4353
        %v4355 = vpop.f32.mrb[0].mxu0
        %4356 = vmatprep.mubr.f32.mxu0 0.0
        %4357 = vmatmul.mubr.f32.gmra.mrb[0].mxu0 %v1624
        %v4358 = vpop.f32.mrb[0].mxu0
        %v4359 = vadd.f32 0.0, %v4358
        %v4360 = vpop.f32.mrb[0].mxu0
        %4361 = vmatprep.mubr.f32.mxu0 0.0
        %4362 = vmatmul.mubr.f32.gmra.mrb[0].mxu0 %v1625
        %v4363 = vpop.f32.mrb[0].mxu0
        %v4364 = vadd.f32 0.0, %v4363
        %v4365 = vpop.f32.mrb[0].mxu0
        %4366 = vmatprep.mubr.f32.mxu0 0.0
        %4367 = vmatmul.mubr.f32.gmra.mrb[0].mxu0 %v1626
        %v4368 = vpop.f32.mrb[0].mxu0
        %v4369 = vadd.f32 0.0, %v4368
        %v4370 = vpop.f32.mrb[0].mxu0
        %4371 = vmatprep.mubr.f32.mxu0 0.0
        %4372 = vmatmul.mubr.f32.gmra.mrb[0].mxu0 %v1627
        %v4373 = vpop.f32.mrb[0].mxu0
        %v4374 = vadd.f32 0.0, %v4373
        %v4375 = vpop.f32.mrb[0].mxu0
        %4376 = vmatprep.mubr.f32.mxu0 0.0
        %4377 = vmatmul.mubr.f32.gmra.mrb[0].mxu0 %v1628
        %v4378 = vpop.f32.mrb[0].mxu0
        %v4379 = vadd.f32 0.0, %v4378
        %v4380 = vpop.f32.mrb[0].mxu0
        %4381 = vmatprep.mubr.f32.mxu0 0.0
        %4382 = vmatmul.mubr.f32.gmra.mrb[0].mxu0 %v1629
        %v4383 = vpop.f32.mrb[0].mxu0
        %v4384 = vadd.f32 0.0, %v4383
        %v4385 = vpop.f32.mrb[0].mxu0
        %4386 = vmatprep.mubr.f32.mxu0 0.0
        %4387 = vmatmul.mubr.f32.gmra.mrb[0].mxu0 %v1630
        %v4388 = vpop.f32.mrb[0].mxu0
        %v4389 = vadd.f32 0.0, %v4388
        %v4390 = vpop.f32.mrb[0].mxu0
        %4391 = vmatprep.mubr.f32.mxu0 0.0
        %4392 = vmatmul.mubr.f32.gmra.mrb[0].mxu0 %v1631
        %v4393 = vpop.f32.mrb[0].mxu0
        %v4394 = vadd.f32 0.0, %v4393
        %v4395 = vpop.f32.mrb[0].mxu0
        %4396 = vmatprep.mubr.f32.mxu0 0.0
        %4397 = vmatmul.mubr.f32.gmra.mrb[0].mxu0 %v1632
        %v4398 = vpop.f32.mrb[0].mxu0
        %v4399 = vadd.f32 0.0, %v4398
        %v4400 = vpop.f32.mrb[0].mxu0
        %4401 = vmatprep.mubr.f32.mxu0 0.0
        %4402 = vmatmul.mubr.f32.gmra.mrb[0].mxu0 %v1633
        %v4403 = vpop.f32.mrb[0].mxu0
        %v4404 = vadd.f32 0.0, %v4403
        %v4405 = vpop.f32.mrb[0].mxu0
        %4406 = vmatprep.mubr.f32.mxu0 0.0
        %4407 = vmatmul.mubr.f32.gmra.mrb[0].mxu0 %v1634
        %v4408 = vpop.f32.mrb[0].mxu0
        %v4409 = vadd.f32 0.0, %v4408
        %v4410 = vpop.f32.mrb[0].mxu0
        %4411 = vmatprep.mubr.f32.mxu0 0.0
        %4412 = vmatmul.mubr.f32.gmra.mrb[0].mxu0 %v1635
        %v4413 = vpop.f32.mrb[0].mxu0
        %v4414 = vadd.f32 0.0, %v4413
        %v4415 = vpop.f32.mrb[0].mxu0
        %4416 = vmatprep.mubr.f32.mxu0 0.0
        %4417 = vmatmul.mubr.f32.gmra.mrb[0].mxu0 %v1636
        %v4418 = vpop.f32.mrb[0].mxu0
        %v4419 = vadd.f32 0.0, %v4418
        %v4420 = vpop.f32.mrb[0].mxu0
        %4421 = vmatprep.mubr.f32.mxu0 0.0
        %4422 = vmatmul.mubr.f32.gmra.mrb[0].mxu0 %v1637
        %v4423 = vpop.f32.mrb[0].mxu0
        %v4424 = vadd.f32 0.0, %v4423
        %v4425 = vpop.f32.mrb[0].mxu0
        %4426 = vmatprep.mubr.f32.mxu0 0.0
        %4427 = vmatmul.mubr.f32.gmra.mrb[0].mxu0 %v1638
        %v4428 = vpop.f32.mrb[0].mxu0
        %v4429 = vadd.f32 0.0, %v4428
        %v4430 = vpop.f32.mrb[0].mxu0
        %4431 = vmatprep.mubr.f32.mxu0 0.0
        %4432 = vmatmul.mubr.f32.gmra.mrb[0].mxu0 %v1639
        %v4433 = vpop.f32.mrb[0].mxu0
        %v4434 = vadd.f32 0.0, %v4433
        %v4435 = vpop.f32.mrb[0].mxu0
        %4436 = vmatprep.mubr.f32.mxu0 0.0
        %4437 = vmatmul.mubr.f32.gmra.mrb[0].mxu0 %v1640
        %v4438 = vpop.f32.mrb[0].mxu0
        %v4439 = vadd.f32 0.0, %v4438
        %v4440 = vpop.f32.mrb[0].mxu0
        %4441 = vmatprep.mubr.f32.mxu0 0.0
        %4442 = vmatmul.mubr.f32.gmra.mrb[0].mxu0 %v1641
        %v4443 = vpop.f32.mrb[0].mxu0
        %v4444 = vadd.f32 0.0, %v4443
        %v4445 = vpop.f32.mrb[0].mxu0
        %4446 = vmatprep.mubr.f32.mxu0 0.0
        %4447 = vmatmul.mubr.f32.gmra.mrb[0].mxu0 %v1642
        %v4448 = vpop.f32.mrb[0].mxu0
        %v4449 = vadd.f32 0.0, %v4448
        %v4450 = vpop.f32.mrb[0].mxu0
        %4451 = vmatprep.mubr.f32.mxu0 0.0
        %4452 = vmatmul.mubr.f32.gmra.mrb[0].mxu0 %v1643
        %v4453 = vpop.f32.mrb[0].mxu0
        %v4454 = vadd.f32 0.0, %v4453
        %v4455 = vpop.f32.mrb[0].mxu0
        %4456 = vmatprep.mubr.f32.mxu0 0.0
        %4457 = vmatmul.mubr.f32.gmra.mrb[0].mxu0 %v1644
        %v4458 = vpop.f32.mrb[0].mxu0
        %v4459 = vadd.f32 0.0, %v4458
        %v4460 = vpop.f32.mrb[0].mxu0
        %4461 = vmatprep.mubr.f32.mxu0 0.0
        %4462 = vmatmul.mubr.f32.gmra.mrb[0].mxu0 %v1645
        %v4463 = vpop.f32.mrb[0].mxu0
        %v4464 = vadd.f32 0.0, %v4463
        %v4465 = vpop.f32.mrb[0].mxu0
        %4466 = vmatprep.mubr.f32.mxu0 0.0
        %4467 = vmatmul.mubr.f32.gmra.mrb[0].mxu0 %v1646
        %v4468 = vpop.f32.mrb[0].mxu0
        %v4469 = vadd.f32 0.0, %v4468
        %v4470 = vpop.f32.mrb[0].mxu0
        %4471 = vmatprep.mubr.f32.mxu0 0.0
        %4472 = vmatmul.mubr.f32.gmra.mrb[0].mxu0 %v1647
        %v4473 = vpop.f32.mrb[0].mxu0
        %v4474 = vadd.f32 0.0, %v4473
        %v4475 = vpop.f32.mrb[0].mxu0
        %4476 = vmatprep.mubr.f32.mxu0 0.0
        %4477 = vmatmul.mubr.f32.gmra.mrb[0].mxu0 %v1648
        %v4478 = vpop.f32.mrb[0].mxu0
        %v4479 = vadd.f32 0.0, %v4478
        %v4480 = vpop.f32.mrb[0].mxu0
        %4481 = vmatprep.mubr.f32.mxu0 0.0
        %4482 = vmatmul.mubr.f32.gmra.mrb[0].mxu0 %v1649
        %v4483 = vpop.f32.mrb[0].mxu0
        %v4484 = vadd.f32 0.0, %v4483
        %v4485 = vpop.f32.mrb[0].mxu0
        %4486 = vmatprep.mubr.f32.mxu0 0.0
        %4487 = vmatmul.mubr.f32.gmra.mrb[0].mxu0 %v1650
        %v4488 = vpop.f32.mrb[0].mxu0
        %v4489 = vadd.f32 0.0, %v4488
        %v4490 = vpop.f32.mrb[0].mxu0
        %4491 = vmatprep.mubr.f32.mxu0 0.0
        %4492 = vmatmul.mubr.f32.gmra.mrb[0].mxu0 %v1651
        %v4493 = vpop.f32.mrb[0].mxu0
        %v4494 = vadd.f32 0.0, %v4493
        %v4495 = vpop.f32.mrb[0].mxu0
        %4496 = vmatprep.mubr.f32.mxu0 0.0
        %4497 = vmatmul.mubr.f32.gmra.mrb[0].mxu0 %v1652
        %v4498 = vpop.f32.mrb[0].mxu0
        %v4499 = vadd.f32 0.0, %v4498
        %v4500 = vpop.f32.mrb[0].mxu0
        %4501 = vmatprep.mubr.f32.mxu0 0.0
        %4502 = vmatmul.mubr.f32.gmra.mrb[0].mxu0 %v1653
        %v4503 = vpop.f32.mrb[0].mxu0
        %v4504 = vadd.f32 0.0, %v4503
        %v4505 = vpop.f32.mrb[0].mxu0
        %4506 = vmatprep.mubr.f32.mxu0 0.0
        %4507 = vmatmul.mubr.f32.gmra.mrb[0].mxu0 %v1654
        %v4508 = vpop.f32.mrb[0].mxu0
        %v4509 = vadd.f32 0.0, %v4508
        %v4510 = vpop.f32.mrb[0].mxu0
        %4511 = vmatprep.mubr.f32.mxu0 0.0
        %4512 = vmatmul.mubr.f32.gmra.mrb[0].mxu0 %v1655
        %v4513 = vpop.f32.mrb[0].mxu0
        %v4514 = vadd.f32 0.0, %v4513
        %v4515 = vpop.f32.mrb[0].mxu0
        %4516 = vmatprep.mubr.f32.mxu0 0.0
        %4517 = vmatmul.mubr.f32.gmra.mrb[0].mxu0 %v1656
        %v4518 = vpop.f32.mrb[0].mxu0
        %v4519 = vadd.f32 0.0, %v4518
        %v4520 = vpop.f32.mrb[0].mxu0
        %4521 = vmatprep.mubr.f32.mxu0 0.0
        %4522 = vmatmul.mubr.f32.gmra.mrb[0].mxu0 %v1657
        %v4523 = vpop.f32.mrb[0].mxu0
        %v4524 = vadd.f32 0.0, %v4523
        %v4525 = vpop.f32.mrb[0].mxu0
        %4526 = vmatprep.mubr.f32.mxu0 0.0
        %4527 = vmatmul.mubr.f32.gmra.mrb[0].mxu0 %v1658
        %v4528 = vpop.f32.mrb[0].mxu0
        %v4529 = vadd.f32 0.0, %v4528
        %v4530 = vpop.f32.mrb[0].mxu0
        %4531 = vmatprep.mubr.f32.mxu0 0.0
        %4532 = vmatmul.mubr.f32.gmra.mrb[0].mxu0 %v1659
        %v4533 = vpop.f32.mrb[0].mxu0
        %v4534 = vadd.f32 0.0, %v4533
        %v4535 = vpop.f32.mrb[0].mxu0
        %4536 = vmatprep.mubr.f32.mxu0 0.0
        %4537 = vmatmul.mubr.f32.gmra.mrb[0].mxu0 %v1660
        %v4538 = vpop.f32.mrb[0].mxu0
        %v4539 = vadd.f32 0.0, %v4538
        %v4540 = vpop.f32.mrb[0].mxu0
        %4541 = vmatprep.mubr.f32.mxu0 0.0
        %4542 = vmatmul.mubr.f32.gmra.mrb[0].mxu0 %v1661
        %v4543 = vpop.f32.mrb[0].mxu0
        %v4544 = vadd.f32 0.0, %v4543
        %v4545 = vpop.f32.mrb[0].mxu0
        %4546 = vmatprep.mubr.f32.mxu0 0.0
        %4547 = vmatmul.mubr.f32.gmra.mrb[0].mxu0 %v1662
        %v4548 = vpop.f32.mrb[0].mxu0
        %v4549 = vadd.f32 0.0, %v4548
        %v4550 = vpop.f32.mrb[0].mxu0
        %4551 = vmatprep.mubr.f32.mxu0 0.0
        %4552 = vmatmul.mubr.f32.gmra.mrb[0].mxu0 %v1663
        %v4553 = vpop.f32.mrb[0].mxu0
        %v4554 = vadd.f32 0.0, %v4553
        %v4555 = vpop.f32.mrb[0].mxu0
        %4556 = vmatprep.mubr.f32.mxu0 0.0
        %4557 = vmatmul.mubr.f32.gmra.mrb[0].mxu0 %v1664
        %v4558 = vpop.f32.mrb[0].mxu0
        %v4559 = vadd.f32 0.0, %v4558
        %v4560 = vpop.f32.mrb[0].mxu0
        %4561 = vmatprep.mubr.f32.mxu0 0.0
        %4562 = vmatmul.mubr.f32.gmra.mrb[0].mxu0 %v1665
        %v4563 = vpop.f32.mrb[0].mxu0
        %v4564 = vadd.f32 0.0, %v4563
        %v4565 = vpop.f32.mrb[0].mxu0
        %4566 = vmatprep.mubr.f32.mxu0 0.0
        %4567 = vmatmul.mubr.f32.gmra.mrb[0].mxu0 %v1666
        %v4568 = vpop.f32.mrb[0].mxu0
        %v4569 = vadd.f32 0.0, %v4568
        %v4570 = vpop.f32.mrb[0].mxu0
        %4571 = vmatprep.mubr.f32.mxu0 0.0
        %4572 = vmatmul.mubr.f32.gmra.mrb[0].mxu0 %v1667
        %v4573 = vpop.f32.mrb[0].mxu0
        %v4574 = vadd.f32 0.0, %v4573
        %v4575 = vpop.f32.mrb[0].mxu0
        %4576 = vmatprep.mubr.f32.mxu0 0.0
        %4577 = vmatmul.mubr.f32.gmra.mrb[0].mxu0 %v1668
        %v4578 = vpop.f32.mrb[0].mxu0
        %v4579 = vadd.f32 0.0, %v4578
        %v4580 = vpop.f32.mrb[0].mxu0
        %4581 = vmatprep.mubr.f32.mxu0 0.0
        %4582 = vmatmul.mubr.f32.gmra.mrb[0].mxu0 %v1669
        %v4583 = vpop.f32.mrb[0].mxu0
        %v4584 = vadd.f32 0.0, %v4583
        %v4585 = vpop.f32.mrb[0].mxu0
        %4586 = vmatprep.mubr.f32.mxu0 0.0
        %4587 = vmatmul.mubr.f32.gmra.mrb[0].mxu0 %v1670
        %v4588 = vpop.f32.mrb[0].mxu0
        %v4589 = vadd.f32 0.0, %v4588
        %v4590 = vpop.f32.mrb[0].mxu0
        %4591 = vmatprep.mubr.f32.mxu0 0.0
        %4592 = vmatmul.mubr.f32.gmra.mrb[0].mxu0 %v1671
        %v4593 = vpop.f32.mrb[0].mxu0
        %v4594 = vadd.f32 0.0, %v4593
        %v4595 = vpop.f32.mrb[0].mxu0
        %4596 = vmatprep.mubr.f32.mxu0 0.0
        %4597 = vmatmul.mubr.f32.gmra.mrb[0].mxu0 %v1672
        %v4598 = vpop.f32.mrb[0].mxu0
        %v4599 = vadd.f32 0.0, %v4598
        %v4600 = vpop.f32.mrb[0].mxu0
        %4601 = vmatprep.mubr.f32.mxu0 0.0
        %4602 = vmatmul.mubr.f32.gmra.mrb[0].mxu0 %v1673
        %v4603 = vpop.f32.mrb[0].mxu0
        %v4604 = vadd.f32 0.0, %v4603
        %v4605 = vpop.f32.mrb[0].mxu0
        %4606 = vmatprep.mubr.f32.mxu0 0.0
        %4607 = vmatmul.mubr.f32.gmra.mrb[0].mxu0 %v1674
        %v4608 = vpop.f32.mrb[0].mxu0
        %v4609 = vadd.f32 0.0, %v4608
        %v4610 = vpop.f32.mrb[0].mxu0
        %4611 = vmatprep.mubr.f32.mxu0 0.0
        %4612 = vmatmul.mubr.f32.gmra.mrb[0].mxu0 %v1675
        %v4613 = vpop.f32.mrb[0].mxu0
        %v4614 = vadd.f32 0.0, %v4613
        %v4615 = vpop.f32.mrb[0].mxu0
        %4616 = vmatprep.mubr.f32.mxu0 0.0
        %4617 = vmatmul.mubr.f32.gmra.mrb[0].mxu0 %v1676
        %v4618 = vpop.f32.mrb[0].mxu0
        %v4619 = vadd.f32 0.0, %v4618
        %v4620 = vpop.f32.mrb[0].mxu0
        %4621 = vmatprep.mubr.f32.mxu0 0.0
        %4622 = vmatmul.mubr.f32.gmra.mrb[0].mxu0 %v1677
        %v4623 = vpop.f32.mrb[0].mxu0
        %v4624 = vadd.f32 0.0, %v4623
        %v4625 = vpop.f32.mrb[0].mxu0
        %4626 = vmatprep.mubr.f32.mxu0 0.0
        %4627 = vmatmul.mubr.f32.gmra.mrb[0].mxu0 %v1678
        %v4628 = vpop.f32.mrb[0].mxu0
        %v4629 = vadd.f32 0.0, %v4628
        %v4630 = vpop.f32.mrb[0].mxu0
        %4631 = vmatprep.mubr.f32.mxu0 0.0
        %4632 = vmatmul.mubr.f32.gmra.mrb[0].mxu0 %v1679
        %v4633 = vpop.f32.mrb[0].mxu0
        %v4634 = vadd.f32 0.0, %v4633
        %v4635 = vpop.f32.mrb[0].mxu0
        %4636 = vmatprep.mubr.f32.mxu0 0.0
        %4637 = vmatmul.mubr.f32.gmra.mrb[0].mxu0 %v1680
        %v4638 = vpop.f32.mrb[0].mxu0
        %v4639 = vadd.f32 0.0, %v4638
        %v4640 = vpop.f32.mrb[0].mxu0
        %4641 = vdwg.mxu0
        %4642 = vmatprep.subr.mxu0 0.0
        %4643 = vmatpush1.msra.mxu0 %v3601
        %4644 = vmatprep.subr.mxu0 0.0
        %4645 = vmatpush1.msra.mxu0 %v3602
        %4646 = vmatprep.subr.mxu0 0.0
        %4647 = vmatpush1.msra.mxu0 %v3603
        %4648 = vmatprep.subr.mxu0 0.0
        %4649 = vmatpush1.msra.mxu0 %v3604
        %4650 = vmatprep.subr.mxu0 0.0
        %4651 = vmatpush1.msra.mxu0 %v3605
        %4652 = vmatprep.subr.mxu0 0.0
        %4653 = vmatpush1.msra.mxu0 %v3606
        %4654 = vmatprep.subr.mxu0 0.0
        %4655 = vmatpush1.msra.mxu0 %v3607
        %4656 = vmatprep.subr.mxu0 0.0
        %4657 = vmatpush1.msra.mxu0 %v3608
        %4658 = vmatprep.subr.mxu0 0.0
        %4659 = vmatpush1.msra.mxu0 %v3609
        %4660 = vmatprep.subr.mxu0 0.0
        %4661 = vmatpush1.msra.mxu0 %v3610
        %4662 = vmatprep.subr.mxu0 0.0
        %4663 = vmatpush1.msra.mxu0 %v3611
        %4664 = vmatprep.subr.mxu0 0.0
        %4665 = vmatpush1.msra.mxu0 %v3612
        %4666 = vmatprep.subr.mxu0 0.0
        %4667 = vmatpush1.msra.mxu0 %v3613
        %4668 = vmatprep.subr.mxu0 0.0
        %4669 = vmatpush1.msra.mxu0 %v3614
        %4670 = vmatprep.subr.mxu0 0.0
        %4671 = vmatpush1.msra.mxu0 %v3615
        %4672 = vmatprep.subr.mxu0 0.0
        %4673 = vmatpush1.msra.mxu0 %v3616
        %4674 = vmatprep.subr.mxu0 0.0
        %4675 = vmatpush1.msra.mxu0 0.0
        %4676 = vmatprep.subr.mxu0 0.0
        %4677 = vmatpush1.msra.mxu0 0.0
        %4678 = vmatprep.subr.mxu0 0.0
        %4679 = vmatpush1.msra.mxu0 0.0
        %4680 = vmatprep.subr.mxu0 0.0
        %4681 = vmatpush1.msra.mxu0 0.0
        %4682 = vmatprep.subr.mxu0 0.0
        %4683 = vmatpush1.msra.mxu0 0.0
        %4684 = vmatprep.subr.mxu0 0.0
        %4685 = vmatpush1.msra.mxu0 0.0
        %4686 = vmatprep.subr.mxu0 0.0
        %4687 = vmatpush1.msra.mxu0 0.0
        %4688 = vmatprep.subr.mxu0 0.0
        %4689 = vmatpush1.msra.mxu0 0.0
        %4690 = vmatprep.subr.mxu0 0.0
        %4691 = vmatpush1.msra.mxu0 0.0
        %4692 = vmatprep.subr.mxu0 0.0
        %4693 = vmatpush1.msra.mxu0 0.0
        %4694 = vmatprep.subr.mxu0 0.0
        %4695 = vmatpush1.msra.mxu0 0.0
        %4696 = vmatprep.subr.mxu0 0.0
        %4697 = vmatpush1.msra.mxu0 0.0
        %4698 = vmatprep.subr.mxu0 0.0
        %4699 = vmatpush1.msra.mxu0 0.0
        %4700 = vmatprep.subr.mxu0 0.0
        %4701 = vmatpush1.msra.mxu0 0.0
        %4702 = vmatprep.subr.mxu0 0.0
        %4703 = vmatpush1.msra.mxu0 0.0
        %4704 = vmatprep.subr.mxu0 0.0
        %4705 = vmatpush1.msra.mxu0 0.0
        %4706 = vmatprep.mubr.f32.mxu0 0.0
        %4707 = vmatmul.mubr.f32.gmra.mrb[0].mxu0 %v3409
        %v4708 = vpop.f32.mrb[0].mxu0
        %v4709 = vadd.f32 0.0, %v4708
        %v4710 = vpop.f32.mrb[0].mxu0
        %4711 = vmatprep.mubr.f32.mxu0 0.0
        %4712 = vmatmul.mubr.f32.gmra.mrb[0].mxu0 %v3410
        %v4713 = vpop.f32.mrb[0].mxu0
        %v4714 = vadd.f32 0.0, %v4713
        %v4715 = vpop.f32.mrb[0].mxu0
        %4716 = vmatprep.mubr.f32.mxu0 0.0
        %4717 = vmatmul.mubr.f32.gmra.mrb[0].mxu0 %v3411
        %v4718 = vpop.f32.mrb[0].mxu0
        %v4719 = vadd.f32 0.0, %v4718
        %v4720 = vpop.f32.mrb[0].mxu0
        %4721 = vmatprep.mubr.f32.mxu0 0.0
        %4722 = vmatmul.mubr.f32.gmra.mrb[0].mxu0 %v3412
        %v4723 = vpop.f32.mrb[0].mxu0
        %v4724 = vadd.f32 0.0, %v4723
        %v4725 = vpop.f32.mrb[0].mxu0
        %4726 = vmatprep.mubr.f32.mxu0 0.0
        %4727 = vmatmul.mubr.f32.gmra.mrb[0].mxu0 %v3413
        %v4728 = vpop.f32.mrb[0].mxu0
        %v4729 = vadd.f32 0.0, %v4728
        %v4730 = vpop.f32.mrb[0].mxu0
        %4731 = vmatprep.mubr.f32.mxu0 0.0
        %4732 = vmatmul.mubr.f32.gmra.mrb[0].mxu0 %v3414
        %v4733 = vpop.f32.mrb[0].mxu0
        %v4734 = vadd.f32 0.0, %v4733
        %v4735 = vpop.f32.mrb[0].mxu0
        %4736 = vmatprep.mubr.f32.mxu0 0.0
        %4737 = vmatmul.mubr.f32.gmra.mrb[0].mxu0 %v3415
        %v4738 = vpop.f32.mrb[0].mxu0
        %v4739 = vadd.f32 0.0, %v4738
        %v4740 = vpop.f32.mrb[0].mxu0
        %4741 = vmatprep.mubr.f32.mxu0 0.0
        %4742 = vmatmul.mubr.f32.gmra.mrb[0].mxu0 %v3416
        %v4743 = vpop.f32.mrb[0].mxu0
        %v4744 = vadd.f32 0.0, %v4743
        %v4745 = vpop.f32.mrb[0].mxu0
        %4746 = vmatprep.mubr.f32.mxu0 0.0
        %4747 = vmatmul.mubr.f32.gmra.mrb[0].mxu0 %v3417
        %v4748 = vpop.f32.mrb[0].mxu0
        %v4749 = vadd.f32 0.0, %v4748
        %v4750 = vpop.f32.mrb[0].mxu0
        %4751 = vmatprep.mubr.f32.mxu0 0.0
        %4752 = vmatmul.mubr.f32.gmra.mrb[0].mxu0 %v3418
        %v4753 = vpop.f32.mrb[0].mxu0
        %v4754 = vadd.f32 0.0, %v4753
        %v4755 = vpop.f32.mrb[0].mxu0
        %4756 = vmatprep.mubr.f32.mxu0 0.0
        %4757 = vmatmul.mubr.f32.gmra.mrb[0].mxu0 %v3419
        %v4758 = vpop.f32.mrb[0].mxu0
        %v4759 = vadd.f32 0.0, %v4758
        %v4760 = vpop.f32.mrb[0].mxu0
        %4761 = vmatprep.mubr.f32.mxu0 0.0
        %4762 = vmatmul.mubr.f32.gmra.mrb[0].mxu0 %v3420
        %v4763 = vpop.f32.mrb[0].mxu0
        %v4764 = vadd.f32 0.0, %v4763
        %v4765 = vpop.f32.mrb[0].mxu0
        %4766 = vmatprep.mubr.f32.mxu0 0.0
        %4767 = vmatmul.mubr.f32.gmra.mrb[0].mxu0 %v3421
        %v4768 = vpop.f32.mrb[0].mxu0
        %v4769 = vadd.f32 0.0, %v4768
        %v4770 = vpop.f32.mrb[0].mxu0
        %4771 = vmatprep.mubr.f32.mxu0 0.0
        %4772 = vmatmul.mubr.f32.gmra.mrb[0].mxu0 %v3422
        %v4773 = vpop.f32.mrb[0].mxu0
        %v4774 = vadd.f32 0.0, %v4773
        %v4775 = vpop.f32.mrb[0].mxu0
        %4776 = vmatprep.mubr.f32.mxu0 0.0
        %4777 = vmatmul.mubr.f32.gmra.mrb[0].mxu0 %v3423
        %v4778 = vpop.f32.mrb[0].mxu0
        %v4779 = vadd.f32 0.0, %v4778
        %v4780 = vpop.f32.mrb[0].mxu0
        %4781 = vmatprep.mubr.f32.mxu0 0.0
        %4782 = vmatmul.mubr.f32.gmra.mrb[0].mxu0 %v3424
        %v4783 = vpop.f32.mrb[0].mxu0
        %v4784 = vadd.f32 0.0, %v4783
        %v4785 = vpop.f32.mrb[0].mxu0
        %4786 = vmatprep.mubr.f32.mxu0 0.0
        %4787 = vmatmul.mubr.f32.gmra.mrb[0].mxu0 %v3425
        %v4788 = vpop.f32.mrb[0].mxu0
        %v4789 = vadd.f32 0.0, %v4788
        %v4790 = vpop.f32.mrb[0].mxu0
        %4791 = vmatprep.mubr.f32.mxu0 0.0
        %4792 = vmatmul.mubr.f32.gmra.mrb[0].mxu0 %v3426
        %v4793 = vpop.f32.mrb[0].mxu0
        %v4794 = vadd.f32 0.0, %v4793
        %v4795 = vpop.f32.mrb[0].mxu0
        %4796 = vmatprep.mubr.f32.mxu0 0.0
        %4797 = vmatmul.mubr.f32.gmra.mrb[0].mxu0 %v3427
        %v4798 = vpop.f32.mrb[0].mxu0
        %v4799 = vadd.f32 0.0, %v4798
        %v4800 = vpop.f32.mrb[0].mxu0
        %4801 = vmatprep.mubr.f32.mxu0 0.0
        %4802 = vmatmul.mubr.f32.gmra.mrb[0].mxu0 %v3428
        %v4803 = vpop.f32.mrb[0].mxu0
        %v4804 = vadd.f32 0.0, %v4803
        %v4805 = vpop.f32.mrb[0].mxu0
        %4806 = vmatprep.mubr.f32.mxu0 0.0
        %4807 = vmatmul.mubr.f32.gmra.mrb[0].mxu0 %v3429
        %v4808 = vpop.f32.mrb[0].mxu0
        %v4809 = vadd.f32 0.0, %v4808
        %v4810 = vpop.f32.mrb[0].mxu0
        %4811 = vmatprep.mubr.f32.mxu0 0.0
        %4812 = vmatmul.mubr.f32.gmra.mrb[0].mxu0 %v3430
        %v4813 = vpop.f32.mrb[0].mxu0
        %v4814 = vadd.f32 0.0, %v4813
        %v4815 = vpop.f32.mrb[0].mxu0
        %4816 = vmatprep.mubr.f32.mxu0 0.0
        %4817 = vmatmul.mubr.f32.gmra.mrb[0].mxu0 %v3431
        %v4818 = vpop.f32.mrb[0].mxu0
        %v4819 = vadd.f32 0.0, %v4818
        %v4820 = vpop.f32.mrb[0].mxu0
        %4821 = vmatprep.mubr.f32.mxu0 0.0
        %4822 = vmatmul.mubr.f32.gmra.mrb[0].mxu0 %v3432
        %v4823 = vpop.f32.mrb[0].mxu0
        %v4824 = vadd.f32 0.0, %v4823
        %v4825 = vpop.f32.mrb[0].mxu0
        %4826 = vmatprep.mubr.f32.mxu0 0.0
        %4827 = vmatmul.mubr.f32.gmra.mrb[0].mxu0 %v3433
        %v4828 = vpop.f32.mrb[0].mxu0
        %v4829 = vadd.f32 0.0, %v4828
        %v4830 = vpop.f32.mrb[0].mxu0
        %4831 = vmatprep.mubr.f32.mxu0 0.0
        %4832 = vmatmul.mubr.f32.gmra.mrb[0].mxu0 %v3434
        %v4833 = vpop.f32.mrb[0].mxu0
        %v4834 = vadd.f32 0.0, %v4833
        %v4835 = vpop.f32.mrb[0].mxu0
        %4836 = vmatprep.mubr.f32.mxu0 0.0
        %4837 = vmatmul.mubr.f32.gmra.mrb[0].mxu0 %v3435
        %v4838 = vpop.f32.mrb[0].mxu0
        %v4839 = vadd.f32 0.0, %v4838
        %v4840 = vpop.f32.mrb[0].mxu0
        %4841 = vmatprep.mubr.f32.mxu0 0.0
        %4842 = vmatmul.mubr.f32.gmra.mrb[0].mxu0 %v3436
        %v4843 = vpop.f32.mrb[0].mxu0
        %v4844 = vadd.f32 0.0, %v4843
        %v4845 = vpop.f32.mrb[0].mxu0
        %4846 = vmatprep.mubr.f32.mxu0 0.0
        %4847 = vmatmul.mubr.f32.gmra.mrb[0].mxu0 %v3437
        %v4848 = vpop.f32.mrb[0].mxu0
        %v4849 = vadd.f32 0.0, %v4848
        %v4850 = vpop.f32.mrb[0].mxu0
        %4851 = vmatprep.mubr.f32.mxu0 0.0
        %4852 = vmatmul.mubr.f32.gmra.mrb[0].mxu0 %v3438
        %v4853 = vpop.f32.mrb[0].mxu0
        %v4854 = vadd.f32 0.0, %v4853
        %v4855 = vpop.f32.mrb[0].mxu0
        %4856 = vmatprep.mubr.f32.mxu0 0.0
        %4857 = vmatmul.mubr.f32.gmra.mrb[0].mxu0 %v3439
        %v4858 = vpop.f32.mrb[0].mxu0
        %v4859 = vadd.f32 0.0, %v4858
        %v4860 = vpop.f32.mrb[0].mxu0
        %4861 = vmatprep.mubr.f32.mxu0 0.0
        %4862 = vmatmul.mubr.f32.gmra.mrb[0].mxu0 %v3440
        %v4863 = vpop.f32.mrb[0].mxu0
        %v4864 = vadd.f32 0.0, %v4863
        %v4865 = vpop.f32.mrb[0].mxu0
        %4866 = vmatprep.mubr.f32.mxu0 0.0
        %4867 = vmatmul.mubr.f32.gmra.mrb[0].mxu0 %v3441
        %v4868 = vpop.f32.mrb[0].mxu0
        %v4869 = vadd.f32 0.0, %v4868
        %v4870 = vpop.f32.mrb[0].mxu0
        %4871 = vmatprep.mubr.f32.mxu0 0.0
        %4872 = vmatmul.mubr.f32.gmra.mrb[0].mxu0 %v3442
        %v4873 = vpop.f32.mrb[0].mxu0
        %v4874 = vadd.f32 0.0, %v4873
        %v4875 = vpop.f32.mrb[0].mxu0
        %4876 = vmatprep.mubr.f32.mxu0 0.0
        %4877 = vmatmul.mubr.f32.gmra.mrb[0].mxu0 %v3443
        %v4878 = vpop.f32.mrb[0].mxu0
        %v4879 = vadd.f32 0.0, %v4878
        %v4880 = vpop.f32.mrb[0].mxu0
        %4881 = vmatprep.mubr.f32.mxu0 0.0
        %4882 = vmatmul.mubr.f32.gmra.mrb[0].mxu0 %v3444
        %v4883 = vpop.f32.mrb[0].mxu0
        %v4884 = vadd.f32 0.0, %v4883
        %v4885 = vpop.f32.mrb[0].mxu0
        %4886 = vmatprep.mubr.f32.mxu0 0.0
        %4887 = vmatmul.mubr.f32.gmra.mrb[0].mxu0 %v3445
        %v4888 = vpop.f32.mrb[0].mxu0
        %v4889 = vadd.f32 0.0, %v4888
        %v4890 = vpop.f32.mrb[0].mxu0
        %4891 = vmatprep.mubr.f32.mxu0 0.0
        %4892 = vmatmul.mubr.f32.gmra.mrb[0].mxu0 %v3446
        %v4893 = vpop.f32.mrb[0].mxu0
        %v4894 = vadd.f32 0.0, %v4893
        %v4895 = vpop.f32.mrb[0].mxu0
        %4896 = vmatprep.mubr.f32.mxu0 0.0
        %4897 = vmatmul.mubr.f32.gmra.mrb[0].mxu0 %v3447
        %v4898 = vpop.f32.mrb[0].mxu0
        %v4899 = vadd.f32 0.0, %v4898
        %v4900 = vpop.f32.mrb[0].mxu0
        %4901 = vmatprep.mubr.f32.mxu0 0.0
        %4902 = vmatmul.mubr.f32.gmra.mrb[0].mxu0 %v3448
        %v4903 = vpop.f32.mrb[0].mxu0
        %v4904 = vadd.f32 0.0, %v4903
        %v4905 = vpop.f32.mrb[0].mxu0
        %4906 = vmatprep.mubr.f32.mxu0 0.0
        %4907 = vmatmul.mubr.f32.gmra.mrb[0].mxu0 %v3449
        %v4908 = vpop.f32.mrb[0].mxu0
        %v4909 = vadd.f32 0.0, %v4908
        %v4910 = vpop.f32.mrb[0].mxu0
        %4911 = vmatprep.mubr.f32.mxu0 0.0
        %4912 = vmatmul.mubr.f32.gmra.mrb[0].mxu0 %v3450
        %v4913 = vpop.f32.mrb[0].mxu0
        %v4914 = vadd.f32 0.0, %v4913
        %v4915 = vpop.f32.mrb[0].mxu0
        %4916 = vmatprep.mubr.f32.mxu0 0.0
        %4917 = vmatmul.mubr.f32.gmra.mrb[0].mxu0 %v3451
        %v4918 = vpop.f32.mrb[0].mxu0
        %v4919 = vadd.f32 0.0, %v4918
        %v4920 = vpop.f32.mrb[0].mxu0
        %4921 = vmatprep.mubr.f32.mxu0 0.0
        %4922 = vmatmul.mubr.f32.gmra.mrb[0].mxu0 %v3452
        %v4923 = vpop.f32.mrb[0].mxu0
        %v4924 = vadd.f32 0.0, %v4923
        %v4925 = vpop.f32.mrb[0].mxu0
        %4926 = vmatprep.mubr.f32.mxu0 0.0
        %4927 = vmatmul.mubr.f32.gmra.mrb[0].mxu0 %v3453
        %v4928 = vpop.f32.mrb[0].mxu0
        %v4929 = vadd.f32 0.0, %v4928
        %v4930 = vpop.f32.mrb[0].mxu0
        %4931 = vmatprep.mubr.f32.mxu0 0.0
        %4932 = vmatmul.mubr.f32.gmra.mrb[0].mxu0 %v3454
        %v4933 = vpop.f32.mrb[0].mxu0
        %v4934 = vadd.f32 0.0, %v4933
        %v4935 = vpop.f32.mrb[0].mxu0
        %4936 = vmatprep.mubr.f32.mxu0 0.0
        %4937 = vmatmul.mubr.f32.gmra.mrb[0].mxu0 %v3455
        %v4938 = vpop.f32.mrb[0].mxu0
        %v4939 = vadd.f32 0.0, %v4938
        %v4940 = vpop.f32.mrb[0].mxu0
        %4941 = vmatprep.mubr.f32.mxu0 0.0
        %4942 = vmatmul.mubr.f32.gmra.mrb[0].mxu0 %v3456
        %v4943 = vpop.f32.mrb[0].mxu0
        %v4944 = vadd.f32 0.0, %v4943
        %v4945 = vpop.f32.mrb[0].mxu0
        %4946 = vmatprep.mubr.f32.mxu0 0.0
        %4947 = vmatmul.mubr.f32.gmra.mrb[0].mxu0 %v3457
        %v4948 = vpop.f32.mrb[0].mxu0
        %v4949 = vadd.f32 0.0, %v4948
        %v4950 = vpop.f32.mrb[0].mxu0
        %4951 = vmatprep.mubr.f32.mxu0 0.0
        %4952 = vmatmul.mubr.f32.gmra.mrb[0].mxu0 %v3458
        %v4953 = vpop.f32.mrb[0].mxu0
        %v4954 = vadd.f32 0.0, %v4953
        %v4955 = vpop.f32.mrb[0].mxu0
        %4956 = vmatprep.mubr.f32.mxu0 0.0
        %4957 = vmatmul.mubr.f32.gmra.mrb[0].mxu0 %v3459
        %v4958 = vpop.f32.mrb[0].mxu0
        %v4959 = vadd.f32 0.0, %v4958
        %v4960 = vpop.f32.mrb[0].mxu0
        %4961 = vmatprep.mubr.f32.mxu0 0.0
        %4962 = vmatmul.mubr.f32.gmra.mrb[0].mxu0 %v3460
        %v4963 = vpop.f32.mrb[0].mxu0
        %v4964 = vadd.f32 0.0, %v4963
        %v4965 = vpop.f32.mrb[0].mxu0
        %4966 = vmatprep.mubr.f32.mxu0 0.0
        %4967 = vmatmul.mubr.f32.gmra.mrb[0].mxu0 %v3461
        %v4968 = vpop.f32.mrb[0].mxu0
        %v4969 = vadd.f32 0.0, %v4968
        %v4970 = vpop.f32.mrb[0].mxu0
        %4971 = vmatprep.mubr.f32.mxu0 0.0
        %4972 = vmatmul.mubr.f32.gmra.mrb[0].mxu0 %v3462
        %v4973 = vpop.f32.mrb[0].mxu0
        %v4974 = vadd.f32 0.0, %v4973
        %v4975 = vpop.f32.mrb[0].mxu0
        %4976 = vmatprep.mubr.f32.mxu0 0.0
        %4977 = vmatmul.mubr.f32.gmra.mrb[0].mxu0 %v3463
        %v4978 = vpop.f32.mrb[0].mxu0
        %v4979 = vadd.f32 0.0, %v4978
        %v4980 = vpop.f32.mrb[0].mxu0
        %4981 = vmatprep.mubr.f32.mxu0 0.0
        %4982 = vmatmul.mubr.f32.gmra.mrb[0].mxu0 %v3464
        %v4983 = vpop.f32.mrb[0].mxu0
        %v4984 = vadd.f32 0.0, %v4983
        %v4985 = vpop.f32.mrb[0].mxu0
        %4986 = vmatprep.mubr.f32.mxu0 0.0
        %4987 = vmatmul.mubr.f32.gmra.mrb[0].mxu0 %v3465
        %v4988 = vpop.f32.mrb[0].mxu0
        %v4989 = vadd.f32 0.0, %v4988
        %v4990 = vpop.f32.mrb[0].mxu0
        %4991 = vmatprep.mubr.f32.mxu0 0.0
        %4992 = vmatmul.mubr.f32.gmra.mrb[0].mxu0 %v3466
        %v4993 = vpop.f32.mrb[0].mxu0
        %v4994 = vadd.f32 0.0, %v4993
        %v4995 = vpop.f32.mrb[0].mxu0
        %4996 = vmatprep.mubr.f32.mxu0 0.0
        %4997 = vmatmul.mubr.f32.gmra.mrb[0].mxu0 %v3467
        %v4998 = vpop.f32.mrb[0].mxu0
        %v4999 = vadd.f32 0.0, %v4998
        %v5000 = vpop.f32.mrb[0].mxu0
        %5001 = vmatprep.mubr.f32.mxu0 0.0
        %5002 = vmatmul.mubr.f32.gmra.mrb[0].mxu0 %v3468
        %v5003 = vpop.f32.mrb[0].mxu0
        %v5004 = vadd.f32 0.0, %v5003
        %v5005 = vpop.f32.mrb[0].mxu0
        %5006 = vmatprep.mubr.f32.mxu0 0.0
        %5007 = vmatmul.mubr.f32.gmra.mrb[0].mxu0 %v3469
        %v5008 = vpop.f32.mrb[0].mxu0
        %v5009 = vadd.f32 0.0, %v5008
        %v5010 = vpop.f32.mrb[0].mxu0
        %5011 = vmatprep.mubr.f32.mxu0 0.0
        %5012 = vmatmul.mubr.f32.gmra.mrb[0].mxu0 %v3470
        %v5013 = vpop.f32.mrb[0].mxu0
        %v5014 = vadd.f32 0.0, %v5013
        %v5015 = vpop.f32.mrb[0].mxu0
        %5016 = vmatprep.mubr.f32.mxu0 0.0
        %5017 = vmatmul.mubr.f32.gmra.mrb[0].mxu0 %v3471
        %v5018 = vpop.f32.mrb[0].mxu0
        %v5019 = vadd.f32 0.0, %v5018
        %v5020 = vpop.f32.mrb[0].mxu0
        %5021 = vmatprep.mubr.f32.mxu0 0.0
        %5022 = vmatmul.mubr.f32.gmra.mrb[0].mxu0 %v3472
        %v5023 = vpop.f32.mrb[0].mxu0
        %v5024 = vadd.f32 0.0, %v5023
        %v5025 = vpop.f32.mrb[0].mxu0
        %5026 = vmatprep.mubr.f32.mxu0 0.0
        %5027 = vmatmul.mubr.f32.gmra.mrb[0].mxu0 %v3473
        %v5028 = vpop.f32.mrb[0].mxu0
        %v5029 = vadd.f32 0.0, %v5028
        %v5030 = vpop.f32.mrb[0].mxu0
        %5031 = vmatprep.mubr.f32.mxu0 0.0
        %5032 = vmatmul.mubr.f32.gmra.mrb[0].mxu0 %v3474
        %v5033 = vpop.f32.mrb[0].mxu0
        %v5034 = vadd.f32 0.0, %v5033
        %v5035 = vpop.f32.mrb[0].mxu0
        %5036 = vmatprep.mubr.f32.mxu0 0.0
        %5037 = vmatmul.mubr.f32.gmra.mrb[0].mxu0 %v3475
        %v5038 = vpop.f32.mrb[0].mxu0
        %v5039 = vadd.f32 0.0, %v5038
        %v5040 = vpop.f32.mrb[0].mxu0
        %5041 = vmatprep.mubr.f32.mxu0 0.0
        %5042 = vmatmul.mubr.f32.gmra.mrb[0].mxu0 %v3476
        %v5043 = vpop.f32.mrb[0].mxu0
        %v5044 = vadd.f32 0.0, %v5043
        %v5045 = vpop.f32.mrb[0].mxu0
        %5046 = vmatprep.mubr.f32.mxu0 0.0
        %5047 = vmatmul.mubr.f32.gmra.mrb[0].mxu0 %v3477
        %v5048 = vpop.f32.mrb[0].mxu0
        %v5049 = vadd.f32 0.0, %v5048
        %v5050 = vpop.f32.mrb[0].mxu0
        %5051 = vmatprep.mubr.f32.mxu0 0.0
        %5052 = vmatmul.mubr.f32.gmra.mrb[0].mxu0 %v3478
        %v5053 = vpop.f32.mrb[0].mxu0
        %v5054 = vadd.f32 0.0, %v5053
        %v5055 = vpop.f32.mrb[0].mxu0
        %5056 = vmatprep.mubr.f32.mxu0 0.0
        %5057 = vmatmul.mubr.f32.gmra.mrb[0].mxu0 %v3479
        %v5058 = vpop.f32.mrb[0].mxu0
        %v5059 = vadd.f32 0.0, %v5058
        %v5060 = vpop.f32.mrb[0].mxu0
        %5061 = vmatprep.mubr.f32.mxu0 0.0
        %5062 = vmatmul.mubr.f32.gmra.mrb[0].mxu0 %v3480
        %v5063 = vpop.f32.mrb[0].mxu0
        %v5064 = vadd.f32 0.0, %v5063
        %v5065 = vpop.f32.mrb[0].mxu0
        %5066 = vmatprep.mubr.f32.mxu0 0.0
        %5067 = vmatmul.mubr.f32.gmra.mrb[0].mxu0 %v3481
        %v5068 = vpop.f32.mrb[0].mxu0
        %v5069 = vadd.f32 0.0, %v5068
        %v5070 = vpop.f32.mrb[0].mxu0
        %5071 = vmatprep.mubr.f32.mxu0 0.0
        %5072 = vmatmul.mubr.f32.gmra.mrb[0].mxu0 %v3482
        %v5073 = vpop.f32.mrb[0].mxu0
        %v5074 = vadd.f32 0.0, %v5073
        %v5075 = vpop.f32.mrb[0].mxu0
        %5076 = vmatprep.mubr.f32.mxu0 0.0
        %5077 = vmatmul.mubr.f32.gmra.mrb[0].mxu0 %v3483
        %v5078 = vpop.f32.mrb[0].mxu0
        %v5079 = vadd.f32 0.0, %v5078
        %v5080 = vpop.f32.mrb[0].mxu0
        %5081 = vmatprep.mubr.f32.mxu0 0.0
        %5082 = vmatmul.mubr.f32.gmra.mrb[0].mxu0 %v3484
        %v5083 = vpop.f32.mrb[0].mxu0
        %v5084 = vadd.f32 0.0, %v5083
        %v5085 = vpop.f32.mrb[0].mxu0
        %5086 = vmatprep.mubr.f32.mxu0 0.0
        %5087 = vmatmul.mubr.f32.gmra.mrb[0].mxu0 %v3485
        %v5088 = vpop.f32.mrb[0].mxu0
        %v5089 = vadd.f32 0.0, %v5088
        %v5090 = vpop.f32.mrb[0].mxu0
        %5091 = vmatprep.mubr.f32.mxu0 0.0
        %5092 = vmatmul.mubr.f32.gmra.mrb[0].mxu0 %v3486
        %v5093 = vpop.f32.mrb[0].mxu0
        %v5094 = vadd.f32 0.0, %v5093
        %v5095 = vpop.f32.mrb[0].mxu0
        %5096 = vmatprep.mubr.f32.mxu0 0.0
        %5097 = vmatmul.mubr.f32.gmra.mrb[0].mxu0 %v3487
        %v5098 = vpop.f32.mrb[0].mxu0
        %v5099 = vadd.f32 0.0, %v5098
        %v5100 = vpop.f32.mrb[0].mxu0
        %5101 = vmatprep.mubr.f32.mxu0 0.0
        %5102 = vmatmul.mubr.f32.gmra.mrb[0].mxu0 %v3488
        %v5103 = vpop.f32.mrb[0].mxu0
        %v5104 = vadd.f32 0.0, %v5103
        %v5105 = vpop.f32.mrb[0].mxu0
        %5106 = vmatprep.mubr.f32.mxu0 0.0
        %5107 = vmatmul.mubr.f32.gmra.mrb[0].mxu0 %v3489
        %v5108 = vpop.f32.mrb[0].mxu0
        %v5109 = vadd.f32 0.0, %v5108
        %v5110 = vpop.f32.mrb[0].mxu0
        %5111 = vmatprep.mubr.f32.mxu0 0.0
        %5112 = vmatmul.mubr.f32.gmra.mrb[0].mxu0 %v3490
        %v5113 = vpop.f32.mrb[0].mxu0
        %v5114 = vadd.f32 0.0, %v5113
        %v5115 = vpop.f32.mrb[0].mxu0
        %5116 = vmatprep.mubr.f32.mxu0 0.0
        %5117 = vmatmul.mubr.f32.gmra.mrb[0].mxu0 %v3491
        %v5118 = vpop.f32.mrb[0].mxu0
        %v5119 = vadd.f32 0.0, %v5118
        %v5120 = vpop.f32.mrb[0].mxu0
        %5121 = vmatprep.mubr.f32.mxu0 0.0
        %5122 = vmatmul.mubr.f32.gmra.mrb[0].mxu0 %v3492
        %v5123 = vpop.f32.mrb[0].mxu0
        %v5124 = vadd.f32 0.0, %v5123
        %v5125 = vpop.f32.mrb[0].mxu0
        %5126 = vmatprep.mubr.f32.mxu0 0.0
        %5127 = vmatmul.mubr.f32.gmra.mrb[0].mxu0 %v3493
        %v5128 = vpop.f32.mrb[0].mxu0
        %v5129 = vadd.f32 0.0, %v5128
        %v5130 = vpop.f32.mrb[0].mxu0
        %5131 = vmatprep.mubr.f32.mxu0 0.0
        %5132 = vmatmul.mubr.f32.gmra.mrb[0].mxu0 %v3494
        %v5133 = vpop.f32.mrb[0].mxu0
        %v5134 = vadd.f32 0.0, %v5133
        %v5135 = vpop.f32.mrb[0].mxu0
        %5136 = vmatprep.mubr.f32.mxu0 0.0
        %5137 = vmatmul.mubr.f32.gmra.mrb[0].mxu0 %v3495
        %v5138 = vpop.f32.mrb[0].mxu0
        %v5139 = vadd.f32 0.0, %v5138
        %v5140 = vpop.f32.mrb[0].mxu0
        %5141 = vmatprep.mubr.f32.mxu0 0.0
        %5142 = vmatmul.mubr.f32.gmra.mrb[0].mxu0 %v3496
        %v5143 = vpop.f32.mrb[0].mxu0
        %v5144 = vadd.f32 0.0, %v5143
        %v5145 = vpop.f32.mrb[0].mxu0
        %5146 = vmatprep.mubr.f32.mxu0 0.0
        %5147 = vmatmul.mubr.f32.gmra.mrb[0].mxu0 %v3497
        %v5148 = vpop.f32.mrb[0].mxu0
        %v5149 = vadd.f32 0.0, %v5148
        %v5150 = vpop.f32.mrb[0].mxu0
        %5151 = vmatprep.mubr.f32.mxu0 0.0
        %5152 = vmatmul.mubr.f32.gmra.mrb[0].mxu0 %v3498
        %v5153 = vpop.f32.mrb[0].mxu0
        %v5154 = vadd.f32 0.0, %v5153
        %v5155 = vpop.f32.mrb[0].mxu0
        %5156 = vmatprep.mubr.f32.mxu0 0.0
        %5157 = vmatmul.mubr.f32.gmra.mrb[0].mxu0 %v3499
        %v5158 = vpop.f32.mrb[0].mxu0
        %v5159 = vadd.f32 0.0, %v5158
        %v5160 = vpop.f32.mrb[0].mxu0
        %5161 = vmatprep.mubr.f32.mxu0 0.0
        %5162 = vmatmul.mubr.f32.gmra.mrb[0].mxu0 %v3500
        %v5163 = vpop.f32.mrb[0].mxu0
        %v5164 = vadd.f32 0.0, %v5163
        %v5165 = vpop.f32.mrb[0].mxu0
        %5166 = vmatprep.mubr.f32.mxu0 0.0
        %5167 = vmatmul.mubr.f32.gmra.mrb[0].mxu0 %v3501
        %v5168 = vpop.f32.mrb[0].mxu0
        %v5169 = vadd.f32 0.0, %v5168
        %v5170 = vpop.f32.mrb[0].mxu0
        %5171 = vmatprep.mubr.f32.mxu0 0.0
        %5172 = vmatmul.mubr.f32.gmra.mrb[0].mxu0 %v3502
        %v5173 = vpop.f32.mrb[0].mxu0
        %v5174 = vadd.f32 0.0, %v5173
        %v5175 = vpop.f32.mrb[0].mxu0
        %5176 = vmatprep.mubr.f32.mxu0 0.0
        %5177 = vmatmul.mubr.f32.gmra.mrb[0].mxu0 %v3503
        %v5178 = vpop.f32.mrb[0].mxu0
        %v5179 = vadd.f32 0.0, %v5178
        %v5180 = vpop.f32.mrb[0].mxu0
        %5181 = vmatprep.mubr.f32.mxu0 0.0
        %5182 = vmatmul.mubr.f32.gmra.mrb[0].mxu0 %v3504
        %v5183 = vpop.f32.mrb[0].mxu0
        %v5184 = vadd.f32 0.0, %v5183
        %v5185 = vpop.f32.mrb[0].mxu0
        %5186 = vmatprep.mubr.f32.mxu0 0.0
        %5187 = vmatmul.mubr.f32.gmra.mrb[0].mxu0 %v3505
        %v5188 = vpop.f32.mrb[0].mxu0
        %v5189 = vadd.f32 0.0, %v5188
        %v5190 = vpop.f32.mrb[0].mxu0
        %5191 = vmatprep.mubr.f32.mxu0 0.0
        %5192 = vmatmul.mubr.f32.gmra.mrb[0].mxu0 %v3506
        %v5193 = vpop.f32.mrb[0].mxu0
        %v5194 = vadd.f32 0.0, %v5193
        %v5195 = vpop.f32.mrb[0].mxu0
        %5196 = vmatprep.mubr.f32.mxu0 0.0
        %5197 = vmatmul.mubr.f32.gmra.mrb[0].mxu0 %v3507
        %v5198 = vpop.f32.mrb[0].mxu0
        %v5199 = vadd.f32 0.0, %v5198
        %v5200 = vpop.f32.mrb[0].mxu0
        %5201 = vmatprep.mubr.f32.mxu0 0.0
        %5202 = vmatmul.mubr.f32.gmra.mrb[0].mxu0 %v3508
        %v5203 = vpop.f32.mrb[0].mxu0
        %v5204 = vadd.f32 0.0, %v5203
        %v5205 = vpop.f32.mrb[0].mxu0
        %5206 = vmatprep.mubr.f32.mxu0 0.0
        %5207 = vmatmul.mubr.f32.gmra.mrb[0].mxu0 %v3509
        %v5208 = vpop.f32.mrb[0].mxu0
        %v5209 = vadd.f32 0.0, %v5208
        %v5210 = vpop.f32.mrb[0].mxu0
        %5211 = vmatprep.mubr.f32.mxu0 0.0
        %5212 = vmatmul.mubr.f32.gmra.mrb[0].mxu0 %v3510
        %v5213 = vpop.f32.mrb[0].mxu0
        %v5214 = vadd.f32 0.0, %v5213
        %v5215 = vpop.f32.mrb[0].mxu0
        %5216 = vmatprep.mubr.f32.mxu0 0.0
        %5217 = vmatmul.mubr.f32.gmra.mrb[0].mxu0 %v3511
        %v5218 = vpop.f32.mrb[0].mxu0
        %v5219 = vadd.f32 0.0, %v5218
        %v5220 = vpop.f32.mrb[0].mxu0
        %5221 = vmatprep.mubr.f32.mxu0 0.0
        %5222 = vmatmul.mubr.f32.gmra.mrb[0].mxu0 %v3512
        %v5223 = vpop.f32.mrb[0].mxu0
        %v5224 = vadd.f32 0.0, %v5223
        %v5225 = vpop.f32.mrb[0].mxu0
        %5226 = vmatprep.mubr.f32.mxu0 0.0
        %5227 = vmatmul.mubr.f32.gmra.mrb[0].mxu0 %v3513
        %v5228 = vpop.f32.mrb[0].mxu0
        %v5229 = vadd.f32 0.0, %v5228
        %v5230 = vpop.f32.mrb[0].mxu0
        %5231 = vmatprep.mubr.f32.mxu0 0.0
        %5232 = vmatmul.mubr.f32.gmra.mrb[0].mxu0 %v3514
        %v5233 = vpop.f32.mrb[0].mxu0
        %v5234 = vadd.f32 0.0, %v5233
        %v5235 = vpop.f32.mrb[0].mxu0
        %5236 = vmatprep.mubr.f32.mxu0 0.0
        %5237 = vmatmul.mubr.f32.gmra.mrb[0].mxu0 %v3515
        %v5238 = vpop.f32.mrb[0].mxu0
        %v5239 = vadd.f32 0.0, %v5238
        %v5240 = vpop.f32.mrb[0].mxu0
        %5241 = vmatprep.mubr.f32.mxu0 0.0
        %5242 = vmatmul.mubr.f32.gmra.mrb[0].mxu0 %v3516
        %v5243 = vpop.f32.mrb[0].mxu0
        %v5244 = vadd.f32 0.0, %v5243
        %v5245 = vpop.f32.mrb[0].mxu0
        %5246 = vmatprep.mubr.f32.mxu0 0.0
        %5247 = vmatmul.mubr.f32.gmra.mrb[0].mxu0 %v3517
        %v5248 = vpop.f32.mrb[0].mxu0
        %v5249 = vadd.f32 0.0, %v5248
        %v5250 = vpop.f32.mrb[0].mxu0
        %5251 = vmatprep.mubr.f32.mxu0 0.0
        %5252 = vmatmul.mubr.f32.gmra.mrb[0].mxu0 %v3518
        %v5253 = vpop.f32.mrb[0].mxu0
        %v5254 = vadd.f32 0.0, %v5253
        %v5255 = vpop.f32.mrb[0].mxu0
        %5256 = vmatprep.mubr.f32.mxu0 0.0
        %5257 = vmatmul.mubr.f32.gmra.mrb[0].mxu0 %v3519
        %v5258 = vpop.f32.mrb[0].mxu0
        %v5259 = vadd.f32 0.0, %v5258
        %v5260 = vpop.f32.mrb[0].mxu0
        %5261 = vmatprep.mubr.f32.mxu0 0.0
        %5262 = vmatmul.mubr.f32.gmra.mrb[0].mxu0 %v3520
        %v5263 = vpop.f32.mrb[0].mxu0
        %v5264 = vadd.f32 0.0, %v5263
        %v5265 = vpop.f32.mrb[0].mxu0
        %5266 = vmatprep.mubr.f32.mxu0 0.0
        %5267 = vmatmul.mubr.f32.gmra.mrb[0].mxu0 %v3521
        %v5268 = vpop.f32.mrb[0].mxu0
        %v5269 = vadd.f32 0.0, %v5268
        %v5270 = vpop.f32.mrb[0].mxu0
        %5271 = vmatprep.mubr.f32.mxu0 0.0
        %5272 = vmatmul.mubr.f32.gmra.mrb[0].mxu0 %v3522
        %v5273 = vpop.f32.mrb[0].mxu0
        %v5274 = vadd.f32 0.0, %v5273
        %v5275 = vpop.f32.mrb[0].mxu0
        %5276 = vmatprep.mubr.f32.mxu0 0.0
        %5277 = vmatmul.mubr.f32.gmra.mrb[0].mxu0 %v3523
        %v5278 = vpop.f32.mrb[0].mxu0
        %v5279 = vadd.f32 0.0, %v5278
        %v5280 = vpop.f32.mrb[0].mxu0
        %5281 = vmatprep.mubr.f32.mxu0 0.0
        %5282 = vmatmul.mubr.f32.gmra.mrb[0].mxu0 %v3524
        %v5283 = vpop.f32.mrb[0].mxu0
        %v5284 = vadd.f32 0.0, %v5283
        %v5285 = vpop.f32.mrb[0].mxu0
        %5286 = vmatprep.mubr.f32.mxu0 0.0
        %5287 = vmatmul.mubr.f32.gmra.mrb[0].mxu0 %v3525
        %v5288 = vpop.f32.mrb[0].mxu0
        %v5289 = vadd.f32 0.0, %v5288
        %v5290 = vpop.f32.mrb[0].mxu0
        %5291 = vmatprep.mubr.f32.mxu0 0.0
        %5292 = vmatmul.mubr.f32.gmra.mrb[0].mxu0 %v3526
        %v5293 = vpop.f32.mrb[0].mxu0
        %v5294 = vadd.f32 0.0, %v5293
        %v5295 = vpop.f32.mrb[0].mxu0
        %5296 = vmatprep.mubr.f32.mxu0 0.0
        %5297 = vmatmul.mubr.f32.gmra.mrb[0].mxu0 %v3527
        %v5298 = vpop.f32.mrb[0].mxu0
        %v5299 = vadd.f32 0.0, %v5298
        %v5300 = vpop.f32.mrb[0].mxu0
        %5301 = vmatprep.mubr.f32.mxu0 0.0
        %5302 = vmatmul.mubr.f32.gmra.mrb[0].mxu0 %v3528
        %v5303 = vpop.f32.mrb[0].mxu0
        %v5304 = vadd.f32 0.0, %v5303
        %v5305 = vpop.f32.mrb[0].mxu0
        %5306 = vmatprep.mubr.f32.mxu0 0.0
        %5307 = vmatmul.mubr.f32.gmra.mrb[0].mxu0 %v3529
        %v5308 = vpop.f32.mrb[0].mxu0
        %v5309 = vadd.f32 0.0, %v5308
        %v5310 = vpop.f32.mrb[0].mxu0
        %5311 = vmatprep.mubr.f32.mxu0 0.0
        %5312 = vmatmul.mubr.f32.gmra.mrb[0].mxu0 %v3530
        %v5313 = vpop.f32.mrb[0].mxu0
        %v5314 = vadd.f32 0.0, %v5313
        %v5315 = vpop.f32.mrb[0].mxu0
        %5316 = vmatprep.mubr.f32.mxu0 0.0
        %5317 = vmatmul.mubr.f32.gmra.mrb[0].mxu0 %v3531
        %v5318 = vpop.f32.mrb[0].mxu0
        %v5319 = vadd.f32 0.0, %v5318
        %v5320 = vpop.f32.mrb[0].mxu0
        %5321 = vmatprep.mubr.f32.mxu0 0.0
        %5322 = vmatmul.mubr.f32.gmra.mrb[0].mxu0 %v3532
        %v5323 = vpop.f32.mrb[0].mxu0
        %v5324 = vadd.f32 0.0, %v5323
        %v5325 = vpop.f32.mrb[0].mxu0
        %5326 = vmatprep.mubr.f32.mxu0 0.0
        %5327 = vmatmul.mubr.f32.gmra.mrb[0].mxu0 %v3533
        %v5328 = vpop.f32.mrb[0].mxu0
        %v5329 = vadd.f32 0.0, %v5328
        %v5330 = vpop.f32.mrb[0].mxu0
        %5331 = vmatprep.mubr.f32.mxu0 0.0
        %5332 = vmatmul.mubr.f32.gmra.mrb[0].mxu0 %v3534
        %v5333 = vpop.f32.mrb[0].mxu0
        %v5334 = vadd.f32 0.0, %v5333
        %v5335 = vpop.f32.mrb[0].mxu0
        %5336 = vmatprep.mubr.f32.mxu0 0.0
        %5337 = vmatmul.mubr.f32.gmra.mrb[0].mxu0 %v3535
        %v5338 = vpop.f32.mrb[0].mxu0
        %v5339 = vadd.f32 0.0, %v5338
        %v5340 = vpop.f32.mrb[0].mxu0
        %5341 = vmatprep.mubr.f32.mxu0 0.0
        %5342 = vmatmul.mubr.f32.gmra.mrb[0].mxu0 %v3536
        %v5343 = vpop.f32.mrb[0].mxu0
        %v5344 = vadd.f32 0.0, %v5343
        %v5345 = vpop.f32.mrb[0].mxu0
        %5346 = vmatprep.mubr.f32.mxu0 0.0
        %5347 = vmatmul.mubr.f32.gmra.mrb[0].mxu0 %v3537
        %v5348 = vpop.f32.mrb[0].mxu0
        %v5349 = vadd.f32 0.0, %v5348
        %v5350 = vpop.f32.mrb[0].mxu0
        %5351 = vmatprep.mubr.f32.mxu0 0.0
        %5352 = vmatmul.mubr.f32.gmra.mrb[0].mxu0 %v3538
        %v5353 = vpop.f32.mrb[0].mxu0
        %v5354 = vadd.f32 0.0, %v5353
        %v5355 = vpop.f32.mrb[0].mxu0
        %5356 = vmatprep.mubr.f32.mxu0 0.0
        %5357 = vmatmul.mubr.f32.gmra.mrb[0].mxu0 %v3539
        %v5358 = vpop.f32.mrb[0].mxu0
        %v5359 = vadd.f32 0.0, %v5358
        %v5360 = vpop.f32.mrb[0].mxu0
        %5361 = vmatprep.mubr.f32.mxu0 0.0
        %5362 = vmatmul.mubr.f32.gmra.mrb[0].mxu0 %v3540
        %v5363 = vpop.f32.mrb[0].mxu0
        %v5364 = vadd.f32 0.0, %v5363
        %v5365 = vpop.f32.mrb[0].mxu0
        %5366 = vmatprep.mubr.f32.mxu0 0.0
        %5367 = vmatmul.mubr.f32.gmra.mrb[0].mxu0 %v3541
        %v5368 = vpop.f32.mrb[0].mxu0
        %v5369 = vadd.f32 0.0, %v5368
        %v5370 = vpop.f32.mrb[0].mxu0
        %5371 = vmatprep.mubr.f32.mxu0 0.0
        %5372 = vmatmul.mubr.f32.gmra.mrb[0].mxu0 %v3542
        %v5373 = vpop.f32.mrb[0].mxu0
        %v5374 = vadd.f32 0.0, %v5373
        %v5375 = vpop.f32.mrb[0].mxu0
        %5376 = vmatprep.mubr.f32.mxu0 0.0
        %5377 = vmatmul.mubr.f32.gmra.mrb[0].mxu0 %v3543
        %v5378 = vpop.f32.mrb[0].mxu0
        %v5379 = vadd.f32 0.0, %v5378
        %v5380 = vpop.f32.mrb[0].mxu0
        %5381 = vmatprep.mubr.f32.mxu0 0.0
        %5382 = vmatmul.mubr.f32.gmra.mrb[0].mxu0 %v3544
        %v5383 = vpop.f32.mrb[0].mxu0
        %v5384 = vadd.f32 0.0, %v5383
        %v5385 = vpop.f32.mrb[0].mxu0
        %5386 = vmatprep.mubr.f32.mxu0 0.0
        %5387 = vmatmul.mubr.f32.gmra.mrb[0].mxu0 %v3545
        %v5388 = vpop.f32.mrb[0].mxu0
        %v5389 = vadd.f32 0.0, %v5388
        %v5390 = vpop.f32.mrb[0].mxu0
        %5391 = vmatprep.mubr.f32.mxu0 0.0
        %5392 = vmatmul.mubr.f32.gmra.mrb[0].mxu0 %v3546
        %v5393 = vpop.f32.mrb[0].mxu0
        %v5394 = vadd.f32 0.0, %v5393
        %v5395 = vpop.f32.mrb[0].mxu0
        %5396 = vmatprep.mubr.f32.mxu0 0.0
        %5397 = vmatmul.mubr.f32.gmra.mrb[0].mxu0 %v3547
        %v5398 = vpop.f32.mrb[0].mxu0
        %v5399 = vadd.f32 0.0, %v5398
        %v5400 = vpop.f32.mrb[0].mxu0
        %5401 = vmatprep.mubr.f32.mxu0 0.0
        %5402 = vmatmul.mubr.f32.gmra.mrb[0].mxu0 %v3548
        %v5403 = vpop.f32.mrb[0].mxu0
        %v5404 = vadd.f32 0.0, %v5403
        %v5405 = vpop.f32.mrb[0].mxu0
        %5406 = vmatprep.mubr.f32.mxu0 0.0
        %5407 = vmatmul.mubr.f32.gmra.mrb[0].mxu0 %v3549
        %v5408 = vpop.f32.mrb[0].mxu0
        %v5409 = vadd.f32 0.0, %v5408
        %v5410 = vpop.f32.mrb[0].mxu0
        %5411 = vmatprep.mubr.f32.mxu0 0.0
        %5412 = vmatmul.mubr.f32.gmra.mrb[0].mxu0 %v3550
        %v5413 = vpop.f32.mrb[0].mxu0
        %v5414 = vadd.f32 0.0, %v5413
        %v5415 = vpop.f32.mrb[0].mxu0
        %5416 = vmatprep.mubr.f32.mxu0 0.0
        %5417 = vmatmul.mubr.f32.gmra.mrb[0].mxu0 %v3551
        %v5418 = vpop.f32.mrb[0].mxu0
        %v5419 = vadd.f32 0.0, %v5418
        %v5420 = vpop.f32.mrb[0].mxu0
        %5421 = vmatprep.mubr.f32.mxu0 0.0
        %5422 = vmatmul.mubr.f32.gmra.mrb[0].mxu0 %v3552
        %v5423 = vpop.f32.mrb[0].mxu0
        %v5424 = vadd.f32 0.0, %v5423
        %v5425 = vpop.f32.mrb[0].mxu0
        %5426 = vmatprep.mubr.f32.mxu0 0.0
        %5427 = vmatmul.mubr.f32.gmra.mrb[0].mxu0 %v3553
        %v5428 = vpop.f32.mrb[0].mxu0
        %v5429 = vadd.f32 0.0, %v5428
        %v5430 = vpop.f32.mrb[0].mxu0
        %5431 = vmatprep.mubr.f32.mxu0 0.0
        %5432 = vmatmul.mubr.f32.gmra.mrb[0].mxu0 %v3554
        %v5433 = vpop.f32.mrb[0].mxu0
        %v5434 = vadd.f32 0.0, %v5433
        %v5435 = vpop.f32.mrb[0].mxu0
        %5436 = vmatprep.mubr.f32.mxu0 0.0
        %5437 = vmatmul.mubr.f32.gmra.mrb[0].mxu0 %v3555
        %v5438 = vpop.f32.mrb[0].mxu0
        %v5439 = vadd.f32 0.0, %v5438
        %v5440 = vpop.f32.mrb[0].mxu0
        %5441 = vmatprep.mubr.f32.mxu0 0.0
        %5442 = vmatmul.mubr.f32.gmra.mrb[0].mxu0 %v3556
        %v5443 = vpop.f32.mrb[0].mxu0
        %v5444 = vadd.f32 0.0, %v5443
        %v5445 = vpop.f32.mrb[0].mxu0
        %5446 = vmatprep.mubr.f32.mxu0 0.0
        %5447 = vmatmul.mubr.f32.gmra.mrb[0].mxu0 %v3557
        %v5448 = vpop.f32.mrb[0].mxu0
        %v5449 = vadd.f32 0.0, %v5448
        %v5450 = vpop.f32.mrb[0].mxu0
        %5451 = vmatprep.mubr.f32.mxu0 0.0
        %5452 = vmatmul.mubr.f32.gmra.mrb[0].mxu0 %v3558
        %v5453 = vpop.f32.mrb[0].mxu0
        %v5454 = vadd.f32 0.0, %v5453
        %v5455 = vpop.f32.mrb[0].mxu0
        %5456 = vmatprep.mubr.f32.mxu0 0.0
        %5457 = vmatmul.mubr.f32.gmra.mrb[0].mxu0 %v3559
        %v5458 = vpop.f32.mrb[0].mxu0
        %v5459 = vadd.f32 0.0, %v5458
        %v5460 = vpop.f32.mrb[0].mxu0
        %5461 = vmatprep.mubr.f32.mxu0 0.0
        %5462 = vmatmul.mubr.f32.gmra.mrb[0].mxu0 %v3560
        %v5463 = vpop.f32.mrb[0].mxu0
        %v5464 = vadd.f32 0.0, %v5463
        %v5465 = vpop.f32.mrb[0].mxu0
        %5466 = vmatprep.mubr.f32.mxu0 0.0
        %5467 = vmatmul.mubr.f32.gmra.mrb[0].mxu0 %v3561
        %v5468 = vpop.f32.mrb[0].mxu0
        %v5469 = vadd.f32 0.0, %v5468
        %v5470 = vpop.f32.mrb[0].mxu0
        %5471 = vmatprep.mubr.f32.mxu0 0.0
        %5472 = vmatmul.mubr.f32.gmra.mrb[0].mxu0 %v3562
        %v5473 = vpop.f32.mrb[0].mxu0
        %v5474 = vadd.f32 0.0, %v5473
        %v5475 = vpop.f32.mrb[0].mxu0
        %5476 = vmatprep.mubr.f32.mxu0 0.0
        %5477 = vmatmul.mubr.f32.gmra.mrb[0].mxu0 %v3563
        %v5478 = vpop.f32.mrb[0].mxu0
        %v5479 = vadd.f32 0.0, %v5478
        %v5480 = vpop.f32.mrb[0].mxu0
        %5481 = vmatprep.mubr.f32.mxu0 0.0
        %5482 = vmatmul.mubr.f32.gmra.mrb[0].mxu0 %v3564
        %v5483 = vpop.f32.mrb[0].mxu0
        %v5484 = vadd.f32 0.0, %v5483
        %v5485 = vpop.f32.mrb[0].mxu0
        %5486 = vmatprep.mubr.f32.mxu0 0.0
        %5487 = vmatmul.mubr.f32.gmra.mrb[0].mxu0 %v3565
        %v5488 = vpop.f32.mrb[0].mxu0
        %v5489 = vadd.f32 0.0, %v5488
        %v5490 = vpop.f32.mrb[0].mxu0
        %5491 = vmatprep.mubr.f32.mxu0 0.0
        %5492 = vmatmul.mubr.f32.gmra.mrb[0].mxu0 %v3566
        %v5493 = vpop.f32.mrb[0].mxu0
        %v5494 = vadd.f32 0.0, %v5493
        %v5495 = vpop.f32.mrb[0].mxu0
        %5496 = vmatprep.mubr.f32.mxu0 0.0
        %5497 = vmatmul.mubr.f32.gmra.mrb[0].mxu0 %v3567
        %v5498 = vpop.f32.mrb[0].mxu0
        %v5499 = vadd.f32 0.0, %v5498
        %v5500 = vpop.f32.mrb[0].mxu0
        %5501 = vmatprep.mubr.f32.mxu0 0.0
        %5502 = vmatmul.mubr.f32.gmra.mrb[0].mxu0 %v3568
        %v5503 = vpop.f32.mrb[0].mxu0
        %v5504 = vadd.f32 0.0, %v5503
        %v5505 = vpop.f32.mrb[0].mxu0
        %5506 = vmatprep.mubr.f32.mxu0 0.0
        %5507 = vmatmul.mubr.f32.gmra.mrb[0].mxu0 %v3569
        %v5508 = vpop.f32.mrb[0].mxu0
        %v5509 = vadd.f32 0.0, %v5508
        %v5510 = vpop.f32.mrb[0].mxu0
        %5511 = vmatprep.mubr.f32.mxu0 0.0
        %5512 = vmatmul.mubr.f32.gmra.mrb[0].mxu0 %v3570
        %v5513 = vpop.f32.mrb[0].mxu0
        %v5514 = vadd.f32 0.0, %v5513
        %v5515 = vpop.f32.mrb[0].mxu0
        %5516 = vmatprep.mubr.f32.mxu0 0.0
        %5517 = vmatmul.mubr.f32.gmra.mrb[0].mxu0 %v3571
        %v5518 = vpop.f32.mrb[0].mxu0
        %v5519 = vadd.f32 0.0, %v5518
        %v5520 = vpop.f32.mrb[0].mxu0
        %5521 = vmatprep.mubr.f32.mxu0 0.0
        %5522 = vmatmul.mubr.f32.gmra.mrb[0].mxu0 %v3572
        %v5523 = vpop.f32.mrb[0].mxu0
        %v5524 = vadd.f32 0.0, %v5523
        %v5525 = vpop.f32.mrb[0].mxu0
        %5526 = vmatprep.mubr.f32.mxu0 0.0
        %5527 = vmatmul.mubr.f32.gmra.mrb[0].mxu0 %v3573
        %v5528 = vpop.f32.mrb[0].mxu0
        %v5529 = vadd.f32 0.0, %v5528
        %v5530 = vpop.f32.mrb[0].mxu0
        %5531 = vmatprep.mubr.f32.mxu0 0.0
        %5532 = vmatmul.mubr.f32.gmra.mrb[0].mxu0 %v3574
        %v5533 = vpop.f32.mrb[0].mxu0
        %v5534 = vadd.f32 0.0, %v5533
        %v5535 = vpop.f32.mrb[0].mxu0
        %5536 = vmatprep.mubr.f32.mxu0 0.0
        %5537 = vmatmul.mubr.f32.gmra.mrb[0].mxu0 %v3575
        %v5538 = vpop.f32.mrb[0].mxu0
        %v5539 = vadd.f32 0.0, %v5538
        %v5540 = vpop.f32.mrb[0].mxu0
        %5541 = vmatprep.mubr.f32.mxu0 0.0
        %5542 = vmatmul.mubr.f32.gmra.mrb[0].mxu0 %v3576
        %v5543 = vpop.f32.mrb[0].mxu0
        %v5544 = vadd.f32 0.0, %v5543
        %v5545 = vpop.f32.mrb[0].mxu0
        %5546 = vmatprep.mubr.f32.mxu0 0.0
        %5547 = vmatmul.mubr.f32.gmra.mrb[0].mxu0 %v3577
        %v5548 = vpop.f32.mrb[0].mxu0
        %v5549 = vadd.f32 0.0, %v5548
        %v5550 = vpop.f32.mrb[0].mxu0
        %5551 = vmatprep.mubr.f32.mxu0 0.0
        %5552 = vmatmul.mubr.f32.gmra.mrb[0].mxu0 %v3578
        %v5553 = vpop.f32.mrb[0].mxu0
        %v5554 = vadd.f32 0.0, %v5553
        %v5555 = vpop.f32.mrb[0].mxu0
        %5556 = vmatprep.mubr.f32.mxu0 0.0
        %5557 = vmatmul.mubr.f32.gmra.mrb[0].mxu0 %v3579
        %v5558 = vpop.f32.mrb[0].mxu0
        %v5559 = vadd.f32 0.0, %v5558
        %v5560 = vpop.f32.mrb[0].mxu0
        %5561 = vmatprep.mubr.f32.mxu0 0.0
        %5562 = vmatmul.mubr.f32.gmra.mrb[0].mxu0 %v3580
        %v5563 = vpop.f32.mrb[0].mxu0
        %v5564 = vadd.f32 0.0, %v5563
        %v5565 = vpop.f32.mrb[0].mxu0
        %5566 = vmatprep.mubr.f32.mxu0 0.0
        %5567 = vmatmul.mubr.f32.gmra.mrb[0].mxu0 %v3581
        %v5568 = vpop.f32.mrb[0].mxu0
        %v5569 = vadd.f32 0.0, %v5568
        %v5570 = vpop.f32.mrb[0].mxu0
        %5571 = vmatprep.mubr.f32.mxu0 0.0
        %5572 = vmatmul.mubr.f32.gmra.mrb[0].mxu0 %v3582
        %v5573 = vpop.f32.mrb[0].mxu0
        %v5574 = vadd.f32 0.0, %v5573
        %v5575 = vpop.f32.mrb[0].mxu0
        %5576 = vmatprep.mubr.f32.mxu0 0.0
        %5577 = vmatmul.mubr.f32.gmra.mrb[0].mxu0 %v3583
        %v5578 = vpop.f32.mrb[0].mxu0
        %v5579 = vadd.f32 0.0, %v5578
        %v5580 = vpop.f32.mrb[0].mxu0
        %5581 = vmatprep.mubr.f32.mxu0 0.0
        %5582 = vmatmul.mubr.f32.gmra.mrb[0].mxu0 %v3584
        %v5583 = vpop.f32.mrb[0].mxu0
        %v5584 = vadd.f32 0.0, %v5583
        %v5585 = vpop.f32.mrb[0].mxu0
        %5586 = vmatprep.mubr.f32.mxu0 0.0
        %5587 = vmatmul.mubr.f32.gmra.mrb[0].mxu0 %v3585
        %v5588 = vpop.f32.mrb[0].mxu0
        %v5589 = vadd.f32 0.0, %v5588
        %v5590 = vpop.f32.mrb[0].mxu0
        %5591 = vmatprep.mubr.f32.mxu0 0.0
        %5592 = vmatmul.mubr.f32.gmra.mrb[0].mxu0 %v3586
        %v5593 = vpop.f32.mrb[0].mxu0
        %v5594 = vadd.f32 0.0, %v5593
        %v5595 = vpop.f32.mrb[0].mxu0
        %5596 = vmatprep.mubr.f32.mxu0 0.0
        %5597 = vmatmul.mubr.f32.gmra.mrb[0].mxu0 %v3587
        %v5598 = vpop.f32.mrb[0].mxu0
        %v5599 = vadd.f32 0.0, %v5598
        %v5600 = vpop.f32.mrb[0].mxu0
        %5601 = vmatprep.mubr.f32.mxu0 0.0
        %5602 = vmatmul.mubr.f32.gmra.mrb[0].mxu0 %v3588
        %v5603 = vpop.f32.mrb[0].mxu0
        %v5604 = vadd.f32 0.0, %v5603
        %v5605 = vpop.f32.mrb[0].mxu0
        %5606 = vmatprep.mubr.f32.mxu0 0.0
        %5607 = vmatmul.mubr.f32.gmra.mrb[0].mxu0 %v3589
        %v5608 = vpop.f32.mrb[0].mxu0
        %v5609 = vadd.f32 0.0, %v5608
        %v5610 = vpop.f32.mrb[0].mxu0
        %5611 = vmatprep.mubr.f32.mxu0 0.0
        %5612 = vmatmul.mubr.f32.gmra.mrb[0].mxu0 %v3590
        %v5613 = vpop.f32.mrb[0].mxu0
        %v5614 = vadd.f32 0.0, %v5613
        %v5615 = vpop.f32.mrb[0].mxu0
        %5616 = vmatprep.mubr.f32.mxu0 0.0
        %5617 = vmatmul.mubr.f32.gmra.mrb[0].mxu0 %v3591
        %v5618 = vpop.f32.mrb[0].mxu0
        %v5619 = vadd.f32 0.0, %v5618
        %v5620 = vpop.f32.mrb[0].mxu0
        %5621 = vmatprep.mubr.f32.mxu0 0.0
        %5622 = vmatmul.mubr.f32.gmra.mrb[0].mxu0 %v3592
        %v5623 = vpop.f32.mrb[0].mxu0
        %v5624 = vadd.f32 0.0, %v5623
        %v5625 = vpop.f32.mrb[0].mxu0
        %5626 = vmatprep.mubr.f32.mxu0 0.0
        %5627 = vmatmul.mubr.f32.gmra.mrb[0].mxu0 %v3593
        %v5628 = vpop.f32.mrb[0].mxu0
        %v5629 = vadd.f32 0.0, %v5628
        %v5630 = vpop.f32.mrb[0].mxu0
        %5631 = vmatprep.mubr.f32.mxu0 0.0
        %5632 = vmatmul.mubr.f32.gmra.mrb[0].mxu0 %v3594
        %v5633 = vpop.f32.mrb[0].mxu0
        %v5634 = vadd.f32 0.0, %v5633
        %v5635 = vpop.f32.mrb[0].mxu0
        %5636 = vmatprep.mubr.f32.mxu0 0.0
        %5637 = vmatmul.mubr.f32.gmra.mrb[0].mxu0 %v3595
        %v5638 = vpop.f32.mrb[0].mxu0
        %v5639 = vadd.f32 0.0, %v5638
        %v5640 = vpop.f32.mrb[0].mxu0
        %5641 = vmatprep.mubr.f32.mxu0 0.0
        %5642 = vmatmul.mubr.f32.gmra.mrb[0].mxu0 %v3596
        %v5643 = vpop.f32.mrb[0].mxu0
        %v5644 = vadd.f32 0.0, %v5643
        %v5645 = vpop.f32.mrb[0].mxu0
        %5646 = vmatprep.mubr.f32.mxu0 0.0
        %5647 = vmatmul.mubr.f32.gmra.mrb[0].mxu0 %v3597
        %v5648 = vpop.f32.mrb[0].mxu0
        %v5649 = vadd.f32 0.0, %v5648
        %v5650 = vpop.f32.mrb[0].mxu0
        %5651 = vmatprep.mubr.f32.mxu0 0.0
        %5652 = vmatmul.mubr.f32.gmra.mrb[0].mxu0 %v3598
        %v5653 = vpop.f32.mrb[0].mxu0
        %v5654 = vadd.f32 0.0, %v5653
        %v5655 = vpop.f32.mrb[0].mxu0
        %5656 = vmatprep.mubr.f32.mxu0 0.0
        %5657 = vmatmul.mubr.f32.gmra.mrb[0].mxu0 %v3599
        %v5658 = vpop.f32.mrb[0].mxu0
        %v5659 = vadd.f32 0.0, %v5658
        %v5660 = vpop.f32.mrb[0].mxu0
        %5661 = vmatprep.mubr.f32.mxu0 0.0
        %5662 = vmatmul.mubr.f32.gmra.mrb[0].mxu0 %v3600
        %v5663 = vpop.f32.mrb[0].mxu0
        %v5664 = vadd.f32 0.0, %v5663
        %v5665 = vpop.f32.mrb[0].mxu0
        %5666 = vdwg.mxu0
        %v5667 = vmul.f32 %v3684, %v4709
        %v5668 = vmul.f32 %v3689, %v4714
        %v5669 = vmul.f32 %v3694, %v4719
        %v5670 = vmul.f32 %v3699, %v4724
        %v5671 = vmul.f32 %v3704, %v4729
        %v5672 = vmul.f32 %v3709, %v4734
        %v5673 = vmul.f32 %v3714, %v4739
        %v5674 = vmul.f32 %v3719, %v4744
        %v5675 = vmul.f32 %v3724, %v4749
        %v5676 = vmul.f32 %v3729, %v4754
        %v5677 = vmul.f32 %v3734, %v4759
        %v5678 = vmul.f32 %v3739, %v4764
        %v5679 = vmul.f32 %v3744, %v4769
        %v5680 = vmul.f32 %v3749, %v4774
        %v5681 = vmul.f32 %v3754, %v4779
        %v5682 = vmul.f32 %v3759, %v4784
        %v5683 = vmul.f32 %v3764, %v4789
        %v5684 = vmul.f32 %v3769, %v4794
        %v5685 = vmul.f32 %v3774, %v4799
        %v5686 = vmul.f32 %v3779, %v4804
        %v5687 = vmul.f32 %v3784, %v4809
        %v5688 = vmul.f32 %v3789, %v4814
        %v5689 = vmul.f32 %v3794, %v4819
        %v5690 = vmul.f32 %v3799, %v4824
        %v5691 = vmul.f32 %v3804, %v4829
        %v5692 = vmul.f32 %v3809, %v4834
        %v5693 = vmul.f32 %v3814, %v4839
        %v5694 = vmul.f32 %v3819, %v4844
        %v5695 = vmul.f32 %v3824, %v4849
        %v5696 = vmul.f32 %v3829, %v4854
        %v5697 = vmul.f32 %v3834, %v4859
        %v5698 = vmul.f32 %v3839, %v4864
        %v5699 = vmul.f32 %v3844, %v4869
        %v5700 = vmul.f32 %v3849, %v4874
        %v5701 = vmul.f32 %v3854, %v4879
        %v5702 = vmul.f32 %v3859, %v4884
        %v5703 = vmul.f32 %v3864, %v4889
        %v5704 = vmul.f32 %v3869, %v4894
        %v5705 = vmul.f32 %v3874, %v4899
        %v5706 = vmul.f32 %v3879, %v4904
        %v5707 = vmul.f32 %v3884, %v4909
        %v5708 = vmul.f32 %v3889, %v4914
        %v5709 = vmul.f32 %v3894, %v4919
        %v5710 = vmul.f32 %v3899, %v4924
        %v5711 = vmul.f32 %v3904, %v4929
        %v5712 = vmul.f32 %v3909, %v4934
        %v5713 = vmul.f32 %v3914, %v4939
        %v5714 = vmul.f32 %v3919, %v4944
        %v5715 = vmul.f32 %v3924, %v4949
        %v5716 = vmul.f32 %v3929, %v4954
        %v5717 = vmul.f32 %v3934, %v4959
        %v5718 = vmul.f32 %v3939, %v4964
        %v5719 = vmul.f32 %v3944, %v4969
        %v5720 = vmul.f32 %v3949, %v4974
        %v5721 = vmul.f32 %v3954, %v4979
        %v5722 = vmul.f32 %v3959, %v4984
        %v5723 = vmul.f32 %v3964, %v4989
        %v5724 = vmul.f32 %v3969, %v4994
        %v5725 = vmul.f32 %v3974, %v4999
        %v5726 = vmul.f32 %v3979, %v5004
        %v5727 = vmul.f32 %v3984, %v5009
        %v5728 = vmul.f32 %v3989, %v5014
        %v5729 = vmul.f32 %v3994, %v5019
        %v5730 = vmul.f32 %v3999, %v5024
        %v5731 = vmul.f32 %v4004, %v5029
        %v5732 = vmul.f32 %v4009, %v5034
        %v5733 = vmul.f32 %v4014, %v5039
        %v5734 = vmul.f32 %v4019, %v5044
        %v5735 = vmul.f32 %v4024, %v5049
        %v5736 = vmul.f32 %v4029, %v5054
        %v5737 = vmul.f32 %v4034, %v5059
        %v5738 = vmul.f32 %v4039, %v5064
        %v5739 = vmul.f32 %v4044, %v5069
        %v5740 = vmul.f32 %v4049, %v5074
        %v5741 = vmul.f32 %v4054, %v5079
        %v5742 = vmul.f32 %v4059, %v5084
        %v5743 = vmul.f32 %v4064, %v5089
        %v5744 = vmul.f32 %v4069, %v5094
        %v5745 = vmul.f32 %v4074, %v5099
        %v5746 = vmul.f32 %v4079, %v5104
        %v5747 = vmul.f32 %v4084, %v5109
        %v5748 = vmul.f32 %v4089, %v5114
        %v5749 = vmul.f32 %v4094, %v5119
        %v5750 = vmul.f32 %v4099, %v5124
        %v5751 = vmul.f32 %v4104, %v5129
        %v5752 = vmul.f32 %v4109, %v5134
        %v5753 = vmul.f32 %v4114, %v5139
        %v5754 = vmul.f32 %v4119, %v5144
        %v5755 = vmul.f32 %v4124, %v5149
        %v5756 = vmul.f32 %v4129, %v5154
        %v5757 = vmul.f32 %v4134, %v5159
        %v5758 = vmul.f32 %v4139, %v5164
        %v5759 = vmul.f32 %v4144, %v5169
        %v5760 = vmul.f32 %v4149, %v5174
        %v5761 = vmul.f32 %v4154, %v5179
        %v5762 = vmul.f32 %v4159, %v5184
        %v5763 = vmul.f32 %v4164, %v5189
        %v5764 = vmul.f32 %v4169, %v5194
        %v5765 = vmul.f32 %v4174, %v5199
        %v5766 = vmul.f32 %v4179, %v5204
        %v5767 = vmul.f32 %v4184, %v5209
        %v5768 = vmul.f32 %v4189, %v5214
        %v5769 = vmul.f32 %v4194, %v5219
        %v5770 = vmul.f32 %v4199, %v5224
        %v5771 = vmul.f32 %v4204, %v5229
        %v5772 = vmul.f32 %v4209, %v5234
        %v5773 = vmul.f32 %v4214, %v5239
        %v5774 = vmul.f32 %v4219, %v5244
        %v5775 = vmul.f32 %v4224, %v5249
        %v5776 = vmul.f32 %v4229, %v5254
        %v5777 = vmul.f32 %v4234, %v5259
        %v5778 = vmul.f32 %v4239, %v5264
        %v5779 = vmul.f32 %v4244, %v5269
        %v5780 = vmul.f32 %v4249, %v5274
        %v5781 = vmul.f32 %v4254, %v5279
        %v5782 = vmul.f32 %v4259, %v5284
        %v5783 = vmul.f32 %v4264, %v5289
        %v5784 = vmul.f32 %v4269, %v5294
        %v5785 = vmul.f32 %v4274, %v5299
        %v5786 = vmul.f32 %v4279, %v5304
        %v5787 = vmul.f32 %v4284, %v5309
        %v5788 = vmul.f32 %v4289, %v5314
        %v5789 = vmul.f32 %v4294, %v5319
        %v5790 = vmul.f32 %v4299, %v5324
        %v5791 = vmul.f32 %v4304, %v5329
        %v5792 = vmul.f32 %v4309, %v5334
        %v5793 = vmul.f32 %v4314, %v5339
        %v5794 = vmul.f32 %v4319, %v5344
        %v5795 = vmul.f32 %v4324, %v5349
        %v5796 = vmul.f32 %v4329, %v5354
        %v5797 = vmul.f32 %v4334, %v5359
        %v5798 = vmul.f32 %v4339, %v5364
        %v5799 = vmul.f32 %v4344, %v5369
        %v5800 = vmul.f32 %v4349, %v5374
        %v5801 = vmul.f32 %v4354, %v5379
        %v5802 = vmul.f32 %v4359, %v5384
        %v5803 = vmul.f32 %v4364, %v5389
        %v5804 = vmul.f32 %v4369, %v5394
        %v5805 = vmul.f32 %v4374, %v5399
        %v5806 = vmul.f32 %v4379, %v5404
        %v5807 = vmul.f32 %v4384, %v5409
        %v5808 = vmul.f32 %v4389, %v5414
        %v5809 = vmul.f32 %v4394, %v5419
        %v5810 = vmul.f32 %v4399, %v5424
        %v5811 = vmul.f32 %v4404, %v5429
        %v5812 = vmul.f32 %v4409, %v5434
        %v5813 = vmul.f32 %v4414, %v5439
        %v5814 = vmul.f32 %v4419, %v5444
        %v5815 = vmul.f32 %v4424, %v5449
        %v5816 = vmul.f32 %v4429, %v5454
        %v5817 = vmul.f32 %v4434, %v5459
        %v5818 = vmul.f32 %v4439, %v5464
        %v5819 = vmul.f32 %v4444, %v5469
        %v5820 = vmul.f32 %v4449, %v5474
        %v5821 = vmul.f32 %v4454, %v5479
        %v5822 = vmul.f32 %v4459, %v5484
        %v5823 = vmul.f32 %v4464, %v5489
        %v5824 = vmul.f32 %v4469, %v5494
        %v5825 = vmul.f32 %v4474, %v5499
        %v5826 = vmul.f32 %v4479, %v5504
        %v5827 = vmul.f32 %v4484, %v5509
        %v5828 = vmul.f32 %v4489, %v5514
        %v5829 = vmul.f32 %v4494, %v5519
        %v5830 = vmul.f32 %v4499, %v5524
        %v5831 = vmul.f32 %v4504, %v5529
        %v5832 = vmul.f32 %v4509, %v5534
        %v5833 = vmul.f32 %v4514, %v5539
        %v5834 = vmul.f32 %v4519, %v5544
        %v5835 = vmul.f32 %v4524, %v5549
        %v5836 = vmul.f32 %v4529, %v5554
        %v5837 = vmul.f32 %v4534, %v5559
        %v5838 = vmul.f32 %v4539, %v5564
        %v5839 = vmul.f32 %v4544, %v5569
        %v5840 = vmul.f32 %v4549, %v5574
        %v5841 = vmul.f32 %v4554, %v5579
        %v5842 = vmul.f32 %v4559, %v5584
        %v5843 = vmul.f32 %v4564, %v5589
        %v5844 = vmul.f32 %v4569, %v5594
        %v5845 = vmul.f32 %v4574, %v5599
        %v5846 = vmul.f32 %v4579, %v5604
        %v5847 = vmul.f32 %v4584, %v5609
        %v5848 = vmul.f32 %v4589, %v5614
        %v5849 = vmul.f32 %v4594, %v5619
        %v5850 = vmul.f32 %v4599, %v5624
        %v5851 = vmul.f32 %v4604, %v5629
        %v5852 = vmul.f32 %v4609, %v5634
        %v5853 = vmul.f32 %v4614, %v5639
        %v5854 = vmul.f32 %v4619, %v5644
        %v5855 = vmul.f32 %v4624, %v5649
        %v5856 = vmul.f32 %v4629, %v5654
        %v5857 = vmul.f32 %v4634, %v5659
        %v5858 = vmul.f32 %v4639, %v5664
        %5859 = vadd.xlane.f32.xlu0 %v5667
        %v5860 = vpop.xlane.xlu0 %5859
        %5861 = vadd.xlane.f32.xlu0 %v5668
        %v5862 = vpop.xlane.xlu0 %5861
        %5863 = vadd.xlane.f32.xlu0 %v5669
        %v5864 = vpop.xlane.xlu0 %5863
        %5865 = vadd.xlane.f32.xlu0 %v5670
        %v5866 = vpop.xlane.xlu0 %5865
        %5867 = vadd.xlane.f32.xlu0 %v5671
        %v5868 = vpop.xlane.xlu0 %5867
        %5869 = vadd.xlane.f32.xlu0 %v5672
        %v5870 = vpop.xlane.xlu0 %5869
        %5871 = vadd.xlane.f32.xlu0 %v5673
        %v5872 = vpop.xlane.xlu0 %5871
        %5873 = vadd.xlane.f32.xlu0 %v5674
        %v5874 = vpop.xlane.xlu0 %5873
        %5875 = vadd.xlane.f32.xlu0 %v5675
        %v5876 = vpop.xlane.xlu0 %5875
        %5877 = vadd.xlane.f32.xlu0 %v5676
        %v5878 = vpop.xlane.xlu0 %5877
        %5879 = vadd.xlane.f32.xlu0 %v5677
        %v5880 = vpop.xlane.xlu0 %5879
        %5881 = vadd.xlane.f32.xlu0 %v5678
        %v5882 = vpop.xlane.xlu0 %5881
        %5883 = vadd.xlane.f32.xlu0 %v5679
        %v5884 = vpop.xlane.xlu0 %5883
        %5885 = vadd.xlane.f32.xlu0 %v5680
        %v5886 = vpop.xlane.xlu0 %5885
        %5887 = vadd.xlane.f32.xlu0 %v5681
        %v5888 = vpop.xlane.xlu0 %5887
        %5889 = vadd.xlane.f32.xlu0 %v5682
        %v5890 = vpop.xlane.xlu0 %5889
        %5891 = vadd.xlane.f32.xlu0 %v5683
        %v5892 = vpop.xlane.xlu0 %5891
        %5893 = vadd.xlane.f32.xlu0 %v5684
        %v5894 = vpop.xlane.xlu0 %5893
        %5895 = vadd.xlane.f32.xlu0 %v5685
        %v5896 = vpop.xlane.xlu0 %5895
        %5897 = vadd.xlane.f32.xlu0 %v5686
        %v5898 = vpop.xlane.xlu0 %5897
        %5899 = vadd.xlane.f32.xlu0 %v5687
        %v5900 = vpop.xlane.xlu0 %5899
        %5901 = vadd.xlane.f32.xlu0 %v5688
        %v5902 = vpop.xlane.xlu0 %5901
        %5903 = vadd.xlane.f32.xlu0 %v5689
        %v5904 = vpop.xlane.xlu0 %5903
        %5905 = vadd.xlane.f32.xlu0 %v5690
        %v5906 = vpop.xlane.xlu0 %5905
        %5907 = vadd.xlane.f32.xlu0 %v5691
        %v5908 = vpop.xlane.xlu0 %5907
        %5909 = vadd.xlane.f32.xlu0 %v5692
        %v5910 = vpop.xlane.xlu0 %5909
        %5911 = vadd.xlane.f32.xlu0 %v5693
        %v5912 = vpop.xlane.xlu0 %5911
        %5913 = vadd.xlane.f32.xlu0 %v5694
        %v5914 = vpop.xlane.xlu0 %5913
        %5915 = vadd.xlane.f32.xlu0 %v5695
        %v5916 = vpop.xlane.xlu0 %5915
        %5917 = vadd.xlane.f32.xlu0 %v5696
        %v5918 = vpop.xlane.xlu0 %5917
        %5919 = vadd.xlane.f32.xlu0 %v5697
        %v5920 = vpop.xlane.xlu0 %5919
        %5921 = vadd.xlane.f32.xlu0 %v5698
        %v5922 = vpop.xlane.xlu0 %5921
        %5923 = vadd.xlane.f32.xlu0 %v5699
        %v5924 = vpop.xlane.xlu0 %5923
        %5925 = vadd.xlane.f32.xlu0 %v5700
        %v5926 = vpop.xlane.xlu0 %5925
        %5927 = vadd.xlane.f32.xlu0 %v5701
        %v5928 = vpop.xlane.xlu0 %5927
        %5929 = vadd.xlane.f32.xlu0 %v5702
        %v5930 = vpop.xlane.xlu0 %5929
        %5931 = vadd.xlane.f32.xlu0 %v5703
        %v5932 = vpop.xlane.xlu0 %5931
        %5933 = vadd.xlane.f32.xlu0 %v5704
        %v5934 = vpop.xlane.xlu0 %5933
        %5935 = vadd.xlane.f32.xlu0 %v5705
        %v5936 = vpop.xlane.xlu0 %5935
        %5937 = vadd.xlane.f32.xlu0 %v5706
        %v5938 = vpop.xlane.xlu0 %5937
        %5939 = vadd.xlane.f32.xlu0 %v5707
        %v5940 = vpop.xlane.xlu0 %5939
        %5941 = vadd.xlane.f32.xlu0 %v5708
        %v5942 = vpop.xlane.xlu0 %5941
        %5943 = vadd.xlane.f32.xlu0 %v5709
        %v5944 = vpop.xlane.xlu0 %5943
        %5945 = vadd.xlane.f32.xlu0 %v5710
        %v5946 = vpop.xlane.xlu0 %5945
        %5947 = vadd.xlane.f32.xlu0 %v5711
        %v5948 = vpop.xlane.xlu0 %5947
        %5949 = vadd.xlane.f32.xlu0 %v5712
        %v5950 = vpop.xlane.xlu0 %5949
        %5951 = vadd.xlane.f32.xlu0 %v5713
        %v5952 = vpop.xlane.xlu0 %5951
        %5953 = vadd.xlane.f32.xlu0 %v5714
        %v5954 = vpop.xlane.xlu0 %5953
        %5955 = vadd.xlane.f32.xlu0 %v5715
        %v5956 = vpop.xlane.xlu0 %5955
        %5957 = vadd.xlane.f32.xlu0 %v5716
        %v5958 = vpop.xlane.xlu0 %5957
        %5959 = vadd.xlane.f32.xlu0 %v5717
        %v5960 = vpop.xlane.xlu0 %5959
        %5961 = vadd.xlane.f32.xlu0 %v5718
        %v5962 = vpop.xlane.xlu0 %5961
        %5963 = vadd.xlane.f32.xlu0 %v5719
        %v5964 = vpop.xlane.xlu0 %5963
        %5965 = vadd.xlane.f32.xlu0 %v5720
        %v5966 = vpop.xlane.xlu0 %5965
        %5967 = vadd.xlane.f32.xlu0 %v5721
        %v5968 = vpop.xlane.xlu0 %5967
        %5969 = vadd.xlane.f32.xlu0 %v5722
        %v5970 = vpop.xlane.xlu0 %5969
        %5971 = vadd.xlane.f32.xlu0 %v5723
        %v5972 = vpop.xlane.xlu0 %5971
        %5973 = vadd.xlane.f32.xlu0 %v5724
        %v5974 = vpop.xlane.xlu0 %5973
        %5975 = vadd.xlane.f32.xlu0 %v5725
        %v5976 = vpop.xlane.xlu0 %5975
        %5977 = vadd.xlane.f32.xlu0 %v5726
        %v5978 = vpop.xlane.xlu0 %5977
        %5979 = vadd.xlane.f32.xlu0 %v5727
        %v5980 = vpop.xlane.xlu0 %5979
        %5981 = vadd.xlane.f32.xlu0 %v5728
        %v5982 = vpop.xlane.xlu0 %5981
        %5983 = vadd.xlane.f32.xlu0 %v5729
        %v5984 = vpop.xlane.xlu0 %5983
        %5985 = vadd.xlane.f32.xlu0 %v5730
        %v5986 = vpop.xlane.xlu0 %5985
        %5987 = vadd.xlane.f32.xlu0 %v5731
        %v5988 = vpop.xlane.xlu0 %5987
        %5989 = vadd.xlane.f32.xlu0 %v5732
        %v5990 = vpop.xlane.xlu0 %5989
        %5991 = vadd.xlane.f32.xlu0 %v5733
        %v5992 = vpop.xlane.xlu0 %5991
        %5993 = vadd.xlane.f32.xlu0 %v5734
        %v5994 = vpop.xlane.xlu0 %5993
        %5995 = vadd.xlane.f32.xlu0 %v5735
        %v5996 = vpop.xlane.xlu0 %5995
        %5997 = vadd.xlane.f32.xlu0 %v5736
        %v5998 = vpop.xlane.xlu0 %5997
        %5999 = vadd.xlane.f32.xlu0 %v5737
        %v6000 = vpop.xlane.xlu0 %5999
        %6001 = vadd.xlane.f32.xlu0 %v5738
        %v6002 = vpop.xlane.xlu0 %6001
        %6003 = vadd.xlane.f32.xlu0 %v5739
        %v6004 = vpop.xlane.xlu0 %6003
        %6005 = vadd.xlane.f32.xlu0 %v5740
        %v6006 = vpop.xlane.xlu0 %6005
        %6007 = vadd.xlane.f32.xlu0 %v5741
        %v6008 = vpop.xlane.xlu0 %6007
        %6009 = vadd.xlane.f32.xlu0 %v5742
        %v6010 = vpop.xlane.xlu0 %6009
        %6011 = vadd.xlane.f32.xlu0 %v5743
        %v6012 = vpop.xlane.xlu0 %6011
        %6013 = vadd.xlane.f32.xlu0 %v5744
        %v6014 = vpop.xlane.xlu0 %6013
        %6015 = vadd.xlane.f32.xlu0 %v5745
        %v6016 = vpop.xlane.xlu0 %6015
        %6017 = vadd.xlane.f32.xlu0 %v5746
        %v6018 = vpop.xlane.xlu0 %6017
        %6019 = vadd.xlane.f32.xlu0 %v5747
        %v6020 = vpop.xlane.xlu0 %6019
        %6021 = vadd.xlane.f32.xlu0 %v5748
        %v6022 = vpop.xlane.xlu0 %6021
        %6023 = vadd.xlane.f32.xlu0 %v5749
        %v6024 = vpop.xlane.xlu0 %6023
        %6025 = vadd.xlane.f32.xlu0 %v5750
        %v6026 = vpop.xlane.xlu0 %6025
        %6027 = vadd.xlane.f32.xlu0 %v5751
        %v6028 = vpop.xlane.xlu0 %6027
        %6029 = vadd.xlane.f32.xlu0 %v5752
        %v6030 = vpop.xlane.xlu0 %6029
        %6031 = vadd.xlane.f32.xlu0 %v5753
        %v6032 = vpop.xlane.xlu0 %6031
        %6033 = vadd.xlane.f32.xlu0 %v5754
        %v6034 = vpop.xlane.xlu0 %6033
        %6035 = vadd.xlane.f32.xlu0 %v5755
        %v6036 = vpop.xlane.xlu0 %6035
        %6037 = vadd.xlane.f32.xlu0 %v5756
        %v6038 = vpop.xlane.xlu0 %6037
        %6039 = vadd.xlane.f32.xlu0 %v5757
        %v6040 = vpop.xlane.xlu0 %6039
        %6041 = vadd.xlane.f32.xlu0 %v5758
        %v6042 = vpop.xlane.xlu0 %6041
        %6043 = vadd.xlane.f32.xlu0 %v5759
        %v6044 = vpop.xlane.xlu0 %6043
        %6045 = vadd.xlane.f32.xlu0 %v5760
        %v6046 = vpop.xlane.xlu0 %6045
        %6047 = vadd.xlane.f32.xlu0 %v5761
        %v6048 = vpop.xlane.xlu0 %6047
        %6049 = vadd.xlane.f32.xlu0 %v5762
        %v6050 = vpop.xlane.xlu0 %6049
        %6051 = vadd.xlane.f32.xlu0 %v5763
        %v6052 = vpop.xlane.xlu0 %6051
        %6053 = vadd.xlane.f32.xlu0 %v5764
        %v6054 = vpop.xlane.xlu0 %6053
        %6055 = vadd.xlane.f32.xlu0 %v5765
        %v6056 = vpop.xlane.xlu0 %6055
        %6057 = vadd.xlane.f32.xlu0 %v5766
        %v6058 = vpop.xlane.xlu0 %6057
        %6059 = vadd.xlane.f32.xlu0 %v5767
        %v6060 = vpop.xlane.xlu0 %6059
        %6061 = vadd.xlane.f32.xlu0 %v5768
        %v6062 = vpop.xlane.xlu0 %6061
        %6063 = vadd.xlane.f32.xlu0 %v5769
        %v6064 = vpop.xlane.xlu0 %6063
        %6065 = vadd.xlane.f32.xlu0 %v5770
        %v6066 = vpop.xlane.xlu0 %6065
        %6067 = vadd.xlane.f32.xlu0 %v5771
        %v6068 = vpop.xlane.xlu0 %6067
        %6069 = vadd.xlane.f32.xlu0 %v5772
        %v6070 = vpop.xlane.xlu0 %6069
        %6071 = vadd.xlane.f32.xlu0 %v5773
        %v6072 = vpop.xlane.xlu0 %6071
        %6073 = vadd.xlane.f32.xlu0 %v5774
        %v6074 = vpop.xlane.xlu0 %6073
        %6075 = vadd.xlane.f32.xlu0 %v5775
        %v6076 = vpop.xlane.xlu0 %6075
        %6077 = vadd.xlane.f32.xlu0 %v5776
        %v6078 = vpop.xlane.xlu0 %6077
        %6079 = vadd.xlane.f32.xlu0 %v5777
        %v6080 = vpop.xlane.xlu0 %6079
        %6081 = vadd.xlane.f32.xlu0 %v5778
        %v6082 = vpop.xlane.xlu0 %6081
        %6083 = vadd.xlane.f32.xlu0 %v5779
        %v6084 = vpop.xlane.xlu0 %6083
        %6085 = vadd.xlane.f32.xlu0 %v5780
        %v6086 = vpop.xlane.xlu0 %6085
        %6087 = vadd.xlane.f32.xlu0 %v5781
        %v6088 = vpop.xlane.xlu0 %6087
        %6089 = vadd.xlane.f32.xlu0 %v5782
        %v6090 = vpop.xlane.xlu0 %6089
        %6091 = vadd.xlane.f32.xlu0 %v5783
        %v6092 = vpop.xlane.xlu0 %6091
        %6093 = vadd.xlane.f32.xlu0 %v5784
        %v6094 = vpop.xlane.xlu0 %6093
        %6095 = vadd.xlane.f32.xlu0 %v5785
        %v6096 = vpop.xlane.xlu0 %6095
        %6097 = vadd.xlane.f32.xlu0 %v5786
        %v6098 = vpop.xlane.xlu0 %6097
        %6099 = vadd.xlane.f32.xlu0 %v5787
        %v6100 = vpop.xlane.xlu0 %6099
        %6101 = vadd.xlane.f32.xlu0 %v5788
        %v6102 = vpop.xlane.xlu0 %6101
        %6103 = vadd.xlane.f32.xlu0 %v5789
        %v6104 = vpop.xlane.xlu0 %6103
        %6105 = vadd.xlane.f32.xlu0 %v5790
        %v6106 = vpop.xlane.xlu0 %6105
        %6107 = vadd.xlane.f32.xlu0 %v5791
        %v6108 = vpop.xlane.xlu0 %6107
        %6109 = vadd.xlane.f32.xlu0 %v5792
        %v6110 = vpop.xlane.xlu0 %6109
        %6111 = vadd.xlane.f32.xlu0 %v5793
        %v6112 = vpop.xlane.xlu0 %6111
        %6113 = vadd.xlane.f32.xlu0 %v5794
        %v6114 = vpop.xlane.xlu0 %6113
        %6115 = vadd.xlane.f32.xlu0 %v5795
        %v6116 = vpop.xlane.xlu0 %6115
        %6117 = vadd.xlane.f32.xlu0 %v5796
        %v6118 = vpop.xlane.xlu0 %6117
        %6119 = vadd.xlane.f32.xlu0 %v5797
        %v6120 = vpop.xlane.xlu0 %6119
        %6121 = vadd.xlane.f32.xlu0 %v5798
        %v6122 = vpop.xlane.xlu0 %6121
        %6123 = vadd.xlane.f32.xlu0 %v5799
        %v6124 = vpop.xlane.xlu0 %6123
        %6125 = vadd.xlane.f32.xlu0 %v5800
        %v6126 = vpop.xlane.xlu0 %6125
        %6127 = vadd.xlane.f32.xlu0 %v5801
        %v6128 = vpop.xlane.xlu0 %6127
        %6129 = vadd.xlane.f32.xlu0 %v5802
        %v6130 = vpop.xlane.xlu0 %6129
        %6131 = vadd.xlane.f32.xlu0 %v5803
        %v6132 = vpop.xlane.xlu0 %6131
        %6133 = vadd.xlane.f32.xlu0 %v5804
        %v6134 = vpop.xlane.xlu0 %6133
        %6135 = vadd.xlane.f32.xlu0 %v5805
        %v6136 = vpop.xlane.xlu0 %6135
        %6137 = vadd.xlane.f32.xlu0 %v5806
        %v6138 = vpop.xlane.xlu0 %6137
        %6139 = vadd.xlane.f32.xlu0 %v5807
        %v6140 = vpop.xlane.xlu0 %6139
        %6141 = vadd.xlane.f32.xlu0 %v5808
        %v6142 = vpop.xlane.xlu0 %6141
        %6143 = vadd.xlane.f32.xlu0 %v5809
        %v6144 = vpop.xlane.xlu0 %6143
        %6145 = vadd.xlane.f32.xlu0 %v5810
        %v6146 = vpop.xlane.xlu0 %6145
        %6147 = vadd.xlane.f32.xlu0 %v5811
        %v6148 = vpop.xlane.xlu0 %6147
        %6149 = vadd.xlane.f32.xlu0 %v5812
        %v6150 = vpop.xlane.xlu0 %6149
        %6151 = vadd.xlane.f32.xlu0 %v5813
        %v6152 = vpop.xlane.xlu0 %6151
        %6153 = vadd.xlane.f32.xlu0 %v5814
        %v6154 = vpop.xlane.xlu0 %6153
        %6155 = vadd.xlane.f32.xlu0 %v5815
        %v6156 = vpop.xlane.xlu0 %6155
        %6157 = vadd.xlane.f32.xlu0 %v5816
        %v6158 = vpop.xlane.xlu0 %6157
        %6159 = vadd.xlane.f32.xlu0 %v5817
        %v6160 = vpop.xlane.xlu0 %6159
        %6161 = vadd.xlane.f32.xlu0 %v5818
        %v6162 = vpop.xlane.xlu0 %6161
        %6163 = vadd.xlane.f32.xlu0 %v5819
        %v6164 = vpop.xlane.xlu0 %6163
        %6165 = vadd.xlane.f32.xlu0 %v5820
        %v6166 = vpop.xlane.xlu0 %6165
        %6167 = vadd.xlane.f32.xlu0 %v5821
        %v6168 = vpop.xlane.xlu0 %6167
        %6169 = vadd.xlane.f32.xlu0 %v5822
        %v6170 = vpop.xlane.xlu0 %6169
        %6171 = vadd.xlane.f32.xlu0 %v5823
        %v6172 = vpop.xlane.xlu0 %6171
        %6173 = vadd.xlane.f32.xlu0 %v5824
        %v6174 = vpop.xlane.xlu0 %6173
        %6175 = vadd.xlane.f32.xlu0 %v5825
        %v6176 = vpop.xlane.xlu0 %6175
        %6177 = vadd.xlane.f32.xlu0 %v5826
        %v6178 = vpop.xlane.xlu0 %6177
        %6179 = vadd.xlane.f32.xlu0 %v5827
        %v6180 = vpop.xlane.xlu0 %6179
        %6181 = vadd.xlane.f32.xlu0 %v5828
        %v6182 = vpop.xlane.xlu0 %6181
        %6183 = vadd.xlane.f32.xlu0 %v5829
        %v6184 = vpop.xlane.xlu0 %6183
        %6185 = vadd.xlane.f32.xlu0 %v5830
        %v6186 = vpop.xlane.xlu0 %6185
        %6187 = vadd.xlane.f32.xlu0 %v5831
        %v6188 = vpop.xlane.xlu0 %6187
        %6189 = vadd.xlane.f32.xlu0 %v5832
        %v6190 = vpop.xlane.xlu0 %6189
        %6191 = vadd.xlane.f32.xlu0 %v5833
        %v6192 = vpop.xlane.xlu0 %6191
        %6193 = vadd.xlane.f32.xlu0 %v5834
        %v6194 = vpop.xlane.xlu0 %6193
        %6195 = vadd.xlane.f32.xlu0 %v5835
        %v6196 = vpop.xlane.xlu0 %6195
        %6197 = vadd.xlane.f32.xlu0 %v5836
        %v6198 = vpop.xlane.xlu0 %6197
        %6199 = vadd.xlane.f32.xlu0 %v5837
        %v6200 = vpop.xlane.xlu0 %6199
        %6201 = vadd.xlane.f32.xlu0 %v5838
        %v6202 = vpop.xlane.xlu0 %6201
        %6203 = vadd.xlane.f32.xlu0 %v5839
        %v6204 = vpop.xlane.xlu0 %6203
        %6205 = vadd.xlane.f32.xlu0 %v5840
        %v6206 = vpop.xlane.xlu0 %6205
        %6207 = vadd.xlane.f32.xlu0 %v5841
        %v6208 = vpop.xlane.xlu0 %6207
        %6209 = vadd.xlane.f32.xlu0 %v5842
        %v6210 = vpop.xlane.xlu0 %6209
        %6211 = vadd.xlane.f32.xlu0 %v5843
        %v6212 = vpop.xlane.xlu0 %6211
        %6213 = vadd.xlane.f32.xlu0 %v5844
        %v6214 = vpop.xlane.xlu0 %6213
        %6215 = vadd.xlane.f32.xlu0 %v5845
        %v6216 = vpop.xlane.xlu0 %6215
        %6217 = vadd.xlane.f32.xlu0 %v5846
        %v6218 = vpop.xlane.xlu0 %6217
        %6219 = vadd.xlane.f32.xlu0 %v5847
        %v6220 = vpop.xlane.xlu0 %6219
        %6221 = vadd.xlane.f32.xlu0 %v5848
        %v6222 = vpop.xlane.xlu0 %6221
        %6223 = vadd.xlane.f32.xlu0 %v5849
        %v6224 = vpop.xlane.xlu0 %6223
        %6225 = vadd.xlane.f32.xlu0 %v5850
        %v6226 = vpop.xlane.xlu0 %6225
        %6227 = vadd.xlane.f32.xlu0 %v5851
        %v6228 = vpop.xlane.xlu0 %6227
        %6229 = vadd.xlane.f32.xlu0 %v5852
        %v6230 = vpop.xlane.xlu0 %6229
        %6231 = vadd.xlane.f32.xlu0 %v5853
        %v6232 = vpop.xlane.xlu0 %6231
        %6233 = vadd.xlane.f32.xlu0 %v5854
        %v6234 = vpop.xlane.xlu0 %6233
        %6235 = vadd.xlane.f32.xlu0 %v5855
        %v6236 = vpop.xlane.xlu0 %6235
        %6237 = vadd.xlane.f32.xlu0 %v5856
        %v6238 = vpop.xlane.xlu0 %6237
        %6239 = vadd.xlane.f32.xlu0 %v5857
        %v6240 = vpop.xlane.xlu0 %6239
        %6241 = vadd.xlane.f32.xlu0 %v5858
        %v6242 = vpop.xlane.xlu0 %6241
        %v6243 = vmin.f32 %v5860, 0.0
        %v6244 = vmin.f32 %v5862, 0.0
        %v6245 = vmin.f32 %v5864, 0.0
        %v6246 = vmin.f32 %v5866, 0.0
        %v6247 = vmin.f32 %v5868, 0.0
        %v6248 = vmin.f32 %v5870, 0.0
        %v6249 = vmin.f32 %v5872, 0.0
        %v6250 = vmin.f32 %v5874, 0.0
        %v6251 = vmin.f32 %v5876, 0.0
        %v6252 = vmin.f32 %v5878, 0.0
        %v6253 = vmin.f32 %v5880, 0.0
        %v6254 = vmin.f32 %v5882, 0.0
        %v6255 = vmin.f32 %v5884, 0.0
        %v6256 = vmin.f32 %v5886, 0.0
        %v6257 = vmin.f32 %v5888, 0.0
        %v6258 = vmin.f32 %v5890, 0.0
        %v6259 = vmin.f32 %v5892, 0.0
        %v6260 = vmin.f32 %v5894, 0.0
        %v6261 = vmin.f32 %v5896, 0.0
        %v6262 = vmin.f32 %v5898, 0.0
        %v6263 = vmin.f32 %v5900, 0.0
        %v6264 = vmin.f32 %v5902, 0.0
        %v6265 = vmin.f32 %v5904, 0.0
        %v6266 = vmin.f32 %v5906, 0.0
        %v6267 = vmin.f32 %v5908, 0.0
        %v6268 = vmin.f32 %v5910, 0.0
        %v6269 = vmin.f32 %v5912, 0.0
        %v6270 = vmin.f32 %v5914, 0.0
        %v6271 = vmin.f32 %v5916, 0.0
        %v6272 = vmin.f32 %v5918, 0.0
        %v6273 = vmin.f32 %v5920, 0.0
        %v6274 = vmin.f32 %v5922, 0.0
        %v6275 = vmin.f32 %v5924, 0.0
        %v6276 = vmin.f32 %v5926, 0.0
        %v6277 = vmin.f32 %v5928, 0.0
        %v6278 = vmin.f32 %v5930, 0.0
        %v6279 = vmin.f32 %v5932, 0.0
        %v6280 = vmin.f32 %v5934, 0.0
        %v6281 = vmin.f32 %v5936, 0.0
        %v6282 = vmin.f32 %v5938, 0.0
        %v6283 = vmin.f32 %v5940, 0.0
        %v6284 = vmin.f32 %v5942, 0.0
        %v6285 = vmin.f32 %v5944, 0.0
        %v6286 = vmin.f32 %v5946, 0.0
        %v6287 = vmin.f32 %v5948, 0.0
        %v6288 = vmin.f32 %v5950, 0.0
        %v6289 = vmin.f32 %v5952, 0.0
        %v6290 = vmin.f32 %v5954, 0.0
        %v6291 = vmin.f32 %v5956, 0.0
        %v6292 = vmin.f32 %v5958, 0.0
        %v6293 = vmin.f32 %v5960, 0.0
        %v6294 = vmin.f32 %v5962, 0.0
        %v6295 = vmin.f32 %v5964, 0.0
        %v6296 = vmin.f32 %v5966, 0.0
        %v6297 = vmin.f32 %v5968, 0.0
        %v6298 = vmin.f32 %v5970, 0.0
        %v6299 = vmin.f32 %v5972, 0.0
        %v6300 = vmin.f32 %v5974, 0.0
        %v6301 = vmin.f32 %v5976, 0.0
        %v6302 = vmin.f32 %v5978, 0.0
        %v6303 = vmin.f32 %v5980, 0.0
        %v6304 = vmin.f32 %v5982, 0.0
        %v6305 = vmin.f32 %v5984, 0.0
        %v6306 = vmin.f32 %v5986, 0.0
        %v6307 = vmin.f32 %v5988, 0.0
        %v6308 = vmin.f32 %v5990, 0.0
        %v6309 = vmin.f32 %v5992, 0.0
        %v6310 = vmin.f32 %v5994, 0.0
        %v6311 = vmin.f32 %v5996, 0.0
        %v6312 = vmin.f32 %v5998, 0.0
        %v6313 = vmin.f32 %v6000, 0.0
        %v6314 = vmin.f32 %v6002, 0.0
        %v6315 = vmin.f32 %v6004, 0.0
        %v6316 = vmin.f32 %v6006, 0.0
        %v6317 = vmin.f32 %v6008, 0.0
        %v6318 = vmin.f32 %v6010, 0.0
        %v6319 = vmin.f32 %v6012, 0.0
        %v6320 = vmin.f32 %v6014, 0.0
        %v6321 = vmin.f32 %v6016, 0.0
        %v6322 = vmin.f32 %v6018, 0.0
        %v6323 = vmin.f32 %v6020, 0.0
        %v6324 = vmin.f32 %v6022, 0.0
        %v6325 = vmin.f32 %v6024, 0.0
        %v6326 = vmin.f32 %v6026, 0.0
        %v6327 = vmin.f32 %v6028, 0.0
        %v6328 = vmin.f32 %v6030, 0.0
        %v6329 = vmin.f32 %v6032, 0.0
        %v6330 = vmin.f32 %v6034, 0.0
        %v6331 = vmin.f32 %v6036, 0.0
        %v6332 = vmin.f32 %v6038, 0.0
        %v6333 = vmin.f32 %v6040, 0.0
        %v6334 = vmin.f32 %v6042, 0.0
        %v6335 = vmin.f32 %v6044, 0.0
        %v6336 = vmin.f32 %v6046, 0.0
        %v6337 = vmin.f32 %v6048, 0.0
        %v6338 = vmin.f32 %v6050, 0.0
        %v6339 = vmin.f32 %v6052, 0.0
        %v6340 = vmin.f32 %v6054, 0.0
        %v6341 = vmin.f32 %v6056, 0.0
        %v6342 = vmin.f32 %v6058, 0.0
        %v6343 = vmin.f32 %v6060, 0.0
        %v6344 = vmin.f32 %v6062, 0.0
        %v6345 = vmin.f32 %v6064, 0.0
        %v6346 = vmin.f32 %v6066, 0.0
        %v6347 = vmin.f32 %v6068, 0.0
        %v6348 = vmin.f32 %v6070, 0.0
        %v6349 = vmin.f32 %v6072, 0.0
        %v6350 = vmin.f32 %v6074, 0.0
        %v6351 = vmin.f32 %v6076, 0.0
        %v6352 = vmin.f32 %v6078, 0.0
        %v6353 = vmin.f32 %v6080, 0.0
        %v6354 = vmin.f32 %v6082, 0.0
        %v6355 = vmin.f32 %v6084, 0.0
        %v6356 = vmin.f32 %v6086, 0.0
        %v6357 = vmin.f32 %v6088, 0.0
        %v6358 = vmin.f32 %v6090, 0.0
        %v6359 = vmin.f32 %v6092, 0.0
        %v6360 = vmin.f32 %v6094, 0.0
        %v6361 = vmin.f32 %v6096, 0.0
        %v6362 = vmin.f32 %v6098, 0.0
        %v6363 = vmin.f32 %v6100, 0.0
        %v6364 = vmin.f32 %v6102, 0.0
        %v6365 = vmin.f32 %v6104, 0.0
        %v6366 = vmin.f32 %v6106, 0.0
        %v6367 = vmin.f32 %v6108, 0.0
        %v6368 = vmin.f32 %v6110, 0.0
        %v6369 = vmin.f32 %v6112, 0.0
        %v6370 = vmin.f32 %v6114, 0.0
        %v6371 = vmin.f32 %v6116, 0.0
        %v6372 = vmin.f32 %v6118, 0.0
        %v6373 = vmin.f32 %v6120, 0.0
        %v6374 = vmin.f32 %v6122, 0.0
        %v6375 = vmin.f32 %v6124, 0.0
        %v6376 = vmin.f32 %v6126, 0.0
        %v6377 = vmin.f32 %v6128, 0.0
        %v6378 = vmin.f32 %v6130, 0.0
        %v6379 = vmin.f32 %v6132, 0.0
        %v6380 = vmin.f32 %v6134, 0.0
        %v6381 = vmin.f32 %v6136, 0.0
        %v6382 = vmin.f32 %v6138, 0.0
        %v6383 = vmin.f32 %v6140, 0.0
        %v6384 = vmin.f32 %v6142, 0.0
        %v6385 = vmin.f32 %v6144, 0.0
        %v6386 = vmin.f32 %v6146, 0.0
        %v6387 = vmin.f32 %v6148, 0.0
        %v6388 = vmin.f32 %v6150, 0.0
        %v6389 = vmin.f32 %v6152, 0.0
        %v6390 = vmin.f32 %v6154, 0.0
        %v6391 = vmin.f32 %v6156, 0.0
        %v6392 = vmin.f32 %v6158, 0.0
        %v6393 = vmin.f32 %v6160, 0.0
        %v6394 = vmin.f32 %v6162, 0.0
        %v6395 = vmin.f32 %v6164, 0.0
        %v6396 = vmin.f32 %v6166, 0.0
        %v6397 = vmin.f32 %v6168, 0.0
        %v6398 = vmin.f32 %v6170, 0.0
        %v6399 = vmin.f32 %v6172, 0.0
        %v6400 = vmin.f32 %v6174, 0.0
        %v6401 = vmin.f32 %v6176, 0.0
        %v6402 = vmin.f32 %v6178, 0.0
        %v6403 = vmin.f32 %v6180, 0.0
        %v6404 = vmin.f32 %v6182, 0.0
        %v6405 = vmin.f32 %v6184, 0.0
        %v6406 = vmin.f32 %v6186, 0.0
        %v6407 = vmin.f32 %v6188, 0.0
        %v6408 = vmin.f32 %v6190, 0.0
        %v6409 = vmin.f32 %v6192, 0.0
        %v6410 = vmin.f32 %v6194, 0.0
        %v6411 = vmin.f32 %v6196, 0.0
        %v6412 = vmin.f32 %v6198, 0.0
        %v6413 = vmin.f32 %v6200, 0.0
        %v6414 = vmin.f32 %v6202, 0.0
        %v6415 = vmin.f32 %v6204, 0.0
        %v6416 = vmin.f32 %v6206, 0.0
        %v6417 = vmin.f32 %v6208, 0.0
        %v6418 = vmin.f32 %v6210, 0.0
        %v6419 = vmin.f32 %v6212, 0.0
        %v6420 = vmin.f32 %v6214, 0.0
        %v6421 = vmin.f32 %v6216, 0.0
        %v6422 = vmin.f32 %v6218, 0.0
        %v6423 = vmin.f32 %v6220, 0.0
        %v6424 = vmin.f32 %v6222, 0.0
        %v6425 = vmin.f32 %v6224, 0.0
        %v6426 = vmin.f32 %v6226, 0.0
        %v6427 = vmin.f32 %v6228, 0.0
        %v6428 = vmin.f32 %v6230, 0.0
        %v6429 = vmin.f32 %v6232, 0.0
        %v6430 = vmin.f32 %v6234, 0.0
        %v6431 = vmin.f32 %v6236, 0.0
        %v6432 = vmin.f32 %v6238, 0.0
        %v6433 = vmin.f32 %v6240, 0.0
        %v6434 = vmin.f32 %v6242, 0.0
        %v6435 = vand.u32 2147483647, %v5860
        %v6436 = vand.u32 2147483647, %v5862
        %v6437 = vand.u32 2147483647, %v5864
        %v6438 = vand.u32 2147483647, %v5866
        %v6439 = vand.u32 2147483647, %v5868
        %v6440 = vand.u32 2147483647, %v5870
        %v6441 = vand.u32 2147483647, %v5872
        %v6442 = vand.u32 2147483647, %v5874
        %v6443 = vand.u32 2147483647, %v5876
        %v6444 = vand.u32 2147483647, %v5878
        %v6445 = vand.u32 2147483647, %v5880
        %v6446 = vand.u32 2147483647, %v5882
        %v6447 = vand.u32 2147483647, %v5884
        %v6448 = vand.u32 2147483647, %v5886
        %v6449 = vand.u32 2147483647, %v5888
        %v6450 = vand.u32 2147483647, %v5890
        %v6451 = vand.u32 2147483647, %v5892
        %v6452 = vand.u32 2147483647, %v5894
        %v6453 = vand.u32 2147483647, %v5896
        %v6454 = vand.u32 2147483647, %v5898
        %v6455 = vand.u32 2147483647, %v5900
        %v6456 = vand.u32 2147483647, %v5902
        %v6457 = vand.u32 2147483647, %v5904
        %v6458 = vand.u32 2147483647, %v5906
        %v6459 = vand.u32 2147483647, %v5908
        %v6460 = vand.u32 2147483647, %v5910
        %v6461 = vand.u32 2147483647, %v5912
        %v6462 = vand.u32 2147483647, %v5914
        %v6463 = vand.u32 2147483647, %v5916
        %v6464 = vand.u32 2147483647, %v5918
        %v6465 = vand.u32 2147483647, %v5920
        %v6466 = vand.u32 2147483647, %v5922
        %v6467 = vand.u32 2147483647, %v5924
        %v6468 = vand.u32 2147483647, %v5926
        %v6469 = vand.u32 2147483647, %v5928
        %v6470 = vand.u32 2147483647, %v5930
        %v6471 = vand.u32 2147483647, %v5932
        %v6472 = vand.u32 2147483647, %v5934
        %v6473 = vand.u32 2147483647, %v5936
        %v6474 = vand.u32 2147483647, %v5938
        %v6475 = vand.u32 2147483647, %v5940
        %v6476 = vand.u32 2147483647, %v5942
        %v6477 = vand.u32 2147483647, %v5944
        %v6478 = vand.u32 2147483647, %v5946
        %v6479 = vand.u32 2147483647, %v5948
        %v6480 = vand.u32 2147483647, %v5950
        %v6481 = vand.u32 2147483647, %v5952
        %v6482 = vand.u32 2147483647, %v5954
        %v6483 = vand.u32 2147483647, %v5956
        %v6484 = vand.u32 2147483647, %v5958
        %v6485 = vand.u32 2147483647, %v5960
        %v6486 = vand.u32 2147483647, %v5962
        %v6487 = vand.u32 2147483647, %v5964
        %v6488 = vand.u32 2147483647, %v5966
        %v6489 = vand.u32 2147483647, %v5968
        %v6490 = vand.u32 2147483647, %v5970
        %v6491 = vand.u32 2147483647, %v5972
        %v6492 = vand.u32 2147483647, %v5974
        %v6493 = vand.u32 2147483647, %v5976
        %v6494 = vand.u32 2147483647, %v5978
        %v6495 = vand.u32 2147483647, %v5980
        %v6496 = vand.u32 2147483647, %v5982
        %v6497 = vand.u32 2147483647, %v5984
        %v6498 = vand.u32 2147483647, %v5986
        %v6499 = vand.u32 2147483647, %v5988
        %v6500 = vand.u32 2147483647, %v5990
        %v6501 = vand.u32 2147483647, %v5992
        %v6502 = vand.u32 2147483647, %v5994
        %v6503 = vand.u32 2147483647, %v5996
        %v6504 = vand.u32 2147483647, %v5998
        %v6505 = vand.u32 2147483647, %v6000
        %v6506 = vand.u32 2147483647, %v6002
        %v6507 = vand.u32 2147483647, %v6004
        %v6508 = vand.u32 2147483647, %v6006
        %v6509 = vand.u32 2147483647, %v6008
        %v6510 = vand.u32 2147483647, %v6010
        %v6511 = vand.u32 2147483647, %v6012
        %v6512 = vand.u32 2147483647, %v6014
        %v6513 = vand.u32 2147483647, %v6016
        %v6514 = vand.u32 2147483647, %v6018
        %v6515 = vand.u32 2147483647, %v6020
        %v6516 = vand.u32 2147483647, %v6022
        %v6517 = vand.u32 2147483647, %v6024
        %v6518 = vand.u32 2147483647, %v6026
        %v6519 = vand.u32 2147483647, %v6028
        %v6520 = vand.u32 2147483647, %v6030
        %v6521 = vand.u32 2147483647, %v6032
        %v6522 = vand.u32 2147483647, %v6034
        %v6523 = vand.u32 2147483647, %v6036
        %v6524 = vand.u32 2147483647, %v6038
        %v6525 = vand.u32 2147483647, %v6040
        %v6526 = vand.u32 2147483647, %v6042
        %v6527 = vand.u32 2147483647, %v6044
        %v6528 = vand.u32 2147483647, %v6046
        %v6529 = vand.u32 2147483647, %v6048
        %v6530 = vand.u32 2147483647, %v6050
        %v6531 = vand.u32 2147483647, %v6052
        %v6532 = vand.u32 2147483647, %v6054
        %v6533 = vand.u32 2147483647, %v6056
        %v6534 = vand.u32 2147483647, %v6058
        %v6535 = vand.u32 2147483647, %v6060
        %v6536 = vand.u32 2147483647, %v6062
        %v6537 = vand.u32 2147483647, %v6064
        %v6538 = vand.u32 2147483647, %v6066
        %v6539 = vand.u32 2147483647, %v6068
        %v6540 = vand.u32 2147483647, %v6070
        %v6541 = vand.u32 2147483647, %v6072
        %v6542 = vand.u32 2147483647, %v6074
        %v6543 = vand.u32 2147483647, %v6076
        %v6544 = vand.u32 2147483647, %v6078
        %v6545 = vand.u32 2147483647, %v6080
        %v6546 = vand.u32 2147483647, %v6082
        %v6547 = vand.u32 2147483647, %v6084
        %v6548 = vand.u32 2147483647, %v6086
        %v6549 = vand.u32 2147483647, %v6088
        %v6550 = vand.u32 2147483647, %v6090
        %v6551 = vand.u32 2147483647, %v6092
        %v6552 = vand.u32 2147483647, %v6094
        %v6553 = vand.u32 2147483647, %v6096
        %v6554 = vand.u32 2147483647, %v6098
        %v6555 = vand.u32 2147483647, %v6100
        %v6556 = vand.u32 2147483647, %v6102
        %v6557 = vand.u32 2147483647, %v6104
        %v6558 = vand.u32 2147483647, %v6106
        %v6559 = vand.u32 2147483647, %v6108
        %v6560 = vand.u32 2147483647, %v6110
        %v6561 = vand.u32 2147483647, %v6112
        %v6562 = vand.u32 2147483647, %v6114
        %v6563 = vand.u32 2147483647, %v6116
        %v6564 = vand.u32 2147483647, %v6118
        %v6565 = vand.u32 2147483647, %v6120
        %v6566 = vand.u32 2147483647, %v6122
        %v6567 = vand.u32 2147483647, %v6124
        %v6568 = vand.u32 2147483647, %v6126
        %v6569 = vand.u32 2147483647, %v6128
        %v6570 = vand.u32 2147483647, %v6130
        %v6571 = vand.u32 2147483647, %v6132
        %v6572 = vand.u32 2147483647, %v6134
        %v6573 = vand.u32 2147483647, %v6136
        %v6574 = vand.u32 2147483647, %v6138
        %v6575 = vand.u32 2147483647, %v6140
        %v6576 = vand.u32 2147483647, %v6142
        %v6577 = vand.u32 2147483647, %v6144
        %v6578 = vand.u32 2147483647, %v6146
        %v6579 = vand.u32 2147483647, %v6148
        %v6580 = vand.u32 2147483647, %v6150
        %v6581 = vand.u32 2147483647, %v6152
        %v6582 = vand.u32 2147483647, %v6154
        %v6583 = vand.u32 2147483647, %v6156
        %v6584 = vand.u32 2147483647, %v6158
        %v6585 = vand.u32 2147483647, %v6160
        %v6586 = vand.u32 2147483647, %v6162
        %v6587 = vand.u32 2147483647, %v6164
        %v6588 = vand.u32 2147483647, %v6166
        %v6589 = vand.u32 2147483647, %v6168
        %v6590 = vand.u32 2147483647, %v6170
        %v6591 = vand.u32 2147483647, %v6172
        %v6592 = vand.u32 2147483647, %v6174
        %v6593 = vand.u32 2147483647, %v6176
        %v6594 = vand.u32 2147483647, %v6178
        %v6595 = vand.u32 2147483647, %v6180
        %v6596 = vand.u32 2147483647, %v6182
        %v6597 = vand.u32 2147483647, %v6184
        %v6598 = vand.u32 2147483647, %v6186
        %v6599 = vand.u32 2147483647, %v6188
        %v6600 = vand.u32 2147483647, %v6190
        %v6601 = vand.u32 2147483647, %v6192
        %v6602 = vand.u32 2147483647, %v6194
        %v6603 = vand.u32 2147483647, %v6196
        %v6604 = vand.u32 2147483647, %v6198
        %v6605 = vand.u32 2147483647, %v6200
        %v6606 = vand.u32 2147483647, %v6202
        %v6607 = vand.u32 2147483647, %v6204
        %v6608 = vand.u32 2147483647, %v6206
        %v6609 = vand.u32 2147483647, %v6208
        %v6610 = vand.u32 2147483647, %v6210
        %v6611 = vand.u32 2147483647, %v6212
        %v6612 = vand.u32 2147483647, %v6214
        %v6613 = vand.u32 2147483647, %v6216
        %v6614 = vand.u32 2147483647, %v6218
        %v6615 = vand.u32 2147483647, %v6220
        %v6616 = vand.u32 2147483647, %v6222
        %v6617 = vand.u32 2147483647, %v6224
        %v6618 = vand.u32 2147483647, %v6226
        %v6619 = vand.u32 2147483647, %v6228
        %v6620 = vand.u32 2147483647, %v6230
        %v6621 = vand.u32 2147483647, %v6232
        %v6622 = vand.u32 2147483647, %v6234
        %v6623 = vand.u32 2147483647, %v6236
        %v6624 = vand.u32 2147483647, %v6238
        %v6625 = vand.u32 2147483647, %v6240
        %v6626 = vand.u32 2147483647, %v6242
        %v6627 = vsub.f32 0.0, %v6435
        %v6628 = vsub.f32 0.0, %v6436
        %v6629 = vsub.f32 0.0, %v6437
        %v6630 = vsub.f32 0.0, %v6438
        %v6631 = vsub.f32 0.0, %v6439
        %v6632 = vsub.f32 0.0, %v6440
        %v6633 = vsub.f32 0.0, %v6441
        %v6634 = vsub.f32 0.0, %v6442
        %v6635 = vsub.f32 0.0, %v6443
        %v6636 = vsub.f32 0.0, %v6444
        %v6637 = vsub.f32 0.0, %v6445
        %v6638 = vsub.f32 0.0, %v6446
        %v6639 = vsub.f32 0.0, %v6447
        %v6640 = vsub.f32 0.0, %v6448
        %v6641 = vsub.f32 0.0, %v6449
        %v6642 = vsub.f32 0.0, %v6450
        %v6643 = vsub.f32 0.0, %v6451
        %v6644 = vsub.f32 0.0, %v6452
        %v6645 = vsub.f32 0.0, %v6453
        %v6646 = vsub.f32 0.0, %v6454
        %v6647 = vsub.f32 0.0, %v6455
        %v6648 = vsub.f32 0.0, %v6456
        %v6649 = vsub.f32 0.0, %v6457
        %v6650 = vsub.f32 0.0, %v6458
        %v6651 = vsub.f32 0.0, %v6459
        %v6652 = vsub.f32 0.0, %v6460
        %v6653 = vsub.f32 0.0, %v6461
        %v6654 = vsub.f32 0.0, %v6462
        %v6655 = vsub.f32 0.0, %v6463
        %v6656 = vsub.f32 0.0, %v6464
        %v6657 = vsub.f32 0.0, %v6465
        %v6658 = vsub.f32 0.0, %v6466
        %v6659 = vsub.f32 0.0, %v6467
        %v6660 = vsub.f32 0.0, %v6468
        %v6661 = vsub.f32 0.0, %v6469
        %v6662 = vsub.f32 0.0, %v6470
        %v6663 = vsub.f32 0.0, %v6471
        %v6664 = vsub.f32 0.0, %v6472
        %v6665 = vsub.f32 0.0, %v6473
        %v6666 = vsub.f32 0.0, %v6474
        %v6667 = vsub.f32 0.0, %v6475
        %v6668 = vsub.f32 0.0, %v6476
        %v6669 = vsub.f32 0.0, %v6477
        %v6670 = vsub.f32 0.0, %v6478
        %v6671 = vsub.f32 0.0, %v6479
        %v6672 = vsub.f32 0.0, %v6480
        %v6673 = vsub.f32 0.0, %v6481
        %v6674 = vsub.f32 0.0, %v6482
        %v6675 = vsub.f32 0.0, %v6483
        %v6676 = vsub.f32 0.0, %v6484
        %v6677 = vsub.f32 0.0, %v6485
        %v6678 = vsub.f32 0.0, %v6486
        %v6679 = vsub.f32 0.0, %v6487
        %v6680 = vsub.f32 0.0, %v6488
        %v6681 = vsub.f32 0.0, %v6489
        %v6682 = vsub.f32 0.0, %v6490
        %v6683 = vsub.f32 0.0, %v6491
        %v6684 = vsub.f32 0.0, %v6492
        %v6685 = vsub.f32 0.0, %v6493
        %v6686 = vsub.f32 0.0, %v6494
        %v6687 = vsub.f32 0.0, %v6495
        %v6688 = vsub.f32 0.0, %v6496
        %v6689 = vsub.f32 0.0, %v6497
        %v6690 = vsub.f32 0.0, %v6498
        %v6691 = vsub.f32 0.0, %v6499
        %v6692 = vsub.f32 0.0, %v6500
        %v6693 = vsub.f32 0.0, %v6501
        %v6694 = vsub.f32 0.0, %v6502
        %v6695 = vsub.f32 0.0, %v6503
        %v6696 = vsub.f32 0.0, %v6504
        %v6697 = vsub.f32 0.0, %v6505
        %v6698 = vsub.f32 0.0, %v6506
        %v6699 = vsub.f32 0.0, %v6507
        %v6700 = vsub.f32 0.0, %v6508
        %v6701 = vsub.f32 0.0, %v6509
        %v6702 = vsub.f32 0.0, %v6510
        %v6703 = vsub.f32 0.0, %v6511
        %v6704 = vsub.f32 0.0, %v6512
        %v6705 = vsub.f32 0.0, %v6513
        %v6706 = vsub.f32 0.0, %v6514
        %v6707 = vsub.f32 0.0, %v6515
        %v6708 = vsub.f32 0.0, %v6516
        %v6709 = vsub.f32 0.0, %v6517
        %v6710 = vsub.f32 0.0, %v6518
        %v6711 = vsub.f32 0.0, %v6519
        %v6712 = vsub.f32 0.0, %v6520
        %v6713 = vsub.f32 0.0, %v6521
        %v6714 = vsub.f32 0.0, %v6522
        %v6715 = vsub.f32 0.0, %v6523
        %v6716 = vsub.f32 0.0, %v6524
        %v6717 = vsub.f32 0.0, %v6525
        %v6718 = vsub.f32 0.0, %v6526
        %v6719 = vsub.f32 0.0, %v6527
        %v6720 = vsub.f32 0.0, %v6528
        %v6721 = vsub.f32 0.0, %v6529
        %v6722 = vsub.f32 0.0, %v6530
        %v6723 = vsub.f32 0.0, %v6531
        %v6724 = vsub.f32 0.0, %v6532
        %v6725 = vsub.f32 0.0, %v6533
        %v6726 = vsub.f32 0.0, %v6534
        %v6727 = vsub.f32 0.0, %v6535
        %v6728 = vsub.f32 0.0, %v6536
        %v6729 = vsub.f32 0.0, %v6537
        %v6730 = vsub.f32 0.0, %v6538
        %v6731 = vsub.f32 0.0, %v6539
        %v6732 = vsub.f32 0.0, %v6540
        %v6733 = vsub.f32 0.0, %v6541
        %v6734 = vsub.f32 0.0, %v6542
        %v6735 = vsub.f32 0.0, %v6543
        %v6736 = vsub.f32 0.0, %v6544
        %v6737 = vsub.f32 0.0, %v6545
        %v6738 = vsub.f32 0.0, %v6546
        %v6739 = vsub.f32 0.0, %v6547
        %v6740 = vsub.f32 0.0, %v6548
        %v6741 = vsub.f32 0.0, %v6549
        %v6742 = vsub.f32 0.0, %v6550
        %v6743 = vsub.f32 0.0, %v6551
        %v6744 = vsub.f32 0.0, %v6552
        %v6745 = vsub.f32 0.0, %v6553
        %v6746 = vsub.f32 0.0, %v6554
        %v6747 = vsub.f32 0.0, %v6555
        %v6748 = vsub.f32 0.0, %v6556
        %v6749 = vsub.f32 0.0, %v6557
        %v6750 = vsub.f32 0.0, %v6558
        %v6751 = vsub.f32 0.0, %v6559
        %v6752 = vsub.f32 0.0, %v6560
        %v6753 = vsub.f32 0.0, %v6561
        %v6754 = vsub.f32 0.0, %v6562
        %v6755 = vsub.f32 0.0, %v6563
        %v6756 = vsub.f32 0.0, %v6564
        %v6757 = vsub.f32 0.0, %v6565
        %v6758 = vsub.f32 0.0, %v6566
        %v6759 = vsub.f32 0.0, %v6567
        %v6760 = vsub.f32 0.0, %v6568
        %v6761 = vsub.f32 0.0, %v6569
        %v6762 = vsub.f32 0.0, %v6570
        %v6763 = vsub.f32 0.0, %v6571
        %v6764 = vsub.f32 0.0, %v6572
        %v6765 = vsub.f32 0.0, %v6573
        %v6766 = vsub.f32 0.0, %v6574
        %v6767 = vsub.f32 0.0, %v6575
        %v6768 = vsub.f32 0.0, %v6576
        %v6769 = vsub.f32 0.0, %v6577
        %v6770 = vsub.f32 0.0, %v6578
        %v6771 = vsub.f32 0.0, %v6579
        %v6772 = vsub.f32 0.0, %v6580
        %v6773 = vsub.f32 0.0, %v6581
        %v6774 = vsub.f32 0.0, %v6582
        %v6775 = vsub.f32 0.0, %v6583
        %v6776 = vsub.f32 0.0, %v6584
        %v6777 = vsub.f32 0.0, %v6585
        %v6778 = vsub.f32 0.0, %v6586
        %v6779 = vsub.f32 0.0, %v6587
        %v6780 = vsub.f32 0.0, %v6588
        %v6781 = vsub.f32 0.0, %v6589
        %v6782 = vsub.f32 0.0, %v6590
        %v6783 = vsub.f32 0.0, %v6591
        %v6784 = vsub.f32 0.0, %v6592
        %v6785 = vsub.f32 0.0, %v6593
        %v6786 = vsub.f32 0.0, %v6594
        %v6787 = vsub.f32 0.0, %v6595
        %v6788 = vsub.f32 0.0, %v6596
        %v6789 = vsub.f32 0.0, %v6597
        %v6790 = vsub.f32 0.0, %v6598
        %v6791 = vsub.f32 0.0, %v6599
        %v6792 = vsub.f32 0.0, %v6600
        %v6793 = vsub.f32 0.0, %v6601
        %v6794 = vsub.f32 0.0, %v6602
        %v6795 = vsub.f32 0.0, %v6603
        %v6796 = vsub.f32 0.0, %v6604
        %v6797 = vsub.f32 0.0, %v6605
        %v6798 = vsub.f32 0.0, %v6606
        %v6799 = vsub.f32 0.0, %v6607
        %v6800 = vsub.f32 0.0, %v6608
        %v6801 = vsub.f32 0.0, %v6609
        %v6802 = vsub.f32 0.0, %v6610
        %v6803 = vsub.f32 0.0, %v6611
        %v6804 = vsub.f32 0.0, %v6612
        %v6805 = vsub.f32 0.0, %v6613
        %v6806 = vsub.f32 0.0, %v6614
        %v6807 = vsub.f32 0.0, %v6615
        %v6808 = vsub.f32 0.0, %v6616
        %v6809 = vsub.f32 0.0, %v6617
        %v6810 = vsub.f32 0.0, %v6618
        %v6811 = vsub.f32 0.0, %v6619
        %v6812 = vsub.f32 0.0, %v6620
        %v6813 = vsub.f32 0.0, %v6621
        %v6814 = vsub.f32 0.0, %v6622
        %v6815 = vsub.f32 0.0, %v6623
        %v6816 = vsub.f32 0.0, %v6624
        %v6817 = vsub.f32 0.0, %v6625
        %v6818 = vsub.f32 0.0, %v6626
        %v6819 = vmul.f32 %v6627, 1.442695
        %v6820 = vpow.pop %v6819
        %v6821 = vmul.f32 %v6628, 1.442695
        %v6822 = vpow.pop %v6821
        %v6823 = vmul.f32 %v6629, 1.442695
        %v6824 = vpow.pop %v6823
        %v6825 = vmul.f32 %v6630, 1.442695
        %v6826 = vpow.pop %v6825
        %v6827 = vmul.f32 %v6631, 1.442695
        %v6828 = vpow.pop %v6827
        %v6829 = vmul.f32 %v6632, 1.442695
        %v6830 = vpow.pop %v6829
        %v6831 = vmul.f32 %v6633, 1.442695
        %v6832 = vpow.pop %v6831
        %v6833 = vmul.f32 %v6634, 1.442695
        %v6834 = vpow.pop %v6833
        %v6835 = vmul.f32 %v6635, 1.442695
        %v6836 = vpow.pop %v6835
        %v6837 = vmul.f32 %v6636, 1.442695
        %v6838 = vpow.pop %v6837
        %v6839 = vmul.f32 %v6637, 1.442695
        %v6840 = vpow.pop %v6839
        %v6841 = vmul.f32 %v6638, 1.442695
        %v6842 = vpow.pop %v6841
        %v6843 = vmul.f32 %v6639, 1.442695
        %v6844 = vpow.pop %v6843
        %v6845 = vmul.f32 %v6640, 1.442695
        %v6846 = vpow.pop %v6845
        %v6847 = vmul.f32 %v6641, 1.442695
        %v6848 = vpow.pop %v6847
        %v6849 = vmul.f32 %v6642, 1.442695
        %v6850 = vpow.pop %v6849
        %v6851 = vmul.f32 %v6643, 1.442695
        %v6852 = vpow.pop %v6851
        %v6853 = vmul.f32 %v6644, 1.442695
        %v6854 = vpow.pop %v6853
        %v6855 = vmul.f32 %v6645, 1.442695
        %v6856 = vpow.pop %v6855
        %v6857 = vmul.f32 %v6646, 1.442695
        %v6858 = vpow.pop %v6857
        %v6859 = vmul.f32 %v6647, 1.442695
        %v6860 = vpow.pop %v6859
        %v6861 = vmul.f32 %v6648, 1.442695
        %v6862 = vpow.pop %v6861
        %v6863 = vmul.f32 %v6649, 1.442695
        %v6864 = vpow.pop %v6863
        %v6865 = vmul.f32 %v6650, 1.442695
        %v6866 = vpow.pop %v6865
        %v6867 = vmul.f32 %v6651, 1.442695
        %v6868 = vpow.pop %v6867
        %v6869 = vmul.f32 %v6652, 1.442695
        %v6870 = vpow.pop %v6869
        %v6871 = vmul.f32 %v6653, 1.442695
        %v6872 = vpow.pop %v6871
        %v6873 = vmul.f32 %v6654, 1.442695
        %v6874 = vpow.pop %v6873
        %v6875 = vmul.f32 %v6655, 1.442695
        %v6876 = vpow.pop %v6875
        %v6877 = vmul.f32 %v6656, 1.442695
        %v6878 = vpow.pop %v6877
        %v6879 = vmul.f32 %v6657, 1.442695
        %v6880 = vpow.pop %v6879
        %v6881 = vmul.f32 %v6658, 1.442695
        %v6882 = vpow.pop %v6881
        %v6883 = vmul.f32 %v6659, 1.442695
        %v6884 = vpow.pop %v6883
        %v6885 = vmul.f32 %v6660, 1.442695
        %v6886 = vpow.pop %v6885
        %v6887 = vmul.f32 %v6661, 1.442695
        %v6888 = vpow.pop %v6887
        %v6889 = vmul.f32 %v6662, 1.442695
        %v6890 = vpow.pop %v6889
        %v6891 = vmul.f32 %v6663, 1.442695
        %v6892 = vpow.pop %v6891
        %v6893 = vmul.f32 %v6664, 1.442695
        %v6894 = vpow.pop %v6893
        %v6895 = vmul.f32 %v6665, 1.442695
        %v6896 = vpow.pop %v6895
        %v6897 = vmul.f32 %v6666, 1.442695
        %v6898 = vpow.pop %v6897
        %v6899 = vmul.f32 %v6667, 1.442695
        %v6900 = vpow.pop %v6899
        %v6901 = vmul.f32 %v6668, 1.442695
        %v6902 = vpow.pop %v6901
        %v6903 = vmul.f32 %v6669, 1.442695
        %v6904 = vpow.pop %v6903
        %v6905 = vmul.f32 %v6670, 1.442695
        %v6906 = vpow.pop %v6905
        %v6907 = vmul.f32 %v6671, 1.442695
        %v6908 = vpow.pop %v6907
        %v6909 = vmul.f32 %v6672, 1.442695
        %v6910 = vpow.pop %v6909
        %v6911 = vmul.f32 %v6673, 1.442695
        %v6912 = vpow.pop %v6911
        %v6913 = vmul.f32 %v6674, 1.442695
        %v6914 = vpow.pop %v6913
        %v6915 = vmul.f32 %v6675, 1.442695
        %v6916 = vpow.pop %v6915
        %v6917 = vmul.f32 %v6676, 1.442695
        %v6918 = vpow.pop %v6917
        %v6919 = vmul.f32 %v6677, 1.442695
        %v6920 = vpow.pop %v6919
        %v6921 = vmul.f32 %v6678, 1.442695
        %v6922 = vpow.pop %v6921
        %v6923 = vmul.f32 %v6679, 1.442695
        %v6924 = vpow.pop %v6923
        %v6925 = vmul.f32 %v6680, 1.442695
        %v6926 = vpow.pop %v6925
        %v6927 = vmul.f32 %v6681, 1.442695
        %v6928 = vpow.pop %v6927
        %v6929 = vmul.f32 %v6682, 1.442695
        %v6930 = vpow.pop %v6929
        %v6931 = vmul.f32 %v6683, 1.442695
        %v6932 = vpow.pop %v6931
        %v6933 = vmul.f32 %v6684, 1.442695
        %v6934 = vpow.pop %v6933
        %v6935 = vmul.f32 %v6685, 1.442695
        %v6936 = vpow.pop %v6935
        %v6937 = vmul.f32 %v6686, 1.442695
        %v6938 = vpow.pop %v6937
        %v6939 = vmul.f32 %v6687, 1.442695
        %v6940 = vpow.pop %v6939
        %v6941 = vmul.f32 %v6688, 1.442695
        %v6942 = vpow.pop %v6941
        %v6943 = vmul.f32 %v6689, 1.442695
        %v6944 = vpow.pop %v6943
        %v6945 = vmul.f32 %v6690, 1.442695
        %v6946 = vpow.pop %v6945
        %v6947 = vmul.f32 %v6691, 1.442695
        %v6948 = vpow.pop %v6947
        %v6949 = vmul.f32 %v6692, 1.442695
        %v6950 = vpow.pop %v6949
        %v6951 = vmul.f32 %v6693, 1.442695
        %v6952 = vpow.pop %v6951
        %v6953 = vmul.f32 %v6694, 1.442695
        %v6954 = vpow.pop %v6953
        %v6955 = vmul.f32 %v6695, 1.442695
        %v6956 = vpow.pop %v6955
        %v6957 = vmul.f32 %v6696, 1.442695
        %v6958 = vpow.pop %v6957
        %v6959 = vmul.f32 %v6697, 1.442695
        %v6960 = vpow.pop %v6959
        %v6961 = vmul.f32 %v6698, 1.442695
        %v6962 = vpow.pop %v6961
        %v6963 = vmul.f32 %v6699, 1.442695
        %v6964 = vpow.pop %v6963
        %v6965 = vmul.f32 %v6700, 1.442695
        %v6966 = vpow.pop %v6965
        %v6967 = vmul.f32 %v6701, 1.442695
        %v6968 = vpow.pop %v6967
        %v6969 = vmul.f32 %v6702, 1.442695
        %v6970 = vpow.pop %v6969
        %v6971 = vmul.f32 %v6703, 1.442695
        %v6972 = vpow.pop %v6971
        %v6973 = vmul.f32 %v6704, 1.442695
        %v6974 = vpow.pop %v6973
        %v6975 = vmul.f32 %v6705, 1.442695
        %v6976 = vpow.pop %v6975
        %v6977 = vmul.f32 %v6706, 1.442695
        %v6978 = vpow.pop %v6977
        %v6979 = vmul.f32 %v6707, 1.442695
        %v6980 = vpow.pop %v6979
        %v6981 = vmul.f32 %v6708, 1.442695
        %v6982 = vpow.pop %v6981
        %v6983 = vmul.f32 %v6709, 1.442695
        %v6984 = vpow.pop %v6983
        %v6985 = vmul.f32 %v6710, 1.442695
        %v6986 = vpow.pop %v6985
        %v6987 = vmul.f32 %v6711, 1.442695
        %v6988 = vpow.pop %v6987
        %v6989 = vmul.f32 %v6712, 1.442695
        %v6990 = vpow.pop %v6989
        %v6991 = vmul.f32 %v6713, 1.442695
        %v6992 = vpow.pop %v6991
        %v6993 = vmul.f32 %v6714, 1.442695
        %v6994 = vpow.pop %v6993
        %v6995 = vmul.f32 %v6715, 1.442695
        %v6996 = vpow.pop %v6995
        %v6997 = vmul.f32 %v6716, 1.442695
        %v6998 = vpow.pop %v6997
        %v6999 = vmul.f32 %v6717, 1.442695
        %v7000 = vpow.pop %v6999
        %v7001 = vmul.f32 %v6718, 1.442695
        %v7002 = vpow.pop %v7001
        %v7003 = vmul.f32 %v6719, 1.442695
        %v7004 = vpow.pop %v7003
        %v7005 = vmul.f32 %v6720, 1.442695
        %v7006 = vpow.pop %v7005
        %v7007 = vmul.f32 %v6721, 1.442695
        %v7008 = vpow.pop %v7007
        %v7009 = vmul.f32 %v6722, 1.442695
        %v7010 = vpow.pop %v7009
        %v7011 = vmul.f32 %v6723, 1.442695
        %v7012 = vpow.pop %v7011
        %v7013 = vmul.f32 %v6724, 1.442695
        %v7014 = vpow.pop %v7013
        %v7015 = vmul.f32 %v6725, 1.442695
        %v7016 = vpow.pop %v7015
        %v7017 = vmul.f32 %v6726, 1.442695
        %v7018 = vpow.pop %v7017
        %v7019 = vmul.f32 %v6727, 1.442695
        %v7020 = vpow.pop %v7019
        %v7021 = vmul.f32 %v6728, 1.442695
        %v7022 = vpow.pop %v7021
        %v7023 = vmul.f32 %v6729, 1.442695
        %v7024 = vpow.pop %v7023
        %v7025 = vmul.f32 %v6730, 1.442695
        %v7026 = vpow.pop %v7025
        %v7027 = vmul.f32 %v6731, 1.442695
        %v7028 = vpow.pop %v7027
        %v7029 = vmul.f32 %v6732, 1.442695
        %v7030 = vpow.pop %v7029
        %v7031 = vmul.f32 %v6733, 1.442695
        %v7032 = vpow.pop %v7031
        %v7033 = vmul.f32 %v6734, 1.442695
        %v7034 = vpow.pop %v7033
        %v7035 = vmul.f32 %v6735, 1.442695
        %v7036 = vpow.pop %v7035
        %v7037 = vmul.f32 %v6736, 1.442695
        %v7038 = vpow.pop %v7037
        %v7039 = vmul.f32 %v6737, 1.442695
        %v7040 = vpow.pop %v7039
        %v7041 = vmul.f32 %v6738, 1.442695
        %v7042 = vpow.pop %v7041
        %v7043 = vmul.f32 %v6739, 1.442695
        %v7044 = vpow.pop %v7043
        %v7045 = vmul.f32 %v6740, 1.442695
        %v7046 = vpow.pop %v7045
        %v7047 = vmul.f32 %v6741, 1.442695
        %v7048 = vpow.pop %v7047
        %v7049 = vmul.f32 %v6742, 1.442695
        %v7050 = vpow.pop %v7049
        %v7051 = vmul.f32 %v6743, 1.442695
        %v7052 = vpow.pop %v7051
        %v7053 = vmul.f32 %v6744, 1.442695
        %v7054 = vpow.pop %v7053
        %v7055 = vmul.f32 %v6745, 1.442695
        %v7056 = vpow.pop %v7055
        %v7057 = vmul.f32 %v6746, 1.442695
        %v7058 = vpow.pop %v7057
        %v7059 = vmul.f32 %v6747, 1.442695
        %v7060 = vpow.pop %v7059
        %v7061 = vmul.f32 %v6748, 1.442695
        %v7062 = vpow.pop %v7061
        %v7063 = vmul.f32 %v6749, 1.442695
        %v7064 = vpow.pop %v7063
        %v7065 = vmul.f32 %v6750, 1.442695
        %v7066 = vpow.pop %v7065
        %v7067 = vmul.f32 %v6751, 1.442695
        %v7068 = vpow.pop %v7067
        %v7069 = vmul.f32 %v6752, 1.442695
        %v7070 = vpow.pop %v7069
        %v7071 = vmul.f32 %v6753, 1.442695
        %v7072 = vpow.pop %v7071
        %v7073 = vmul.f32 %v6754, 1.442695
        %v7074 = vpow.pop %v7073
        %v7075 = vmul.f32 %v6755, 1.442695
        %v7076 = vpow.pop %v7075
        %v7077 = vmul.f32 %v6756, 1.442695
        %v7078 = vpow.pop %v7077
        %v7079 = vmul.f32 %v6757, 1.442695
        %v7080 = vpow.pop %v7079
        %v7081 = vmul.f32 %v6758, 1.442695
        %v7082 = vpow.pop %v7081
        %v7083 = vmul.f32 %v6759, 1.442695
        %v7084 = vpow.pop %v7083
        %v7085 = vmul.f32 %v6760, 1.442695
        %v7086 = vpow.pop %v7085
        %v7087 = vmul.f32 %v6761, 1.442695
        %v7088 = vpow.pop %v7087
        %v7089 = vmul.f32 %v6762, 1.442695
        %v7090 = vpow.pop %v7089
        %v7091 = vmul.f32 %v6763, 1.442695
        %v7092 = vpow.pop %v7091
        %v7093 = vmul.f32 %v6764, 1.442695
        %v7094 = vpow.pop %v7093
        %v7095 = vmul.f32 %v6765, 1.442695
        %v7096 = vpow.pop %v7095
        %v7097 = vmul.f32 %v6766, 1.442695
        %v7098 = vpow.pop %v7097
        %v7099 = vmul.f32 %v6767, 1.442695
        %v7100 = vpow.pop %v7099
        %v7101 = vmul.f32 %v6768, 1.442695
        %v7102 = vpow.pop %v7101
        %v7103 = vmul.f32 %v6769, 1.442695
        %v7104 = vpow.pop %v7103
        %v7105 = vmul.f32 %v6770, 1.442695
        %v7106 = vpow.pop %v7105
        %v7107 = vmul.f32 %v6771, 1.442695
        %v7108 = vpow.pop %v7107
        %v7109 = vmul.f32 %v6772, 1.442695
        %v7110 = vpow.pop %v7109
        %v7111 = vmul.f32 %v6773, 1.442695
        %v7112 = vpow.pop %v7111
        %v7113 = vmul.f32 %v6774, 1.442695
        %v7114 = vpow.pop %v7113
        %v7115 = vmul.f32 %v6775, 1.442695
        %v7116 = vpow.pop %v7115
        %v7117 = vmul.f32 %v6776, 1.442695
        %v7118 = vpow.pop %v7117
        %v7119 = vmul.f32 %v6777, 1.442695
        %v7120 = vpow.pop %v7119
        %v7121 = vmul.f32 %v6778, 1.442695
        %v7122 = vpow.pop %v7121
        %v7123 = vmul.f32 %v6779, 1.442695
        %v7124 = vpow.pop %v7123
        %v7125 = vmul.f32 %v6780, 1.442695
        %v7126 = vpow.pop %v7125
        %v7127 = vmul.f32 %v6781, 1.442695
        %v7128 = vpow.pop %v7127
        %v7129 = vmul.f32 %v6782, 1.442695
        %v7130 = vpow.pop %v7129
        %v7131 = vmul.f32 %v6783, 1.442695
        %v7132 = vpow.pop %v7131
        %v7133 = vmul.f32 %v6784, 1.442695
        %v7134 = vpow.pop %v7133
        %v7135 = vmul.f32 %v6785, 1.442695
        %v7136 = vpow.pop %v7135
        %v7137 = vmul.f32 %v6786, 1.442695
        %v7138 = vpow.pop %v7137
        %v7139 = vmul.f32 %v6787, 1.442695
        %v7140 = vpow.pop %v7139
        %v7141 = vmul.f32 %v6788, 1.442695
        %v7142 = vpow.pop %v7141
        %v7143 = vmul.f32 %v6789, 1.442695
        %v7144 = vpow.pop %v7143
        %v7145 = vmul.f32 %v6790, 1.442695
        %v7146 = vpow.pop %v7145
        %v7147 = vmul.f32 %v6791, 1.442695
        %v7148 = vpow.pop %v7147
        %v7149 = vmul.f32 %v6792, 1.442695
        %v7150 = vpow.pop %v7149
        %v7151 = vmul.f32 %v6793, 1.442695
        %v7152 = vpow.pop %v7151
        %v7153 = vmul.f32 %v6794, 1.442695
        %v7154 = vpow.pop %v7153
        %v7155 = vmul.f32 %v6795, 1.442695
        %v7156 = vpow.pop %v7155
        %v7157 = vmul.f32 %v6796, 1.442695
        %v7158 = vpow.pop %v7157
        %v7159 = vmul.f32 %v6797, 1.442695
        %v7160 = vpow.pop %v7159
        %v7161 = vmul.f32 %v6798, 1.442695
        %v7162 = vpow.pop %v7161
        %v7163 = vmul.f32 %v6799, 1.442695
        %v7164 = vpow.pop %v7163
        %v7165 = vmul.f32 %v6800, 1.442695
        %v7166 = vpow.pop %v7165
        %v7167 = vmul.f32 %v6801, 1.442695
        %v7168 = vpow.pop %v7167
        %v7169 = vmul.f32 %v6802, 1.442695
        %v7170 = vpow.pop %v7169
        %v7171 = vmul.f32 %v6803, 1.442695
        %v7172 = vpow.pop %v7171
        %v7173 = vmul.f32 %v6804, 1.442695
        %v7174 = vpow.pop %v7173
        %v7175 = vmul.f32 %v6805, 1.442695
        %v7176 = vpow.pop %v7175
        %v7177 = vmul.f32 %v6806, 1.442695
        %v7178 = vpow.pop %v7177
        %v7179 = vmul.f32 %v6807, 1.442695
        %v7180 = vpow.pop %v7179
        %v7181 = vmul.f32 %v6808, 1.442695
        %v7182 = vpow.pop %v7181
        %v7183 = vmul.f32 %v6809, 1.442695
        %v7184 = vpow.pop %v7183
        %v7185 = vmul.f32 %v6810, 1.442695
        %v7186 = vpow.pop %v7185
        %v7187 = vmul.f32 %v6811, 1.442695
        %v7188 = vpow.pop %v7187
        %v7189 = vmul.f32 %v6812, 1.442695
        %v7190 = vpow.pop %v7189
        %v7191 = vmul.f32 %v6813, 1.442695
        %v7192 = vpow.pop %v7191
        %v7193 = vmul.f32 %v6814, 1.442695
        %v7194 = vpow.pop %v7193
        %v7195 = vmul.f32 %v6815, 1.442695
        %v7196 = vpow.pop %v7195
        %v7197 = vmul.f32 %v6816, 1.442695
        %v7198 = vpow.pop %v7197
        %v7199 = vmul.f32 %v6817, 1.442695
        %v7200 = vpow.pop %v7199
        %v7201 = vmul.f32 %v6818, 1.442695
        %v7202 = vpow.pop %v7201
        %v7203 = vadd.f32 %v6820, 1.0
        %v7204 = vlog2.pop %v7203
        %v7205 = vmul.f32 %v7204, 0.6931472
        %v7206 = vmul.f32 -0.5, %v6820
        %v7207 = vadd.f32 %v7206, 1.0
        %v7208 = vmul.f32 %v7207, %v6820
        %v7209 = vand.u32 2147483647, %v6820
        %vm7210 = vcmp.lt.f32.partialorder %v7209, 0.0004427343
        %v7211 = vsel %vm7210, %v7208, %v7205
        %v7212 = vadd.f32 %v6822, 1.0
        %v7213 = vlog2.pop %v7212
        %v7214 = vmul.f32 %v7213, 0.6931472
        %v7215 = vmul.f32 -0.5, %v6822
        %v7216 = vadd.f32 %v7215, 1.0
        %v7217 = vmul.f32 %v7216, %v6822
        %v7218 = vand.u32 2147483647, %v6822
        %vm7219 = vcmp.lt.f32.partialorder %v7218, 0.0004427343
        %v7220 = vsel %vm7219, %v7217, %v7214
        %v7221 = vadd.f32 %v6824, 1.0
        %v7222 = vlog2.pop %v7221
        %v7223 = vmul.f32 %v7222, 0.6931472
        %v7224 = vmul.f32 -0.5, %v6824
        %v7225 = vadd.f32 %v7224, 1.0
        %v7226 = vmul.f32 %v7225, %v6824
        %v7227 = vand.u32 2147483647, %v6824
        %vm7228 = vcmp.lt.f32.partialorder %v7227, 0.0004427343
        %v7229 = vsel %vm7228, %v7226, %v7223
        %v7230 = vadd.f32 %v6826, 1.0
        %v7231 = vlog2.pop %v7230
        %v7232 = vmul.f32 %v7231, 0.6931472
        %v7233 = vmul.f32 -0.5, %v6826
        %v7234 = vadd.f32 %v7233, 1.0
        %v7235 = vmul.f32 %v7234, %v6826
        %v7236 = vand.u32 2147483647, %v6826
        %vm7237 = vcmp.lt.f32.partialorder %v7236, 0.0004427343
        %v7238 = vsel %vm7237, %v7235, %v7232
        %v7239 = vadd.f32 %v6828, 1.0
        %v7240 = vlog2.pop %v7239
        %v7241 = vmul.f32 %v7240, 0.6931472
        %v7242 = vmul.f32 -0.5, %v6828
        %v7243 = vadd.f32 %v7242, 1.0
        %v7244 = vmul.f32 %v7243, %v6828
        %v7245 = vand.u32 2147483647, %v6828
        %vm7246 = vcmp.lt.f32.partialorder %v7245, 0.0004427343
        %v7247 = vsel %vm7246, %v7244, %v7241
        %v7248 = vadd.f32 %v6830, 1.0
        %v7249 = vlog2.pop %v7248
        %v7250 = vmul.f32 %v7249, 0.6931472
        %v7251 = vmul.f32 -0.5, %v6830
        %v7252 = vadd.f32 %v7251, 1.0
        %v7253 = vmul.f32 %v7252, %v6830
        %v7254 = vand.u32 2147483647, %v6830
        %vm7255 = vcmp.lt.f32.partialorder %v7254, 0.0004427343
        %v7256 = vsel %vm7255, %v7253, %v7250
        %v7257 = vadd.f32 %v6832, 1.0
        %v7258 = vlog2.pop %v7257
        %v7259 = vmul.f32 %v7258, 0.6931472
        %v7260 = vmul.f32 -0.5, %v6832
        %v7261 = vadd.f32 %v7260, 1.0
        %v7262 = vmul.f32 %v7261, %v6832
        %v7263 = vand.u32 2147483647, %v6832
        %vm7264 = vcmp.lt.f32.partialorder %v7263, 0.0004427343
        %v7265 = vsel %vm7264, %v7262, %v7259
        %v7266 = vadd.f32 %v6834, 1.0
        %v7267 = vlog2.pop %v7266
        %v7268 = vmul.f32 %v7267, 0.6931472
        %v7269 = vmul.f32 -0.5, %v6834
        %v7270 = vadd.f32 %v7269, 1.0
        %v7271 = vmul.f32 %v7270, %v6834
        %v7272 = vand.u32 2147483647, %v6834
        %vm7273 = vcmp.lt.f32.partialorder %v7272, 0.0004427343
        %v7274 = vsel %vm7273, %v7271, %v7268
        %v7275 = vadd.f32 %v6836, 1.0
        %v7276 = vlog2.pop %v7275
        %v7277 = vmul.f32 %v7276, 0.6931472
        %v7278 = vmul.f32 -0.5, %v6836
        %v7279 = vadd.f32 %v7278, 1.0
        %v7280 = vmul.f32 %v7279, %v6836
        %v7281 = vand.u32 2147483647, %v6836
        %vm7282 = vcmp.lt.f32.partialorder %v7281, 0.0004427343
        %v7283 = vsel %vm7282, %v7280, %v7277
        %v7284 = vadd.f32 %v6838, 1.0
        %v7285 = vlog2.pop %v7284
        %v7286 = vmul.f32 %v7285, 0.6931472
        %v7287 = vmul.f32 -0.5, %v6838
        %v7288 = vadd.f32 %v7287, 1.0
        %v7289 = vmul.f32 %v7288, %v6838
        %v7290 = vand.u32 2147483647, %v6838
        %vm7291 = vcmp.lt.f32.partialorder %v7290, 0.0004427343
        %v7292 = vsel %vm7291, %v7289, %v7286
        %v7293 = vadd.f32 %v6840, 1.0
        %v7294 = vlog2.pop %v7293
        %v7295 = vmul.f32 %v7294, 0.6931472
        %v7296 = vmul.f32 -0.5, %v6840
        %v7297 = vadd.f32 %v7296, 1.0
        %v7298 = vmul.f32 %v7297, %v6840
        %v7299 = vand.u32 2147483647, %v6840
        %vm7300 = vcmp.lt.f32.partialorder %v7299, 0.0004427343
        %v7301 = vsel %vm7300, %v7298, %v7295
        %v7302 = vadd.f32 %v6842, 1.0
        %v7303 = vlog2.pop %v7302
        %v7304 = vmul.f32 %v7303, 0.6931472
        %v7305 = vmul.f32 -0.5, %v6842
        %v7306 = vadd.f32 %v7305, 1.0
        %v7307 = vmul.f32 %v7306, %v6842
        %v7308 = vand.u32 2147483647, %v6842
        %vm7309 = vcmp.lt.f32.partialorder %v7308, 0.0004427343
        %v7310 = vsel %vm7309, %v7307, %v7304
        %v7311 = vadd.f32 %v6844, 1.0
        %v7312 = vlog2.pop %v7311
        %v7313 = vmul.f32 %v7312, 0.6931472
        %v7314 = vmul.f32 -0.5, %v6844
        %v7315 = vadd.f32 %v7314, 1.0
        %v7316 = vmul.f32 %v7315, %v6844
        %v7317 = vand.u32 2147483647, %v6844
        %vm7318 = vcmp.lt.f32.partialorder %v7317, 0.0004427343
        %v7319 = vsel %vm7318, %v7316, %v7313
        %v7320 = vadd.f32 %v6846, 1.0
        %v7321 = vlog2.pop %v7320
        %v7322 = vmul.f32 %v7321, 0.6931472
        %v7323 = vmul.f32 -0.5, %v6846
        %v7324 = vadd.f32 %v7323, 1.0
        %v7325 = vmul.f32 %v7324, %v6846
        %v7326 = vand.u32 2147483647, %v6846
        %vm7327 = vcmp.lt.f32.partialorder %v7326, 0.0004427343
        %v7328 = vsel %vm7327, %v7325, %v7322
        %v7329 = vadd.f32 %v6848, 1.0
        %v7330 = vlog2.pop %v7329
        %v7331 = vmul.f32 %v7330, 0.6931472
        %v7332 = vmul.f32 -0.5, %v6848
        %v7333 = vadd.f32 %v7332, 1.0
        %v7334 = vmul.f32 %v7333, %v6848
        %v7335 = vand.u32 2147483647, %v6848
        %vm7336 = vcmp.lt.f32.partialorder %v7335, 0.0004427343
        %v7337 = vsel %vm7336, %v7334, %v7331
        %v7338 = vadd.f32 %v6850, 1.0
        %v7339 = vlog2.pop %v7338
        %v7340 = vmul.f32 %v7339, 0.6931472
        %v7341 = vmul.f32 -0.5, %v6850
        %v7342 = vadd.f32 %v7341, 1.0
        %v7343 = vmul.f32 %v7342, %v6850
        %v7344 = vand.u32 2147483647, %v6850
        %vm7345 = vcmp.lt.f32.partialorder %v7344, 0.0004427343
        %v7346 = vsel %vm7345, %v7343, %v7340
        %v7347 = vadd.f32 %v6852, 1.0
        %v7348 = vlog2.pop %v7347
        %v7349 = vmul.f32 %v7348, 0.6931472
        %v7350 = vmul.f32 -0.5, %v6852
        %v7351 = vadd.f32 %v7350, 1.0
        %v7352 = vmul.f32 %v7351, %v6852
        %v7353 = vand.u32 2147483647, %v6852
        %vm7354 = vcmp.lt.f32.partialorder %v7353, 0.0004427343
        %v7355 = vsel %vm7354, %v7352, %v7349
        %v7356 = vadd.f32 %v6854, 1.0
        %v7357 = vlog2.pop %v7356
        %v7358 = vmul.f32 %v7357, 0.6931472
        %v7359 = vmul.f32 -0.5, %v6854
        %v7360 = vadd.f32 %v7359, 1.0
        %v7361 = vmul.f32 %v7360, %v6854
        %v7362 = vand.u32 2147483647, %v6854
        %vm7363 = vcmp.lt.f32.partialorder %v7362, 0.0004427343
        %v7364 = vsel %vm7363, %v7361, %v7358
        %v7365 = vadd.f32 %v6856, 1.0
        %v7366 = vlog2.pop %v7365
        %v7367 = vmul.f32 %v7366, 0.6931472
        %v7368 = vmul.f32 -0.5, %v6856
        %v7369 = vadd.f32 %v7368, 1.0
        %v7370 = vmul.f32 %v7369, %v6856
        %v7371 = vand.u32 2147483647, %v6856
        %vm7372 = vcmp.lt.f32.partialorder %v7371, 0.0004427343
        %v7373 = vsel %vm7372, %v7370, %v7367
        %v7374 = vadd.f32 %v6858, 1.0
        %v7375 = vlog2.pop %v7374
        %v7376 = vmul.f32 %v7375, 0.6931472
        %v7377 = vmul.f32 -0.5, %v6858
        %v7378 = vadd.f32 %v7377, 1.0
        %v7379 = vmul.f32 %v7378, %v6858
        %v7380 = vand.u32 2147483647, %v6858
        %vm7381 = vcmp.lt.f32.partialorder %v7380, 0.0004427343
        %v7382 = vsel %vm7381, %v7379, %v7376
        %v7383 = vadd.f32 %v6860, 1.0
        %v7384 = vlog2.pop %v7383
        %v7385 = vmul.f32 %v7384, 0.6931472
        %v7386 = vmul.f32 -0.5, %v6860
        %v7387 = vadd.f32 %v7386, 1.0
        %v7388 = vmul.f32 %v7387, %v6860
        %v7389 = vand.u32 2147483647, %v6860
        %vm7390 = vcmp.lt.f32.partialorder %v7389, 0.0004427343
        %v7391 = vsel %vm7390, %v7388, %v7385
        %v7392 = vadd.f32 %v6862, 1.0
        %v7393 = vlog2.pop %v7392
        %v7394 = vmul.f32 %v7393, 0.6931472
        %v7395 = vmul.f32 -0.5, %v6862
        %v7396 = vadd.f32 %v7395, 1.0
        %v7397 = vmul.f32 %v7396, %v6862
        %v7398 = vand.u32 2147483647, %v6862
        %vm7399 = vcmp.lt.f32.partialorder %v7398, 0.0004427343
        %v7400 = vsel %vm7399, %v7397, %v7394
        %v7401 = vadd.f32 %v6864, 1.0
        %v7402 = vlog2.pop %v7401
        %v7403 = vmul.f32 %v7402, 0.6931472
        %v7404 = vmul.f32 -0.5, %v6864
        %v7405 = vadd.f32 %v7404, 1.0
        %v7406 = vmul.f32 %v7405, %v6864
        %v7407 = vand.u32 2147483647, %v6864
        %vm7408 = vcmp.lt.f32.partialorder %v7407, 0.0004427343
        %v7409 = vsel %vm7408, %v7406, %v7403
        %v7410 = vadd.f32 %v6866, 1.0
        %v7411 = vlog2.pop %v7410
        %v7412 = vmul.f32 %v7411, 0.6931472
        %v7413 = vmul.f32 -0.5, %v6866
        %v7414 = vadd.f32 %v7413, 1.0
        %v7415 = vmul.f32 %v7414, %v6866
        %v7416 = vand.u32 2147483647, %v6866
        %vm7417 = vcmp.lt.f32.partialorder %v7416, 0.0004427343
        %v7418 = vsel %vm7417, %v7415, %v7412
        %v7419 = vadd.f32 %v6868, 1.0
        %v7420 = vlog2.pop %v7419
        %v7421 = vmul.f32 %v7420, 0.6931472
        %v7422 = vmul.f32 -0.5, %v6868
        %v7423 = vadd.f32 %v7422, 1.0
        %v7424 = vmul.f32 %v7423, %v6868
        %v7425 = vand.u32 2147483647, %v6868
        %vm7426 = vcmp.lt.f32.partialorder %v7425, 0.0004427343
        %v7427 = vsel %vm7426, %v7424, %v7421
        %v7428 = vadd.f32 %v6870, 1.0
        %v7429 = vlog2.pop %v7428
        %v7430 = vmul.f32 %v7429, 0.6931472
        %v7431 = vmul.f32 -0.5, %v6870
        %v7432 = vadd.f32 %v7431, 1.0
        %v7433 = vmul.f32 %v7432, %v6870
        %v7434 = vand.u32 2147483647, %v6870
        %vm7435 = vcmp.lt.f32.partialorder %v7434, 0.0004427343
        %v7436 = vsel %vm7435, %v7433, %v7430
        %v7437 = vadd.f32 %v6872, 1.0
        %v7438 = vlog2.pop %v7437
        %v7439 = vmul.f32 %v7438, 0.6931472
        %v7440 = vmul.f32 -0.5, %v6872
        %v7441 = vadd.f32 %v7440, 1.0
        %v7442 = vmul.f32 %v7441, %v6872
        %v7443 = vand.u32 2147483647, %v6872
        %vm7444 = vcmp.lt.f32.partialorder %v7443, 0.0004427343
        %v7445 = vsel %vm7444, %v7442, %v7439
        %v7446 = vadd.f32 %v6874, 1.0
        %v7447 = vlog2.pop %v7446
        %v7448 = vmul.f32 %v7447, 0.6931472
        %v7449 = vmul.f32 -0.5, %v6874
        %v7450 = vadd.f32 %v7449, 1.0
        %v7451 = vmul.f32 %v7450, %v6874
        %v7452 = vand.u32 2147483647, %v6874
        %vm7453 = vcmp.lt.f32.partialorder %v7452, 0.0004427343
        %v7454 = vsel %vm7453, %v7451, %v7448
        %v7455 = vadd.f32 %v6876, 1.0
        %v7456 = vlog2.pop %v7455
        %v7457 = vmul.f32 %v7456, 0.6931472
        %v7458 = vmul.f32 -0.5, %v6876
        %v7459 = vadd.f32 %v7458, 1.0
        %v7460 = vmul.f32 %v7459, %v6876
        %v7461 = vand.u32 2147483647, %v6876
        %vm7462 = vcmp.lt.f32.partialorder %v7461, 0.0004427343
        %v7463 = vsel %vm7462, %v7460, %v7457
        %v7464 = vadd.f32 %v6878, 1.0
        %v7465 = vlog2.pop %v7464
        %v7466 = vmul.f32 %v7465, 0.6931472
        %v7467 = vmul.f32 -0.5, %v6878
        %v7468 = vadd.f32 %v7467, 1.0
        %v7469 = vmul.f32 %v7468, %v6878
        %v7470 = vand.u32 2147483647, %v6878
        %vm7471 = vcmp.lt.f32.partialorder %v7470, 0.0004427343
        %v7472 = vsel %vm7471, %v7469, %v7466
        %v7473 = vadd.f32 %v6880, 1.0
        %v7474 = vlog2.pop %v7473
        %v7475 = vmul.f32 %v7474, 0.6931472
        %v7476 = vmul.f32 -0.5, %v6880
        %v7477 = vadd.f32 %v7476, 1.0
        %v7478 = vmul.f32 %v7477, %v6880
        %v7479 = vand.u32 2147483647, %v6880
        %vm7480 = vcmp.lt.f32.partialorder %v7479, 0.0004427343
        %v7481 = vsel %vm7480, %v7478, %v7475
        %v7482 = vadd.f32 %v6882, 1.0
        %v7483 = vlog2.pop %v7482
        %v7484 = vmul.f32 %v7483, 0.6931472
        %v7485 = vmul.f32 -0.5, %v6882
        %v7486 = vadd.f32 %v7485, 1.0
        %v7487 = vmul.f32 %v7486, %v6882
        %v7488 = vand.u32 2147483647, %v6882
        %vm7489 = vcmp.lt.f32.partialorder %v7488, 0.0004427343
        %v7490 = vsel %vm7489, %v7487, %v7484
        %v7491 = vadd.f32 %v6884, 1.0
        %v7492 = vlog2.pop %v7491
        %v7493 = vmul.f32 %v7492, 0.6931472
        %v7494 = vmul.f32 -0.5, %v6884
        %v7495 = vadd.f32 %v7494, 1.0
        %v7496 = vmul.f32 %v7495, %v6884
        %v7497 = vand.u32 2147483647, %v6884
        %vm7498 = vcmp.lt.f32.partialorder %v7497, 0.0004427343
        %v7499 = vsel %vm7498, %v7496, %v7493
        %v7500 = vadd.f32 %v6886, 1.0
        %v7501 = vlog2.pop %v7500
        %v7502 = vmul.f32 %v7501, 0.6931472
        %v7503 = vmul.f32 -0.5, %v6886
        %v7504 = vadd.f32 %v7503, 1.0
        %v7505 = vmul.f32 %v7504, %v6886
        %v7506 = vand.u32 2147483647, %v6886
        %vm7507 = vcmp.lt.f32.partialorder %v7506, 0.0004427343
        %v7508 = vsel %vm7507, %v7505, %v7502
        %v7509 = vadd.f32 %v6888, 1.0
        %v7510 = vlog2.pop %v7509
        %v7511 = vmul.f32 %v7510, 0.6931472
        %v7512 = vmul.f32 -0.5, %v6888
        %v7513 = vadd.f32 %v7512, 1.0
        %v7514 = vmul.f32 %v7513, %v6888
        %v7515 = vand.u32 2147483647, %v6888
        %vm7516 = vcmp.lt.f32.partialorder %v7515, 0.0004427343
        %v7517 = vsel %vm7516, %v7514, %v7511
        %v7518 = vadd.f32 %v6890, 1.0
        %v7519 = vlog2.pop %v7518
        %v7520 = vmul.f32 %v7519, 0.6931472
        %v7521 = vmul.f32 -0.5, %v6890
        %v7522 = vadd.f32 %v7521, 1.0
        %v7523 = vmul.f32 %v7522, %v6890
        %v7524 = vand.u32 2147483647, %v6890
        %vm7525 = vcmp.lt.f32.partialorder %v7524, 0.0004427343
        %v7526 = vsel %vm7525, %v7523, %v7520
        %v7527 = vadd.f32 %v6892, 1.0
        %v7528 = vlog2.pop %v7527
        %v7529 = vmul.f32 %v7528, 0.6931472
        %v7530 = vmul.f32 -0.5, %v6892
        %v7531 = vadd.f32 %v7530, 1.0
        %v7532 = vmul.f32 %v7531, %v6892
        %v7533 = vand.u32 2147483647, %v6892
        %vm7534 = vcmp.lt.f32.partialorder %v7533, 0.0004427343
        %v7535 = vsel %vm7534, %v7532, %v7529
        %v7536 = vadd.f32 %v6894, 1.0
        %v7537 = vlog2.pop %v7536
        %v7538 = vmul.f32 %v7537, 0.6931472
        %v7539 = vmul.f32 -0.5, %v6894
        %v7540 = vadd.f32 %v7539, 1.0
        %v7541 = vmul.f32 %v7540, %v6894
        %v7542 = vand.u32 2147483647, %v6894
        %vm7543 = vcmp.lt.f32.partialorder %v7542, 0.0004427343
        %v7544 = vsel %vm7543, %v7541, %v7538
        %v7545 = vadd.f32 %v6896, 1.0
        %v7546 = vlog2.pop %v7545
        %v7547 = vmul.f32 %v7546, 0.6931472
        %v7548 = vmul.f32 -0.5, %v6896
        %v7549 = vadd.f32 %v7548, 1.0
        %v7550 = vmul.f32 %v7549, %v6896
        %v7551 = vand.u32 2147483647, %v6896
        %vm7552 = vcmp.lt.f32.partialorder %v7551, 0.0004427343
        %v7553 = vsel %vm7552, %v7550, %v7547
        %v7554 = vadd.f32 %v6898, 1.0
        %v7555 = vlog2.pop %v7554
        %v7556 = vmul.f32 %v7555, 0.6931472
        %v7557 = vmul.f32 -0.5, %v6898
        %v7558 = vadd.f32 %v7557, 1.0
        %v7559 = vmul.f32 %v7558, %v6898
        %v7560 = vand.u32 2147483647, %v6898
        %vm7561 = vcmp.lt.f32.partialorder %v7560, 0.0004427343
        %v7562 = vsel %vm7561, %v7559, %v7556
        %v7563 = vadd.f32 %v6900, 1.0
        %v7564 = vlog2.pop %v7563
        %v7565 = vmul.f32 %v7564, 0.6931472
        %v7566 = vmul.f32 -0.5, %v6900
        %v7567 = vadd.f32 %v7566, 1.0
        %v7568 = vmul.f32 %v7567, %v6900
        %v7569 = vand.u32 2147483647, %v6900
        %vm7570 = vcmp.lt.f32.partialorder %v7569, 0.0004427343
        %v7571 = vsel %vm7570, %v7568, %v7565
        %v7572 = vadd.f32 %v6902, 1.0
        %v7573 = vlog2.pop %v7572
        %v7574 = vmul.f32 %v7573, 0.6931472
        %v7575 = vmul.f32 -0.5, %v6902
        %v7576 = vadd.f32 %v7575, 1.0
        %v7577 = vmul.f32 %v7576, %v6902
        %v7578 = vand.u32 2147483647, %v6902
        %vm7579 = vcmp.lt.f32.partialorder %v7578, 0.0004427343
        %v7580 = vsel %vm7579, %v7577, %v7574
        %v7581 = vadd.f32 %v6904, 1.0
        %v7582 = vlog2.pop %v7581
        %v7583 = vmul.f32 %v7582, 0.6931472
        %v7584 = vmul.f32 -0.5, %v6904
        %v7585 = vadd.f32 %v7584, 1.0
        %v7586 = vmul.f32 %v7585, %v6904
        %v7587 = vand.u32 2147483647, %v6904
        %vm7588 = vcmp.lt.f32.partialorder %v7587, 0.0004427343
        %v7589 = vsel %vm7588, %v7586, %v7583
        %v7590 = vadd.f32 %v6906, 1.0
        %v7591 = vlog2.pop %v7590
        %v7592 = vmul.f32 %v7591, 0.6931472
        %v7593 = vmul.f32 -0.5, %v6906
        %v7594 = vadd.f32 %v7593, 1.0
        %v7595 = vmul.f32 %v7594, %v6906
        %v7596 = vand.u32 2147483647, %v6906
        %vm7597 = vcmp.lt.f32.partialorder %v7596, 0.0004427343
        %v7598 = vsel %vm7597, %v7595, %v7592
        %v7599 = vadd.f32 %v6908, 1.0
        %v7600 = vlog2.pop %v7599
        %v7601 = vmul.f32 %v7600, 0.6931472
        %v7602 = vmul.f32 -0.5, %v6908
        %v7603 = vadd.f32 %v7602, 1.0
        %v7604 = vmul.f32 %v7603, %v6908
        %v7605 = vand.u32 2147483647, %v6908
        %vm7606 = vcmp.lt.f32.partialorder %v7605, 0.0004427343
        %v7607 = vsel %vm7606, %v7604, %v7601
        %v7608 = vadd.f32 %v6910, 1.0
        %v7609 = vlog2.pop %v7608
        %v7610 = vmul.f32 %v7609, 0.6931472
        %v7611 = vmul.f32 -0.5, %v6910
        %v7612 = vadd.f32 %v7611, 1.0
        %v7613 = vmul.f32 %v7612, %v6910
        %v7614 = vand.u32 2147483647, %v6910
        %vm7615 = vcmp.lt.f32.partialorder %v7614, 0.0004427343
        %v7616 = vsel %vm7615, %v7613, %v7610
        %v7617 = vadd.f32 %v6912, 1.0
        %v7618 = vlog2.pop %v7617
        %v7619 = vmul.f32 %v7618, 0.6931472
        %v7620 = vmul.f32 -0.5, %v6912
        %v7621 = vadd.f32 %v7620, 1.0
        %v7622 = vmul.f32 %v7621, %v6912
        %v7623 = vand.u32 2147483647, %v6912
        %vm7624 = vcmp.lt.f32.partialorder %v7623, 0.0004427343
        %v7625 = vsel %vm7624, %v7622, %v7619
        %v7626 = vadd.f32 %v6914, 1.0
        %v7627 = vlog2.pop %v7626
        %v7628 = vmul.f32 %v7627, 0.6931472
        %v7629 = vmul.f32 -0.5, %v6914
        %v7630 = vadd.f32 %v7629, 1.0
        %v7631 = vmul.f32 %v7630, %v6914
        %v7632 = vand.u32 2147483647, %v6914
        %vm7633 = vcmp.lt.f32.partialorder %v7632, 0.0004427343
        %v7634 = vsel %vm7633, %v7631, %v7628
        %v7635 = vadd.f32 %v6916, 1.0
        %v7636 = vlog2.pop %v7635
        %v7637 = vmul.f32 %v7636, 0.6931472
        %v7638 = vmul.f32 -0.5, %v6916
        %v7639 = vadd.f32 %v7638, 1.0
        %v7640 = vmul.f32 %v7639, %v6916
        %v7641 = vand.u32 2147483647, %v6916
        %vm7642 = vcmp.lt.f32.partialorder %v7641, 0.0004427343
        %v7643 = vsel %vm7642, %v7640, %v7637
        %v7644 = vadd.f32 %v6918, 1.0
        %v7645 = vlog2.pop %v7644
        %v7646 = vmul.f32 %v7645, 0.6931472
        %v7647 = vmul.f32 -0.5, %v6918
        %v7648 = vadd.f32 %v7647, 1.0
        %v7649 = vmul.f32 %v7648, %v6918
        %v7650 = vand.u32 2147483647, %v6918
        %vm7651 = vcmp.lt.f32.partialorder %v7650, 0.0004427343
        %v7652 = vsel %vm7651, %v7649, %v7646
        %v7653 = vadd.f32 %v6920, 1.0
        %v7654 = vlog2.pop %v7653
        %v7655 = vmul.f32 %v7654, 0.6931472
        %v7656 = vmul.f32 -0.5, %v6920
        %v7657 = vadd.f32 %v7656, 1.0
        %v7658 = vmul.f32 %v7657, %v6920
        %v7659 = vand.u32 2147483647, %v6920
        %vm7660 = vcmp.lt.f32.partialorder %v7659, 0.0004427343
        %v7661 = vsel %vm7660, %v7658, %v7655
        %v7662 = vadd.f32 %v6922, 1.0
        %v7663 = vlog2.pop %v7662
        %v7664 = vmul.f32 %v7663, 0.6931472
        %v7665 = vmul.f32 -0.5, %v6922
        %v7666 = vadd.f32 %v7665, 1.0
        %v7667 = vmul.f32 %v7666, %v6922
        %v7668 = vand.u32 2147483647, %v6922
        %vm7669 = vcmp.lt.f32.partialorder %v7668, 0.0004427343
        %v7670 = vsel %vm7669, %v7667, %v7664
        %v7671 = vadd.f32 %v6924, 1.0
        %v7672 = vlog2.pop %v7671
        %v7673 = vmul.f32 %v7672, 0.6931472
        %v7674 = vmul.f32 -0.5, %v6924
        %v7675 = vadd.f32 %v7674, 1.0
        %v7676 = vmul.f32 %v7675, %v6924
        %v7677 = vand.u32 2147483647, %v6924
        %vm7678 = vcmp.lt.f32.partialorder %v7677, 0.0004427343
        %v7679 = vsel %vm7678, %v7676, %v7673
        %v7680 = vadd.f32 %v6926, 1.0
        %v7681 = vlog2.pop %v7680
        %v7682 = vmul.f32 %v7681, 0.6931472
        %v7683 = vmul.f32 -0.5, %v6926
        %v7684 = vadd.f32 %v7683, 1.0
        %v7685 = vmul.f32 %v7684, %v6926
        %v7686 = vand.u32 2147483647, %v6926
        %vm7687 = vcmp.lt.f32.partialorder %v7686, 0.0004427343
        %v7688 = vsel %vm7687, %v7685, %v7682
        %v7689 = vadd.f32 %v6928, 1.0
        %v7690 = vlog2.pop %v7689
        %v7691 = vmul.f32 %v7690, 0.6931472
        %v7692 = vmul.f32 -0.5, %v6928
        %v7693 = vadd.f32 %v7692, 1.0
        %v7694 = vmul.f32 %v7693, %v6928
        %v7695 = vand.u32 2147483647, %v6928
        %vm7696 = vcmp.lt.f32.partialorder %v7695, 0.0004427343
        %v7697 = vsel %vm7696, %v7694, %v7691
        %v7698 = vadd.f32 %v6930, 1.0
        %v7699 = vlog2.pop %v7698
        %v7700 = vmul.f32 %v7699, 0.6931472
        %v7701 = vmul.f32 -0.5, %v6930
        %v7702 = vadd.f32 %v7701, 1.0
        %v7703 = vmul.f32 %v7702, %v6930
        %v7704 = vand.u32 2147483647, %v6930
        %vm7705 = vcmp.lt.f32.partialorder %v7704, 0.0004427343
        %v7706 = vsel %vm7705, %v7703, %v7700
        %v7707 = vadd.f32 %v6932, 1.0
        %v7708 = vlog2.pop %v7707
        %v7709 = vmul.f32 %v7708, 0.6931472
        %v7710 = vmul.f32 -0.5, %v6932
        %v7711 = vadd.f32 %v7710, 1.0
        %v7712 = vmul.f32 %v7711, %v6932
        %v7713 = vand.u32 2147483647, %v6932
        %vm7714 = vcmp.lt.f32.partialorder %v7713, 0.0004427343
        %v7715 = vsel %vm7714, %v7712, %v7709
        %v7716 = vadd.f32 %v6934, 1.0
        %v7717 = vlog2.pop %v7716
        %v7718 = vmul.f32 %v7717, 0.6931472
        %v7719 = vmul.f32 -0.5, %v6934
        %v7720 = vadd.f32 %v7719, 1.0
        %v7721 = vmul.f32 %v7720, %v6934
        %v7722 = vand.u32 2147483647, %v6934
        %vm7723 = vcmp.lt.f32.partialorder %v7722, 0.0004427343
        %v7724 = vsel %vm7723, %v7721, %v7718
        %v7725 = vadd.f32 %v6936, 1.0
        %v7726 = vlog2.pop %v7725
        %v7727 = vmul.f32 %v7726, 0.6931472
        %v7728 = vmul.f32 -0.5, %v6936
        %v7729 = vadd.f32 %v7728, 1.0
        %v7730 = vmul.f32 %v7729, %v6936
        %v7731 = vand.u32 2147483647, %v6936
        %vm7732 = vcmp.lt.f32.partialorder %v7731, 0.0004427343
        %v7733 = vsel %vm7732, %v7730, %v7727
        %v7734 = vadd.f32 %v6938, 1.0
        %v7735 = vlog2.pop %v7734
        %v7736 = vmul.f32 %v7735, 0.6931472
        %v7737 = vmul.f32 -0.5, %v6938
        %v7738 = vadd.f32 %v7737, 1.0
        %v7739 = vmul.f32 %v7738, %v6938
        %v7740 = vand.u32 2147483647, %v6938
        %vm7741 = vcmp.lt.f32.partialorder %v7740, 0.0004427343
        %v7742 = vsel %vm7741, %v7739, %v7736
        %v7743 = vadd.f32 %v6940, 1.0
        %v7744 = vlog2.pop %v7743
        %v7745 = vmul.f32 %v7744, 0.6931472
        %v7746 = vmul.f32 -0.5, %v6940
        %v7747 = vadd.f32 %v7746, 1.0
        %v7748 = vmul.f32 %v7747, %v6940
        %v7749 = vand.u32 2147483647, %v6940
        %vm7750 = vcmp.lt.f32.partialorder %v7749, 0.0004427343
        %v7751 = vsel %vm7750, %v7748, %v7745
        %v7752 = vadd.f32 %v6942, 1.0
        %v7753 = vlog2.pop %v7752
        %v7754 = vmul.f32 %v7753, 0.6931472
        %v7755 = vmul.f32 -0.5, %v6942
        %v7756 = vadd.f32 %v7755, 1.0
        %v7757 = vmul.f32 %v7756, %v6942
        %v7758 = vand.u32 2147483647, %v6942
        %vm7759 = vcmp.lt.f32.partialorder %v7758, 0.0004427343
        %v7760 = vsel %vm7759, %v7757, %v7754
        %v7761 = vadd.f32 %v6944, 1.0
        %v7762 = vlog2.pop %v7761
        %v7763 = vmul.f32 %v7762, 0.6931472
        %v7764 = vmul.f32 -0.5, %v6944
        %v7765 = vadd.f32 %v7764, 1.0
        %v7766 = vmul.f32 %v7765, %v6944
        %v7767 = vand.u32 2147483647, %v6944
        %vm7768 = vcmp.lt.f32.partialorder %v7767, 0.0004427343
        %v7769 = vsel %vm7768, %v7766, %v7763
        %v7770 = vadd.f32 %v6946, 1.0
        %v7771 = vlog2.pop %v7770
        %v7772 = vmul.f32 %v7771, 0.6931472
        %v7773 = vmul.f32 -0.5, %v6946
        %v7774 = vadd.f32 %v7773, 1.0
        %v7775 = vmul.f32 %v7774, %v6946
        %v7776 = vand.u32 2147483647, %v6946
        %vm7777 = vcmp.lt.f32.partialorder %v7776, 0.0004427343
        %v7778 = vsel %vm7777, %v7775, %v7772
        %v7779 = vadd.f32 %v6948, 1.0
        %v7780 = vlog2.pop %v7779
        %v7781 = vmul.f32 %v7780, 0.6931472
        %v7782 = vmul.f32 -0.5, %v6948
        %v7783 = vadd.f32 %v7782, 1.0
        %v7784 = vmul.f32 %v7783, %v6948
        %v7785 = vand.u32 2147483647, %v6948
        %vm7786 = vcmp.lt.f32.partialorder %v7785, 0.0004427343
        %v7787 = vsel %vm7786, %v7784, %v7781
        %v7788 = vadd.f32 %v6950, 1.0
        %v7789 = vlog2.pop %v7788
        %v7790 = vmul.f32 %v7789, 0.6931472
        %v7791 = vmul.f32 -0.5, %v6950
        %v7792 = vadd.f32 %v7791, 1.0
        %v7793 = vmul.f32 %v7792, %v6950
        %v7794 = vand.u32 2147483647, %v6950
        %vm7795 = vcmp.lt.f32.partialorder %v7794, 0.0004427343
        %v7796 = vsel %vm7795, %v7793, %v7790
        %v7797 = vadd.f32 %v6952, 1.0
        %v7798 = vlog2.pop %v7797
        %v7799 = vmul.f32 %v7798, 0.6931472
        %v7800 = vmul.f32 -0.5, %v6952
        %v7801 = vadd.f32 %v7800, 1.0
        %v7802 = vmul.f32 %v7801, %v6952
        %v7803 = vand.u32 2147483647, %v6952
        %vm7804 = vcmp.lt.f32.partialorder %v7803, 0.0004427343
        %v7805 = vsel %vm7804, %v7802, %v7799
        %v7806 = vadd.f32 %v6954, 1.0
        %v7807 = vlog2.pop %v7806
        %v7808 = vmul.f32 %v7807, 0.6931472
        %v7809 = vmul.f32 -0.5, %v6954
        %v7810 = vadd.f32 %v7809, 1.0
        %v7811 = vmul.f32 %v7810, %v6954
        %v7812 = vand.u32 2147483647, %v6954
        %vm7813 = vcmp.lt.f32.partialorder %v7812, 0.0004427343
        %v7814 = vsel %vm7813, %v7811, %v7808
        %v7815 = vadd.f32 %v6956, 1.0
        %v7816 = vlog2.pop %v7815
        %v7817 = vmul.f32 %v7816, 0.6931472
        %v7818 = vmul.f32 -0.5, %v6956
        %v7819 = vadd.f32 %v7818, 1.0
        %v7820 = vmul.f32 %v7819, %v6956
        %v7821 = vand.u32 2147483647, %v6956
        %vm7822 = vcmp.lt.f32.partialorder %v7821, 0.0004427343
        %v7823 = vsel %vm7822, %v7820, %v7817
        %v7824 = vadd.f32 %v6958, 1.0
        %v7825 = vlog2.pop %v7824
        %v7826 = vmul.f32 %v7825, 0.6931472
        %v7827 = vmul.f32 -0.5, %v6958
        %v7828 = vadd.f32 %v7827, 1.0
        %v7829 = vmul.f32 %v7828, %v6958
        %v7830 = vand.u32 2147483647, %v6958
        %vm7831 = vcmp.lt.f32.partialorder %v7830, 0.0004427343
        %v7832 = vsel %vm7831, %v7829, %v7826
        %v7833 = vadd.f32 %v6960, 1.0
        %v7834 = vlog2.pop %v7833
        %v7835 = vmul.f32 %v7834, 0.6931472
        %v7836 = vmul.f32 -0.5, %v6960
        %v7837 = vadd.f32 %v7836, 1.0
        %v7838 = vmul.f32 %v7837, %v6960
        %v7839 = vand.u32 2147483647, %v6960
        %vm7840 = vcmp.lt.f32.partialorder %v7839, 0.0004427343
        %v7841 = vsel %vm7840, %v7838, %v7835
        %v7842 = vadd.f32 %v6962, 1.0
        %v7843 = vlog2.pop %v7842
        %v7844 = vmul.f32 %v7843, 0.6931472
        %v7845 = vmul.f32 -0.5, %v6962
        %v7846 = vadd.f32 %v7845, 1.0
        %v7847 = vmul.f32 %v7846, %v6962
        %v7848 = vand.u32 2147483647, %v6962
        %vm7849 = vcmp.lt.f32.partialorder %v7848, 0.0004427343
        %v7850 = vsel %vm7849, %v7847, %v7844
        %v7851 = vadd.f32 %v6964, 1.0
        %v7852 = vlog2.pop %v7851
        %v7853 = vmul.f32 %v7852, 0.6931472
        %v7854 = vmul.f32 -0.5, %v6964
        %v7855 = vadd.f32 %v7854, 1.0
        %v7856 = vmul.f32 %v7855, %v6964
        %v7857 = vand.u32 2147483647, %v6964
        %vm7858 = vcmp.lt.f32.partialorder %v7857, 0.0004427343
        %v7859 = vsel %vm7858, %v7856, %v7853
        %v7860 = vadd.f32 %v6966, 1.0
        %v7861 = vlog2.pop %v7860
        %v7862 = vmul.f32 %v7861, 0.6931472
        %v7863 = vmul.f32 -0.5, %v6966
        %v7864 = vadd.f32 %v7863, 1.0
        %v7865 = vmul.f32 %v7864, %v6966
        %v7866 = vand.u32 2147483647, %v6966
        %vm7867 = vcmp.lt.f32.partialorder %v7866, 0.0004427343
        %v7868 = vsel %vm7867, %v7865, %v7862
        %v7869 = vadd.f32 %v6968, 1.0
        %v7870 = vlog2.pop %v7869
        %v7871 = vmul.f32 %v7870, 0.6931472
        %v7872 = vmul.f32 -0.5, %v6968
        %v7873 = vadd.f32 %v7872, 1.0
        %v7874 = vmul.f32 %v7873, %v6968
        %v7875 = vand.u32 2147483647, %v6968
        %vm7876 = vcmp.lt.f32.partialorder %v7875, 0.0004427343
        %v7877 = vsel %vm7876, %v7874, %v7871
        %v7878 = vadd.f32 %v6970, 1.0
        %v7879 = vlog2.pop %v7878
        %v7880 = vmul.f32 %v7879, 0.6931472
        %v7881 = vmul.f32 -0.5, %v6970
        %v7882 = vadd.f32 %v7881, 1.0
        %v7883 = vmul.f32 %v7882, %v6970
        %v7884 = vand.u32 2147483647, %v6970
        %vm7885 = vcmp.lt.f32.partialorder %v7884, 0.0004427343
        %v7886 = vsel %vm7885, %v7883, %v7880
        %v7887 = vadd.f32 %v6972, 1.0
        %v7888 = vlog2.pop %v7887
        %v7889 = vmul.f32 %v7888, 0.6931472
        %v7890 = vmul.f32 -0.5, %v6972
        %v7891 = vadd.f32 %v7890, 1.0
        %v7892 = vmul.f32 %v7891, %v6972
        %v7893 = vand.u32 2147483647, %v6972
        %vm7894 = vcmp.lt.f32.partialorder %v7893, 0.0004427343
        %v7895 = vsel %vm7894, %v7892, %v7889
        %v7896 = vadd.f32 %v6974, 1.0
        %v7897 = vlog2.pop %v7896
        %v7898 = vmul.f32 %v7897, 0.6931472
        %v7899 = vmul.f32 -0.5, %v6974
        %v7900 = vadd.f32 %v7899, 1.0
        %v7901 = vmul.f32 %v7900, %v6974
        %v7902 = vand.u32 2147483647, %v6974
        %vm7903 = vcmp.lt.f32.partialorder %v7902, 0.0004427343
        %v7904 = vsel %vm7903, %v7901, %v7898
        %v7905 = vadd.f32 %v6976, 1.0
        %v7906 = vlog2.pop %v7905
        %v7907 = vmul.f32 %v7906, 0.6931472
        %v7908 = vmul.f32 -0.5, %v6976
        %v7909 = vadd.f32 %v7908, 1.0
        %v7910 = vmul.f32 %v7909, %v6976
        %v7911 = vand.u32 2147483647, %v6976
        %vm7912 = vcmp.lt.f32.partialorder %v7911, 0.0004427343
        %v7913 = vsel %vm7912, %v7910, %v7907
        %v7914 = vadd.f32 %v6978, 1.0
        %v7915 = vlog2.pop %v7914
        %v7916 = vmul.f32 %v7915, 0.6931472
        %v7917 = vmul.f32 -0.5, %v6978
        %v7918 = vadd.f32 %v7917, 1.0
        %v7919 = vmul.f32 %v7918, %v6978
        %v7920 = vand.u32 2147483647, %v6978
        %vm7921 = vcmp.lt.f32.partialorder %v7920, 0.0004427343
        %v7922 = vsel %vm7921, %v7919, %v7916
        %v7923 = vadd.f32 %v6980, 1.0
        %v7924 = vlog2.pop %v7923
        %v7925 = vmul.f32 %v7924, 0.6931472
        %v7926 = vmul.f32 -0.5, %v6980
        %v7927 = vadd.f32 %v7926, 1.0
        %v7928 = vmul.f32 %v7927, %v6980
        %v7929 = vand.u32 2147483647, %v6980
        %vm7930 = vcmp.lt.f32.partialorder %v7929, 0.0004427343
        %v7931 = vsel %vm7930, %v7928, %v7925
        %v7932 = vadd.f32 %v6982, 1.0
        %v7933 = vlog2.pop %v7932
        %v7934 = vmul.f32 %v7933, 0.6931472
        %v7935 = vmul.f32 -0.5, %v6982
        %v7936 = vadd.f32 %v7935, 1.0
        %v7937 = vmul.f32 %v7936, %v6982
        %v7938 = vand.u32 2147483647, %v6982
        %vm7939 = vcmp.lt.f32.partialorder %v7938, 0.0004427343
        %v7940 = vsel %vm7939, %v7937, %v7934
        %v7941 = vadd.f32 %v6984, 1.0
        %v7942 = vlog2.pop %v7941
        %v7943 = vmul.f32 %v7942, 0.6931472
        %v7944 = vmul.f32 -0.5, %v6984
        %v7945 = vadd.f32 %v7944, 1.0
        %v7946 = vmul.f32 %v7945, %v6984
        %v7947 = vand.u32 2147483647, %v6984
        %vm7948 = vcmp.lt.f32.partialorder %v7947, 0.0004427343
        %v7949 = vsel %vm7948, %v7946, %v7943
        %v7950 = vadd.f32 %v6986, 1.0
        %v7951 = vlog2.pop %v7950
        %v7952 = vmul.f32 %v7951, 0.6931472
        %v7953 = vmul.f32 -0.5, %v6986
        %v7954 = vadd.f32 %v7953, 1.0
        %v7955 = vmul.f32 %v7954, %v6986
        %v7956 = vand.u32 2147483647, %v6986
        %vm7957 = vcmp.lt.f32.partialorder %v7956, 0.0004427343
        %v7958 = vsel %vm7957, %v7955, %v7952
        %v7959 = vadd.f32 %v6988, 1.0
        %v7960 = vlog2.pop %v7959
        %v7961 = vmul.f32 %v7960, 0.6931472
        %v7962 = vmul.f32 -0.5, %v6988
        %v7963 = vadd.f32 %v7962, 1.0
        %v7964 = vmul.f32 %v7963, %v6988
        %v7965 = vand.u32 2147483647, %v6988
        %vm7966 = vcmp.lt.f32.partialorder %v7965, 0.0004427343
        %v7967 = vsel %vm7966, %v7964, %v7961
        %v7968 = vadd.f32 %v6990, 1.0
        %v7969 = vlog2.pop %v7968
        %v7970 = vmul.f32 %v7969, 0.6931472
        %v7971 = vmul.f32 -0.5, %v6990
        %v7972 = vadd.f32 %v7971, 1.0
        %v7973 = vmul.f32 %v7972, %v6990
        %v7974 = vand.u32 2147483647, %v6990
        %vm7975 = vcmp.lt.f32.partialorder %v7974, 0.0004427343
        %v7976 = vsel %vm7975, %v7973, %v7970
        %v7977 = vadd.f32 %v6992, 1.0
        %v7978 = vlog2.pop %v7977
        %v7979 = vmul.f32 %v7978, 0.6931472
        %v7980 = vmul.f32 -0.5, %v6992
        %v7981 = vadd.f32 %v7980, 1.0
        %v7982 = vmul.f32 %v7981, %v6992
        %v7983 = vand.u32 2147483647, %v6992
        %vm7984 = vcmp.lt.f32.partialorder %v7983, 0.0004427343
        %v7985 = vsel %vm7984, %v7982, %v7979
        %v7986 = vadd.f32 %v6994, 1.0
        %v7987 = vlog2.pop %v7986
        %v7988 = vmul.f32 %v7987, 0.6931472
        %v7989 = vmul.f32 -0.5, %v6994
        %v7990 = vadd.f32 %v7989, 1.0
        %v7991 = vmul.f32 %v7990, %v6994
        %v7992 = vand.u32 2147483647, %v6994
        %vm7993 = vcmp.lt.f32.partialorder %v7992, 0.0004427343
        %v7994 = vsel %vm7993, %v7991, %v7988
        %v7995 = vadd.f32 %v6996, 1.0
        %v7996 = vlog2.pop %v7995
        %v7997 = vmul.f32 %v7996, 0.6931472
        %v7998 = vmul.f32 -0.5, %v6996
        %v7999 = vadd.f32 %v7998, 1.0
        %v8000 = vmul.f32 %v7999, %v6996
        %v8001 = vand.u32 2147483647, %v6996
        %vm8002 = vcmp.lt.f32.partialorder %v8001, 0.0004427343
        %v8003 = vsel %vm8002, %v8000, %v7997
        %v8004 = vadd.f32 %v6998, 1.0
        %v8005 = vlog2.pop %v8004
        %v8006 = vmul.f32 %v8005, 0.6931472
        %v8007 = vmul.f32 -0.5, %v6998
        %v8008 = vadd.f32 %v8007, 1.0
        %v8009 = vmul.f32 %v8008, %v6998
        %v8010 = vand.u32 2147483647, %v6998
        %vm8011 = vcmp.lt.f32.partialorder %v8010, 0.0004427343
        %v8012 = vsel %vm8011, %v8009, %v8006
        %v8013 = vadd.f32 %v7000, 1.0
        %v8014 = vlog2.pop %v8013
        %v8015 = vmul.f32 %v8014, 0.6931472
        %v8016 = vmul.f32 -0.5, %v7000
        %v8017 = vadd.f32 %v8016, 1.0
        %v8018 = vmul.f32 %v8017, %v7000
        %v8019 = vand.u32 2147483647, %v7000
        %vm8020 = vcmp.lt.f32.partialorder %v8019, 0.0004427343
        %v8021 = vsel %vm8020, %v8018, %v8015
        %v8022 = vadd.f32 %v7002, 1.0
        %v8023 = vlog2.pop %v8022
        %v8024 = vmul.f32 %v8023, 0.6931472
        %v8025 = vmul.f32 -0.5, %v7002
        %v8026 = vadd.f32 %v8025, 1.0
        %v8027 = vmul.f32 %v8026, %v7002
        %v8028 = vand.u32 2147483647, %v7002
        %vm8029 = vcmp.lt.f32.partialorder %v8028, 0.0004427343
        %v8030 = vsel %vm8029, %v8027, %v8024
        %v8031 = vadd.f32 %v7004, 1.0
        %v8032 = vlog2.pop %v8031
        %v8033 = vmul.f32 %v8032, 0.6931472
        %v8034 = vmul.f32 -0.5, %v7004
        %v8035 = vadd.f32 %v8034, 1.0
        %v8036 = vmul.f32 %v8035, %v7004
        %v8037 = vand.u32 2147483647, %v7004
        %vm8038 = vcmp.lt.f32.partialorder %v8037, 0.0004427343
        %v8039 = vsel %vm8038, %v8036, %v8033
        %v8040 = vadd.f32 %v7006, 1.0
        %v8041 = vlog2.pop %v8040
        %v8042 = vmul.f32 %v8041, 0.6931472
        %v8043 = vmul.f32 -0.5, %v7006
        %v8044 = vadd.f32 %v8043, 1.0
        %v8045 = vmul.f32 %v8044, %v7006
        %v8046 = vand.u32 2147483647, %v7006
        %vm8047 = vcmp.lt.f32.partialorder %v8046, 0.0004427343
        %v8048 = vsel %vm8047, %v8045, %v8042
        %v8049 = vadd.f32 %v7008, 1.0
        %v8050 = vlog2.pop %v8049
        %v8051 = vmul.f32 %v8050, 0.6931472
        %v8052 = vmul.f32 -0.5, %v7008
        %v8053 = vadd.f32 %v8052, 1.0
        %v8054 = vmul.f32 %v8053, %v7008
        %v8055 = vand.u32 2147483647, %v7008
        %vm8056 = vcmp.lt.f32.partialorder %v8055, 0.0004427343
        %v8057 = vsel %vm8056, %v8054, %v8051
        %v8058 = vadd.f32 %v7010, 1.0
        %v8059 = vlog2.pop %v8058
        %v8060 = vmul.f32 %v8059, 0.6931472
        %v8061 = vmul.f32 -0.5, %v7010
        %v8062 = vadd.f32 %v8061, 1.0
        %v8063 = vmul.f32 %v8062, %v7010
        %v8064 = vand.u32 2147483647, %v7010
        %vm8065 = vcmp.lt.f32.partialorder %v8064, 0.0004427343
        %v8066 = vsel %vm8065, %v8063, %v8060
        %v8067 = vadd.f32 %v7012, 1.0
        %v8068 = vlog2.pop %v8067
        %v8069 = vmul.f32 %v8068, 0.6931472
        %v8070 = vmul.f32 -0.5, %v7012
        %v8071 = vadd.f32 %v8070, 1.0
        %v8072 = vmul.f32 %v8071, %v7012
        %v8073 = vand.u32 2147483647, %v7012
        %vm8074 = vcmp.lt.f32.partialorder %v8073, 0.0004427343
        %v8075 = vsel %vm8074, %v8072, %v8069
        %v8076 = vadd.f32 %v7014, 1.0
        %v8077 = vlog2.pop %v8076
        %v8078 = vmul.f32 %v8077, 0.6931472
        %v8079 = vmul.f32 -0.5, %v7014
        %v8080 = vadd.f32 %v8079, 1.0
        %v8081 = vmul.f32 %v8080, %v7014
        %v8082 = vand.u32 2147483647, %v7014
        %vm8083 = vcmp.lt.f32.partialorder %v8082, 0.0004427343
        %v8084 = vsel %vm8083, %v8081, %v8078
        %v8085 = vadd.f32 %v7016, 1.0
        %v8086 = vlog2.pop %v8085
        %v8087 = vmul.f32 %v8086, 0.6931472
        %v8088 = vmul.f32 -0.5, %v7016
        %v8089 = vadd.f32 %v8088, 1.0
        %v8090 = vmul.f32 %v8089, %v7016
        %v8091 = vand.u32 2147483647, %v7016
        %vm8092 = vcmp.lt.f32.partialorder %v8091, 0.0004427343
        %v8093 = vsel %vm8092, %v8090, %v8087
        %v8094 = vadd.f32 %v7018, 1.0
        %v8095 = vlog2.pop %v8094
        %v8096 = vmul.f32 %v8095, 0.6931472
        %v8097 = vmul.f32 -0.5, %v7018
        %v8098 = vadd.f32 %v8097, 1.0
        %v8099 = vmul.f32 %v8098, %v7018
        %v8100 = vand.u32 2147483647, %v7018
        %vm8101 = vcmp.lt.f32.partialorder %v8100, 0.0004427343
        %v8102 = vsel %vm8101, %v8099, %v8096
        %v8103 = vadd.f32 %v7020, 1.0
        %v8104 = vlog2.pop %v8103
        %v8105 = vmul.f32 %v8104, 0.6931472
        %v8106 = vmul.f32 -0.5, %v7020
        %v8107 = vadd.f32 %v8106, 1.0
        %v8108 = vmul.f32 %v8107, %v7020
        %v8109 = vand.u32 2147483647, %v7020
        %vm8110 = vcmp.lt.f32.partialorder %v8109, 0.0004427343
        %v8111 = vsel %vm8110, %v8108, %v8105
        %v8112 = vadd.f32 %v7022, 1.0
        %v8113 = vlog2.pop %v8112
        %v8114 = vmul.f32 %v8113, 0.6931472
        %v8115 = vmul.f32 -0.5, %v7022
        %v8116 = vadd.f32 %v8115, 1.0
        %v8117 = vmul.f32 %v8116, %v7022
        %v8118 = vand.u32 2147483647, %v7022
        %vm8119 = vcmp.lt.f32.partialorder %v8118, 0.0004427343
        %v8120 = vsel %vm8119, %v8117, %v8114
        %v8121 = vadd.f32 %v7024, 1.0
        %v8122 = vlog2.pop %v8121
        %v8123 = vmul.f32 %v8122, 0.6931472
        %v8124 = vmul.f32 -0.5, %v7024
        %v8125 = vadd.f32 %v8124, 1.0
        %v8126 = vmul.f32 %v8125, %v7024
        %v8127 = vand.u32 2147483647, %v7024
        %vm8128 = vcmp.lt.f32.partialorder %v8127, 0.0004427343
        %v8129 = vsel %vm8128, %v8126, %v8123
        %v8130 = vadd.f32 %v7026, 1.0
        %v8131 = vlog2.pop %v8130
        %v8132 = vmul.f32 %v8131, 0.6931472
        %v8133 = vmul.f32 -0.5, %v7026
        %v8134 = vadd.f32 %v8133, 1.0
        %v8135 = vmul.f32 %v8134, %v7026
        %v8136 = vand.u32 2147483647, %v7026
        %vm8137 = vcmp.lt.f32.partialorder %v8136, 0.0004427343
        %v8138 = vsel %vm8137, %v8135, %v8132
        %v8139 = vadd.f32 %v7028, 1.0
        %v8140 = vlog2.pop %v8139
        %v8141 = vmul.f32 %v8140, 0.6931472
        %v8142 = vmul.f32 -0.5, %v7028
        %v8143 = vadd.f32 %v8142, 1.0
        %v8144 = vmul.f32 %v8143, %v7028
        %v8145 = vand.u32 2147483647, %v7028
        %vm8146 = vcmp.lt.f32.partialorder %v8145, 0.0004427343
        %v8147 = vsel %vm8146, %v8144, %v8141
        %v8148 = vadd.f32 %v7030, 1.0
        %v8149 = vlog2.pop %v8148
        %v8150 = vmul.f32 %v8149, 0.6931472
        %v8151 = vmul.f32 -0.5, %v7030
        %v8152 = vadd.f32 %v8151, 1.0
        %v8153 = vmul.f32 %v8152, %v7030
        %v8154 = vand.u32 2147483647, %v7030
        %vm8155 = vcmp.lt.f32.partialorder %v8154, 0.0004427343
        %v8156 = vsel %vm8155, %v8153, %v8150
        %v8157 = vadd.f32 %v7032, 1.0
        %v8158 = vlog2.pop %v8157
        %v8159 = vmul.f32 %v8158, 0.6931472
        %v8160 = vmul.f32 -0.5, %v7032
        %v8161 = vadd.f32 %v8160, 1.0
        %v8162 = vmul.f32 %v8161, %v7032
        %v8163 = vand.u32 2147483647, %v7032
        %vm8164 = vcmp.lt.f32.partialorder %v8163, 0.0004427343
        %v8165 = vsel %vm8164, %v8162, %v8159
        %v8166 = vadd.f32 %v7034, 1.0
        %v8167 = vlog2.pop %v8166
        %v8168 = vmul.f32 %v8167, 0.6931472
        %v8169 = vmul.f32 -0.5, %v7034
        %v8170 = vadd.f32 %v8169, 1.0
        %v8171 = vmul.f32 %v8170, %v7034
        %v8172 = vand.u32 2147483647, %v7034
        %vm8173 = vcmp.lt.f32.partialorder %v8172, 0.0004427343
        %v8174 = vsel %vm8173, %v8171, %v8168
        %v8175 = vadd.f32 %v7036, 1.0
        %v8176 = vlog2.pop %v8175
        %v8177 = vmul.f32 %v8176, 0.6931472
        %v8178 = vmul.f32 -0.5, %v7036
        %v8179 = vadd.f32 %v8178, 1.0
        %v8180 = vmul.f32 %v8179, %v7036
        %v8181 = vand.u32 2147483647, %v7036
        %vm8182 = vcmp.lt.f32.partialorder %v8181, 0.0004427343
        %v8183 = vsel %vm8182, %v8180, %v8177
        %v8184 = vadd.f32 %v7038, 1.0
        %v8185 = vlog2.pop %v8184
        %v8186 = vmul.f32 %v8185, 0.6931472
        %v8187 = vmul.f32 -0.5, %v7038
        %v8188 = vadd.f32 %v8187, 1.0
        %v8189 = vmul.f32 %v8188, %v7038
        %v8190 = vand.u32 2147483647, %v7038
        %vm8191 = vcmp.lt.f32.partialorder %v8190, 0.0004427343
        %v8192 = vsel %vm8191, %v8189, %v8186
        %v8193 = vadd.f32 %v7040, 1.0
        %v8194 = vlog2.pop %v8193
        %v8195 = vmul.f32 %v8194, 0.6931472
        %v8196 = vmul.f32 -0.5, %v7040
        %v8197 = vadd.f32 %v8196, 1.0
        %v8198 = vmul.f32 %v8197, %v7040
        %v8199 = vand.u32 2147483647, %v7040
        %vm8200 = vcmp.lt.f32.partialorder %v8199, 0.0004427343
        %v8201 = vsel %vm8200, %v8198, %v8195
        %v8202 = vadd.f32 %v7042, 1.0
        %v8203 = vlog2.pop %v8202
        %v8204 = vmul.f32 %v8203, 0.6931472
        %v8205 = vmul.f32 -0.5, %v7042
        %v8206 = vadd.f32 %v8205, 1.0
        %v8207 = vmul.f32 %v8206, %v7042
        %v8208 = vand.u32 2147483647, %v7042
        %vm8209 = vcmp.lt.f32.partialorder %v8208, 0.0004427343
        %v8210 = vsel %vm8209, %v8207, %v8204
        %v8211 = vadd.f32 %v7044, 1.0
        %v8212 = vlog2.pop %v8211
        %v8213 = vmul.f32 %v8212, 0.6931472
        %v8214 = vmul.f32 -0.5, %v7044
        %v8215 = vadd.f32 %v8214, 1.0
        %v8216 = vmul.f32 %v8215, %v7044
        %v8217 = vand.u32 2147483647, %v7044
        %vm8218 = vcmp.lt.f32.partialorder %v8217, 0.0004427343
        %v8219 = vsel %vm8218, %v8216, %v8213
        %v8220 = vadd.f32 %v7046, 1.0
        %v8221 = vlog2.pop %v8220
        %v8222 = vmul.f32 %v8221, 0.6931472
        %v8223 = vmul.f32 -0.5, %v7046
        %v8224 = vadd.f32 %v8223, 1.0
        %v8225 = vmul.f32 %v8224, %v7046
        %v8226 = vand.u32 2147483647, %v7046
        %vm8227 = vcmp.lt.f32.partialorder %v8226, 0.0004427343
        %v8228 = vsel %vm8227, %v8225, %v8222
        %v8229 = vadd.f32 %v7048, 1.0
        %v8230 = vlog2.pop %v8229
        %v8231 = vmul.f32 %v8230, 0.6931472
        %v8232 = vmul.f32 -0.5, %v7048
        %v8233 = vadd.f32 %v8232, 1.0
        %v8234 = vmul.f32 %v8233, %v7048
        %v8235 = vand.u32 2147483647, %v7048
        %vm8236 = vcmp.lt.f32.partialorder %v8235, 0.0004427343
        %v8237 = vsel %vm8236, %v8234, %v8231
        %v8238 = vadd.f32 %v7050, 1.0
        %v8239 = vlog2.pop %v8238
        %v8240 = vmul.f32 %v8239, 0.6931472
        %v8241 = vmul.f32 -0.5, %v7050
        %v8242 = vadd.f32 %v8241, 1.0
        %v8243 = vmul.f32 %v8242, %v7050
        %v8244 = vand.u32 2147483647, %v7050
        %vm8245 = vcmp.lt.f32.partialorder %v8244, 0.0004427343
        %v8246 = vsel %vm8245, %v8243, %v8240
        %v8247 = vadd.f32 %v7052, 1.0
        %v8248 = vlog2.pop %v8247
        %v8249 = vmul.f32 %v8248, 0.6931472
        %v8250 = vmul.f32 -0.5, %v7052
        %v8251 = vadd.f32 %v8250, 1.0
        %v8252 = vmul.f32 %v8251, %v7052
        %v8253 = vand.u32 2147483647, %v7052
        %vm8254 = vcmp.lt.f32.partialorder %v8253, 0.0004427343
        %v8255 = vsel %vm8254, %v8252, %v8249
        %v8256 = vadd.f32 %v7054, 1.0
        %v8257 = vlog2.pop %v8256
        %v8258 = vmul.f32 %v8257, 0.6931472
        %v8259 = vmul.f32 -0.5, %v7054
        %v8260 = vadd.f32 %v8259, 1.0
        %v8261 = vmul.f32 %v8260, %v7054
        %v8262 = vand.u32 2147483647, %v7054
        %vm8263 = vcmp.lt.f32.partialorder %v8262, 0.0004427343
        %v8264 = vsel %vm8263, %v8261, %v8258
        %v8265 = vadd.f32 %v7056, 1.0
        %v8266 = vlog2.pop %v8265
        %v8267 = vmul.f32 %v8266, 0.6931472
        %v8268 = vmul.f32 -0.5, %v7056
        %v8269 = vadd.f32 %v8268, 1.0
        %v8270 = vmul.f32 %v8269, %v7056
        %v8271 = vand.u32 2147483647, %v7056
        %vm8272 = vcmp.lt.f32.partialorder %v8271, 0.0004427343
        %v8273 = vsel %vm8272, %v8270, %v8267
        %v8274 = vadd.f32 %v7058, 1.0
        %v8275 = vlog2.pop %v8274
        %v8276 = vmul.f32 %v8275, 0.6931472
        %v8277 = vmul.f32 -0.5, %v7058
        %v8278 = vadd.f32 %v8277, 1.0
        %v8279 = vmul.f32 %v8278, %v7058
        %v8280 = vand.u32 2147483647, %v7058
        %vm8281 = vcmp.lt.f32.partialorder %v8280, 0.0004427343
        %v8282 = vsel %vm8281, %v8279, %v8276
        %v8283 = vadd.f32 %v7060, 1.0
        %v8284 = vlog2.pop %v8283
        %v8285 = vmul.f32 %v8284, 0.6931472
        %v8286 = vmul.f32 -0.5, %v7060
        %v8287 = vadd.f32 %v8286, 1.0
        %v8288 = vmul.f32 %v8287, %v7060
        %v8289 = vand.u32 2147483647, %v7060
        %vm8290 = vcmp.lt.f32.partialorder %v8289, 0.0004427343
        %v8291 = vsel %vm8290, %v8288, %v8285
        %v8292 = vadd.f32 %v7062, 1.0
        %v8293 = vlog2.pop %v8292
        %v8294 = vmul.f32 %v8293, 0.6931472
        %v8295 = vmul.f32 -0.5, %v7062
        %v8296 = vadd.f32 %v8295, 1.0
        %v8297 = vmul.f32 %v8296, %v7062
        %v8298 = vand.u32 2147483647, %v7062
        %vm8299 = vcmp.lt.f32.partialorder %v8298, 0.0004427343
        %v8300 = vsel %vm8299, %v8297, %v8294
        %v8301 = vadd.f32 %v7064, 1.0
        %v8302 = vlog2.pop %v8301
        %v8303 = vmul.f32 %v8302, 0.6931472
        %v8304 = vmul.f32 -0.5, %v7064
        %v8305 = vadd.f32 %v8304, 1.0
        %v8306 = vmul.f32 %v8305, %v7064
        %v8307 = vand.u32 2147483647, %v7064
        %vm8308 = vcmp.lt.f32.partialorder %v8307, 0.0004427343
        %v8309 = vsel %vm8308, %v8306, %v8303
        %v8310 = vadd.f32 %v7066, 1.0
        %v8311 = vlog2.pop %v8310
        %v8312 = vmul.f32 %v8311, 0.6931472
        %v8313 = vmul.f32 -0.5, %v7066
        %v8314 = vadd.f32 %v8313, 1.0
        %v8315 = vmul.f32 %v8314, %v7066
        %v8316 = vand.u32 2147483647, %v7066
        %vm8317 = vcmp.lt.f32.partialorder %v8316, 0.0004427343
        %v8318 = vsel %vm8317, %v8315, %v8312
        %v8319 = vadd.f32 %v7068, 1.0
        %v8320 = vlog2.pop %v8319
        %v8321 = vmul.f32 %v8320, 0.6931472
        %v8322 = vmul.f32 -0.5, %v7068
        %v8323 = vadd.f32 %v8322, 1.0
        %v8324 = vmul.f32 %v8323, %v7068
        %v8325 = vand.u32 2147483647, %v7068
        %vm8326 = vcmp.lt.f32.partialorder %v8325, 0.0004427343
        %v8327 = vsel %vm8326, %v8324, %v8321
        %v8328 = vadd.f32 %v7070, 1.0
        %v8329 = vlog2.pop %v8328
        %v8330 = vmul.f32 %v8329, 0.6931472
        %v8331 = vmul.f32 -0.5, %v7070
        %v8332 = vadd.f32 %v8331, 1.0
        %v8333 = vmul.f32 %v8332, %v7070
        %v8334 = vand.u32 2147483647, %v7070
        %vm8335 = vcmp.lt.f32.partialorder %v8334, 0.0004427343
        %v8336 = vsel %vm8335, %v8333, %v8330
        %v8337 = vadd.f32 %v7072, 1.0
        %v8338 = vlog2.pop %v8337
        %v8339 = vmul.f32 %v8338, 0.6931472
        %v8340 = vmul.f32 -0.5, %v7072
        %v8341 = vadd.f32 %v8340, 1.0
        %v8342 = vmul.f32 %v8341, %v7072
        %v8343 = vand.u32 2147483647, %v7072
        %vm8344 = vcmp.lt.f32.partialorder %v8343, 0.0004427343
        %v8345 = vsel %vm8344, %v8342, %v8339
        %v8346 = vadd.f32 %v7074, 1.0
        %v8347 = vlog2.pop %v8346
        %v8348 = vmul.f32 %v8347, 0.6931472
        %v8349 = vmul.f32 -0.5, %v7074
        %v8350 = vadd.f32 %v8349, 1.0
        %v8351 = vmul.f32 %v8350, %v7074
        %v8352 = vand.u32 2147483647, %v7074
        %vm8353 = vcmp.lt.f32.partialorder %v8352, 0.0004427343
        %v8354 = vsel %vm8353, %v8351, %v8348
        %v8355 = vadd.f32 %v7076, 1.0
        %v8356 = vlog2.pop %v8355
        %v8357 = vmul.f32 %v8356, 0.6931472
        %v8358 = vmul.f32 -0.5, %v7076
        %v8359 = vadd.f32 %v8358, 1.0
        %v8360 = vmul.f32 %v8359, %v7076
        %v8361 = vand.u32 2147483647, %v7076
        %vm8362 = vcmp.lt.f32.partialorder %v8361, 0.0004427343
        %v8363 = vsel %vm8362, %v8360, %v8357
        %v8364 = vadd.f32 %v7078, 1.0
        %v8365 = vlog2.pop %v8364
        %v8366 = vmul.f32 %v8365, 0.6931472
        %v8367 = vmul.f32 -0.5, %v7078
        %v8368 = vadd.f32 %v8367, 1.0
        %v8369 = vmul.f32 %v8368, %v7078
        %v8370 = vand.u32 2147483647, %v7078
        %vm8371 = vcmp.lt.f32.partialorder %v8370, 0.0004427343
        %v8372 = vsel %vm8371, %v8369, %v8366
        %v8373 = vadd.f32 %v7080, 1.0
        %v8374 = vlog2.pop %v8373
        %v8375 = vmul.f32 %v8374, 0.6931472
        %v8376 = vmul.f32 -0.5, %v7080
        %v8377 = vadd.f32 %v8376, 1.0
        %v8378 = vmul.f32 %v8377, %v7080
        %v8379 = vand.u32 2147483647, %v7080
        %vm8380 = vcmp.lt.f32.partialorder %v8379, 0.0004427343
        %v8381 = vsel %vm8380, %v8378, %v8375
        %v8382 = vadd.f32 %v7082, 1.0
        %v8383 = vlog2.pop %v8382
        %v8384 = vmul.f32 %v8383, 0.6931472
        %v8385 = vmul.f32 -0.5, %v7082
        %v8386 = vadd.f32 %v8385, 1.0
        %v8387 = vmul.f32 %v8386, %v7082
        %v8388 = vand.u32 2147483647, %v7082
        %vm8389 = vcmp.lt.f32.partialorder %v8388, 0.0004427343
        %v8390 = vsel %vm8389, %v8387, %v8384
        %v8391 = vadd.f32 %v7084, 1.0
        %v8392 = vlog2.pop %v8391
        %v8393 = vmul.f32 %v8392, 0.6931472
        %v8394 = vmul.f32 -0.5, %v7084
        %v8395 = vadd.f32 %v8394, 1.0
        %v8396 = vmul.f32 %v8395, %v7084
        %v8397 = vand.u32 2147483647, %v7084
        %vm8398 = vcmp.lt.f32.partialorder %v8397, 0.0004427343
        %v8399 = vsel %vm8398, %v8396, %v8393
        %v8400 = vadd.f32 %v7086, 1.0
        %v8401 = vlog2.pop %v8400
        %v8402 = vmul.f32 %v8401, 0.6931472
        %v8403 = vmul.f32 -0.5, %v7086
        %v8404 = vadd.f32 %v8403, 1.0
        %v8405 = vmul.f32 %v8404, %v7086
        %v8406 = vand.u32 2147483647, %v7086
        %vm8407 = vcmp.lt.f32.partialorder %v8406, 0.0004427343
        %v8408 = vsel %vm8407, %v8405, %v8402
        %v8409 = vadd.f32 %v7088, 1.0
        %v8410 = vlog2.pop %v8409
        %v8411 = vmul.f32 %v8410, 0.6931472
        %v8412 = vmul.f32 -0.5, %v7088
        %v8413 = vadd.f32 %v8412, 1.0
        %v8414 = vmul.f32 %v8413, %v7088
        %v8415 = vand.u32 2147483647, %v7088
        %vm8416 = vcmp.lt.f32.partialorder %v8415, 0.0004427343
        %v8417 = vsel %vm8416, %v8414, %v8411
        %v8418 = vadd.f32 %v7090, 1.0
        %v8419 = vlog2.pop %v8418
        %v8420 = vmul.f32 %v8419, 0.6931472
        %v8421 = vmul.f32 -0.5, %v7090
        %v8422 = vadd.f32 %v8421, 1.0
        %v8423 = vmul.f32 %v8422, %v7090
        %v8424 = vand.u32 2147483647, %v7090
        %vm8425 = vcmp.lt.f32.partialorder %v8424, 0.0004427343
        %v8426 = vsel %vm8425, %v8423, %v8420
        %v8427 = vadd.f32 %v7092, 1.0
        %v8428 = vlog2.pop %v8427
        %v8429 = vmul.f32 %v8428, 0.6931472
        %v8430 = vmul.f32 -0.5, %v7092
        %v8431 = vadd.f32 %v8430, 1.0
        %v8432 = vmul.f32 %v8431, %v7092
        %v8433 = vand.u32 2147483647, %v7092
        %vm8434 = vcmp.lt.f32.partialorder %v8433, 0.0004427343
        %v8435 = vsel %vm8434, %v8432, %v8429
        %v8436 = vadd.f32 %v7094, 1.0
        %v8437 = vlog2.pop %v8436
        %v8438 = vmul.f32 %v8437, 0.6931472
        %v8439 = vmul.f32 -0.5, %v7094
        %v8440 = vadd.f32 %v8439, 1.0
        %v8441 = vmul.f32 %v8440, %v7094
        %v8442 = vand.u32 2147483647, %v7094
        %vm8443 = vcmp.lt.f32.partialorder %v8442, 0.0004427343
        %v8444 = vsel %vm8443, %v8441, %v8438
        %v8445 = vadd.f32 %v7096, 1.0
        %v8446 = vlog2.pop %v8445
        %v8447 = vmul.f32 %v8446, 0.6931472
        %v8448 = vmul.f32 -0.5, %v7096
        %v8449 = vadd.f32 %v8448, 1.0
        %v8450 = vmul.f32 %v8449, %v7096
        %v8451 = vand.u32 2147483647, %v7096
        %vm8452 = vcmp.lt.f32.partialorder %v8451, 0.0004427343
        %v8453 = vsel %vm8452, %v8450, %v8447
        %v8454 = vadd.f32 %v7098, 1.0
        %v8455 = vlog2.pop %v8454
        %v8456 = vmul.f32 %v8455, 0.6931472
        %v8457 = vmul.f32 -0.5, %v7098
        %v8458 = vadd.f32 %v8457, 1.0
        %v8459 = vmul.f32 %v8458, %v7098
        %v8460 = vand.u32 2147483647, %v7098
        %vm8461 = vcmp.lt.f32.partialorder %v8460, 0.0004427343
        %v8462 = vsel %vm8461, %v8459, %v8456
        %v8463 = vadd.f32 %v7100, 1.0
        %v8464 = vlog2.pop %v8463
        %v8465 = vmul.f32 %v8464, 0.6931472
        %v8466 = vmul.f32 -0.5, %v7100
        %v8467 = vadd.f32 %v8466, 1.0
        %v8468 = vmul.f32 %v8467, %v7100
        %v8469 = vand.u32 2147483647, %v7100
        %vm8470 = vcmp.lt.f32.partialorder %v8469, 0.0004427343
        %v8471 = vsel %vm8470, %v8468, %v8465
        %v8472 = vadd.f32 %v7102, 1.0
        %v8473 = vlog2.pop %v8472
        %v8474 = vmul.f32 %v8473, 0.6931472
        %v8475 = vmul.f32 -0.5, %v7102
        %v8476 = vadd.f32 %v8475, 1.0
        %v8477 = vmul.f32 %v8476, %v7102
        %v8478 = vand.u32 2147483647, %v7102
        %vm8479 = vcmp.lt.f32.partialorder %v8478, 0.0004427343
        %v8480 = vsel %vm8479, %v8477, %v8474
        %v8481 = vadd.f32 %v7104, 1.0
        %v8482 = vlog2.pop %v8481
        %v8483 = vmul.f32 %v8482, 0.6931472
        %v8484 = vmul.f32 -0.5, %v7104
        %v8485 = vadd.f32 %v8484, 1.0
        %v8486 = vmul.f32 %v8485, %v7104
        %v8487 = vand.u32 2147483647, %v7104
        %vm8488 = vcmp.lt.f32.partialorder %v8487, 0.0004427343
        %v8489 = vsel %vm8488, %v8486, %v8483
        %v8490 = vadd.f32 %v7106, 1.0
        %v8491 = vlog2.pop %v8490
        %v8492 = vmul.f32 %v8491, 0.6931472
        %v8493 = vmul.f32 -0.5, %v7106
        %v8494 = vadd.f32 %v8493, 1.0
        %v8495 = vmul.f32 %v8494, %v7106
        %v8496 = vand.u32 2147483647, %v7106
        %vm8497 = vcmp.lt.f32.partialorder %v8496, 0.0004427343
        %v8498 = vsel %vm8497, %v8495, %v8492
        %v8499 = vadd.f32 %v7108, 1.0
        %v8500 = vlog2.pop %v8499
        %v8501 = vmul.f32 %v8500, 0.6931472
        %v8502 = vmul.f32 -0.5, %v7108
        %v8503 = vadd.f32 %v8502, 1.0
        %v8504 = vmul.f32 %v8503, %v7108
        %v8505 = vand.u32 2147483647, %v7108
        %vm8506 = vcmp.lt.f32.partialorder %v8505, 0.0004427343
        %v8507 = vsel %vm8506, %v8504, %v8501
        %v8508 = vadd.f32 %v7110, 1.0
        %v8509 = vlog2.pop %v8508
        %v8510 = vmul.f32 %v8509, 0.6931472
        %v8511 = vmul.f32 -0.5, %v7110
        %v8512 = vadd.f32 %v8511, 1.0
        %v8513 = vmul.f32 %v8512, %v7110
        %v8514 = vand.u32 2147483647, %v7110
        %vm8515 = vcmp.lt.f32.partialorder %v8514, 0.0004427343
        %v8516 = vsel %vm8515, %v8513, %v8510
        %v8517 = vadd.f32 %v7112, 1.0
        %v8518 = vlog2.pop %v8517
        %v8519 = vmul.f32 %v8518, 0.6931472
        %v8520 = vmul.f32 -0.5, %v7112
        %v8521 = vadd.f32 %v8520, 1.0
        %v8522 = vmul.f32 %v8521, %v7112
        %v8523 = vand.u32 2147483647, %v7112
        %vm8524 = vcmp.lt.f32.partialorder %v8523, 0.0004427343
        %v8525 = vsel %vm8524, %v8522, %v8519
        %v8526 = vadd.f32 %v7114, 1.0
        %v8527 = vlog2.pop %v8526
        %v8528 = vmul.f32 %v8527, 0.6931472
        %v8529 = vmul.f32 -0.5, %v7114
        %v8530 = vadd.f32 %v8529, 1.0
        %v8531 = vmul.f32 %v8530, %v7114
        %v8532 = vand.u32 2147483647, %v7114
        %vm8533 = vcmp.lt.f32.partialorder %v8532, 0.0004427343
        %v8534 = vsel %vm8533, %v8531, %v8528
        %v8535 = vadd.f32 %v7116, 1.0
        %v8536 = vlog2.pop %v8535
        %v8537 = vmul.f32 %v8536, 0.6931472
        %v8538 = vmul.f32 -0.5, %v7116
        %v8539 = vadd.f32 %v8538, 1.0
        %v8540 = vmul.f32 %v8539, %v7116
        %v8541 = vand.u32 2147483647, %v7116
        %vm8542 = vcmp.lt.f32.partialorder %v8541, 0.0004427343
        %v8543 = vsel %vm8542, %v8540, %v8537
        %v8544 = vadd.f32 %v7118, 1.0
        %v8545 = vlog2.pop %v8544
        %v8546 = vmul.f32 %v8545, 0.6931472
        %v8547 = vmul.f32 -0.5, %v7118
        %v8548 = vadd.f32 %v8547, 1.0
        %v8549 = vmul.f32 %v8548, %v7118
        %v8550 = vand.u32 2147483647, %v7118
        %vm8551 = vcmp.lt.f32.partialorder %v8550, 0.0004427343
        %v8552 = vsel %vm8551, %v8549, %v8546
        %v8553 = vadd.f32 %v7120, 1.0
        %v8554 = vlog2.pop %v8553
        %v8555 = vmul.f32 %v8554, 0.6931472
        %v8556 = vmul.f32 -0.5, %v7120
        %v8557 = vadd.f32 %v8556, 1.0
        %v8558 = vmul.f32 %v8557, %v7120
        %v8559 = vand.u32 2147483647, %v7120
        %vm8560 = vcmp.lt.f32.partialorder %v8559, 0.0004427343
        %v8561 = vsel %vm8560, %v8558, %v8555
        %v8562 = vadd.f32 %v7122, 1.0
        %v8563 = vlog2.pop %v8562
        %v8564 = vmul.f32 %v8563, 0.6931472
        %v8565 = vmul.f32 -0.5, %v7122
        %v8566 = vadd.f32 %v8565, 1.0
        %v8567 = vmul.f32 %v8566, %v7122
        %v8568 = vand.u32 2147483647, %v7122
        %vm8569 = vcmp.lt.f32.partialorder %v8568, 0.0004427343
        %v8570 = vsel %vm8569, %v8567, %v8564
        %v8571 = vadd.f32 %v7124, 1.0
        %v8572 = vlog2.pop %v8571
        %v8573 = vmul.f32 %v8572, 0.6931472
        %v8574 = vmul.f32 -0.5, %v7124
        %v8575 = vadd.f32 %v8574, 1.0
        %v8576 = vmul.f32 %v8575, %v7124
        %v8577 = vand.u32 2147483647, %v7124
        %vm8578 = vcmp.lt.f32.partialorder %v8577, 0.0004427343
        %v8579 = vsel %vm8578, %v8576, %v8573
        %v8580 = vadd.f32 %v7126, 1.0
        %v8581 = vlog2.pop %v8580
        %v8582 = vmul.f32 %v8581, 0.6931472
        %v8583 = vmul.f32 -0.5, %v7126
        %v8584 = vadd.f32 %v8583, 1.0
        %v8585 = vmul.f32 %v8584, %v7126
        %v8586 = vand.u32 2147483647, %v7126
        %vm8587 = vcmp.lt.f32.partialorder %v8586, 0.0004427343
        %v8588 = vsel %vm8587, %v8585, %v8582
        %v8589 = vadd.f32 %v7128, 1.0
        %v8590 = vlog2.pop %v8589
        %v8591 = vmul.f32 %v8590, 0.6931472
        %v8592 = vmul.f32 -0.5, %v7128
        %v8593 = vadd.f32 %v8592, 1.0
        %v8594 = vmul.f32 %v8593, %v7128
        %v8595 = vand.u32 2147483647, %v7128
        %vm8596 = vcmp.lt.f32.partialorder %v8595, 0.0004427343
        %v8597 = vsel %vm8596, %v8594, %v8591
        %v8598 = vadd.f32 %v7130, 1.0
        %v8599 = vlog2.pop %v8598
        %v8600 = vmul.f32 %v8599, 0.6931472
        %v8601 = vmul.f32 -0.5, %v7130
        %v8602 = vadd.f32 %v8601, 1.0
        %v8603 = vmul.f32 %v8602, %v7130
        %v8604 = vand.u32 2147483647, %v7130
        %vm8605 = vcmp.lt.f32.partialorder %v8604, 0.0004427343
        %v8606 = vsel %vm8605, %v8603, %v8600
        %v8607 = vadd.f32 %v7132, 1.0
        %v8608 = vlog2.pop %v8607
        %v8609 = vmul.f32 %v8608, 0.6931472
        %v8610 = vmul.f32 -0.5, %v7132
        %v8611 = vadd.f32 %v8610, 1.0
        %v8612 = vmul.f32 %v8611, %v7132
        %v8613 = vand.u32 2147483647, %v7132
        %vm8614 = vcmp.lt.f32.partialorder %v8613, 0.0004427343
        %v8615 = vsel %vm8614, %v8612, %v8609
        %v8616 = vadd.f32 %v7134, 1.0
        %v8617 = vlog2.pop %v8616
        %v8618 = vmul.f32 %v8617, 0.6931472
        %v8619 = vmul.f32 -0.5, %v7134
        %v8620 = vadd.f32 %v8619, 1.0
        %v8621 = vmul.f32 %v8620, %v7134
        %v8622 = vand.u32 2147483647, %v7134
        %vm8623 = vcmp.lt.f32.partialorder %v8622, 0.0004427343
        %v8624 = vsel %vm8623, %v8621, %v8618
        %v8625 = vadd.f32 %v7136, 1.0
        %v8626 = vlog2.pop %v8625
        %v8627 = vmul.f32 %v8626, 0.6931472
        %v8628 = vmul.f32 -0.5, %v7136
        %v8629 = vadd.f32 %v8628, 1.0
        %v8630 = vmul.f32 %v8629, %v7136
        %v8631 = vand.u32 2147483647, %v7136
        %vm8632 = vcmp.lt.f32.partialorder %v8631, 0.0004427343
        %v8633 = vsel %vm8632, %v8630, %v8627
        %v8634 = vadd.f32 %v7138, 1.0
        %v8635 = vlog2.pop %v8634
        %v8636 = vmul.f32 %v8635, 0.6931472
        %v8637 = vmul.f32 -0.5, %v7138
        %v8638 = vadd.f32 %v8637, 1.0
        %v8639 = vmul.f32 %v8638, %v7138
        %v8640 = vand.u32 2147483647, %v7138
        %vm8641 = vcmp.lt.f32.partialorder %v8640, 0.0004427343
        %v8642 = vsel %vm8641, %v8639, %v8636
        %v8643 = vadd.f32 %v7140, 1.0
        %v8644 = vlog2.pop %v8643
        %v8645 = vmul.f32 %v8644, 0.6931472
        %v8646 = vmul.f32 -0.5, %v7140
        %v8647 = vadd.f32 %v8646, 1.0
        %v8648 = vmul.f32 %v8647, %v7140
        %v8649 = vand.u32 2147483647, %v7140
        %vm8650 = vcmp.lt.f32.partialorder %v8649, 0.0004427343
        %v8651 = vsel %vm8650, %v8648, %v8645
        %v8652 = vadd.f32 %v7142, 1.0
        %v8653 = vlog2.pop %v8652
        %v8654 = vmul.f32 %v8653, 0.6931472
        %v8655 = vmul.f32 -0.5, %v7142
        %v8656 = vadd.f32 %v8655, 1.0
        %v8657 = vmul.f32 %v8656, %v7142
        %v8658 = vand.u32 2147483647, %v7142
        %vm8659 = vcmp.lt.f32.partialorder %v8658, 0.0004427343
        %v8660 = vsel %vm8659, %v8657, %v8654
        %v8661 = vadd.f32 %v7144, 1.0
        %v8662 = vlog2.pop %v8661
        %v8663 = vmul.f32 %v8662, 0.6931472
        %v8664 = vmul.f32 -0.5, %v7144
        %v8665 = vadd.f32 %v8664, 1.0
        %v8666 = vmul.f32 %v8665, %v7144
        %v8667 = vand.u32 2147483647, %v7144
        %vm8668 = vcmp.lt.f32.partialorder %v8667, 0.0004427343
        %v8669 = vsel %vm8668, %v8666, %v8663
        %v8670 = vadd.f32 %v7146, 1.0
        %v8671 = vlog2.pop %v8670
        %v8672 = vmul.f32 %v8671, 0.6931472
        %v8673 = vmul.f32 -0.5, %v7146
        %v8674 = vadd.f32 %v8673, 1.0
        %v8675 = vmul.f32 %v8674, %v7146
        %v8676 = vand.u32 2147483647, %v7146
        %vm8677 = vcmp.lt.f32.partialorder %v8676, 0.0004427343
        %v8678 = vsel %vm8677, %v8675, %v8672
        %v8679 = vadd.f32 %v7148, 1.0
        %v8680 = vlog2.pop %v8679
        %v8681 = vmul.f32 %v8680, 0.6931472
        %v8682 = vmul.f32 -0.5, %v7148
        %v8683 = vadd.f32 %v8682, 1.0
        %v8684 = vmul.f32 %v8683, %v7148
        %v8685 = vand.u32 2147483647, %v7148
        %vm8686 = vcmp.lt.f32.partialorder %v8685, 0.0004427343
        %v8687 = vsel %vm8686, %v8684, %v8681
        %v8688 = vadd.f32 %v7150, 1.0
        %v8689 = vlog2.pop %v8688
        %v8690 = vmul.f32 %v8689, 0.6931472
        %v8691 = vmul.f32 -0.5, %v7150
        %v8692 = vadd.f32 %v8691, 1.0
        %v8693 = vmul.f32 %v8692, %v7150
        %v8694 = vand.u32 2147483647, %v7150
        %vm8695 = vcmp.lt.f32.partialorder %v8694, 0.0004427343
        %v8696 = vsel %vm8695, %v8693, %v8690
        %v8697 = vadd.f32 %v7152, 1.0
        %v8698 = vlog2.pop %v8697
        %v8699 = vmul.f32 %v8698, 0.6931472
        %v8700 = vmul.f32 -0.5, %v7152
        %v8701 = vadd.f32 %v8700, 1.0
        %v8702 = vmul.f32 %v8701, %v7152
        %v8703 = vand.u32 2147483647, %v7152
        %vm8704 = vcmp.lt.f32.partialorder %v8703, 0.0004427343
        %v8705 = vsel %vm8704, %v8702, %v8699
        %v8706 = vadd.f32 %v7154, 1.0
        %v8707 = vlog2.pop %v8706
        %v8708 = vmul.f32 %v8707, 0.6931472
        %v8709 = vmul.f32 -0.5, %v7154
        %v8710 = vadd.f32 %v8709, 1.0
        %v8711 = vmul.f32 %v8710, %v7154
        %v8712 = vand.u32 2147483647, %v7154
        %vm8713 = vcmp.lt.f32.partialorder %v8712, 0.0004427343
        %v8714 = vsel %vm8713, %v8711, %v8708
        %v8715 = vadd.f32 %v7156, 1.0
        %v8716 = vlog2.pop %v8715
        %v8717 = vmul.f32 %v8716, 0.6931472
        %v8718 = vmul.f32 -0.5, %v7156
        %v8719 = vadd.f32 %v8718, 1.0
        %v8720 = vmul.f32 %v8719, %v7156
        %v8721 = vand.u32 2147483647, %v7156
        %vm8722 = vcmp.lt.f32.partialorder %v8721, 0.0004427343
        %v8723 = vsel %vm8722, %v8720, %v8717
        %v8724 = vadd.f32 %v7158, 1.0
        %v8725 = vlog2.pop %v8724
        %v8726 = vmul.f32 %v8725, 0.6931472
        %v8727 = vmul.f32 -0.5, %v7158
        %v8728 = vadd.f32 %v8727, 1.0
        %v8729 = vmul.f32 %v8728, %v7158
        %v8730 = vand.u32 2147483647, %v7158
        %vm8731 = vcmp.lt.f32.partialorder %v8730, 0.0004427343
        %v8732 = vsel %vm8731, %v8729, %v8726
        %v8733 = vadd.f32 %v7160, 1.0
        %v8734 = vlog2.pop %v8733
        %v8735 = vmul.f32 %v8734, 0.6931472
        %v8736 = vmul.f32 -0.5, %v7160
        %v8737 = vadd.f32 %v8736, 1.0
        %v8738 = vmul.f32 %v8737, %v7160
        %v8739 = vand.u32 2147483647, %v7160
        %vm8740 = vcmp.lt.f32.partialorder %v8739, 0.0004427343
        %v8741 = vsel %vm8740, %v8738, %v8735
        %v8742 = vadd.f32 %v7162, 1.0
        %v8743 = vlog2.pop %v8742
        %v8744 = vmul.f32 %v8743, 0.6931472
        %v8745 = vmul.f32 -0.5, %v7162
        %v8746 = vadd.f32 %v8745, 1.0
        %v8747 = vmul.f32 %v8746, %v7162
        %v8748 = vand.u32 2147483647, %v7162
        %vm8749 = vcmp.lt.f32.partialorder %v8748, 0.0004427343
        %v8750 = vsel %vm8749, %v8747, %v8744
        %v8751 = vadd.f32 %v7164, 1.0
        %v8752 = vlog2.pop %v8751
        %v8753 = vmul.f32 %v8752, 0.6931472
        %v8754 = vmul.f32 -0.5, %v7164
        %v8755 = vadd.f32 %v8754, 1.0
        %v8756 = vmul.f32 %v8755, %v7164
        %v8757 = vand.u32 2147483647, %v7164
        %vm8758 = vcmp.lt.f32.partialorder %v8757, 0.0004427343
        %v8759 = vsel %vm8758, %v8756, %v8753
        %v8760 = vadd.f32 %v7166, 1.0
        %v8761 = vlog2.pop %v8760
        %v8762 = vmul.f32 %v8761, 0.6931472
        %v8763 = vmul.f32 -0.5, %v7166
        %v8764 = vadd.f32 %v8763, 1.0
        %v8765 = vmul.f32 %v8764, %v7166
        %v8766 = vand.u32 2147483647, %v7166
        %vm8767 = vcmp.lt.f32.partialorder %v8766, 0.0004427343
        %v8768 = vsel %vm8767, %v8765, %v8762
        %v8769 = vadd.f32 %v7168, 1.0
        %v8770 = vlog2.pop %v8769
        %v8771 = vmul.f32 %v8770, 0.6931472
        %v8772 = vmul.f32 -0.5, %v7168
        %v8773 = vadd.f32 %v8772, 1.0
        %v8774 = vmul.f32 %v8773, %v7168
        %v8775 = vand.u32 2147483647, %v7168
        %vm8776 = vcmp.lt.f32.partialorder %v8775, 0.0004427343
        %v8777 = vsel %vm8776, %v8774, %v8771
        %v8778 = vadd.f32 %v7170, 1.0
        %v8779 = vlog2.pop %v8778
        %v8780 = vmul.f32 %v8779, 0.6931472
        %v8781 = vmul.f32 -0.5, %v7170
        %v8782 = vadd.f32 %v8781, 1.0
        %v8783 = vmul.f32 %v8782, %v7170
        %v8784 = vand.u32 2147483647, %v7170
        %vm8785 = vcmp.lt.f32.partialorder %v8784, 0.0004427343
        %v8786 = vsel %vm8785, %v8783, %v8780
        %v8787 = vadd.f32 %v7172, 1.0
        %v8788 = vlog2.pop %v8787
        %v8789 = vmul.f32 %v8788, 0.6931472
        %v8790 = vmul.f32 -0.5, %v7172
        %v8791 = vadd.f32 %v8790, 1.0
        %v8792 = vmul.f32 %v8791, %v7172
        %v8793 = vand.u32 2147483647, %v7172
        %vm8794 = vcmp.lt.f32.partialorder %v8793, 0.0004427343
        %v8795 = vsel %vm8794, %v8792, %v8789
        %v8796 = vadd.f32 %v7174, 1.0
        %v8797 = vlog2.pop %v8796
        %v8798 = vmul.f32 %v8797, 0.6931472
        %v8799 = vmul.f32 -0.5, %v7174
        %v8800 = vadd.f32 %v8799, 1.0
        %v8801 = vmul.f32 %v8800, %v7174
        %v8802 = vand.u32 2147483647, %v7174
        %vm8803 = vcmp.lt.f32.partialorder %v8802, 0.0004427343
        %v8804 = vsel %vm8803, %v8801, %v8798
        %v8805 = vadd.f32 %v7176, 1.0
        %v8806 = vlog2.pop %v8805
        %v8807 = vmul.f32 %v8806, 0.6931472
        %v8808 = vmul.f32 -0.5, %v7176
        %v8809 = vadd.f32 %v8808, 1.0
        %v8810 = vmul.f32 %v8809, %v7176
        %v8811 = vand.u32 2147483647, %v7176
        %vm8812 = vcmp.lt.f32.partialorder %v8811, 0.0004427343
        %v8813 = vsel %vm8812, %v8810, %v8807
        %v8814 = vadd.f32 %v7178, 1.0
        %v8815 = vlog2.pop %v8814
        %v8816 = vmul.f32 %v8815, 0.6931472
        %v8817 = vmul.f32 -0.5, %v7178
        %v8818 = vadd.f32 %v8817, 1.0
        %v8819 = vmul.f32 %v8818, %v7178
        %v8820 = vand.u32 2147483647, %v7178
        %vm8821 = vcmp.lt.f32.partialorder %v8820, 0.0004427343
        %v8822 = vsel %vm8821, %v8819, %v8816
        %v8823 = vadd.f32 %v7180, 1.0
        %v8824 = vlog2.pop %v8823
        %v8825 = vmul.f32 %v8824, 0.6931472
        %v8826 = vmul.f32 -0.5, %v7180
        %v8827 = vadd.f32 %v8826, 1.0
        %v8828 = vmul.f32 %v8827, %v7180
        %v8829 = vand.u32 2147483647, %v7180
        %vm8830 = vcmp.lt.f32.partialorder %v8829, 0.0004427343
        %v8831 = vsel %vm8830, %v8828, %v8825
        %v8832 = vadd.f32 %v7182, 1.0
        %v8833 = vlog2.pop %v8832
        %v8834 = vmul.f32 %v8833, 0.6931472
        %v8835 = vmul.f32 -0.5, %v7182
        %v8836 = vadd.f32 %v8835, 1.0
        %v8837 = vmul.f32 %v8836, %v7182
        %v8838 = vand.u32 2147483647, %v7182
        %vm8839 = vcmp.lt.f32.partialorder %v8838, 0.0004427343
        %v8840 = vsel %vm8839, %v8837, %v8834
        %v8841 = vadd.f32 %v7184, 1.0
        %v8842 = vlog2.pop %v8841
        %v8843 = vmul.f32 %v8842, 0.6931472
        %v8844 = vmul.f32 -0.5, %v7184
        %v8845 = vadd.f32 %v8844, 1.0
        %v8846 = vmul.f32 %v8845, %v7184
        %v8847 = vand.u32 2147483647, %v7184
        %vm8848 = vcmp.lt.f32.partialorder %v8847, 0.0004427343
        %v8849 = vsel %vm8848, %v8846, %v8843
        %v8850 = vadd.f32 %v7186, 1.0
        %v8851 = vlog2.pop %v8850
        %v8852 = vmul.f32 %v8851, 0.6931472
        %v8853 = vmul.f32 -0.5, %v7186
        %v8854 = vadd.f32 %v8853, 1.0
        %v8855 = vmul.f32 %v8854, %v7186
        %v8856 = vand.u32 2147483647, %v7186
        %vm8857 = vcmp.lt.f32.partialorder %v8856, 0.0004427343
        %v8858 = vsel %vm8857, %v8855, %v8852
        %v8859 = vadd.f32 %v7188, 1.0
        %v8860 = vlog2.pop %v8859
        %v8861 = vmul.f32 %v8860, 0.6931472
        %v8862 = vmul.f32 -0.5, %v7188
        %v8863 = vadd.f32 %v8862, 1.0
        %v8864 = vmul.f32 %v8863, %v7188
        %v8865 = vand.u32 2147483647, %v7188
        %vm8866 = vcmp.lt.f32.partialorder %v8865, 0.0004427343
        %v8867 = vsel %vm8866, %v8864, %v8861
        %v8868 = vadd.f32 %v7190, 1.0
        %v8869 = vlog2.pop %v8868
        %v8870 = vmul.f32 %v8869, 0.6931472
        %v8871 = vmul.f32 -0.5, %v7190
        %v8872 = vadd.f32 %v8871, 1.0
        %v8873 = vmul.f32 %v8872, %v7190
        %v8874 = vand.u32 2147483647, %v7190
        %vm8875 = vcmp.lt.f32.partialorder %v8874, 0.0004427343
        %v8876 = vsel %vm8875, %v8873, %v8870
        %v8877 = vadd.f32 %v7192, 1.0
        %v8878 = vlog2.pop %v8877
        %v8879 = vmul.f32 %v8878, 0.6931472
        %v8880 = vmul.f32 -0.5, %v7192
        %v8881 = vadd.f32 %v8880, 1.0
        %v8882 = vmul.f32 %v8881, %v7192
        %v8883 = vand.u32 2147483647, %v7192
        %vm8884 = vcmp.lt.f32.partialorder %v8883, 0.0004427343
        %v8885 = vsel %vm8884, %v8882, %v8879
        %v8886 = vadd.f32 %v7194, 1.0
        %v8887 = vlog2.pop %v8886
        %v8888 = vmul.f32 %v8887, 0.6931472
        %v8889 = vmul.f32 -0.5, %v7194
        %v8890 = vadd.f32 %v8889, 1.0
        %v8891 = vmul.f32 %v8890, %v7194
        %v8892 = vand.u32 2147483647, %v7194
        %vm8893 = vcmp.lt.f32.partialorder %v8892, 0.0004427343
        %v8894 = vsel %vm8893, %v8891, %v8888
        %v8895 = vadd.f32 %v7196, 1.0
        %v8896 = vlog2.pop %v8895
        %v8897 = vmul.f32 %v8896, 0.6931472
        %v8898 = vmul.f32 -0.5, %v7196
        %v8899 = vadd.f32 %v8898, 1.0
        %v8900 = vmul.f32 %v8899, %v7196
        %v8901 = vand.u32 2147483647, %v7196
        %vm8902 = vcmp.lt.f32.partialorder %v8901, 0.0004427343
        %v8903 = vsel %vm8902, %v8900, %v8897
        %v8904 = vadd.f32 %v7198, 1.0
        %v8905 = vlog2.pop %v8904
        %v8906 = vmul.f32 %v8905, 0.6931472
        %v8907 = vmul.f32 -0.5, %v7198
        %v8908 = vadd.f32 %v8907, 1.0
        %v8909 = vmul.f32 %v8908, %v7198
        %v8910 = vand.u32 2147483647, %v7198
        %vm8911 = vcmp.lt.f32.partialorder %v8910, 0.0004427343
        %v8912 = vsel %vm8911, %v8909, %v8906
        %v8913 = vadd.f32 %v7200, 1.0
        %v8914 = vlog2.pop %v8913
        %v8915 = vmul.f32 %v8914, 0.6931472
        %v8916 = vmul.f32 -0.5, %v7200
        %v8917 = vadd.f32 %v8916, 1.0
        %v8918 = vmul.f32 %v8917, %v7200
        %v8919 = vand.u32 2147483647, %v7200
        %vm8920 = vcmp.lt.f32.partialorder %v8919, 0.0004427343
        %v8921 = vsel %vm8920, %v8918, %v8915
        %v8922 = vadd.f32 %v7202, 1.0
        %v8923 = vlog2.pop %v8922
        %v8924 = vmul.f32 %v8923, 0.6931472
        %v8925 = vmul.f32 -0.5, %v7202
        %v8926 = vadd.f32 %v8925, 1.0
        %v8927 = vmul.f32 %v8926, %v7202
        %v8928 = vand.u32 2147483647, %v7202
        %vm8929 = vcmp.lt.f32.partialorder %v8928, 0.0004427343
        %v8930 = vsel %vm8929, %v8927, %v8924
        %v8931 = vsub.f32 %v6243, %v7211
        %v8932 = vsub.f32 %v6244, %v7220
        %v8933 = vsub.f32 %v6245, %v7229
        %v8934 = vsub.f32 %v6246, %v7238
        %v8935 = vsub.f32 %v6247, %v7247
        %v8936 = vsub.f32 %v6248, %v7256
        %v8937 = vsub.f32 %v6249, %v7265
        %v8938 = vsub.f32 %v6250, %v7274
        %v8939 = vsub.f32 %v6251, %v7283
        %v8940 = vsub.f32 %v6252, %v7292
        %v8941 = vsub.f32 %v6253, %v7301
        %v8942 = vsub.f32 %v6254, %v7310
        %v8943 = vsub.f32 %v6255, %v7319
        %v8944 = vsub.f32 %v6256, %v7328
        %v8945 = vsub.f32 %v6257, %v7337
        %v8946 = vsub.f32 %v6258, %v7346
        %v8947 = vsub.f32 %v6259, %v7355
        %v8948 = vsub.f32 %v6260, %v7364
        %v8949 = vsub.f32 %v6261, %v7373
        %v8950 = vsub.f32 %v6262, %v7382
        %v8951 = vsub.f32 %v6263, %v7391
        %v8952 = vsub.f32 %v6264, %v7400
        %v8953 = vsub.f32 %v6265, %v7409
        %v8954 = vsub.f32 %v6266, %v7418
        %v8955 = vsub.f32 %v6267, %v7427
        %v8956 = vsub.f32 %v6268, %v7436
        %v8957 = vsub.f32 %v6269, %v7445
        %v8958 = vsub.f32 %v6270, %v7454
        %v8959 = vsub.f32 %v6271, %v7463
        %v8960 = vsub.f32 %v6272, %v7472
        %v8961 = vsub.f32 %v6273, %v7481
        %v8962 = vsub.f32 %v6274, %v7490
        %v8963 = vsub.f32 %v6275, %v7499
        %v8964 = vsub.f32 %v6276, %v7508
        %v8965 = vsub.f32 %v6277, %v7517
        %v8966 = vsub.f32 %v6278, %v7526
        %v8967 = vsub.f32 %v6279, %v7535
        %v8968 = vsub.f32 %v6280, %v7544
        %v8969 = vsub.f32 %v6281, %v7553
        %v8970 = vsub.f32 %v6282, %v7562
        %v8971 = vsub.f32 %v6283, %v7571
        %v8972 = vsub.f32 %v6284, %v7580
        %v8973 = vsub.f32 %v6285, %v7589
        %v8974 = vsub.f32 %v6286, %v7598
        %v8975 = vsub.f32 %v6287, %v7607
        %v8976 = vsub.f32 %v6288, %v7616
        %v8977 = vsub.f32 %v6289, %v7625
        %v8978 = vsub.f32 %v6290, %v7634
        %v8979 = vsub.f32 %v6291, %v7643
        %v8980 = vsub.f32 %v6292, %v7652
        %v8981 = vsub.f32 %v6293, %v7661
        %v8982 = vsub.f32 %v6294, %v7670
        %v8983 = vsub.f32 %v6295, %v7679
        %v8984 = vsub.f32 %v6296, %v7688
        %v8985 = vsub.f32 %v6297, %v7697
        %v8986 = vsub.f32 %v6298, %v7706
        %v8987 = vsub.f32 %v6299, %v7715
        %v8988 = vsub.f32 %v6300, %v7724
        %v8989 = vsub.f32 %v6301, %v7733
        %v8990 = vsub.f32 %v6302, %v7742
        %v8991 = vsub.f32 %v6303, %v7751
        %v8992 = vsub.f32 %v6304, %v7760
        %v8993 = vsub.f32 %v6305, %v7769
        %v8994 = vsub.f32 %v6306, %v7778
        %v8995 = vsub.f32 %v6307, %v7787
        %v8996 = vsub.f32 %v6308, %v7796
        %v8997 = vsub.f32 %v6309, %v7805
        %v8998 = vsub.f32 %v6310, %v7814
        %v8999 = vsub.f32 %v6311, %v7823
        %v9000 = vsub.f32 %v6312, %v7832
        %v9001 = vsub.f32 %v6313, %v7841
        %v9002 = vsub.f32 %v6314, %v7850
        %v9003 = vsub.f32 %v6315, %v7859
        %v9004 = vsub.f32 %v6316, %v7868
        %v9005 = vsub.f32 %v6317, %v7877
        %v9006 = vsub.f32 %v6318, %v7886
        %v9007 = vsub.f32 %v6319, %v7895
        %v9008 = vsub.f32 %v6320, %v7904
        %v9009 = vsub.f32 %v6321, %v7913
        %v9010 = vsub.f32 %v6322, %v7922
        %v9011 = vsub.f32 %v6323, %v7931
        %v9012 = vsub.f32 %v6324, %v7940
        %v9013 = vsub.f32 %v6325, %v7949
        %v9014 = vsub.f32 %v6326, %v7958
        %v9015 = vsub.f32 %v6327, %v7967
        %v9016 = vsub.f32 %v6328, %v7976
        %v9017 = vsub.f32 %v6329, %v7985
        %v9018 = vsub.f32 %v6330, %v7994
        %v9019 = vsub.f32 %v6331, %v8003
        %v9020 = vsub.f32 %v6332, %v8012
        %v9021 = vsub.f32 %v6333, %v8021
        %v9022 = vsub.f32 %v6334, %v8030
        %v9023 = vsub.f32 %v6335, %v8039
        %v9024 = vsub.f32 %v6336, %v8048
        %v9025 = vsub.f32 %v6337, %v8057
        %v9026 = vsub.f32 %v6338, %v8066
        %v9027 = vsub.f32 %v6339, %v8075
        %v9028 = vsub.f32 %v6340, %v8084
        %v9029 = vsub.f32 %v6341, %v8093
        %v9030 = vsub.f32 %v6342, %v8102
        %v9031 = vsub.f32 %v6343, %v8111
        %v9032 = vsub.f32 %v6344, %v8120
        %v9033 = vsub.f32 %v6345, %v8129
        %v9034 = vsub.f32 %v6346, %v8138
        %v9035 = vsub.f32 %v6347, %v8147
        %v9036 = vsub.f32 %v6348, %v8156
        %v9037 = vsub.f32 %v6349, %v8165
        %v9038 = vsub.f32 %v6350, %v8174
        %v9039 = vsub.f32 %v6351, %v8183
        %v9040 = vsub.f32 %v6352, %v8192
        %v9041 = vsub.f32 %v6353, %v8201
        %v9042 = vsub.f32 %v6354, %v8210
        %v9043 = vsub.f32 %v6355, %v8219
        %v9044 = vsub.f32 %v6356, %v8228
        %v9045 = vsub.f32 %v6357, %v8237
        %v9046 = vsub.f32 %v6358, %v8246
        %v9047 = vsub.f32 %v6359, %v8255
        %v9048 = vsub.f32 %v6360, %v8264
        %v9049 = vsub.f32 %v6361, %v8273
        %v9050 = vsub.f32 %v6362, %v8282
        %v9051 = vsub.f32 %v6363, %v8291
        %v9052 = vsub.f32 %v6364, %v8300
        %v9053 = vsub.f32 %v6365, %v8309
        %v9054 = vsub.f32 %v6366, %v8318
        %v9055 = vsub.f32 %v6367, %v8327
        %v9056 = vsub.f32 %v6368, %v8336
        %v9057 = vsub.f32 %v6369, %v8345
        %v9058 = vsub.f32 %v6370, %v8354
        %v9059 = vsub.f32 %v6371, %v8363
        %v9060 = vsub.f32 %v6372, %v8372
        %v9061 = vsub.f32 %v6373, %v8381
        %v9062 = vsub.f32 %v6374, %v8390
        %v9063 = vsub.f32 %v6375, %v8399
        %v9064 = vsub.f32 %v6376, %v8408
        %v9065 = vsub.f32 %v6377, %v8417
        %v9066 = vsub.f32 %v6378, %v8426
        %v9067 = vsub.f32 %v6379, %v8435
        %v9068 = vsub.f32 %v6380, %v8444
        %v9069 = vsub.f32 %v6381, %v8453
        %v9070 = vsub.f32 %v6382, %v8462
        %v9071 = vsub.f32 %v6383, %v8471
        %v9072 = vsub.f32 %v6384, %v8480
        %v9073 = vsub.f32 %v6385, %v8489
        %v9074 = vsub.f32 %v6386, %v8498
        %v9075 = vsub.f32 %v6387, %v8507
        %v9076 = vsub.f32 %v6388, %v8516
        %v9077 = vsub.f32 %v6389, %v8525
        %v9078 = vsub.f32 %v6390, %v8534
        %v9079 = vsub.f32 %v6391, %v8543
        %v9080 = vsub.f32 %v6392, %v8552
        %v9081 = vsub.f32 %v6393, %v8561
        %v9082 = vsub.f32 %v6394, %v8570
        %v9083 = vsub.f32 %v6395, %v8579
        %v9084 = vsub.f32 %v6396, %v8588
        %v9085 = vsub.f32 %v6397, %v8597
        %v9086 = vsub.f32 %v6398, %v8606
        %v9087 = vsub.f32 %v6399, %v8615
        %v9088 = vsub.f32 %v6400, %v8624
        %v9089 = vsub.f32 %v6401, %v8633
        %v9090 = vsub.f32 %v6402, %v8642
        %v9091 = vsub.f32 %v6403, %v8651
        %v9092 = vsub.f32 %v6404, %v8660
        %v9093 = vsub.f32 %v6405, %v8669
        %v9094 = vsub.f32 %v6406, %v8678
        %v9095 = vsub.f32 %v6407, %v8687
        %v9096 = vsub.f32 %v6408, %v8696
        %v9097 = vsub.f32 %v6409, %v8705
        %v9098 = vsub.f32 %v6410, %v8714
        %v9099 = vsub.f32 %v6411, %v8723
        %v9100 = vsub.f32 %v6412, %v8732
        %v9101 = vsub.f32 %v6413, %v8741
        %v9102 = vsub.f32 %v6414, %v8750
        %v9103 = vsub.f32 %v6415, %v8759
        %v9104 = vsub.f32 %v6416, %v8768
        %v9105 = vsub.f32 %v6417, %v8777
        %v9106 = vsub.f32 %v6418, %v8786
        %v9107 = vsub.f32 %v6419, %v8795
        %v9108 = vsub.f32 %v6420, %v8804
        %v9109 = vsub.f32 %v6421, %v8813
        %v9110 = vsub.f32 %v6422, %v8822
        %v9111 = vsub.f32 %v6423, %v8831
        %v9112 = vsub.f32 %v6424, %v8840
        %v9113 = vsub.f32 %v6425, %v8849
        %v9114 = vsub.f32 %v6426, %v8858
        %v9115 = vsub.f32 %v6427, %v8867
        %v9116 = vsub.f32 %v6428, %v8876
        %v9117 = vsub.f32 %v6429, %v8885
        %v9118 = vsub.f32 %v6430, %v8894
        %v9119 = vsub.f32 %v6431, %v8903
        %v9120 = vsub.f32 %v6432, %v8912
        %v9121 = vsub.f32 %v6433, %v8921
        %v9122 = vsub.f32 %v6434, %v8930
        %9123 = vset.pattern.permute.xlu0 3
        %9124 = vperm.xlu0 %9123, %v143
        %v9125 = vpop.permute.xlu0 %9124
        %9126 = vset.pattern.permute.xlu0 3
        %9127 = vperm.xlu0 %9126, %v144
        %v9128 = vpop.permute.xlu0 %9127
        %9129 = vset.pattern.permute.xlu0 3
        %9130 = vperm.xlu0 %9129, %v145
        %v9131 = vpop.permute.xlu0 %9130
        %9132 = vset.pattern.permute.xlu0 3
        %9133 = vperm.xlu0 %9132, %v146
        %v9134 = vpop.permute.xlu0 %9133
        %9135 = vset.pattern.permute.xlu0 3
        %9136 = vperm.xlu0 %9135, %v147
        %v9137 = vpop.permute.xlu0 %9136
        %9138 = vset.pattern.permute.xlu0 3
        %9139 = vperm.xlu0 %9138, %v148
        %v9140 = vpop.permute.xlu0 %9139
        %9141 = vset.pattern.permute.xlu0 3
        %9142 = vperm.xlu0 %9141, %v149
        %v9143 = vpop.permute.xlu0 %9142
        %9144 = vset.pattern.permute.xlu0 3
        %9145 = vperm.xlu0 %9144, %v150
        %v9146 = vpop.permute.xlu0 %9145
        %9147 = vset.pattern.permute.xlu0 3
        %9148 = vperm.xlu0 %9147, %v151
        %v9149 = vpop.permute.xlu0 %9148
        %9150 = vset.pattern.permute.xlu0 3
        %9151 = vperm.xlu0 %9150, %v152
        %v9152 = vpop.permute.xlu0 %9151
        %9153 = vset.pattern.permute.xlu0 3
        %9154 = vperm.xlu0 %9153, %v153
        %v9155 = vpop.permute.xlu0 %9154
        %9156 = vset.pattern.permute.xlu0 3
        %9157 = vperm.xlu0 %9156, %v154
        %v9158 = vpop.permute.xlu0 %9157
        %9159 = vset.pattern.permute.xlu0 3
        %9160 = vperm.xlu0 %9159, %v155
        %v9161 = vpop.permute.xlu0 %9160
        %9162 = vset.pattern.permute.xlu0 3
        %9163 = vperm.xlu0 %9162, %v156
        %v9164 = vpop.permute.xlu0 %9163
        %9165 = vset.pattern.permute.xlu0 3
        %9166 = vperm.xlu0 %9165, %v157
        %v9167 = vpop.permute.xlu0 %9166
        %9168 = vset.pattern.permute.xlu0 3
        %9169 = vperm.xlu0 %9168, %v158
        %v9170 = vpop.permute.xlu0 %9169
        %9171 = vset.pattern.permute.xlu0 3
        %9172 = vperm.xlu0 %9171, %v159
        %v9173 = vpop.permute.xlu0 %9172
        %9174 = vset.pattern.permute.xlu0 3
        %9175 = vperm.xlu0 %9174, %v160
        %v9176 = vpop.permute.xlu0 %9175
        %9177 = vset.pattern.permute.xlu0 3
        %9178 = vperm.xlu0 %9177, %v161
        %v9179 = vpop.permute.xlu0 %9178
        %9180 = vset.pattern.permute.xlu0 3
        %9181 = vperm.xlu0 %9180, %v162
        %v9182 = vpop.permute.xlu0 %9181
        %9183 = vset.pattern.permute.xlu0 3
        %9184 = vperm.xlu0 %9183, %v163
        %v9185 = vpop.permute.xlu0 %9184
        %9186 = vset.pattern.permute.xlu0 3
        %9187 = vperm.xlu0 %9186, %v164
        %v9188 = vpop.permute.xlu0 %9187
        %9189 = vset.pattern.permute.xlu0 3
        %9190 = vperm.xlu0 %9189, %v165
        %v9191 = vpop.permute.xlu0 %9190
        %9192 = vset.pattern.permute.xlu0 3
        %9193 = vperm.xlu0 %9192, %v166
        %v9194 = vpop.permute.xlu0 %9193
        %9195 = vset.pattern.permute.xlu0 3
        %9196 = vperm.xlu0 %9195, %v167
        %v9197 = vpop.permute.xlu0 %9196
        %9198 = vset.pattern.permute.xlu0 3
        %9199 = vperm.xlu0 %9198, %v168
        %v9200 = vpop.permute.xlu0 %9199
        %9201 = vset.pattern.permute.xlu0 3
        %9202 = vperm.xlu0 %9201, %v169
        %v9203 = vpop.permute.xlu0 %9202
        %9204 = vset.pattern.permute.xlu0 3
        %9205 = vperm.xlu0 %9204, %v170
        %v9206 = vpop.permute.xlu0 %9205
        %9207 = vset.pattern.permute.xlu0 3
        %9208 = vperm.xlu0 %9207, %v171
        %v9209 = vpop.permute.xlu0 %9208
        %9210 = vset.pattern.permute.xlu0 3
        %9211 = vperm.xlu0 %9210, %v172
        %v9212 = vpop.permute.xlu0 %9211
        %9213 = vset.pattern.permute.xlu0 3
        %9214 = vperm.xlu0 %9213, %v173
        %v9215 = vpop.permute.xlu0 %9214
        %9216 = vset.pattern.permute.xlu0 3
        %9217 = vperm.xlu0 %9216, %v174
        %v9218 = vpop.permute.xlu0 %9217
        %9219 = vset.pattern.permute.xlu0 3
        %9220 = vperm.xlu0 %9219, %v175
        %v9221 = vpop.permute.xlu0 %9220
        %9222 = vset.pattern.permute.xlu0 3
        %9223 = vperm.xlu0 %9222, %v176
        %v9224 = vpop.permute.xlu0 %9223
        %9225 = vset.pattern.permute.xlu0 3
        %9226 = vperm.xlu0 %9225, %v177
        %v9227 = vpop.permute.xlu0 %9226
        %9228 = vset.pattern.permute.xlu0 3
        %9229 = vperm.xlu0 %9228, %v178
        %v9230 = vpop.permute.xlu0 %9229
        %9231 = vset.pattern.permute.xlu0 3
        %9232 = vperm.xlu0 %9231, %v179
        %v9233 = vpop.permute.xlu0 %9232
        %9234 = vset.pattern.permute.xlu0 3
        %9235 = vperm.xlu0 %9234, %v180
        %v9236 = vpop.permute.xlu0 %9235
        %9237 = vset.pattern.permute.xlu0 3
        %9238 = vperm.xlu0 %9237, %v181
        %v9239 = vpop.permute.xlu0 %9238
        %9240 = vset.pattern.permute.xlu0 3
        %9241 = vperm.xlu0 %9240, %v182
        %v9242 = vpop.permute.xlu0 %9241
        %9243 = vset.pattern.permute.xlu0 3
        %9244 = vperm.xlu0 %9243, %v183
        %v9245 = vpop.permute.xlu0 %9244
        %9246 = vset.pattern.permute.xlu0 3
        %9247 = vperm.xlu0 %9246, %v184
        %v9248 = vpop.permute.xlu0 %9247
        %9249 = vset.pattern.permute.xlu0 3
        %9250 = vperm.xlu0 %9249, %v185
        %v9251 = vpop.permute.xlu0 %9250
        %9252 = vset.pattern.permute.xlu0 3
        %9253 = vperm.xlu0 %9252, %v186
        %v9254 = vpop.permute.xlu0 %9253
        %9255 = vset.pattern.permute.xlu0 3
        %9256 = vperm.xlu0 %9255, %v187
        %v9257 = vpop.permute.xlu0 %9256
        %9258 = vset.pattern.permute.xlu0 3
        %9259 = vperm.xlu0 %9258, %v188
        %v9260 = vpop.permute.xlu0 %9259
        %9261 = vset.pattern.permute.xlu0 3
        %9262 = vperm.xlu0 %9261, %v189
        %v9263 = vpop.permute.xlu0 %9262
        %9264 = vset.pattern.permute.xlu0 3
        %9265 = vperm.xlu0 %9264, %v190
        %v9266 = vpop.permute.xlu0 %9265
        %9267 = vset.pattern.permute.xlu0 3
        %9268 = vperm.xlu0 %9267, %v191
        %v9269 = vpop.permute.xlu0 %9268
        %9270 = vset.pattern.permute.xlu0 3
        %9271 = vperm.xlu0 %9270, %v192
        %v9272 = vpop.permute.xlu0 %9271
        %9273 = vset.pattern.permute.xlu0 3
        %9274 = vperm.xlu0 %9273, %v193
        %v9275 = vpop.permute.xlu0 %9274
        %9276 = vset.pattern.permute.xlu0 3
        %9277 = vperm.xlu0 %9276, %v194
        %v9278 = vpop.permute.xlu0 %9277
        %9279 = vset.pattern.permute.xlu0 3
        %9280 = vperm.xlu0 %9279, %v195
        %v9281 = vpop.permute.xlu0 %9280
        %9282 = vset.pattern.permute.xlu0 3
        %9283 = vperm.xlu0 %9282, %v196
        %v9284 = vpop.permute.xlu0 %9283
        %9285 = vset.pattern.permute.xlu0 3
        %9286 = vperm.xlu0 %9285, %v197
        %v9287 = vpop.permute.xlu0 %9286
        %9288 = vset.pattern.permute.xlu0 3
        %9289 = vperm.xlu0 %9288, %v198
        %v9290 = vpop.permute.xlu0 %9289
        %9291 = vset.pattern.permute.xlu0 3
        %9292 = vperm.xlu0 %9291, %v199
        %v9293 = vpop.permute.xlu0 %9292
        %9294 = vset.pattern.permute.xlu0 3
        %9295 = vperm.xlu0 %9294, %v200
        %v9296 = vpop.permute.xlu0 %9295
        %9297 = vset.pattern.permute.xlu0 3
        %9298 = vperm.xlu0 %9297, %v201
        %v9299 = vpop.permute.xlu0 %9298
        %9300 = vset.pattern.permute.xlu0 3
        %9301 = vperm.xlu0 %9300, %v202
        %v9302 = vpop.permute.xlu0 %9301
        %9303 = vset.pattern.permute.xlu0 3
        %9304 = vperm.xlu0 %9303, %v203
        %v9305 = vpop.permute.xlu0 %9304
        %9306 = vset.pattern.permute.xlu0 3
        %9307 = vperm.xlu0 %9306, %v204
        %v9308 = vpop.permute.xlu0 %9307
        %9309 = vset.pattern.permute.xlu0 3
        %9310 = vperm.xlu0 %9309, %v205
        %v9311 = vpop.permute.xlu0 %9310
        %9312 = vset.pattern.permute.xlu0 3
        %9313 = vperm.xlu0 %9312, %v206
        %v9314 = vpop.permute.xlu0 %9313
        %9315 = vset.pattern.permute.xlu0 3
        %9316 = vperm.xlu0 %9315, %v207
        %v9317 = vpop.permute.xlu0 %9316
        %9318 = vset.pattern.permute.xlu0 3
        %9319 = vperm.xlu0 %9318, %v208
        %v9320 = vpop.permute.xlu0 %9319
        %9321 = vset.pattern.permute.xlu0 3
        %9322 = vperm.xlu0 %9321, %v209
        %v9323 = vpop.permute.xlu0 %9322
        %9324 = vset.pattern.permute.xlu0 3
        %9325 = vperm.xlu0 %9324, %v210
        %v9326 = vpop.permute.xlu0 %9325
        %9327 = vset.pattern.permute.xlu0 3
        %9328 = vperm.xlu0 %9327, %v211
        %v9329 = vpop.permute.xlu0 %9328
        %9330 = vset.pattern.permute.xlu0 3
        %9331 = vperm.xlu0 %9330, %v212
        %v9332 = vpop.permute.xlu0 %9331
        %9333 = vset.pattern.permute.xlu0 3
        %9334 = vperm.xlu0 %9333, %v213
        %v9335 = vpop.permute.xlu0 %9334
        %9336 = vset.pattern.permute.xlu0 3
        %9337 = vperm.xlu0 %9336, %v214
        %v9338 = vpop.permute.xlu0 %9337
        %9339 = vset.pattern.permute.xlu0 3
        %9340 = vperm.xlu0 %9339, %v215
        %v9341 = vpop.permute.xlu0 %9340
        %9342 = vset.pattern.permute.xlu0 3
        %9343 = vperm.xlu0 %9342, %v216
        %v9344 = vpop.permute.xlu0 %9343
        %9345 = vset.pattern.permute.xlu0 3
        %9346 = vperm.xlu0 %9345, %v217
        %v9347 = vpop.permute.xlu0 %9346
        %9348 = vset.pattern.permute.xlu0 3
        %9349 = vperm.xlu0 %9348, %v218
        %v9350 = vpop.permute.xlu0 %9349
        %9351 = vset.pattern.permute.xlu0 3
        %9352 = vperm.xlu0 %9351, %v219
        %v9353 = vpop.permute.xlu0 %9352
        %9354 = vset.pattern.permute.xlu0 3
        %9355 = vperm.xlu0 %9354, %v220
        %v9356 = vpop.permute.xlu0 %9355
        %9357 = vset.pattern.permute.xlu0 3
        %9358 = vperm.xlu0 %9357, %v221
        %v9359 = vpop.permute.xlu0 %9358
        %9360 = vset.pattern.permute.xlu0 3
        %9361 = vperm.xlu0 %9360, %v222
        %v9362 = vpop.permute.xlu0 %9361
        %9363 = vset.pattern.permute.xlu0 3
        %9364 = vperm.xlu0 %9363, %v223
        %v9365 = vpop.permute.xlu0 %9364
        %9366 = vset.pattern.permute.xlu0 3
        %9367 = vperm.xlu0 %9366, %v224
        %v9368 = vpop.permute.xlu0 %9367
        %9369 = vset.pattern.permute.xlu0 3
        %9370 = vperm.xlu0 %9369, %v225
        %v9371 = vpop.permute.xlu0 %9370
        %9372 = vset.pattern.permute.xlu0 3
        %9373 = vperm.xlu0 %9372, %v226
        %v9374 = vpop.permute.xlu0 %9373
        %9375 = vset.pattern.permute.xlu0 3
        %9376 = vperm.xlu0 %9375, %v227
        %v9377 = vpop.permute.xlu0 %9376
        %9378 = vset.pattern.permute.xlu0 3
        %9379 = vperm.xlu0 %9378, %v228
        %v9380 = vpop.permute.xlu0 %9379
        %9381 = vset.pattern.permute.xlu0 3
        %9382 = vperm.xlu0 %9381, %v229
        %v9383 = vpop.permute.xlu0 %9382
        %9384 = vset.pattern.permute.xlu0 3
        %9385 = vperm.xlu0 %9384, %v230
        %v9386 = vpop.permute.xlu0 %9385
        %9387 = vset.pattern.permute.xlu0 3
        %9388 = vperm.xlu0 %9387, %v231
        %v9389 = vpop.permute.xlu0 %9388
        %9390 = vset.pattern.permute.xlu0 3
        %9391 = vperm.xlu0 %9390, %v232
        %v9392 = vpop.permute.xlu0 %9391
        %9393 = vset.pattern.permute.xlu0 3
        %9394 = vperm.xlu0 %9393, %v233
        %v9395 = vpop.permute.xlu0 %9394
        %9396 = vset.pattern.permute.xlu0 3
        %9397 = vperm.xlu0 %9396, %v234
        %v9398 = vpop.permute.xlu0 %9397
        %9399 = vset.pattern.permute.xlu0 3
        %9400 = vperm.xlu0 %9399, %v235
        %v9401 = vpop.permute.xlu0 %9400
        %9402 = vset.pattern.permute.xlu0 3
        %9403 = vperm.xlu0 %9402, %v236
        %v9404 = vpop.permute.xlu0 %9403
        %9405 = vset.pattern.permute.xlu0 3
        %9406 = vperm.xlu0 %9405, %v237
        %v9407 = vpop.permute.xlu0 %9406
        %9408 = vset.pattern.permute.xlu0 3
        %9409 = vperm.xlu0 %9408, %v238
        %v9410 = vpop.permute.xlu0 %9409
        %9411 = vset.pattern.permute.xlu0 3
        %9412 = vperm.xlu0 %9411, %v239
        %v9413 = vpop.permute.xlu0 %9412
        %9414 = vset.pattern.permute.xlu0 3
        %9415 = vperm.xlu0 %9414, %v240
        %v9416 = vpop.permute.xlu0 %9415
        %9417 = vset.pattern.permute.xlu0 3
        %9418 = vperm.xlu0 %9417, %v241
        %v9419 = vpop.permute.xlu0 %9418
        %9420 = vset.pattern.permute.xlu0 3
        %9421 = vperm.xlu0 %9420, %v242
        %v9422 = vpop.permute.xlu0 %9421
        %9423 = vset.pattern.permute.xlu0 3
        %9424 = vperm.xlu0 %9423, %v243
        %v9425 = vpop.permute.xlu0 %9424
        %9426 = vset.pattern.permute.xlu0 3
        %9427 = vperm.xlu0 %9426, %v244
        %v9428 = vpop.permute.xlu0 %9427
        %9429 = vset.pattern.permute.xlu0 3
        %9430 = vperm.xlu0 %9429, %v245
        %v9431 = vpop.permute.xlu0 %9430
        %9432 = vset.pattern.permute.xlu0 3
        %9433 = vperm.xlu0 %9432, %v246
        %v9434 = vpop.permute.xlu0 %9433
        %9435 = vset.pattern.permute.xlu0 3
        %9436 = vperm.xlu0 %9435, %v247
        %v9437 = vpop.permute.xlu0 %9436
        %9438 = vset.pattern.permute.xlu0 3
        %9439 = vperm.xlu0 %9438, %v248
        %v9440 = vpop.permute.xlu0 %9439
        %9441 = vset.pattern.permute.xlu0 3
        %9442 = vperm.xlu0 %9441, %v249
        %v9443 = vpop.permute.xlu0 %9442
        %9444 = vset.pattern.permute.xlu0 3
        %9445 = vperm.xlu0 %9444, %v250
        %v9446 = vpop.permute.xlu0 %9445
        %9447 = vset.pattern.permute.xlu0 3
        %9448 = vperm.xlu0 %9447, %v251
        %v9449 = vpop.permute.xlu0 %9448
        %9450 = vset.pattern.permute.xlu0 3
        %9451 = vperm.xlu0 %9450, %v252
        %v9452 = vpop.permute.xlu0 %9451
        %9453 = vset.pattern.permute.xlu0 3
        %9454 = vperm.xlu0 %9453, %v253
        %v9455 = vpop.permute.xlu0 %9454
        %9456 = vset.pattern.permute.xlu0 3
        %9457 = vperm.xlu0 %9456, %v254
        %v9458 = vpop.permute.xlu0 %9457
        %9459 = vset.pattern.permute.xlu0 3
        %9460 = vperm.xlu0 %9459, %v255
        %v9461 = vpop.permute.xlu0 %9460
        %9462 = vset.pattern.permute.xlu0 3
        %9463 = vperm.xlu0 %9462, %v256
        %v9464 = vpop.permute.xlu0 %9463
        %9465 = vset.pattern.permute.xlu0 3
        %9466 = vperm.xlu0 %9465, %v257
        %v9467 = vpop.permute.xlu0 %9466
        %9468 = vset.pattern.permute.xlu0 3
        %9469 = vperm.xlu0 %9468, %v258
        %v9470 = vpop.permute.xlu0 %9469
        %9471 = vset.pattern.permute.xlu0 3
        %9472 = vperm.xlu0 %9471, %v259
        %v9473 = vpop.permute.xlu0 %9472
        %9474 = vset.pattern.permute.xlu0 3
        %9475 = vperm.xlu0 %9474, %v260
        %v9476 = vpop.permute.xlu0 %9475
        %9477 = vset.pattern.permute.xlu0 3
        %9478 = vperm.xlu0 %9477, %v261
        %v9479 = vpop.permute.xlu0 %9478
        %9480 = vset.pattern.permute.xlu0 3
        %9481 = vperm.xlu0 %9480, %v262
        %v9482 = vpop.permute.xlu0 %9481
        %9483 = vset.pattern.permute.xlu0 3
        %9484 = vperm.xlu0 %9483, %v263
        %v9485 = vpop.permute.xlu0 %9484
        %9486 = vset.pattern.permute.xlu0 3
        %9487 = vperm.xlu0 %9486, %v264
        %v9488 = vpop.permute.xlu0 %9487
        %9489 = vset.pattern.permute.xlu0 3
        %9490 = vperm.xlu0 %9489, %v265
        %v9491 = vpop.permute.xlu0 %9490
        %9492 = vset.pattern.permute.xlu0 3
        %9493 = vperm.xlu0 %9492, %v266
        %v9494 = vpop.permute.xlu0 %9493
        %9495 = vset.pattern.permute.xlu0 3
        %9496 = vperm.xlu0 %9495, %v267
        %v9497 = vpop.permute.xlu0 %9496
        %9498 = vset.pattern.permute.xlu0 3
        %9499 = vperm.xlu0 %9498, %v268
        %v9500 = vpop.permute.xlu0 %9499
        %9501 = vset.pattern.permute.xlu0 3
        %9502 = vperm.xlu0 %9501, %v269
        %v9503 = vpop.permute.xlu0 %9502
        %9504 = vset.pattern.permute.xlu0 3
        %9505 = vperm.xlu0 %9504, %v270
        %v9506 = vpop.permute.xlu0 %9505
        %9507 = vset.pattern.permute.xlu0 3
        %9508 = vperm.xlu0 %9507, %v271
        %v9509 = vpop.permute.xlu0 %9508
        %9510 = vset.pattern.permute.xlu0 3
        %9511 = vperm.xlu0 %9510, %v272
        %v9512 = vpop.permute.xlu0 %9511
        %9513 = vset.pattern.permute.xlu0 3
        %9514 = vperm.xlu0 %9513, %v273
        %v9515 = vpop.permute.xlu0 %9514
        %9516 = vset.pattern.permute.xlu0 3
        %9517 = vperm.xlu0 %9516, %v274
        %v9518 = vpop.permute.xlu0 %9517
        %9519 = vset.pattern.permute.xlu0 3
        %9520 = vperm.xlu0 %9519, %v275
        %v9521 = vpop.permute.xlu0 %9520
        %9522 = vset.pattern.permute.xlu0 3
        %9523 = vperm.xlu0 %9522, %v276
        %v9524 = vpop.permute.xlu0 %9523
        %9525 = vset.pattern.permute.xlu0 3
        %9526 = vperm.xlu0 %9525, %v277
        %v9527 = vpop.permute.xlu0 %9526
        %9528 = vset.pattern.permute.xlu0 3
        %9529 = vperm.xlu0 %9528, %v278
        %v9530 = vpop.permute.xlu0 %9529
        %9531 = vset.pattern.permute.xlu0 3
        %9532 = vperm.xlu0 %9531, %v279
        %v9533 = vpop.permute.xlu0 %9532
        %9534 = vset.pattern.permute.xlu0 3
        %9535 = vperm.xlu0 %9534, %v280
        %v9536 = vpop.permute.xlu0 %9535
        %9537 = vset.pattern.permute.xlu0 3
        %9538 = vperm.xlu0 %9537, %v281
        %v9539 = vpop.permute.xlu0 %9538
        %9540 = vset.pattern.permute.xlu0 3
        %9541 = vperm.xlu0 %9540, %v282
        %v9542 = vpop.permute.xlu0 %9541
        %9543 = vset.pattern.permute.xlu0 3
        %9544 = vperm.xlu0 %9543, %v283
        %v9545 = vpop.permute.xlu0 %9544
        %9546 = vset.pattern.permute.xlu0 3
        %9547 = vperm.xlu0 %9546, %v284
        %v9548 = vpop.permute.xlu0 %9547
        %9549 = vset.pattern.permute.xlu0 3
        %9550 = vperm.xlu0 %9549, %v285
        %v9551 = vpop.permute.xlu0 %9550
        %9552 = vset.pattern.permute.xlu0 3
        %9553 = vperm.xlu0 %9552, %v286
        %v9554 = vpop.permute.xlu0 %9553
        %9555 = vset.pattern.permute.xlu0 3
        %9556 = vperm.xlu0 %9555, %v287
        %v9557 = vpop.permute.xlu0 %9556
        %9558 = vset.pattern.permute.xlu0 3
        %9559 = vperm.xlu0 %9558, %v288
        %v9560 = vpop.permute.xlu0 %9559
        %9561 = vset.pattern.permute.xlu0 3
        %9562 = vperm.xlu0 %9561, %v289
        %v9563 = vpop.permute.xlu0 %9562
        %9564 = vset.pattern.permute.xlu0 3
        %9565 = vperm.xlu0 %9564, %v290
        %v9566 = vpop.permute.xlu0 %9565
        %9567 = vset.pattern.permute.xlu0 3
        %9568 = vperm.xlu0 %9567, %v291
        %v9569 = vpop.permute.xlu0 %9568
        %9570 = vset.pattern.permute.xlu0 3
        %9571 = vperm.xlu0 %9570, %v292
        %v9572 = vpop.permute.xlu0 %9571
        %9573 = vset.pattern.permute.xlu0 3
        %9574 = vperm.xlu0 %9573, %v293
        %v9575 = vpop.permute.xlu0 %9574
        %9576 = vset.pattern.permute.xlu0 3
        %9577 = vperm.xlu0 %9576, %v294
        %v9578 = vpop.permute.xlu0 %9577
        %9579 = vset.pattern.permute.xlu0 3
        %9580 = vperm.xlu0 %9579, %v295
        %v9581 = vpop.permute.xlu0 %9580
        %9582 = vset.pattern.permute.xlu0 3
        %9583 = vperm.xlu0 %9582, %v296
        %v9584 = vpop.permute.xlu0 %9583
        %9585 = vset.pattern.permute.xlu0 3
        %9586 = vperm.xlu0 %9585, %v297
        %v9587 = vpop.permute.xlu0 %9586
        %9588 = vset.pattern.permute.xlu0 3
        %9589 = vperm.xlu0 %9588, %v298
        %v9590 = vpop.permute.xlu0 %9589
        %9591 = vset.pattern.permute.xlu0 3
        %9592 = vperm.xlu0 %9591, %v299
        %v9593 = vpop.permute.xlu0 %9592
        %9594 = vset.pattern.permute.xlu0 3
        %9595 = vperm.xlu0 %9594, %v300
        %v9596 = vpop.permute.xlu0 %9595
        %9597 = vset.pattern.permute.xlu0 3
        %9598 = vperm.xlu0 %9597, %v301
        %v9599 = vpop.permute.xlu0 %9598
        %9600 = vset.pattern.permute.xlu0 3
        %9601 = vperm.xlu0 %9600, %v302
        %v9602 = vpop.permute.xlu0 %9601
        %9603 = vset.pattern.permute.xlu0 3
        %9604 = vperm.xlu0 %9603, %v303
        %v9605 = vpop.permute.xlu0 %9604
        %9606 = vset.pattern.permute.xlu0 3
        %9607 = vperm.xlu0 %9606, %v304
        %v9608 = vpop.permute.xlu0 %9607
        %9609 = vset.pattern.permute.xlu0 3
        %9610 = vperm.xlu0 %9609, %v305
        %v9611 = vpop.permute.xlu0 %9610
        %9612 = vset.pattern.permute.xlu0 3
        %9613 = vperm.xlu0 %9612, %v306
        %v9614 = vpop.permute.xlu0 %9613
        %9615 = vset.pattern.permute.xlu0 3
        %9616 = vperm.xlu0 %9615, %v307
        %v9617 = vpop.permute.xlu0 %9616
        %9618 = vset.pattern.permute.xlu0 3
        %9619 = vperm.xlu0 %9618, %v308
        %v9620 = vpop.permute.xlu0 %9619
        %9621 = vset.pattern.permute.xlu0 3
        %9622 = vperm.xlu0 %9621, %v309
        %v9623 = vpop.permute.xlu0 %9622
        %9624 = vset.pattern.permute.xlu0 3
        %9625 = vperm.xlu0 %9624, %v310
        %v9626 = vpop.permute.xlu0 %9625
        %9627 = vset.pattern.permute.xlu0 3
        %9628 = vperm.xlu0 %9627, %v311
        %v9629 = vpop.permute.xlu0 %9628
        %9630 = vset.pattern.permute.xlu0 3
        %9631 = vperm.xlu0 %9630, %v312
        %v9632 = vpop.permute.xlu0 %9631
        %9633 = vset.pattern.permute.xlu0 3
        %9634 = vperm.xlu0 %9633, %v313
        %v9635 = vpop.permute.xlu0 %9634
        %9636 = vset.pattern.permute.xlu0 3
        %9637 = vperm.xlu0 %9636, %v314
        %v9638 = vpop.permute.xlu0 %9637
        %9639 = vset.pattern.permute.xlu0 3
        %9640 = vperm.xlu0 %9639, %v315
        %v9641 = vpop.permute.xlu0 %9640
        %9642 = vset.pattern.permute.xlu0 3
        %9643 = vperm.xlu0 %9642, %v316
        %v9644 = vpop.permute.xlu0 %9643
        %9645 = vset.pattern.permute.xlu0 3
        %9646 = vperm.xlu0 %9645, %v317
        %v9647 = vpop.permute.xlu0 %9646
        %9648 = vset.pattern.permute.xlu0 3
        %9649 = vperm.xlu0 %9648, %v318
        %v9650 = vpop.permute.xlu0 %9649
        %9651 = vset.pattern.permute.xlu0 3
        %9652 = vperm.xlu0 %9651, %v319
        %v9653 = vpop.permute.xlu0 %9652
        %9654 = vset.pattern.permute.xlu0 3
        %9655 = vperm.xlu0 %9654, %v320
        %v9656 = vpop.permute.xlu0 %9655
        %9657 = vset.pattern.permute.xlu0 3
        %9658 = vperm.xlu0 %9657, %v321
        %v9659 = vpop.permute.xlu0 %9658
        %9660 = vset.pattern.permute.xlu0 3
        %9661 = vperm.xlu0 %9660, %v322
        %v9662 = vpop.permute.xlu0 %9661
        %9663 = vset.pattern.permute.xlu0 3
        %9664 = vperm.xlu0 %9663, %v323
        %v9665 = vpop.permute.xlu0 %9664
        %9666 = vset.pattern.permute.xlu0 3
        %9667 = vperm.xlu0 %9666, %v324
        %v9668 = vpop.permute.xlu0 %9667
        %9669 = vset.pattern.permute.xlu0 3
        %9670 = vperm.xlu0 %9669, %v325
        %v9671 = vpop.permute.xlu0 %9670
        %9672 = vset.pattern.permute.xlu0 3
        %9673 = vperm.xlu0 %9672, %v326
        %v9674 = vpop.permute.xlu0 %9673
        %9675 = vset.pattern.permute.xlu0 3
        %9676 = vperm.xlu0 %9675, %v327
        %v9677 = vpop.permute.xlu0 %9676
        %9678 = vset.pattern.permute.xlu0 3
        %9679 = vperm.xlu0 %9678, %v328
        %v9680 = vpop.permute.xlu0 %9679
        %9681 = vset.pattern.permute.xlu0 3
        %9682 = vperm.xlu0 %9681, %v329
        %v9683 = vpop.permute.xlu0 %9682
        %9684 = vset.pattern.permute.xlu0 3
        %9685 = vperm.xlu0 %9684, %v330
        %v9686 = vpop.permute.xlu0 %9685
        %9687 = vset.pattern.permute.xlu0 3
        %9688 = vperm.xlu0 %9687, %v331
        %v9689 = vpop.permute.xlu0 %9688
        %9690 = vset.pattern.permute.xlu0 3
        %9691 = vperm.xlu0 %9690, %v332
        %v9692 = vpop.permute.xlu0 %9691
        %9693 = vset.pattern.permute.xlu0 3
        %9694 = vperm.xlu0 %9693, %v333
        %v9695 = vpop.permute.xlu0 %9694
        %9696 = vset.pattern.permute.xlu0 3
        %9697 = vperm.xlu0 %9696, %v334
        %v9698 = vpop.permute.xlu0 %9697
        %vm9699 = vcmp.eq.s32.totalorder %v9125, %v528
        %vm9700 = vcmp.eq.s32.totalorder %v9128, %v528
        %vm9701 = vcmp.eq.s32.totalorder %v9131, %v528
        %vm9702 = vcmp.eq.s32.totalorder %v9134, %v528
        %vm9703 = vcmp.eq.s32.totalorder %v9137, %v528
        %vm9704 = vcmp.eq.s32.totalorder %v9140, %v528
        %vm9705 = vcmp.eq.s32.totalorder %v9143, %v528
        %vm9706 = vcmp.eq.s32.totalorder %v9146, %v528
        %vm9707 = vcmp.eq.s32.totalorder %v9149, %v528
        %vm9708 = vcmp.eq.s32.totalorder %v9152, %v528
        %vm9709 = vcmp.eq.s32.totalorder %v9155, %v528
        %vm9710 = vcmp.eq.s32.totalorder %v9158, %v528
        %vm9711 = vcmp.eq.s32.totalorder %v9161, %v528
        %vm9712 = vcmp.eq.s32.totalorder %v9164, %v528
        %vm9713 = vcmp.eq.s32.totalorder %v9167, %v528
        %vm9714 = vcmp.eq.s32.totalorder %v9170, %v528
        %vm9715 = vcmp.eq.s32.totalorder %v9173, %v528
        %vm9716 = vcmp.eq.s32.totalorder %v9176, %v528
        %vm9717 = vcmp.eq.s32.totalorder %v9179, %v528
        %vm9718 = vcmp.eq.s32.totalorder %v9182, %v528
        %vm9719 = vcmp.eq.s32.totalorder %v9185, %v528
        %vm9720 = vcmp.eq.s32.totalorder %v9188, %v528
        %vm9721 = vcmp.eq.s32.totalorder %v9191, %v528
        %vm9722 = vcmp.eq.s32.totalorder %v9194, %v528
        %vm9723 = vcmp.eq.s32.totalorder %v9197, %v528
        %vm9724 = vcmp.eq.s32.totalorder %v9200, %v528
        %vm9725 = vcmp.eq.s32.totalorder %v9203, %v528
        %vm9726 = vcmp.eq.s32.totalorder %v9206, %v528
        %vm9727 = vcmp.eq.s32.totalorder %v9209, %v528
        %vm9728 = vcmp.eq.s32.totalorder %v9212, %v528
        %vm9729 = vcmp.eq.s32.totalorder %v9215, %v528
        %vm9730 = vcmp.eq.s32.totalorder %v9218, %v528
        %vm9731 = vcmp.eq.s32.totalorder %v9221, %v528
        %vm9732 = vcmp.eq.s32.totalorder %v9224, %v528
        %vm9733 = vcmp.eq.s32.totalorder %v9227, %v528
        %vm9734 = vcmp.eq.s32.totalorder %v9230, %v528
        %vm9735 = vcmp.eq.s32.totalorder %v9233, %v528
        %vm9736 = vcmp.eq.s32.totalorder %v9236, %v528
        %vm9737 = vcmp.eq.s32.totalorder %v9239, %v528
        %vm9738 = vcmp.eq.s32.totalorder %v9242, %v528
        %vm9739 = vcmp.eq.s32.totalorder %v9245, %v528
        %vm9740 = vcmp.eq.s32.totalorder %v9248, %v528
        %vm9741 = vcmp.eq.s32.totalorder %v9251, %v528
        %vm9742 = vcmp.eq.s32.totalorder %v9254, %v528
        %vm9743 = vcmp.eq.s32.totalorder %v9257, %v528
        %vm9744 = vcmp.eq.s32.totalorder %v9260, %v528
        %vm9745 = vcmp.eq.s32.totalorder %v9263, %v528
        %vm9746 = vcmp.eq.s32.totalorder %v9266, %v528
        %vm9747 = vcmp.eq.s32.totalorder %v9269, %v528
        %vm9748 = vcmp.eq.s32.totalorder %v9272, %v528
        %vm9749 = vcmp.eq.s32.totalorder %v9275, %v528
        %vm9750 = vcmp.eq.s32.totalorder %v9278, %v528
        %vm9751 = vcmp.eq.s32.totalorder %v9281, %v528
        %vm9752 = vcmp.eq.s32.totalorder %v9284, %v528
        %vm9753 = vcmp.eq.s32.totalorder %v9287, %v528
        %vm9754 = vcmp.eq.s32.totalorder %v9290, %v528
        %vm9755 = vcmp.eq.s32.totalorder %v9293, %v528
        %vm9756 = vcmp.eq.s32.totalorder %v9296, %v528
        %vm9757 = vcmp.eq.s32.totalorder %v9299, %v528
        %vm9758 = vcmp.eq.s32.totalorder %v9302, %v528
        %vm9759 = vcmp.eq.s32.totalorder %v9305, %v528
        %vm9760 = vcmp.eq.s32.totalorder %v9308, %v528
        %vm9761 = vcmp.eq.s32.totalorder %v9311, %v528
        %vm9762 = vcmp.eq.s32.totalorder %v9314, %v528
        %vm9763 = vcmp.eq.s32.totalorder %v9317, %v528
        %vm9764 = vcmp.eq.s32.totalorder %v9320, %v528
        %vm9765 = vcmp.eq.s32.totalorder %v9323, %v528
        %vm9766 = vcmp.eq.s32.totalorder %v9326, %v528
        %vm9767 = vcmp.eq.s32.totalorder %v9329, %v528
        %vm9768 = vcmp.eq.s32.totalorder %v9332, %v528
        %vm9769 = vcmp.eq.s32.totalorder %v9335, %v528
        %vm9770 = vcmp.eq.s32.totalorder %v9338, %v528
        %vm9771 = vcmp.eq.s32.totalorder %v9341, %v528
        %vm9772 = vcmp.eq.s32.totalorder %v9344, %v528
        %vm9773 = vcmp.eq.s32.totalorder %v9347, %v528
        %vm9774 = vcmp.eq.s32.totalorder %v9350, %v528
        %vm9775 = vcmp.eq.s32.totalorder %v9353, %v528
        %vm9776 = vcmp.eq.s32.totalorder %v9356, %v528
        %vm9777 = vcmp.eq.s32.totalorder %v9359, %v528
        %vm9778 = vcmp.eq.s32.totalorder %v9362, %v528
        %vm9779 = vcmp.eq.s32.totalorder %v9365, %v528
        %vm9780 = vcmp.eq.s32.totalorder %v9368, %v528
        %vm9781 = vcmp.eq.s32.totalorder %v9371, %v528
        %vm9782 = vcmp.eq.s32.totalorder %v9374, %v528
        %vm9783 = vcmp.eq.s32.totalorder %v9377, %v528
        %vm9784 = vcmp.eq.s32.totalorder %v9380, %v528
        %vm9785 = vcmp.eq.s32.totalorder %v9383, %v528
        %vm9786 = vcmp.eq.s32.totalorder %v9386, %v528
        %vm9787 = vcmp.eq.s32.totalorder %v9389, %v528
        %vm9788 = vcmp.eq.s32.totalorder %v9392, %v528
        %vm9789 = vcmp.eq.s32.totalorder %v9395, %v528
        %vm9790 = vcmp.eq.s32.totalorder %v9398, %v528
        %vm9791 = vcmp.eq.s32.totalorder %v9401, %v528
        %vm9792 = vcmp.eq.s32.totalorder %v9404, %v528
        %vm9793 = vcmp.eq.s32.totalorder %v9407, %v528
        %vm9794 = vcmp.eq.s32.totalorder %v9410, %v528
        %vm9795 = vcmp.eq.s32.totalorder %v9413, %v528
        %vm9796 = vcmp.eq.s32.totalorder %v9416, %v528
        %vm9797 = vcmp.eq.s32.totalorder %v9419, %v528
        %vm9798 = vcmp.eq.s32.totalorder %v9422, %v528
        %vm9799 = vcmp.eq.s32.totalorder %v9425, %v528
        %vm9800 = vcmp.eq.s32.totalorder %v9428, %v528
        %vm9801 = vcmp.eq.s32.totalorder %v9431, %v528
        %vm9802 = vcmp.eq.s32.totalorder %v9434, %v528
        %vm9803 = vcmp.eq.s32.totalorder %v9437, %v528
        %vm9804 = vcmp.eq.s32.totalorder %v9440, %v528
        %vm9805 = vcmp.eq.s32.totalorder %v9443, %v528
        %vm9806 = vcmp.eq.s32.totalorder %v9446, %v528
        %vm9807 = vcmp.eq.s32.totalorder %v9449, %v528
        %vm9808 = vcmp.eq.s32.totalorder %v9452, %v528
        %vm9809 = vcmp.eq.s32.totalorder %v9455, %v528
        %vm9810 = vcmp.eq.s32.totalorder %v9458, %v528
        %vm9811 = vcmp.eq.s32.totalorder %v9461, %v528
        %vm9812 = vcmp.eq.s32.totalorder %v9464, %v528
        %vm9813 = vcmp.eq.s32.totalorder %v9467, %v528
        %vm9814 = vcmp.eq.s32.totalorder %v9470, %v528
        %vm9815 = vcmp.eq.s32.totalorder %v9473, %v528
        %vm9816 = vcmp.eq.s32.totalorder %v9476, %v528
        %vm9817 = vcmp.eq.s32.totalorder %v9479, %v528
        %vm9818 = vcmp.eq.s32.totalorder %v9482, %v528
        %vm9819 = vcmp.eq.s32.totalorder %v9485, %v528
        %vm9820 = vcmp.eq.s32.totalorder %v9488, %v528
        %vm9821 = vcmp.eq.s32.totalorder %v9491, %v528
        %vm9822 = vcmp.eq.s32.totalorder %v9494, %v528
        %vm9823 = vcmp.eq.s32.totalorder %v9497, %v528
        %vm9824 = vcmp.eq.s32.totalorder %v9500, %v528
        %vm9825 = vcmp.eq.s32.totalorder %v9503, %v528
        %vm9826 = vcmp.eq.s32.totalorder %v9506, %v528
        %vm9827 = vcmp.eq.s32.totalorder %v9509, %v528
        %vm9828 = vcmp.eq.s32.totalorder %v9512, %v528
        %vm9829 = vcmp.eq.s32.totalorder %v9515, %v528
        %vm9830 = vcmp.eq.s32.totalorder %v9518, %v528
        %vm9831 = vcmp.eq.s32.totalorder %v9521, %v528
        %vm9832 = vcmp.eq.s32.totalorder %v9524, %v528
        %vm9833 = vcmp.eq.s32.totalorder %v9527, %v528
        %vm9834 = vcmp.eq.s32.totalorder %v9530, %v528
        %vm9835 = vcmp.eq.s32.totalorder %v9533, %v528
        %vm9836 = vcmp.eq.s32.totalorder %v9536, %v528
        %vm9837 = vcmp.eq.s32.totalorder %v9539, %v528
        %vm9838 = vcmp.eq.s32.totalorder %v9542, %v528
        %vm9839 = vcmp.eq.s32.totalorder %v9545, %v528
        %vm9840 = vcmp.eq.s32.totalorder %v9548, %v528
        %vm9841 = vcmp.eq.s32.totalorder %v9551, %v528
        %vm9842 = vcmp.eq.s32.totalorder %v9554, %v528
        %vm9843 = vcmp.eq.s32.totalorder %v9557, %v528
        %vm9844 = vcmp.eq.s32.totalorder %v9560, %v528
        %vm9845 = vcmp.eq.s32.totalorder %v9563, %v528
        %vm9846 = vcmp.eq.s32.totalorder %v9566, %v528
        %vm9847 = vcmp.eq.s32.totalorder %v9569, %v528
        %vm9848 = vcmp.eq.s32.totalorder %v9572, %v528
        %vm9849 = vcmp.eq.s32.totalorder %v9575, %v528
        %vm9850 = vcmp.eq.s32.totalorder %v9578, %v528
        %vm9851 = vcmp.eq.s32.totalorder %v9581, %v528
        %vm9852 = vcmp.eq.s32.totalorder %v9584, %v528
        %vm9853 = vcmp.eq.s32.totalorder %v9587, %v528
        %vm9854 = vcmp.eq.s32.totalorder %v9590, %v528
        %vm9855 = vcmp.eq.s32.totalorder %v9593, %v528
        %vm9856 = vcmp.eq.s32.totalorder %v9596, %v528
        %vm9857 = vcmp.eq.s32.totalorder %v9599, %v528
        %vm9858 = vcmp.eq.s32.totalorder %v9602, %v528
        %vm9859 = vcmp.eq.s32.totalorder %v9605, %v528
        %vm9860 = vcmp.eq.s32.totalorder %v9608, %v528
        %vm9861 = vcmp.eq.s32.totalorder %v9611, %v528
        %vm9862 = vcmp.eq.s32.totalorder %v9614, %v528
        %vm9863 = vcmp.eq.s32.totalorder %v9617, %v528
        %vm9864 = vcmp.eq.s32.totalorder %v9620, %v528
        %vm9865 = vcmp.eq.s32.totalorder %v9623, %v528
        %vm9866 = vcmp.eq.s32.totalorder %v9626, %v528
        %vm9867 = vcmp.eq.s32.totalorder %v9629, %v528
        %vm9868 = vcmp.eq.s32.totalorder %v9632, %v528
        %vm9869 = vcmp.eq.s32.totalorder %v9635, %v528
        %vm9870 = vcmp.eq.s32.totalorder %v9638, %v528
        %vm9871 = vcmp.eq.s32.totalorder %v9641, %v528
        %vm9872 = vcmp.eq.s32.totalorder %v9644, %v528
        %vm9873 = vcmp.eq.s32.totalorder %v9647, %v528
        %vm9874 = vcmp.eq.s32.totalorder %v9650, %v528
        %vm9875 = vcmp.eq.s32.totalorder %v9653, %v528
        %vm9876 = vcmp.eq.s32.totalorder %v9656, %v528
        %vm9877 = vcmp.eq.s32.totalorder %v9659, %v528
        %vm9878 = vcmp.eq.s32.totalorder %v9662, %v528
        %vm9879 = vcmp.eq.s32.totalorder %v9665, %v528
        %vm9880 = vcmp.eq.s32.totalorder %v9668, %v528
        %vm9881 = vcmp.eq.s32.totalorder %v9671, %v528
        %vm9882 = vcmp.eq.s32.totalorder %v9674, %v528
        %vm9883 = vcmp.eq.s32.totalorder %v9677, %v528
        %vm9884 = vcmp.eq.s32.totalorder %v9680, %v528
        %vm9885 = vcmp.eq.s32.totalorder %v9683, %v528
        %vm9886 = vcmp.eq.s32.totalorder %v9686, %v528
        %vm9887 = vcmp.eq.s32.totalorder %v9689, %v528
        %vm9888 = vcmp.eq.s32.totalorder %v9692, %v528
        %vm9889 = vcmp.eq.s32.totalorder %v9695, %v528
        %vm9890 = vcmp.eq.s32.totalorder %v9698, %v528
        %v9891 = vsel %vm9699, 1, 0
        %v9892 = vsel %vm9700, 1, 0
        %v9893 = vsel %vm9701, 1, 0
        %v9894 = vsel %vm9702, 1, 0
        %v9895 = vsel %vm9703, 1, 0
        %v9896 = vsel %vm9704, 1, 0
        %v9897 = vsel %vm9705, 1, 0
        %v9898 = vsel %vm9706, 1, 0
        %v9899 = vsel %vm9707, 1, 0
        %v9900 = vsel %vm9708, 1, 0
        %v9901 = vsel %vm9709, 1, 0
        %v9902 = vsel %vm9710, 1, 0
        %v9903 = vsel %vm9711, 1, 0
        %v9904 = vsel %vm9712, 1, 0
        %v9905 = vsel %vm9713, 1, 0
        %v9906 = vsel %vm9714, 1, 0
        %v9907 = vsel %vm9715, 1, 0
        %v9908 = vsel %vm9716, 1, 0
        %v9909 = vsel %vm9717, 1, 0
        %v9910 = vsel %vm9718, 1, 0
        %v9911 = vsel %vm9719, 1, 0
        %v9912 = vsel %vm9720, 1, 0
        %v9913 = vsel %vm9721, 1, 0
        %v9914 = vsel %vm9722, 1, 0
        %v9915 = vsel %vm9723, 1, 0
        %v9916 = vsel %vm9724, 1, 0
        %v9917 = vsel %vm9725, 1, 0
        %v9918 = vsel %vm9726, 1, 0
        %v9919 = vsel %vm9727, 1, 0
        %v9920 = vsel %vm9728, 1, 0
        %v9921 = vsel %vm9729, 1, 0
        %v9922 = vsel %vm9730, 1, 0
        %v9923 = vsel %vm9731, 1, 0
        %v9924 = vsel %vm9732, 1, 0
        %v9925 = vsel %vm9733, 1, 0
        %v9926 = vsel %vm9734, 1, 0
        %v9927 = vsel %vm9735, 1, 0
        %v9928 = vsel %vm9736, 1, 0
        %v9929 = vsel %vm9737, 1, 0
        %v9930 = vsel %vm9738, 1, 0
        %v9931 = vsel %vm9739, 1, 0
        %v9932 = vsel %vm9740, 1, 0
        %v9933 = vsel %vm9741, 1, 0
        %v9934 = vsel %vm9742, 1, 0
        %v9935 = vsel %vm9743, 1, 0
        %v9936 = vsel %vm9744, 1, 0
        %v9937 = vsel %vm9745, 1, 0
        %v9938 = vsel %vm9746, 1, 0
        %v9939 = vsel %vm9747, 1, 0
        %v9940 = vsel %vm9748, 1, 0
        %v9941 = vsel %vm9749, 1, 0
        %v9942 = vsel %vm9750, 1, 0
        %v9943 = vsel %vm9751, 1, 0
        %v9944 = vsel %vm9752, 1, 0
        %v9945 = vsel %vm9753, 1, 0
        %v9946 = vsel %vm9754, 1, 0
        %v9947 = vsel %vm9755, 1, 0
        %v9948 = vsel %vm9756, 1, 0
        %v9949 = vsel %vm9757, 1, 0
        %v9950 = vsel %vm9758, 1, 0
        %v9951 = vsel %vm9759, 1, 0
        %v9952 = vsel %vm9760, 1, 0
        %v9953 = vsel %vm9761, 1, 0
        %v9954 = vsel %vm9762, 1, 0
        %v9955 = vsel %vm9763, 1, 0
        %v9956 = vsel %vm9764, 1, 0
        %v9957 = vsel %vm9765, 1, 0
        %v9958 = vsel %vm9766, 1, 0
        %v9959 = vsel %vm9767, 1, 0
        %v9960 = vsel %vm9768, 1, 0
        %v9961 = vsel %vm9769, 1, 0
        %v9962 = vsel %vm9770, 1, 0
        %v9963 = vsel %vm9771, 1, 0
        %v9964 = vsel %vm9772, 1, 0
        %v9965 = vsel %vm9773, 1, 0
        %v9966 = vsel %vm9774, 1, 0
        %v9967 = vsel %vm9775, 1, 0
        %v9968 = vsel %vm9776, 1, 0
        %v9969 = vsel %vm9777, 1, 0
        %v9970 = vsel %vm9778, 1, 0
        %v9971 = vsel %vm9779, 1, 0
        %v9972 = vsel %vm9780, 1, 0
        %v9973 = vsel %vm9781, 1, 0
        %v9974 = vsel %vm9782, 1, 0
        %v9975 = vsel %vm9783, 1, 0
        %v9976 = vsel %vm9784, 1, 0
        %v9977 = vsel %vm9785, 1, 0
        %v9978 = vsel %vm9786, 1, 0
        %v9979 = vsel %vm9787, 1, 0
        %v9980 = vsel %vm9788, 1, 0
        %v9981 = vsel %vm9789, 1, 0
        %v9982 = vsel %vm9790, 1, 0
        %v9983 = vsel %vm9791, 1, 0
        %v9984 = vsel %vm9792, 1, 0
        %v9985 = vsel %vm9793, 1, 0
        %v9986 = vsel %vm9794, 1, 0
        %v9987 = vsel %vm9795, 1, 0
        %v9988 = vsel %vm9796, 1, 0
        %v9989 = vsel %vm9797, 1, 0
        %v9990 = vsel %vm9798, 1, 0
        %v9991 = vsel %vm9799, 1, 0
        %v9992 = vsel %vm9800, 1, 0
        %v9993 = vsel %vm9801, 1, 0
        %v9994 = vsel %vm9802, 1, 0
        %v9995 = vsel %vm9803, 1, 0
        %v9996 = vsel %vm9804, 1, 0
        %v9997 = vsel %vm9805, 1, 0
        %v9998 = vsel %vm9806, 1, 0
        %v9999 = vsel %vm9807, 1, 0
        %v10000 = vsel %vm9808, 1, 0
        %v10001 = vsel %vm9809, 1, 0
        %v10002 = vsel %vm9810, 1, 0
        %v10003 = vsel %vm9811, 1, 0
        %v10004 = vsel %vm9812, 1, 0
        %v10005 = vsel %vm9813, 1, 0
        %v10006 = vsel %vm9814, 1, 0
        %v10007 = vsel %vm9815, 1, 0
        %v10008 = vsel %vm9816, 1, 0
        %v10009 = vsel %vm9817, 1, 0
        %v10010 = vsel %vm9818, 1, 0
        %v10011 = vsel %vm9819, 1, 0
        %v10012 = vsel %vm9820, 1, 0
        %v10013 = vsel %vm9821, 1, 0
        %v10014 = vsel %vm9822, 1, 0
        %v10015 = vsel %vm9823, 1, 0
        %v10016 = vsel %vm9824, 1, 0
        %v10017 = vsel %vm9825, 1, 0
        %v10018 = vsel %vm9826, 1, 0
        %v10019 = vsel %vm9827, 1, 0
        %v10020 = vsel %vm9828, 1, 0
        %v10021 = vsel %vm9829, 1, 0
        %v10022 = vsel %vm9830, 1, 0
        %v10023 = vsel %vm9831, 1, 0
        %v10024 = vsel %vm9832, 1, 0
        %v10025 = vsel %vm9833, 1, 0
        %v10026 = vsel %vm9834, 1, 0
        %v10027 = vsel %vm9835, 1, 0
        %v10028 = vsel %vm9836, 1, 0
        %v10029 = vsel %vm9837, 1, 0
        %v10030 = vsel %vm9838, 1, 0
        %v10031 = vsel %vm9839, 1, 0
        %v10032 = vsel %vm9840, 1, 0
        %v10033 = vsel %vm9841, 1, 0
        %v10034 = vsel %vm9842, 1, 0
        %v10035 = vsel %vm9843, 1, 0
        %v10036 = vsel %vm9844, 1, 0
        %v10037 = vsel %vm9845, 1, 0
        %v10038 = vsel %vm9846, 1, 0
        %v10039 = vsel %vm9847, 1, 0
        %v10040 = vsel %vm9848, 1, 0
        %v10041 = vsel %vm9849, 1, 0
        %v10042 = vsel %vm9850, 1, 0
        %v10043 = vsel %vm9851, 1, 0
        %v10044 = vsel %vm9852, 1, 0
        %v10045 = vsel %vm9853, 1, 0
        %v10046 = vsel %vm9854, 1, 0
        %v10047 = vsel %vm9855, 1, 0
        %v10048 = vsel %vm9856, 1, 0
        %v10049 = vsel %vm9857, 1, 0
        %v10050 = vsel %vm9858, 1, 0
        %v10051 = vsel %vm9859, 1, 0
        %v10052 = vsel %vm9860, 1, 0
        %v10053 = vsel %vm9861, 1, 0
        %v10054 = vsel %vm9862, 1, 0
        %v10055 = vsel %vm9863, 1, 0
        %v10056 = vsel %vm9864, 1, 0
        %v10057 = vsel %vm9865, 1, 0
        %v10058 = vsel %vm9866, 1, 0
        %v10059 = vsel %vm9867, 1, 0
        %v10060 = vsel %vm9868, 1, 0
        %v10061 = vsel %vm9869, 1, 0
        %v10062 = vsel %vm9870, 1, 0
        %v10063 = vsel %vm9871, 1, 0
        %v10064 = vsel %vm9872, 1, 0
        %v10065 = vsel %vm9873, 1, 0
        %v10066 = vsel %vm9874, 1, 0
        %v10067 = vsel %vm9875, 1, 0
        %v10068 = vsel %vm9876, 1, 0
        %v10069 = vsel %vm9877, 1, 0
        %v10070 = vsel %vm9878, 1, 0
        %v10071 = vsel %vm9879, 1, 0
        %v10072 = vsel %vm9880, 1, 0
        %v10073 = vsel %vm9881, 1, 0
        %v10074 = vsel %vm9882, 1, 0
        %v10075 = vsel %vm9883, 1, 0
        %v10076 = vsel %vm9884, 1, 0
        %v10077 = vsel %vm9885, 1, 0
        %v10078 = vsel %vm9886, 1, 0
        %v10079 = vsel %vm9887, 1, 0
        %v10080 = vsel %vm9888, 1, 0
        %v10081 = vsel %vm9889, 1, 0
        %v10082 = vsel %vm9890, 1, 0
        %v10083 = vcvt.s32.f32 %v9891
        %v10084 = vcvt.s32.f32 %v9892
        %v10085 = vcvt.s32.f32 %v9893
        %v10086 = vcvt.s32.f32 %v9894
        %v10087 = vcvt.s32.f32 %v9895
        %v10088 = vcvt.s32.f32 %v9896
        %v10089 = vcvt.s32.f32 %v9897
        %v10090 = vcvt.s32.f32 %v9898
        %v10091 = vcvt.s32.f32 %v9899
        %v10092 = vcvt.s32.f32 %v9900
        %v10093 = vcvt.s32.f32 %v9901
        %v10094 = vcvt.s32.f32 %v9902
        %v10095 = vcvt.s32.f32 %v9903
        %v10096 = vcvt.s32.f32 %v9904
        %v10097 = vcvt.s32.f32 %v9905
        %v10098 = vcvt.s32.f32 %v9906
        %v10099 = vcvt.s32.f32 %v9907
        %v10100 = vcvt.s32.f32 %v9908
        %v10101 = vcvt.s32.f32 %v9909
        %v10102 = vcvt.s32.f32 %v9910
        %v10103 = vcvt.s32.f32 %v9911
        %v10104 = vcvt.s32.f32 %v9912
        %v10105 = vcvt.s32.f32 %v9913
        %v10106 = vcvt.s32.f32 %v9914
        %v10107 = vcvt.s32.f32 %v9915
        %v10108 = vcvt.s32.f32 %v9916
        %v10109 = vcvt.s32.f32 %v9917
        %v10110 = vcvt.s32.f32 %v9918
        %v10111 = vcvt.s32.f32 %v9919
        %v10112 = vcvt.s32.f32 %v9920
        %v10113 = vcvt.s32.f32 %v9921
        %v10114 = vcvt.s32.f32 %v9922
        %v10115 = vcvt.s32.f32 %v9923
        %v10116 = vcvt.s32.f32 %v9924
        %v10117 = vcvt.s32.f32 %v9925
        %v10118 = vcvt.s32.f32 %v9926
        %v10119 = vcvt.s32.f32 %v9927
        %v10120 = vcvt.s32.f32 %v9928
        %v10121 = vcvt.s32.f32 %v9929
        %v10122 = vcvt.s32.f32 %v9930
        %v10123 = vcvt.s32.f32 %v9931
        %v10124 = vcvt.s32.f32 %v9932
        %v10125 = vcvt.s32.f32 %v9933
        %v10126 = vcvt.s32.f32 %v9934
        %v10127 = vcvt.s32.f32 %v9935
        %v10128 = vcvt.s32.f32 %v9936
        %v10129 = vcvt.s32.f32 %v9937
        %v10130 = vcvt.s32.f32 %v9938
        %v10131 = vcvt.s32.f32 %v9939
        %v10132 = vcvt.s32.f32 %v9940
        %v10133 = vcvt.s32.f32 %v9941
        %v10134 = vcvt.s32.f32 %v9942
        %v10135 = vcvt.s32.f32 %v9943
        %v10136 = vcvt.s32.f32 %v9944
        %v10137 = vcvt.s32.f32 %v9945
        %v10138 = vcvt.s32.f32 %v9946
        %v10139 = vcvt.s32.f32 %v9947
        %v10140 = vcvt.s32.f32 %v9948
        %v10141 = vcvt.s32.f32 %v9949
        %v10142 = vcvt.s32.f32 %v9950
        %v10143 = vcvt.s32.f32 %v9951
        %v10144 = vcvt.s32.f32 %v9952
        %v10145 = vcvt.s32.f32 %v9953
        %v10146 = vcvt.s32.f32 %v9954
        %v10147 = vcvt.s32.f32 %v9955
        %v10148 = vcvt.s32.f32 %v9956
        %v10149 = vcvt.s32.f32 %v9957
        %v10150 = vcvt.s32.f32 %v9958
        %v10151 = vcvt.s32.f32 %v9959
        %v10152 = vcvt.s32.f32 %v9960
        %v10153 = vcvt.s32.f32 %v9961
        %v10154 = vcvt.s32.f32 %v9962
        %v10155 = vcvt.s32.f32 %v9963
        %v10156 = vcvt.s32.f32 %v9964
        %v10157 = vcvt.s32.f32 %v9965
        %v10158 = vcvt.s32.f32 %v9966
        %v10159 = vcvt.s32.f32 %v9967
        %v10160 = vcvt.s32.f32 %v9968
        %v10161 = vcvt.s32.f32 %v9969
        %v10162 = vcvt.s32.f32 %v9970
        %v10163 = vcvt.s32.f32 %v9971
        %v10164 = vcvt.s32.f32 %v9972
        %v10165 = vcvt.s32.f32 %v9973
        %v10166 = vcvt.s32.f32 %v9974
        %v10167 = vcvt.s32.f32 %v9975
        %v10168 = vcvt.s32.f32 %v9976
        %v10169 = vcvt.s32.f32 %v9977
        %v10170 = vcvt.s32.f32 %v9978
        %v10171 = vcvt.s32.f32 %v9979
        %v10172 = vcvt.s32.f32 %v9980
        %v10173 = vcvt.s32.f32 %v9981
        %v10174 = vcvt.s32.f32 %v9982
        %v10175 = vcvt.s32.f32 %v9983
        %v10176 = vcvt.s32.f32 %v9984
        %v10177 = vcvt.s32.f32 %v9985
        %v10178 = vcvt.s32.f32 %v9986
        %v10179 = vcvt.s32.f32 %v9987
        %v10180 = vcvt.s32.f32 %v9988
        %v10181 = vcvt.s32.f32 %v9989
        %v10182 = vcvt.s32.f32 %v9990
        %v10183 = vcvt.s32.f32 %v9991
        %v10184 = vcvt.s32.f32 %v9992
        %v10185 = vcvt.s32.f32 %v9993
        %v10186 = vcvt.s32.f32 %v9994
        %v10187 = vcvt.s32.f32 %v9995
        %v10188 = vcvt.s32.f32 %v9996
        %v10189 = vcvt.s32.f32 %v9997
        %v10190 = vcvt.s32.f32 %v9998
        %v10191 = vcvt.s32.f32 %v9999
        %v10192 = vcvt.s32.f32 %v10000
        %v10193 = vcvt.s32.f32 %v10001
        %v10194 = vcvt.s32.f32 %v10002
        %v10195 = vcvt.s32.f32 %v10003
        %v10196 = vcvt.s32.f32 %v10004
        %v10197 = vcvt.s32.f32 %v10005
        %v10198 = vcvt.s32.f32 %v10006
        %v10199 = vcvt.s32.f32 %v10007
        %v10200 = vcvt.s32.f32 %v10008
        %v10201 = vcvt.s32.f32 %v10009
        %v10202 = vcvt.s32.f32 %v10010
        %v10203 = vcvt.s32.f32 %v10011
        %v10204 = vcvt.s32.f32 %v10012
        %v10205 = vcvt.s32.f32 %v10013
        %v10206 = vcvt.s32.f32 %v10014
        %v10207 = vcvt.s32.f32 %v10015
        %v10208 = vcvt.s32.f32 %v10016
        %v10209 = vcvt.s32.f32 %v10017
        %v10210 = vcvt.s32.f32 %v10018
        %v10211 = vcvt.s32.f32 %v10019
        %v10212 = vcvt.s32.f32 %v10020
        %v10213 = vcvt.s32.f32 %v10021
        %v10214 = vcvt.s32.f32 %v10022
        %v10215 = vcvt.s32.f32 %v10023
        %v10216 = vcvt.s32.f32 %v10024
        %v10217 = vcvt.s32.f32 %v10025
        %v10218 = vcvt.s32.f32 %v10026
        %v10219 = vcvt.s32.f32 %v10027
        %v10220 = vcvt.s32.f32 %v10028
        %v10221 = vcvt.s32.f32 %v10029
        %v10222 = vcvt.s32.f32 %v10030
        %v10223 = vcvt.s32.f32 %v10031
        %v10224 = vcvt.s32.f32 %v10032
        %v10225 = vcvt.s32.f32 %v10033
        %v10226 = vcvt.s32.f32 %v10034
        %v10227 = vcvt.s32.f32 %v10035
        %v10228 = vcvt.s32.f32 %v10036
        %v10229 = vcvt.s32.f32 %v10037
        %v10230 = vcvt.s32.f32 %v10038
        %v10231 = vcvt.s32.f32 %v10039
        %v10232 = vcvt.s32.f32 %v10040
        %v10233 = vcvt.s32.f32 %v10041
        %v10234 = vcvt.s32.f32 %v10042
        %v10235 = vcvt.s32.f32 %v10043
        %v10236 = vcvt.s32.f32 %v10044
        %v10237 = vcvt.s32.f32 %v10045
        %v10238 = vcvt.s32.f32 %v10046
        %v10239 = vcvt.s32.f32 %v10047
        %v10240 = vcvt.s32.f32 %v10048
        %v10241 = vcvt.s32.f32 %v10049
        %v10242 = vcvt.s32.f32 %v10050
        %v10243 = vcvt.s32.f32 %v10051
        %v10244 = vcvt.s32.f32 %v10052
        %v10245 = vcvt.s32.f32 %v10053
        %v10246 = vcvt.s32.f32 %v10054
        %v10247 = vcvt.s32.f32 %v10055
        %v10248 = vcvt.s32.f32 %v10056
        %v10249 = vcvt.s32.f32 %v10057
        %v10250 = vcvt.s32.f32 %v10058
        %v10251 = vcvt.s32.f32 %v10059
        %v10252 = vcvt.s32.f32 %v10060
        %v10253 = vcvt.s32.f32 %v10061
        %v10254 = vcvt.s32.f32 %v10062
        %v10255 = vcvt.s32.f32 %v10063
        %v10256 = vcvt.s32.f32 %v10064
        %v10257 = vcvt.s32.f32 %v10065
        %v10258 = vcvt.s32.f32 %v10066
        %v10259 = vcvt.s32.f32 %v10067
        %v10260 = vcvt.s32.f32 %v10068
        %v10261 = vcvt.s32.f32 %v10069
        %v10262 = vcvt.s32.f32 %v10070
        %v10263 = vcvt.s32.f32 %v10071
        %v10264 = vcvt.s32.f32 %v10072
        %v10265 = vcvt.s32.f32 %v10073
        %v10266 = vcvt.s32.f32 %v10074
        %v10267 = vcvt.s32.f32 %v10075
        %v10268 = vcvt.s32.f32 %v10076
        %v10269 = vcvt.s32.f32 %v10077
        %v10270 = vcvt.s32.f32 %v10078
        %v10271 = vcvt.s32.f32 %v10079
        %v10272 = vcvt.s32.f32 %v10080
        %v10273 = vcvt.s32.f32 %v10081
        %v10274 = vcvt.s32.f32 %v10082
        %v10275 = vmul.f32 %v8931, %v10083
        %v10276 = vmul.f32 %v8932, %v10084
        %v10277 = vmul.f32 %v8933, %v10085
        %v10278 = vmul.f32 %v8934, %v10086
        %v10279 = vmul.f32 %v8935, %v10087
        %v10280 = vmul.f32 %v8936, %v10088
        %v10281 = vmul.f32 %v8937, %v10089
        %v10282 = vmul.f32 %v8938, %v10090
        %v10283 = vmul.f32 %v8939, %v10091
        %v10284 = vmul.f32 %v8940, %v10092
        %v10285 = vmul.f32 %v8941, %v10093
        %v10286 = vmul.f32 %v8942, %v10094
        %v10287 = vmul.f32 %v8943, %v10095
        %v10288 = vmul.f32 %v8944, %v10096
        %v10289 = vmul.f32 %v8945, %v10097
        %v10290 = vmul.f32 %v8946, %v10098
        %v10291 = vmul.f32 %v8947, %v10099
        %v10292 = vmul.f32 %v8948, %v10100
        %v10293 = vmul.f32 %v8949, %v10101
        %v10294 = vmul.f32 %v8950, %v10102
        %v10295 = vmul.f32 %v8951, %v10103
        %v10296 = vmul.f32 %v8952, %v10104
        %v10297 = vmul.f32 %v8953, %v10105
        %v10298 = vmul.f32 %v8954, %v10106
        %v10299 = vmul.f32 %v8955, %v10107
        %v10300 = vmul.f32 %v8956, %v10108
        %v10301 = vmul.f32 %v8957, %v10109
        %v10302 = vmul.f32 %v8958, %v10110
        %v10303 = vmul.f32 %v8959, %v10111
        %v10304 = vmul.f32 %v8960, %v10112
        %v10305 = vmul.f32 %v8961, %v10113
        %v10306 = vmul.f32 %v8962, %v10114
        %v10307 = vmul.f32 %v8963, %v10115
        %v10308 = vmul.f32 %v8964, %v10116
        %v10309 = vmul.f32 %v8965, %v10117
        %v10310 = vmul.f32 %v8966, %v10118
        %v10311 = vmul.f32 %v8967, %v10119
        %v10312 = vmul.f32 %v8968, %v10120
        %v10313 = vmul.f32 %v8969, %v10121
        %v10314 = vmul.f32 %v8970, %v10122
        %v10315 = vmul.f32 %v8971, %v10123
        %v10316 = vmul.f32 %v8972, %v10124
        %v10317 = vmul.f32 %v8973, %v10125
        %v10318 = vmul.f32 %v8974, %v10126
        %v10319 = vmul.f32 %v8975, %v10127
        %v10320 = vmul.f32 %v8976, %v10128
        %v10321 = vmul.f32 %v8977, %v10129
        %v10322 = vmul.f32 %v8978, %v10130
        %v10323 = vmul.f32 %v8979, %v10131
        %v10324 = vmul.f32 %v8980, %v10132
        %v10325 = vmul.f32 %v8981, %v10133
        %v10326 = vmul.f32 %v8982, %v10134
        %v10327 = vmul.f32 %v8983, %v10135
        %v10328 = vmul.f32 %v8984, %v10136
        %v10329 = vmul.f32 %v8985, %v10137
        %v10330 = vmul.f32 %v8986, %v10138
        %v10331 = vmul.f32 %v8987, %v10139
        %v10332 = vmul.f32 %v8988, %v10140
        %v10333 = vmul.f32 %v8989, %v10141
        %v10334 = vmul.f32 %v8990, %v10142
        %v10335 = vmul.f32 %v8991, %v10143
        %v10336 = vmul.f32 %v8992, %v10144
        %v10337 = vmul.f32 %v8993, %v10145
        %v10338 = vmul.f32 %v8994, %v10146
        %v10339 = vmul.f32 %v8995, %v10147
        %v10340 = vmul.f32 %v8996, %v10148
        %v10341 = vmul.f32 %v8997, %v10149
        %v10342 = vmul.f32 %v8998, %v10150
        %v10343 = vmul.f32 %v8999, %v10151
        %v10344 = vmul.f32 %v9000, %v10152
        %v10345 = vmul.f32 %v9001, %v10153
        %v10346 = vmul.f32 %v9002, %v10154
        %v10347 = vmul.f32 %v9003, %v10155
        %v10348 = vmul.f32 %v9004, %v10156
        %v10349 = vmul.f32 %v9005, %v10157
        %v10350 = vmul.f32 %v9006, %v10158
        %v10351 = vmul.f32 %v9007, %v10159
        %v10352 = vmul.f32 %v9008, %v10160
        %v10353 = vmul.f32 %v9009, %v10161
        %v10354 = vmul.f32 %v9010, %v10162
        %v10355 = vmul.f32 %v9011, %v10163
        %v10356 = vmul.f32 %v9012, %v10164
        %v10357 = vmul.f32 %v9013, %v10165
        %v10358 = vmul.f32 %v9014, %v10166
        %v10359 = vmul.f32 %v9015, %v10167
        %v10360 = vmul.f32 %v9016, %v10168
        %v10361 = vmul.f32 %v9017, %v10169
        %v10362 = vmul.f32 %v9018, %v10170
        %v10363 = vmul.f32 %v9019, %v10171
        %v10364 = vmul.f32 %v9020, %v10172
        %v10365 = vmul.f32 %v9021, %v10173
        %v10366 = vmul.f32 %v9022, %v10174
        %v10367 = vmul.f32 %v9023, %v10175
        %v10368 = vmul.f32 %v9024, %v10176
        %v10369 = vmul.f32 %v9025, %v10177
        %v10370 = vmul.f32 %v9026, %v10178
        %v10371 = vmul.f32 %v9027, %v10179
        %v10372 = vmul.f32 %v9028, %v10180
        %v10373 = vmul.f32 %v9029, %v10181
        %v10374 = vmul.f32 %v9030, %v10182
        %v10375 = vmul.f32 %v9031, %v10183
        %v10376 = vmul.f32 %v9032, %v10184
        %v10377 = vmul.f32 %v9033, %v10185
        %v10378 = vmul.f32 %v9034, %v10186
        %v10379 = vmul.f32 %v9035, %v10187
        %v10380 = vmul.f32 %v9036, %v10188
        %v10381 = vmul.f32 %v9037, %v10189
        %v10382 = vmul.f32 %v9038, %v10190
        %v10383 = vmul.f32 %v9039, %v10191
        %v10384 = vmul.f32 %v9040, %v10192
        %v10385 = vmul.f32 %v9041, %v10193
        %v10386 = vmul.f32 %v9042, %v10194
        %v10387 = vmul.f32 %v9043, %v10195
        %v10388 = vmul.f32 %v9044, %v10196
        %v10389 = vmul.f32 %v9045, %v10197
        %v10390 = vmul.f32 %v9046, %v10198
        %v10391 = vmul.f32 %v9047, %v10199
        %v10392 = vmul.f32 %v9048, %v10200
        %v10393 = vmul.f32 %v9049, %v10201
        %v10394 = vmul.f32 %v9050, %v10202
        %v10395 = vmul.f32 %v9051, %v10203
        %v10396 = vmul.f32 %v9052, %v10204
        %v10397 = vmul.f32 %v9053, %v10205
        %v10398 = vmul.f32 %v9054, %v10206
        %v10399 = vmul.f32 %v9055, %v10207
        %v10400 = vmul.f32 %v9056, %v10208
        %v10401 = vmul.f32 %v9057, %v10209
        %v10402 = vmul.f32 %v9058, %v10210
        %v10403 = vmul.f32 %v9059, %v10211
        %v10404 = vmul.f32 %v9060, %v10212
        %v10405 = vmul.f32 %v9061, %v10213
        %v10406 = vmul.f32 %v9062, %v10214
        %v10407 = vmul.f32 %v9063, %v10215
        %v10408 = vmul.f32 %v9064, %v10216
        %v10409 = vmul.f32 %v9065, %v10217
        %v10410 = vmul.f32 %v9066, %v10218
        %v10411 = vmul.f32 %v9067, %v10219
        %v10412 = vmul.f32 %v9068, %v10220
        %v10413 = vmul.f32 %v9069, %v10221
        %v10414 = vmul.f32 %v9070, %v10222
        %v10415 = vmul.f32 %v9071, %v10223
        %v10416 = vmul.f32 %v9072, %v10224
        %v10417 = vmul.f32 %v9073, %v10225
        %v10418 = vmul.f32 %v9074, %v10226
        %v10419 = vmul.f32 %v9075, %v10227
        %v10420 = vmul.f32 %v9076, %v10228
        %v10421 = vmul.f32 %v9077, %v10229
        %v10422 = vmul.f32 %v9078, %v10230
        %v10423 = vmul.f32 %v9079, %v10231
        %v10424 = vmul.f32 %v9080, %v10232
        %v10425 = vmul.f32 %v9081, %v10233
        %v10426 = vmul.f32 %v9082, %v10234
        %v10427 = vmul.f32 %v9083, %v10235
        %v10428 = vmul.f32 %v9084, %v10236
        %v10429 = vmul.f32 %v9085, %v10237
        %v10430 = vmul.f32 %v9086, %v10238
        %v10431 = vmul.f32 %v9087, %v10239
        %v10432 = vmul.f32 %v9088, %v10240
        %v10433 = vmul.f32 %v9089, %v10241
        %v10434 = vmul.f32 %v9090, %v10242
        %v10435 = vmul.f32 %v9091, %v10243
        %v10436 = vmul.f32 %v9092, %v10244
        %v10437 = vmul.f32 %v9093, %v10245
        %v10438 = vmul.f32 %v9094, %v10246
        %v10439 = vmul.f32 %v9095, %v10247
        %v10440 = vmul.f32 %v9096, %v10248
        %v10441 = vmul.f32 %v9097, %v10249
        %v10442 = vmul.f32 %v9098, %v10250
        %v10443 = vmul.f32 %v9099, %v10251
        %v10444 = vmul.f32 %v9100, %v10252
        %v10445 = vmul.f32 %v9101, %v10253
        %v10446 = vmul.f32 %v9102, %v10254
        %v10447 = vmul.f32 %v9103, %v10255
        %v10448 = vmul.f32 %v9104, %v10256
        %v10449 = vmul.f32 %v9105, %v10257
        %v10450 = vmul.f32 %v9106, %v10258
        %v10451 = vmul.f32 %v9107, %v10259
        %v10452 = vmul.f32 %v9108, %v10260
        %v10453 = vmul.f32 %v9109, %v10261
        %v10454 = vmul.f32 %v9110, %v10262
        %v10455 = vmul.f32 %v9111, %v10263
        %v10456 = vmul.f32 %v9112, %v10264
        %v10457 = vmul.f32 %v9113, %v10265
        %v10458 = vmul.f32 %v9114, %v10266
        %v10459 = vmul.f32 %v9115, %v10267
        %v10460 = vmul.f32 %v9116, %v10268
        %v10461 = vmul.f32 %v9117, %v10269
        %v10462 = vmul.f32 %v9118, %v10270
        %v10463 = vmul.f32 %v9119, %v10271
        %v10464 = vmul.f32 %v9120, %v10272
        %v10465 = vmul.f32 %v9121, %v10273
        %v10466 = vmul.f32 %v9122, %v10274
        %vm10467 = vcmask 523264
        %v10468 = vsel %vm10467, %v10275, 0.0
        %v10469 = vsel %vm10467, %v10276, 0.0
        %v10470 = vadd.f32 %v10468, %v10469
        %v10471 = vsel %vm10467, %v10277, 0.0
        %v10472 = vadd.f32 %v10470, %v10471
        %v10473 = vsel %vm10467, %v10278, 0.0
        %v10474 = vadd.f32 %v10472, %v10473
        %v10475 = vsel %vm10467, %v10279, 0.0
        %v10476 = vadd.f32 %v10474, %v10475
        %v10477 = vsel %vm10467, %v10280, 0.0
        %v10478 = vadd.f32 %v10476, %v10477
        %v10479 = vsel %vm10467, %v10281, 0.0
        %v10480 = vadd.f32 %v10478, %v10479
        %v10481 = vsel %vm10467, %v10282, 0.0
        %v10482 = vadd.f32 %v10480, %v10481
        %v10483 = vsel %vm10467, %v10283, 0.0
        %v10484 = vadd.f32 %v10482, %v10483
        %v10485 = vsel %vm10467, %v10284, 0.0
        %v10486 = vadd.f32 %v10484, %v10485
        %v10487 = vsel %vm10467, %v10285, 0.0
        %v10488 = vadd.f32 %v10486, %v10487
        %v10489 = vsel %vm10467, %v10286, 0.0
        %v10490 = vadd.f32 %v10488, %v10489
        %v10491 = vsel %vm10467, %v10287, 0.0
        %v10492 = vadd.f32 %v10490, %v10491
        %v10493 = vsel %vm10467, %v10288, 0.0
        %v10494 = vadd.f32 %v10492, %v10493
        %v10495 = vsel %vm10467, %v10289, 0.0
        %v10496 = vadd.f32 %v10494, %v10495
        %v10497 = vsel %vm10467, %v10290, 0.0
        %v10498 = vadd.f32 %v10496, %v10497
        %v10499 = vsel %vm10467, %v10291, 0.0
        %v10500 = vadd.f32 %v10498, %v10499
        %v10501 = vsel %vm10467, %v10292, 0.0
        %v10502 = vadd.f32 %v10500, %v10501
        %v10503 = vsel %vm10467, %v10293, 0.0
        %v10504 = vadd.f32 %v10502, %v10503
        %v10505 = vsel %vm10467, %v10294, 0.0
        %v10506 = vadd.f32 %v10504, %v10505
        %v10507 = vsel %vm10467, %v10295, 0.0
        %v10508 = vadd.f32 %v10506, %v10507
        %v10509 = vsel %vm10467, %v10296, 0.0
        %v10510 = vadd.f32 %v10508, %v10509
        %v10511 = vsel %vm10467, %v10297, 0.0
        %v10512 = vadd.f32 %v10510, %v10511
        %v10513 = vsel %vm10467, %v10298, 0.0
        %v10514 = vadd.f32 %v10512, %v10513
        %v10515 = vsel %vm10467, %v10299, 0.0
        %v10516 = vadd.f32 %v10514, %v10515
        %v10517 = vsel %vm10467, %v10300, 0.0
        %v10518 = vadd.f32 %v10516, %v10517
        %v10519 = vsel %vm10467, %v10301, 0.0
        %v10520 = vadd.f32 %v10518, %v10519
        %v10521 = vsel %vm10467, %v10302, 0.0
        %v10522 = vadd.f32 %v10520, %v10521
        %v10523 = vsel %vm10467, %v10303, 0.0
        %v10524 = vadd.f32 %v10522, %v10523
        %v10525 = vsel %vm10467, %v10304, 0.0
        %v10526 = vadd.f32 %v10524, %v10525
        %v10527 = vsel %vm10467, %v10305, 0.0
        %v10528 = vadd.f32 %v10526, %v10527
        %v10529 = vsel %vm10467, %v10306, 0.0
        %v10530 = vadd.f32 %v10528, %v10529
        %v10531 = vsel %vm10467, %v10307, 0.0
        %v10532 = vadd.f32 %v10530, %v10531
        %v10533 = vsel %vm10467, %v10308, 0.0
        %v10534 = vadd.f32 %v10532, %v10533
        %v10535 = vsel %vm10467, %v10309, 0.0
        %v10536 = vadd.f32 %v10534, %v10535
        %v10537 = vsel %vm10467, %v10310, 0.0
        %v10538 = vadd.f32 %v10536, %v10537
        %v10539 = vsel %vm10467, %v10311, 0.0
        %v10540 = vadd.f32 %v10538, %v10539
        %v10541 = vsel %vm10467, %v10312, 0.0
        %v10542 = vadd.f32 %v10540, %v10541
        %v10543 = vsel %vm10467, %v10313, 0.0
        %v10544 = vadd.f32 %v10542, %v10543
        %v10545 = vsel %vm10467, %v10314, 0.0
        %v10546 = vadd.f32 %v10544, %v10545
        %v10547 = vsel %vm10467, %v10315, 0.0
        %v10548 = vadd.f32 %v10546, %v10547
        %v10549 = vsel %vm10467, %v10316, 0.0
        %v10550 = vadd.f32 %v10548, %v10549
        %v10551 = vsel %vm10467, %v10317, 0.0
        %v10552 = vadd.f32 %v10550, %v10551
        %v10553 = vsel %vm10467, %v10318, 0.0
        %v10554 = vadd.f32 %v10552, %v10553
        %v10555 = vsel %vm10467, %v10319, 0.0
        %v10556 = vadd.f32 %v10554, %v10555
        %v10557 = vsel %vm10467, %v10320, 0.0
        %v10558 = vadd.f32 %v10556, %v10557
        %v10559 = vsel %vm10467, %v10321, 0.0
        %v10560 = vadd.f32 %v10558, %v10559
        %v10561 = vsel %vm10467, %v10322, 0.0
        %v10562 = vadd.f32 %v10560, %v10561
        %v10563 = vsel %vm10467, %v10323, 0.0
        %v10564 = vadd.f32 %v10562, %v10563
        %v10565 = vsel %vm10467, %v10324, 0.0
        %v10566 = vadd.f32 %v10564, %v10565
        %v10567 = vsel %vm10467, %v10325, 0.0
        %v10568 = vadd.f32 %v10566, %v10567
        %v10569 = vsel %vm10467, %v10326, 0.0
        %v10570 = vadd.f32 %v10568, %v10569
        %v10571 = vsel %vm10467, %v10327, 0.0
        %v10572 = vadd.f32 %v10570, %v10571
        %v10573 = vsel %vm10467, %v10328, 0.0
        %v10574 = vadd.f32 %v10572, %v10573
        %v10575 = vsel %vm10467, %v10329, 0.0
        %v10576 = vadd.f32 %v10574, %v10575
        %v10577 = vsel %vm10467, %v10330, 0.0
        %v10578 = vadd.f32 %v10576, %v10577
        %v10579 = vsel %vm10467, %v10331, 0.0
        %v10580 = vadd.f32 %v10578, %v10579
        %v10581 = vsel %vm10467, %v10332, 0.0
        %v10582 = vadd.f32 %v10580, %v10581
        %v10583 = vsel %vm10467, %v10333, 0.0
        %v10584 = vadd.f32 %v10582, %v10583
        %v10585 = vsel %vm10467, %v10334, 0.0
        %v10586 = vadd.f32 %v10584, %v10585
        %v10587 = vsel %vm10467, %v10335, 0.0
        %v10588 = vadd.f32 %v10586, %v10587
        %v10589 = vsel %vm10467, %v10336, 0.0
        %v10590 = vadd.f32 %v10588, %v10589
        %v10591 = vsel %vm10467, %v10337, 0.0
        %v10592 = vadd.f32 %v10590, %v10591
        %v10593 = vsel %vm10467, %v10338, 0.0
        %v10594 = vadd.f32 %v10592, %v10593
        %v10595 = vsel %vm10467, %v10339, 0.0
        %v10596 = vadd.f32 %v10594, %v10595
        %v10597 = vsel %vm10467, %v10340, 0.0
        %v10598 = vadd.f32 %v10596, %v10597
        %v10599 = vsel %vm10467, %v10341, 0.0
        %v10600 = vadd.f32 %v10598, %v10599
        %v10601 = vsel %vm10467, %v10342, 0.0
        %v10602 = vadd.f32 %v10600, %v10601
        %v10603 = vsel %vm10467, %v10343, 0.0
        %v10604 = vadd.f32 %v10602, %v10603
        %v10605 = vsel %vm10467, %v10344, 0.0
        %v10606 = vadd.f32 %v10604, %v10605
        %v10607 = vsel %vm10467, %v10345, 0.0
        %v10608 = vadd.f32 %v10606, %v10607
        %v10609 = vsel %vm10467, %v10346, 0.0
        %v10610 = vadd.f32 %v10608, %v10609
        %v10611 = vsel %vm10467, %v10347, 0.0
        %v10612 = vadd.f32 %v10610, %v10611
        %v10613 = vsel %vm10467, %v10348, 0.0
        %v10614 = vadd.f32 %v10612, %v10613
        %v10615 = vsel %vm10467, %v10349, 0.0
        %v10616 = vadd.f32 %v10614, %v10615
        %v10617 = vsel %vm10467, %v10350, 0.0
        %v10618 = vadd.f32 %v10616, %v10617
        %v10619 = vsel %vm10467, %v10351, 0.0
        %v10620 = vadd.f32 %v10618, %v10619
        %v10621 = vsel %vm10467, %v10352, 0.0
        %v10622 = vadd.f32 %v10620, %v10621
        %v10623 = vsel %vm10467, %v10353, 0.0
        %v10624 = vadd.f32 %v10622, %v10623
        %v10625 = vsel %vm10467, %v10354, 0.0
        %v10626 = vadd.f32 %v10624, %v10625
        %v10627 = vsel %vm10467, %v10355, 0.0
        %v10628 = vadd.f32 %v10626, %v10627
        %v10629 = vsel %vm10467, %v10356, 0.0
        %v10630 = vadd.f32 %v10628, %v10629
        %v10631 = vsel %vm10467, %v10357, 0.0
        %v10632 = vadd.f32 %v10630, %v10631
        %v10633 = vsel %vm10467, %v10358, 0.0
        %v10634 = vadd.f32 %v10632, %v10633
        %v10635 = vsel %vm10467, %v10359, 0.0
        %v10636 = vadd.f32 %v10634, %v10635
        %v10637 = vsel %vm10467, %v10360, 0.0
        %v10638 = vadd.f32 %v10636, %v10637
        %v10639 = vsel %vm10467, %v10361, 0.0
        %v10640 = vadd.f32 %v10638, %v10639
        %v10641 = vsel %vm10467, %v10362, 0.0
        %v10642 = vadd.f32 %v10640, %v10641
        %v10643 = vsel %vm10467, %v10363, 0.0
        %v10644 = vadd.f32 %v10642, %v10643
        %v10645 = vsel %vm10467, %v10364, 0.0
        %v10646 = vadd.f32 %v10644, %v10645
        %v10647 = vsel %vm10467, %v10365, 0.0
        %v10648 = vadd.f32 %v10646, %v10647
        %v10649 = vsel %vm10467, %v10366, 0.0
        %v10650 = vadd.f32 %v10648, %v10649
        %v10651 = vsel %vm10467, %v10367, 0.0
        %v10652 = vadd.f32 %v10650, %v10651
        %v10653 = vsel %vm10467, %v10368, 0.0
        %v10654 = vadd.f32 %v10652, %v10653
        %v10655 = vsel %vm10467, %v10369, 0.0
        %v10656 = vadd.f32 %v10654, %v10655
        %v10657 = vsel %vm10467, %v10370, 0.0
        %v10658 = vadd.f32 %v10656, %v10657
        %v10659 = vsel %vm10467, %v10371, 0.0
        %v10660 = vadd.f32 %v10658, %v10659
        %v10661 = vsel %vm10467, %v10372, 0.0
        %v10662 = vadd.f32 %v10660, %v10661
        %v10663 = vsel %vm10467, %v10373, 0.0
        %v10664 = vadd.f32 %v10662, %v10663
        %v10665 = vsel %vm10467, %v10374, 0.0
        %v10666 = vadd.f32 %v10664, %v10665
        %v10667 = vsel %vm10467, %v10375, 0.0
        %v10668 = vadd.f32 %v10666, %v10667
        %v10669 = vsel %vm10467, %v10376, 0.0
        %v10670 = vadd.f32 %v10668, %v10669
        %v10671 = vsel %vm10467, %v10377, 0.0
        %v10672 = vadd.f32 %v10670, %v10671
        %v10673 = vsel %vm10467, %v10378, 0.0
        %v10674 = vadd.f32 %v10672, %v10673
        %v10675 = vsel %vm10467, %v10379, 0.0
        %v10676 = vadd.f32 %v10674, %v10675
        %v10677 = vsel %vm10467, %v10380, 0.0
        %v10678 = vadd.f32 %v10676, %v10677
        %v10679 = vsel %vm10467, %v10381, 0.0
        %v10680 = vadd.f32 %v10678, %v10679
        %v10681 = vsel %vm10467, %v10382, 0.0
        %v10682 = vadd.f32 %v10680, %v10681
        %v10683 = vsel %vm10467, %v10383, 0.0
        %v10684 = vadd.f32 %v10682, %v10683
        %v10685 = vsel %vm10467, %v10384, 0.0
        %v10686 = vadd.f32 %v10684, %v10685
        %v10687 = vsel %vm10467, %v10385, 0.0
        %v10688 = vadd.f32 %v10686, %v10687
        %v10689 = vsel %vm10467, %v10386, 0.0
        %v10690 = vadd.f32 %v10688, %v10689
        %v10691 = vsel %vm10467, %v10387, 0.0
        %v10692 = vadd.f32 %v10690, %v10691
        %v10693 = vsel %vm10467, %v10388, 0.0
        %v10694 = vadd.f32 %v10692, %v10693
        %v10695 = vsel %vm10467, %v10389, 0.0
        %v10696 = vadd.f32 %v10694, %v10695
        %v10697 = vsel %vm10467, %v10390, 0.0
        %v10698 = vadd.f32 %v10696, %v10697
        %v10699 = vsel %vm10467, %v10391, 0.0
        %v10700 = vadd.f32 %v10698, %v10699
        %v10701 = vsel %vm10467, %v10392, 0.0
        %v10702 = vadd.f32 %v10700, %v10701
        %v10703 = vsel %vm10467, %v10393, 0.0
        %v10704 = vadd.f32 %v10702, %v10703
        %v10705 = vsel %vm10467, %v10394, 0.0
        %v10706 = vadd.f32 %v10704, %v10705
        %v10707 = vsel %vm10467, %v10395, 0.0
        %v10708 = vadd.f32 %v10706, %v10707
        %v10709 = vsel %vm10467, %v10396, 0.0
        %v10710 = vadd.f32 %v10708, %v10709
        %v10711 = vsel %vm10467, %v10397, 0.0
        %v10712 = vadd.f32 %v10710, %v10711
        %v10713 = vsel %vm10467, %v10398, 0.0
        %v10714 = vadd.f32 %v10712, %v10713
        %v10715 = vsel %vm10467, %v10399, 0.0
        %v10716 = vadd.f32 %v10714, %v10715
        %v10717 = vsel %vm10467, %v10400, 0.0
        %v10718 = vadd.f32 %v10716, %v10717
        %v10719 = vsel %vm10467, %v10401, 0.0
        %v10720 = vadd.f32 %v10718, %v10719
        %v10721 = vsel %vm10467, %v10402, 0.0
        %v10722 = vadd.f32 %v10720, %v10721
        %v10723 = vsel %vm10467, %v10403, 0.0
        %v10724 = vadd.f32 %v10722, %v10723
        %v10725 = vsel %vm10467, %v10404, 0.0
        %v10726 = vadd.f32 %v10724, %v10725
        %v10727 = vsel %vm10467, %v10405, 0.0
        %v10728 = vadd.f32 %v10726, %v10727
        %v10729 = vsel %vm10467, %v10406, 0.0
        %v10730 = vadd.f32 %v10728, %v10729
        %v10731 = vsel %vm10467, %v10407, 0.0
        %v10732 = vadd.f32 %v10730, %v10731
        %v10733 = vsel %vm10467, %v10408, 0.0
        %v10734 = vadd.f32 %v10732, %v10733
        %v10735 = vsel %vm10467, %v10409, 0.0
        %v10736 = vadd.f32 %v10734, %v10735
        %v10737 = vsel %vm10467, %v10410, 0.0
        %v10738 = vadd.f32 %v10736, %v10737
        %v10739 = vsel %vm10467, %v10411, 0.0
        %v10740 = vadd.f32 %v10738, %v10739
        %v10741 = vsel %vm10467, %v10412, 0.0
        %v10742 = vadd.f32 %v10740, %v10741
        %v10743 = vsel %vm10467, %v10413, 0.0
        %v10744 = vadd.f32 %v10742, %v10743
        %v10745 = vsel %vm10467, %v10414, 0.0
        %v10746 = vadd.f32 %v10744, %v10745
        %v10747 = vsel %vm10467, %v10415, 0.0
        %v10748 = vadd.f32 %v10746, %v10747
        %v10749 = vsel %vm10467, %v10416, 0.0
        %v10750 = vadd.f32 %v10748, %v10749
        %v10751 = vsel %vm10467, %v10417, 0.0
        %v10752 = vadd.f32 %v10750, %v10751
        %v10753 = vsel %vm10467, %v10418, 0.0
        %v10754 = vadd.f32 %v10752, %v10753
        %v10755 = vsel %vm10467, %v10419, 0.0
        %v10756 = vadd.f32 %v10754, %v10755
        %v10757 = vsel %vm10467, %v10420, 0.0
        %v10758 = vadd.f32 %v10756, %v10757
        %v10759 = vsel %vm10467, %v10421, 0.0
        %v10760 = vadd.f32 %v10758, %v10759
        %v10761 = vsel %vm10467, %v10422, 0.0
        %v10762 = vadd.f32 %v10760, %v10761
        %v10763 = vsel %vm10467, %v10423, 0.0
        %v10764 = vadd.f32 %v10762, %v10763
        %v10765 = vsel %vm10467, %v10424, 0.0
        %v10766 = vadd.f32 %v10764, %v10765
        %v10767 = vsel %vm10467, %v10425, 0.0
        %v10768 = vadd.f32 %v10766, %v10767
        %v10769 = vsel %vm10467, %v10426, 0.0
        %v10770 = vadd.f32 %v10768, %v10769
        %v10771 = vsel %vm10467, %v10427, 0.0
        %v10772 = vadd.f32 %v10770, %v10771
        %v10773 = vsel %vm10467, %v10428, 0.0
        %v10774 = vadd.f32 %v10772, %v10773
        %v10775 = vsel %vm10467, %v10429, 0.0
        %v10776 = vadd.f32 %v10774, %v10775
        %v10777 = vsel %vm10467, %v10430, 0.0
        %v10778 = vadd.f32 %v10776, %v10777
        %v10779 = vsel %vm10467, %v10431, 0.0
        %v10780 = vadd.f32 %v10778, %v10779
        %v10781 = vsel %vm10467, %v10432, 0.0
        %v10782 = vadd.f32 %v10780, %v10781
        %v10783 = vsel %vm10467, %v10433, 0.0
        %v10784 = vadd.f32 %v10782, %v10783
        %v10785 = vsel %vm10467, %v10434, 0.0
        %v10786 = vadd.f32 %v10784, %v10785
        %v10787 = vsel %vm10467, %v10435, 0.0
        %v10788 = vadd.f32 %v10786, %v10787
        %v10789 = vsel %vm10467, %v10436, 0.0
        %v10790 = vadd.f32 %v10788, %v10789
        %v10791 = vsel %vm10467, %v10437, 0.0
        %v10792 = vadd.f32 %v10790, %v10791
        %v10793 = vsel %vm10467, %v10438, 0.0
        %v10794 = vadd.f32 %v10792, %v10793
        %v10795 = vsel %vm10467, %v10439, 0.0
        %v10796 = vadd.f32 %v10794, %v10795
        %v10797 = vsel %vm10467, %v10440, 0.0
        %v10798 = vadd.f32 %v10796, %v10797
        %v10799 = vsel %vm10467, %v10441, 0.0
        %v10800 = vadd.f32 %v10798, %v10799
        %v10801 = vsel %vm10467, %v10442, 0.0
        %v10802 = vadd.f32 %v10800, %v10801
        %v10803 = vsel %vm10467, %v10443, 0.0
        %v10804 = vadd.f32 %v10802, %v10803
        %v10805 = vsel %vm10467, %v10444, 0.0
        %v10806 = vadd.f32 %v10804, %v10805
        %v10807 = vsel %vm10467, %v10445, 0.0
        %v10808 = vadd.f32 %v10806, %v10807
        %v10809 = vsel %vm10467, %v10446, 0.0
        %v10810 = vadd.f32 %v10808, %v10809
        %v10811 = vsel %vm10467, %v10447, 0.0
        %v10812 = vadd.f32 %v10810, %v10811
        %v10813 = vsel %vm10467, %v10448, 0.0
        %v10814 = vadd.f32 %v10812, %v10813
        %v10815 = vsel %vm10467, %v10449, 0.0
        %v10816 = vadd.f32 %v10814, %v10815
        %v10817 = vsel %vm10467, %v10450, 0.0
        %v10818 = vadd.f32 %v10816, %v10817
        %v10819 = vsel %vm10467, %v10451, 0.0
        %v10820 = vadd.f32 %v10818, %v10819
        %v10821 = vsel %vm10467, %v10452, 0.0
        %v10822 = vadd.f32 %v10820, %v10821
        %v10823 = vsel %vm10467, %v10453, 0.0
        %v10824 = vadd.f32 %v10822, %v10823
        %v10825 = vsel %vm10467, %v10454, 0.0
        %v10826 = vadd.f32 %v10824, %v10825
        %v10827 = vsel %vm10467, %v10455, 0.0
        %v10828 = vadd.f32 %v10826, %v10827
        %v10829 = vsel %vm10467, %v10456, 0.0
        %v10830 = vadd.f32 %v10828, %v10829
        %v10831 = vsel %vm10467, %v10457, 0.0
        %v10832 = vadd.f32 %v10830, %v10831
        %v10833 = vsel %vm10467, %v10458, 0.0
        %v10834 = vadd.f32 %v10832, %v10833
        %v10835 = vsel %vm10467, %v10459, 0.0
        %v10836 = vadd.f32 %v10834, %v10835
        %v10837 = vsel %vm10467, %v10460, 0.0
        %v10838 = vadd.f32 %v10836, %v10837
        %v10839 = vsel %vm10467, %v10461, 0.0
        %v10840 = vadd.f32 %v10838, %v10839
        %v10841 = vsel %vm10467, %v10462, 0.0
        %v10842 = vadd.f32 %v10840, %v10841
        %v10843 = vsel %vm10467, %v10463, 0.0
        %v10844 = vadd.f32 %v10842, %v10843
        %v10845 = vsel %vm10467, %v10464, 0.0
        %v10846 = vadd.f32 %v10844, %v10845
        %v10847 = vsel %vm10467, %v10465, 0.0
        %v10848 = vadd.f32 %v10846, %v10847
        %v10849 = vsel %vm10467, %v10466, 0.0
        %v10850 = vadd.f32 %v10848, %v10849
        %v10851 = vrot.slane %v10850, 4
        %v10852 = vadd.f32 %v10850, %v10851
        %v10853 = vrot.slane %v10852, 2
        %v10854 = vadd.f32 %v10852, %v10853
        %v10855 = vrot.slane %v10854, 1
        %v10856 = vadd.f32 %v10854, %v10855
        %v10857 = vsub.f32 0.0, %v10856
        %vm10858 = vcmask 516096
        %10859 = vst.msk [vmem:[%s136] sm:$0x1] %vm10858, %v10857
        %s10860 = sand.u32 %s71, 1
        %s10861 = scalar_lea.sflag [#allocation3], %s10860
        %s10862 = sand.u32 %s71, 1
        %s10863 = scalar_lea.vmem [#allocation2], %s10862
        // Predicated region
        $region29: #{tpu_custom_call.1} parent=27 // pred_check
          %p10864 = pneg %p81
        $region30: #{tpu_custom_call.1} parent=27 // pred_check_branch
          %10866 = sbr.rel (%p10864) target = $region32
        $region31: #{tpu_custom_call.1} parent=27 // pred_region
          %s10868 = ssub.s32 16, 16
          %10869 = vsyncadd %s10861, %s10868
          %s10870 = smul.addr %s16, 16
          %s10871 = scalar_lea.hbm %s2, %s10870
          %s10873 = sshll.u32 %s10863, 4
          %s10874 = int_to_ptr.vmem [resolvable:$true] %s10873
          %10876 = dma.vmem_to_hbm [thread:$0]  %s10874, 16, %s10871, %s10861
        $region32: #{tpu_custom_call.1} parent=27 // pred_fallthru
          _
      $region28: #{tpu_custom_call.1} parent=5 // pred_fallthru
        _
      %p10877 = scmp.le.s32.totalorder 2, %s11
      // Predicated region
      $region33: #{tpu_custom_call.1} parent=5 // pred_check
        %p10878 = pneg %p10877
      $region34: #{tpu_custom_call.1} parent=5 // pred_check_branch
        %10880 = sbr.rel (%p10878) target = $region36
      $region35: #{tpu_custom_call.1} parent=5 // pred_region
        %s10881 = ssub.s32 %s11, 2
        // Predicated region
        $region37: #{tpu_custom_call.1} parent=35 // pred_check
          %p10882 = pneg %p87
        $region38: #{tpu_custom_call.1} parent=35 // pred_check_branch
          %10884 = sbr.rel (%p10882) target = $region40
        $region39: #{tpu_custom_call.1} parent=35 // pred_region
          %s10885 = sand.u32 %s72, 1
          %s10886 = scalar_lea.sflag [#allocation3], %s10885
          %s10887 = sand.u32 %s72, 1
          %s10888 = scalar_lea.vmem [#allocation2], %s10887
          %10889 = dma.done %s10886, 16
        $region40: #{tpu_custom_call.1} parent=35 // pred_fallthru
          _
      $region36: #{tpu_custom_call.1} parent=5 // pred_fallthru
        _
    $region6: #{tpu_custom_call.1} parent=1 // loop_footer
      %s15 = sadd.s32 1, %s11
    $region7: #{tpu_custom_call.1} parent=1 // loop_footer_branch
      %10 = sbr.rel target = $region3
    $region8: #{tpu_custom_call.1} parent=1 // loop_exit
      _
    %10890 = vsyncpa [#allocation3], 1
    %s10891 = scalar_lea.sflag [#allocation3], 1
    %10892 = vsyncpa %s10891, 1

</llo_original>
